<compile_context>
chip_gen: v5e
topology: v5e:2x2
jax: 0.10.0
libtpu: 0.0.40
codegen_flags: <defaults>
</compile_context>

<pallas_src>
import functools

import jax
import jax.numpy as jnp
from jax.experimental import pallas as pl
from jax.experimental.pallas import tpu as pltpu

# Static geometry implied by BasicCNN with a 32x32 RGB input
# (required so that the flatten hits 5*5*32 = 800).
H0, W0, C0 = 32, 32, 3                 # input
KH = KW = 5                            # conv kernel
C1 = 16                                # conv1 out channels
H1, W1 = H0 - KH + 1, W0 - KW + 1      # 28, 28
H1P, W1P = H1 // 2, W1 // 2            # 14, 14
C2 = 32                                # conv2 out channels
H2, W2 = H1P - KH + 1, W1P - KW + 1    # 10, 10
H2P, W2P = H2 // 2, W2 // 2            # 5, 5
NFC1, NFC2 = 120, 84

_BF16 = jnp.bfloat16
_F32 = jnp.float32


# ---------------------------------------------------------------------------
# Fused forward-pass kernel (all activations stay in vregs/VMEM)
# ---------------------------------------------------------------------------
def _basic_cnn_kernel(x_ref, w1b_ref, b1_ref, hs1_ref, ws1_ref,
                      w2b_ref, b2_ref, hs2_ref, ws2_ref,
                      wfc1_ref, bfc1_ref, wfc2_ref, bfc2_ref,
                      wfc3_ref, bfc3_ref, out_ref, *, batch):
    for b in range(batch):
        # ---- conv1 + bias + relu: (32, 96) -> (28, 448)  [(w, c) in lanes] ----
        acc1 = jnp.zeros((H1, W1 * C1), _F32)
        for di in range(KH):
            lhs = x_ref[b, pl.ds(di, H1), :].astype(_BF16)            # (28, 96)
            acc1 = acc1 + jnp.dot(lhs, w1b_ref[di],
                                  preferred_element_type=_F32)        # (28, 448)
        y1 = jnp.maximum(acc1 + b1_ref[...], 0.0)

        # ---- 2x2 max-pool: row-pair max then col(=16-lane block)-pair max ----
        y1b = y1.astype(_BF16)
        hm1 = jnp.maximum(
            jnp.dot(hs1_ref[0], y1b, preferred_element_type=_F32),
            jnp.dot(hs1_ref[1], y1b, preferred_element_type=_F32))    # (14, 448)
        hm1b = hm1.astype(_BF16)
        p1 = jnp.maximum(
            jnp.dot(hm1b, ws1_ref[0], preferred_element_type=_F32),
            jnp.dot(hm1b, ws1_ref[1], preferred_element_type=_F32))   # (14, 224)

        # ---- conv2 + bias + relu: (14, 224) -> (10, 320) ----------------------
        acc2 = jnp.zeros((H2, W2 * C2), _F32)
        for di in range(KH):
            lhs = p1[di:di + H2, :].astype(_BF16)                     # (10, 224)
            acc2 = acc2 + jnp.dot(lhs, w2b_ref[di],
                                  preferred_element_type=_F32)        # (10, 320)
        y2 = jnp.maximum(acc2 + b2_ref[...], 0.0)

        # ---- 2x2 max-pool -> (5, 160)  [(w, c) in lanes, c minor] -------------
        y2b = y2.astype(_BF16)
        hm2 = jnp.maximum(
            jnp.dot(hs2_ref[0], y2b, preferred_element_type=_F32),
            jnp.dot(hs2_ref[1], y2b, preferred_element_type=_F32))    # (5, 320)
        hm2b = hm2.astype(_BF16)
        p2 = jnp.maximum(
            jnp.dot(hm2b, ws2_ref[0], preferred_element_type=_F32),
            jnp.dot(hm2b, ws2_ref[1], preferred_element_type=_F32))   # (5, 160)

        # ---- fc1 (NCHW flatten folded into the re-laid weight) + relu ---------
        accf = jnp.zeros((1, NFC1), _F32)
        for h in range(H2P):
            row = p2[h:h + 1, :].astype(_BF16)                        # (1, 160)
            accf = accf + jnp.dot(row, wfc1_ref[h],
                                  preferred_element_type=_F32)        # (1, 120)
        h1 = jnp.maximum(accf + bfc1_ref[...], 0.0)
        # TODO(synk): dropout1/dropout2 are identity in eval mode; training-mode dropout omitted.
        h2 = jnp.maximum(
            jnp.dot(h1.astype(_BF16), wfc2_ref[...],
                    preferred_element_type=_F32) + bfc2_ref[...], 0.0)
        logits = (jnp.dot(h2.astype(_BF16), wfc3_ref[...],
                          preferred_element_type=_F32) + bfc3_ref[...])
        out_ref[pl.ds(b, 1), :] = logits.astype(out_ref.dtype)


# ---------------------------------------------------------------------------
# One-time parameter packing (banded conv weights, pool selectors, fc re-layout)
# ---------------------------------------------------------------------------
def _banded_conv_weight(w, w_out, dtype):
    """w: (kh, kw, cin, cout) -> (kh, (w_out+kw-1)*cin, w_out*cout) banded mats so
    y[i, j*cout+co] = sum_di (x[i+di, :] @ band[di])[j*cout+co] is a 'valid'
    cross-correlation on (H, W*C) slabs with channels minor in the lanes."""
    kh, kw, cin, cout = w.shape
    w_in = w_out + kw - 1
    wi = jnp.arange(w_in)[:, None]
    jo = jnp.arange(w_out)[None, :]
    bands = []
    for di in range(kh):
        acc = jnp.zeros((w_in, cin, w_out, cout), jnp.float32)
        for dj in range(kw):
            shift = (wi == jo + dj).astype(jnp.float32)               # (w_in, w_out)
            acc = acc + jnp.einsum("wj,io->wijo", shift,
                                   w[di, dj].astype(jnp.float32))
        bands.append(acc.reshape(w_in * cin, w_out * cout))
    return jnp.stack(bands).astype(dtype)


def _pool_row_select(h_out, dtype):
    r = jnp.arange(h_out)[:, None]
    h = jnp.arange(2 * h_out)[None, :]
    even = (h == 2 * r).astype(jnp.float32)
    odd = (h == 2 * r + 1).astype(jnp.float32)
    return jnp.stack([even, odd]).astype(dtype)            # (2, h_out, 2*h_out)


def _pool_col_select(w_out, c, dtype):
    w = jnp.arange(2 * w_out)[:, None]
    j = jnp.arange(w_out)[None, :]
    even = (w == 2 * j).astype(jnp.float32)
    odd = (w == 2 * j + 1).astype(jnp.float32)
    eye = jnp.eye(c, dtype=jnp.float32)
    return jnp.stack([jnp.kron(even, eye),
                      jnp.kron(odd, eye)]).astype(dtype)   # (2, 2*w_out*c, w_out*c)


def pack_params(p, dtype=jnp.bfloat16):
    kp = {}
    kp["w1b"] = _banded_conv_weight(p["conv1_w"], W1, dtype)           # (5, 96, 448)
    kp["b1t"] = jnp.tile(p["conv1_b"], W1).reshape(1, W1 * C1).astype(_F32)
    kp["hs1"] = _pool_row_select(H1P, dtype)                           # (2, 14, 28)
    kp["ws1"] = _pool_col_select(W1P, C1, dtype)                       # (2, 448, 224)
    kp["w2b"] = _banded_conv_weight(p["conv2_w"], W2, dtype)           # (5, 224, 320)
    kp["b2t"] = jnp.tile(p["conv2_b"], W2).reshape(1, W2 * C2).astype(_F32)
    kp["hs2"] = _pool_row_select(H2P, dtype)                           # (2, 5, 10)
    kp["ws2"] = _pool_col_select(W2P, C2, dtype)                       # (2, 320, 160)
    # fc1 rows are in torch (c, h, w) flatten order -> re-lay to (h, w*C2+c, out)
    kp["wfc1"] = (p["fc1_w"].reshape(C2, H2P, W2P, NFC1)
                  .transpose(1, 2, 0, 3)
                  .reshape(H2P, W2P * C2, NFC1).astype(dtype))         # (5, 160, 120)
    kp["bfc1"] = p["fc1_b"].reshape(1, NFC1).astype(_F32)
    kp["wfc2"] = p["fc2_w"].astype(dtype)
    kp["bfc2"] = p["fc2_b"].reshape(1, NFC2).astype(_F32)
    kp["wfc3"] = p["fc3_w"].astype(dtype)
    kp["bfc3"] = p["fc3_b"].reshape(1, -1).astype(_F32)
    return kp


# ---------------------------------------------------------------------------
# Deterministic parameter init (shapes from BasicCNN.__init__)
# ---------------------------------------------------------------------------
def _uniform(key, shape, fan_in):
    bound = 1.0 / jnp.sqrt(jnp.float32(fan_in))
    return jax.random.uniform(key, shape, jnp.float32, -bound, bound)


def init_params(key, n_feature):
    """Canonical params: conv weights (kh, kw, cin, cout); fc weights (in, out);
    fc1 rows in torch's NCHW-flatten order (c*25 + h*5 + w).
    (If loading real torch weights: conv (cout,cin,kh,kw) -> transpose(2,3,1,0);
    linear (out,in) -> transpose.)"""
    ks = jax.random.split(key, 10)
    p = {}
    p["conv1_w"] = _uniform(ks[0], (KH, KW, C0, C1), C0 * KH * KW)
    p["conv1_b"] = _uniform(ks[1], (C1,), C0 * KH * KW)
    p["conv2_w"] = _uniform(ks[2], (KH, KW, C1, C2), C1 * KH * KW)
    p["conv2_b"] = _uniform(ks[3], (C2,), C1 * KH * KW)
    p["fc1_w"] = _uniform(ks[4], (H2P * W2P * C2, NFC1), H2P * W2P * C2)
    p["fc1_b"] = _uniform(ks[5], (NFC1,), H2P * W2P * C2)
    p["fc2_w"] = _uniform(ks[6], (NFC1, NFC2), NFC1)
    p["fc2_b"] = _uniform(ks[7], (NFC2,), NFC1)
    p["fc3_w"] = _uniform(ks[8], (NFC2, n_feature), NFC2)
    p["fc3_b"] = _uniform(ks[9], (n_feature,), NFC2)
    return p


# ---------------------------------------------------------------------------
# Forward pass: one fused pallas_call
# ---------------------------------------------------------------------------
def _full_spec(shape):
    rank = len(shape)

    def index_map(i):
        return (0,) * rank

    return pl.BlockSpec(shape, index_map)


def basic_cnn_forward(kp, x_nchw):
    batch = x_nchw.shape[0]
    n_out = kp["bfc3"].shape[-1]
    # NCHW -> (B, H, W*C) with channels minor (one tiny XLA transpose + reshape).
    x2d = jnp.transpose(x_nchw, (0, 2, 3, 1)).astype(_F32).reshape(batch, H0, W0 * C0)

    operands = (x2d, kp["w1b"], kp["b1t"], kp["hs1"], kp["ws1"],
                kp["w2b"], kp["b2t"], kp["hs2"], kp["ws2"],
                kp["wfc1"], kp["bfc1"], kp["wfc2"], kp["bfc2"],
                kp["wfc3"], kp["bfc3"])

    flops = batch * 2 * (KH * H1 * (W0 * C0) * (W1 * C1)            # conv1 banded
                         + 2 * H1P * H1 * (W1 * C1)                 # pool1 rows
                         + 2 * H1P * (W1 * C1) * (W1P * C1)         # pool1 cols
                         + KH * H2 * (W1P * C1) * (W2 * C2)         # conv2 banded
                         + 2 * H2P * H2 * (W2 * C2)                 # pool2 rows
                         + 2 * H2P * (W2 * C2) * (W2P * C2)         # pool2 cols
                         + H2P * W2P * C2 * NFC1 + NFC1 * NFC2 + NFC2 * n_out)
    bytes_accessed = (sum(op.size * op.dtype.itemsize for op in operands)
                      + batch * n_out * 4)

    return pl.pallas_call(
        functools.partial(_basic_cnn_kernel, batch=batch),
        out_shape=jax.ShapeDtypeStruct((batch, n_out), jnp.float32),
        grid=(1,),
        in_specs=[_full_spec(op.shape) for op in operands],
        out_specs=pl.BlockSpec((batch, n_out), lambda i: (0, 0)),
        compiler_params=pltpu.CompilerParams(
            dimension_semantics=("arbitrary",),
            vmem_limit_bytes=32 * 1024 * 1024),
        cost_estimate=pl.CostEstimate(flops=int(flops), transcendentals=0,
                                      bytes_accessed=int(bytes_accessed)),
    )(*operands)


if __name__ == "__main__":
    n_feature = 10
    key = jax.random.PRNGKey(0)
    k_param, k_x = jax.random.split(key)

    params = init_params(k_param, n_feature)
    kparams = pack_params(params)          # one-time packing, outside the hot path

    # Input must be (B, 3, 32, 32) so the flatten hits 5*5*32 = 800.
    x = jax.random.normal(k_x, (2, 3, 32, 32), dtype=jnp.float32)

    fwd = jax.jit(basic_cnn_forward)
    out = jax.block_until_ready(fwd(kparams, x))
    assert out.shape == (2, n_feature), out.shape
    print("KERNEL_OK")
</pallas_src>

<mosaic_0001>
module attributes {stable_mosaic.version = 11 : i64} {
  func.func @_basic_cnn_kernel(%arg0: i32, %arg1: memref<2x32x96xf32, #tpu.memory_space<vmem>>, %arg2: memref<5x96x448xbf16, #tpu.memory_space<vmem>>, %arg3: memref<1x448xf32, #tpu.memory_space<vmem>>, %arg4: memref<2x14x28xbf16, #tpu.memory_space<vmem>>, %arg5: memref<2x448x224xbf16, #tpu.memory_space<vmem>>, %arg6: memref<5x224x320xbf16, #tpu.memory_space<vmem>>, %arg7: memref<1x320xf32, #tpu.memory_space<vmem>>, %arg8: memref<2x5x10xbf16, #tpu.memory_space<vmem>>, %arg9: memref<2x320x160xbf16, #tpu.memory_space<vmem>>, %arg10: memref<5x160x120xbf16, #tpu.memory_space<vmem>>, %arg11: memref<1x120xf32, #tpu.memory_space<vmem>>, %arg12: memref<120x84xbf16, #tpu.memory_space<vmem>>, %arg13: memref<1x84xf32, #tpu.memory_space<vmem>>, %arg14: memref<84x10xbf16, #tpu.memory_space<vmem>>, %arg15: memref<1x10xf32, #tpu.memory_space<vmem>>, %arg16: memref<2x10xf32, #tpu.memory_space<vmem>>) attributes {dimension_semantics = [#tpu.dimension_semantics<arbitrary>], iteration_bounds = array<i64: 1>, scalar_prefetch = 0 : i64, scratch_operands = 0 : i64, tpu.core_type = #tpu.core_type<tc>, window_params = [{pipeline_mode = #tpu.pipeline_mode<synchronous>, transform_indices = @transform_0, window_bounds = array<i64: 2, 32, 96>}, {pipeline_mode = #tpu.pipeline_mode<synchronous>, transform_indices = @transform_1, window_bounds = array<i64: 5, 96, 448>}, {pipeline_mode = #tpu.pipeline_mode<synchronous>, transform_indices = @transform_2, window_bounds = array<i64: 1, 448>}, {pipeline_mode = #tpu.pipeline_mode<synchronous>, transform_indices = @transform_3, window_bounds = array<i64: 2, 14, 28>}, {pipeline_mode = #tpu.pipeline_mode<synchronous>, transform_indices = @transform_4, window_bounds = array<i64: 2, 448, 224>}, {pipeline_mode = #tpu.pipeline_mode<synchronous>, transform_indices = @transform_5, window_bounds = array<i64: 5, 224, 320>}, {pipeline_mode = #tpu.pipeline_mode<synchronous>, transform_indices = @transform_6, window_bounds = array<i64: 1, 320>}, {pipeline_mode = #tpu.pipeline_mode<synchronous>, transform_indices = @transform_7, window_bounds = array<i64: 2, 5, 10>}, {pipeline_mode = #tpu.pipeline_mode<synchronous>, transform_indices = @transform_8, window_bounds = array<i64: 2, 320, 160>}, {pipeline_mode = #tpu.pipeline_mode<synchronous>, transform_indices = @transform_9, window_bounds = array<i64: 5, 160, 120>}, {pipeline_mode = #tpu.pipeline_mode<synchronous>, transform_indices = @transform_10, window_bounds = array<i64: 1, 120>}, {pipeline_mode = #tpu.pipeline_mode<synchronous>, transform_indices = @transform_11, window_bounds = array<i64: 120, 84>}, {pipeline_mode = #tpu.pipeline_mode<synchronous>, transform_indices = @transform_12, window_bounds = array<i64: 1, 84>}, {pipeline_mode = #tpu.pipeline_mode<synchronous>, transform_indices = @transform_13, window_bounds = array<i64: 84, 10>}, {pipeline_mode = #tpu.pipeline_mode<synchronous>, transform_indices = @transform_14, window_bounds = array<i64: 1, 10>}, {pipeline_mode = #tpu.pipeline_mode<synchronous>, transform_indices = @transform_15, window_bounds = array<i64: 2, 10>}]} {
    %cst = arith.constant 0.000000e+00 : f32
    %0 = vector.broadcast %cst : f32 to vector<28x448xf32>
    %c0 = arith.constant 0 : index
    %c0_0 = arith.constant 0 : index
    %c0_1 = arith.constant 0 : index
    %1 = vector.load %arg1[%c0, %c0_0, %c0_1] : memref<2x32x96xf32, #tpu.memory_space<vmem>>, vector<1x28x96xf32>
    %2 = vector.shape_cast %1 : vector<1x28x96xf32> to vector<28x96xf32>
    %3 = arith.truncf %2 : vector<28x96xf32> to vector<28x96xbf16>
    %c0_2 = arith.constant 0 : index
    %c0_3 = arith.constant 0 : index
    %c0_4 = arith.constant 0 : index
    %4 = vector.load %arg2[%c0_2, %c0_3, %c0_4] : memref<5x96x448xbf16, #tpu.memory_space<vmem>>, vector<1x96x448xbf16>
    %5 = vector.shape_cast %4 : vector<1x96x448xbf16> to vector<96x448xbf16>
    %cst_5 = arith.constant dense<0.000000e+00> : vector<28x448xf32>
    %6 = tpu.matmul %3, %5, %cst_5 {dimension_numbers = #tpu.dot_dimension_numbers<[1], [0], [0], [1], [0, 0, 1, 1], [], []>} : vector<28x96xbf16>, vector<96x448xbf16>, vector<28x448xf32> -> vector<28x448xf32>
    %7 = arith.addf %0, %6 : vector<28x448xf32>
    %c0_6 = arith.constant 0 : index
    %c1 = arith.constant 1 : index
    %c0_7 = arith.constant 0 : index
    %8 = vector.load %arg1[%c0_6, %c1, %c0_7] : memref<2x32x96xf32, #tpu.memory_space<vmem>>, vector<1x28x96xf32>
    %9 = vector.shape_cast %8 : vector<1x28x96xf32> to vector<28x96xf32>
    %10 = arith.truncf %9 : vector<28x96xf32> to vector<28x96xbf16>
    %c1_8 = arith.constant 1 : index
    %c0_9 = arith.constant 0 : index
    %c0_10 = arith.constant 0 : index
    %11 = vector.load %arg2[%c1_8, %c0_9, %c0_10] : memref<5x96x448xbf16, #tpu.memory_space<vmem>>, vector<1x96x448xbf16>
    %12 = vector.shape_cast %11 : vector<1x96x448xbf16> to vector<96x448xbf16>
    %cst_11 = arith.constant dense<0.000000e+00> : vector<28x448xf32>
    %13 = tpu.matmul %10, %12, %cst_11 {dimension_numbers = #tpu.dot_dimension_numbers<[1], [0], [0], [1], [0, 0, 1, 1], [], []>} : vector<28x96xbf16>, vector<96x448xbf16>, vector<28x448xf32> -> vector<28x448xf32>
    %14 = arith.addf %7, %13 : vector<28x448xf32>
    %c0_12 = arith.constant 0 : index
    %c2 = arith.constant 2 : index
    %c0_13 = arith.constant 0 : index
    %15 = vector.load %arg1[%c0_12, %c2, %c0_13] : memref<2x32x96xf32, #tpu.memory_space<vmem>>, vector<1x28x96xf32>
    %16 = vector.shape_cast %15 : vector<1x28x96xf32> to vector<28x96xf32>
    %17 = arith.truncf %16 : vector<28x96xf32> to vector<28x96xbf16>
    %c2_14 = arith.constant 2 : index
    %c0_15 = arith.constant 0 : index
    %c0_16 = arith.constant 0 : index
    %18 = vector.load %arg2[%c2_14, %c0_15, %c0_16] : memref<5x96x448xbf16, #tpu.memory_space<vmem>>, vector<1x96x448xbf16>
    %19 = vector.shape_cast %18 : vector<1x96x448xbf16> to vector<96x448xbf16>
    %cst_17 = arith.constant dense<0.000000e+00> : vector<28x448xf32>
    %20 = tpu.matmul %17, %19, %cst_17 {dimension_numbers = #tpu.dot_dimension_numbers<[1], [0], [0], [1], [0, 0, 1, 1], [], []>} : vector<28x96xbf16>, vector<96x448xbf16>, vector<28x448xf32> -> vector<28x448xf32>
    %21 = arith.addf %14, %20 : vector<28x448xf32>
    %c0_18 = arith.constant 0 : index
    %c3 = arith.constant 3 : index
    %c0_19 = arith.constant 0 : index
    %22 = vector.load %arg1[%c0_18, %c3, %c0_19] : memref<2x32x96xf32, #tpu.memory_space<vmem>>, vector<1x28x96xf32>
    %23 = vector.shape_cast %22 : vector<1x28x96xf32> to vector<28x96xf32>
    %24 = arith.truncf %23 : vector<28x96xf32> to vector<28x96xbf16>
    %c3_20 = arith.constant 3 : index
    %c0_21 = arith.constant 0 : index
    %c0_22 = arith.constant 0 : index
    %25 = vector.load %arg2[%c3_20, %c0_21, %c0_22] : memref<5x96x448xbf16, #tpu.memory_space<vmem>>, vector<1x96x448xbf16>
    %26 = vector.shape_cast %25 : vector<1x96x448xbf16> to vector<96x448xbf16>
    %cst_23 = arith.constant dense<0.000000e+00> : vector<28x448xf32>
    %27 = tpu.matmul %24, %26, %cst_23 {dimension_numbers = #tpu.dot_dimension_numbers<[1], [0], [0], [1], [0, 0, 1, 1], [], []>} : vector<28x96xbf16>, vector<96x448xbf16>, vector<28x448xf32> -> vector<28x448xf32>
    %28 = arith.addf %21, %27 : vector<28x448xf32>
    %c0_24 = arith.constant 0 : index
    %c4 = arith.constant 4 : index
    %c0_25 = arith.constant 0 : index
    %29 = vector.load %arg1[%c0_24, %c4, %c0_25] : memref<2x32x96xf32, #tpu.memory_space<vmem>>, vector<1x28x96xf32>
    %30 = vector.shape_cast %29 : vector<1x28x96xf32> to vector<28x96xf32>
    %31 = arith.truncf %30 : vector<28x96xf32> to vector<28x96xbf16>
    %c4_26 = arith.constant 4 : index
    %c0_27 = arith.constant 0 : index
    %c0_28 = arith.constant 0 : index
    %32 = vector.load %arg2[%c4_26, %c0_27, %c0_28] : memref<5x96x448xbf16, #tpu.memory_space<vmem>>, vector<1x96x448xbf16>
    %33 = vector.shape_cast %32 : vector<1x96x448xbf16> to vector<96x448xbf16>
    %cst_29 = arith.constant dense<0.000000e+00> : vector<28x448xf32>
    %34 = tpu.matmul %31, %33, %cst_29 {dimension_numbers = #tpu.dot_dimension_numbers<[1], [0], [0], [1], [0, 0, 1, 1], [], []>} : vector<28x96xbf16>, vector<96x448xbf16>, vector<28x448xf32> -> vector<28x448xf32>
    %35 = arith.addf %28, %34 : vector<28x448xf32>
    %c0_30 = arith.constant 0 : index
    %c0_31 = arith.constant 0 : index
    %36 = vector.load %arg3[%c0_30, %c0_31] : memref<1x448xf32, #tpu.memory_space<vmem>>, vector<1x448xf32>
    %37 = vector.broadcast %36 : vector<1x448xf32> to vector<28x448xf32>
    %38 = arith.addf %35, %37 : vector<28x448xf32>
    %cst_32 = arith.constant 0.000000e+00 : f32
    %39 = vector.broadcast %cst_32 : f32 to vector<28x448xf32>
    %40 = arith.maximumf %38, %39 : vector<28x448xf32>
    %41 = arith.truncf %40 : vector<28x448xf32> to vector<28x448xbf16>
    %c0_33 = arith.constant 0 : index
    %c0_34 = arith.constant 0 : index
    %c0_35 = arith.constant 0 : index
    %42 = vector.load %arg4[%c0_33, %c0_34, %c0_35] : memref<2x14x28xbf16, #tpu.memory_space<vmem>>, vector<1x14x28xbf16>
    %43 = vector.shape_cast %42 : vector<1x14x28xbf16> to vector<14x28xbf16>
    %cst_36 = arith.constant dense<0.000000e+00> : vector<14x448xf32>
    %44 = tpu.matmul %43, %41, %cst_36 {dimension_numbers = #tpu.dot_dimension_numbers<[1], [0], [0], [1], [0, 0, 1, 1], [], []>} : vector<14x28xbf16>, vector<28x448xbf16>, vector<14x448xf32> -> vector<14x448xf32>
    %c1_37 = arith.constant 1 : index
    %c0_38 = arith.constant 0 : index
    %c0_39 = arith.constant 0 : index
    %45 = vector.load %arg4[%c1_37, %c0_38, %c0_39] : memref<2x14x28xbf16, #tpu.memory_space<vmem>>, vector<1x14x28xbf16>
    %46 = vector.shape_cast %45 : vector<1x14x28xbf16> to vector<14x28xbf16>
    %cst_40 = arith.constant dense<0.000000e+00> : vector<14x448xf32>
    %47 = tpu.matmul %46, %41, %cst_40 {dimension_numbers = #tpu.dot_dimension_numbers<[1], [0], [0], [1], [0, 0, 1, 1], [], []>} : vector<14x28xbf16>, vector<28x448xbf16>, vector<14x448xf32> -> vector<14x448xf32>
    %48 = arith.maximumf %44, %47 : vector<14x448xf32>
    %49 = arith.truncf %48 : vector<14x448xf32> to vector<14x448xbf16>
    %c0_41 = arith.constant 0 : index
    %c0_42 = arith.constant 0 : index
    %c0_43 = arith.constant 0 : index
    %50 = vector.load %arg5[%c0_41, %c0_42, %c0_43] : memref<2x448x224xbf16, #tpu.memory_space<vmem>>, vector<1x448x224xbf16>
    %51 = vector.shape_cast %50 : vector<1x448x224xbf16> to vector<448x224xbf16>
    %cst_44 = arith.constant dense<0.000000e+00> : vector<14x224xf32>
    %52 = tpu.matmul %49, %51, %cst_44 {dimension_numbers = #tpu.dot_dimension_numbers<[1], [0], [0], [1], [0, 0, 1, 1], [], []>} : vector<14x448xbf16>, vector<448x224xbf16>, vector<14x224xf32> -> vector<14x224xf32>
    %c1_45 = arith.constant 1 : index
    %c0_46 = arith.constant 0 : index
    %c0_47 = arith.constant 0 : index
    %53 = vector.load %arg5[%c1_45, %c0_46, %c0_47] : memref<2x448x224xbf16, #tpu.memory_space<vmem>>, vector<1x448x224xbf16>
    %54 = vector.shape_cast %53 : vector<1x448x224xbf16> to vector<448x224xbf16>
    %cst_48 = arith.constant dense<0.000000e+00> : vector<14x224xf32>
    %55 = tpu.matmul %49, %54, %cst_48 {dimension_numbers = #tpu.dot_dimension_numbers<[1], [0], [0], [1], [0, 0, 1, 1], [], []>} : vector<14x448xbf16>, vector<448x224xbf16>, vector<14x224xf32> -> vector<14x224xf32>
    %56 = arith.maximumf %52, %55 : vector<14x224xf32>
    %cst_49 = arith.constant 0.000000e+00 : f32
    %57 = vector.broadcast %cst_49 : f32 to vector<10x320xf32>
    %58 = vector.extract_strided_slice %56 {offsets = [0, 0], sizes = [10, 224], strides = [1, 1]} : vector<14x224xf32> to vector<10x224xf32>
    %59 = arith.truncf %58 : vector<10x224xf32> to vector<10x224xbf16>
    %c0_50 = arith.constant 0 : index
    %c0_51 = arith.constant 0 : index
    %c0_52 = arith.constant 0 : index
    %60 = vector.load %arg6[%c0_50, %c0_51, %c0_52] : memref<5x224x320xbf16, #tpu.memory_space<vmem>>, vector<1x224x320xbf16>
    %61 = vector.shape_cast %60 : vector<1x224x320xbf16> to vector<224x320xbf16>
    %cst_53 = arith.constant dense<0.000000e+00> : vector<10x320xf32>
    %62 = tpu.matmul %59, %61, %cst_53 {dimension_numbers = #tpu.dot_dimension_numbers<[1], [0], [0], [1], [0, 0, 1, 1], [], []>} : vector<10x224xbf16>, vector<224x320xbf16>, vector<10x320xf32> -> vector<10x320xf32>
    %63 = arith.addf %57, %62 : vector<10x320xf32>
    %64 = vector.extract_strided_slice %56 {offsets = [1, 0], sizes = [10, 224], strides = [1, 1]} : vector<14x224xf32> to vector<10x224xf32>
    %65 = arith.truncf %64 : vector<10x224xf32> to vector<10x224xbf16>
    %c1_54 = arith.constant 1 : index
    %c0_55 = arith.constant 0 : index
    %c0_56 = arith.constant 0 : index
    %66 = vector.load %arg6[%c1_54, %c0_55, %c0_56] : memref<5x224x320xbf16, #tpu.memory_space<vmem>>, vector<1x224x320xbf16>
    %67 = vector.shape_cast %66 : vector<1x224x320xbf16> to vector<224x320xbf16>
    %cst_57 = arith.constant dense<0.000000e+00> : vector<10x320xf32>
    %68 = tpu.matmul %65, %67, %cst_57 {dimension_numbers = #tpu.dot_dimension_numbers<[1], [0], [0], [1], [0, 0, 1, 1], [], []>} : vector<10x224xbf16>, vector<224x320xbf16>, vector<10x320xf32> -> vector<10x320xf32>
    %69 = arith.addf %63, %68 : vector<10x320xf32>
    %70 = vector.extract_strided_slice %56 {offsets = [2, 0], sizes = [10, 224], strides = [1, 1]} : vector<14x224xf32> to vector<10x224xf32>
    %71 = arith.truncf %70 : vector<10x224xf32> to vector<10x224xbf16>
    %c2_58 = arith.constant 2 : index
    %c0_59 = arith.constant 0 : index
    %c0_60 = arith.constant 0 : index
    %72 = vector.load %arg6[%c2_58, %c0_59, %c0_60] : memref<5x224x320xbf16, #tpu.memory_space<vmem>>, vector<1x224x320xbf16>
    %73 = vector.shape_cast %72 : vector<1x224x320xbf16> to vector<224x320xbf16>
    %cst_61 = arith.constant dense<0.000000e+00> : vector<10x320xf32>
    %74 = tpu.matmul %71, %73, %cst_61 {dimension_numbers = #tpu.dot_dimension_numbers<[1], [0], [0], [1], [0, 0, 1, 1], [], []>} : vector<10x224xbf16>, vector<224x320xbf16>, vector<10x320xf32> -> vector<10x320xf32>
    %75 = arith.addf %69, %74 : vector<10x320xf32>
    %76 = vector.extract_strided_slice %56 {offsets = [3, 0], sizes = [10, 224], strides = [1, 1]} : vector<14x224xf32> to vector<10x224xf32>
    %77 = arith.truncf %76 : vector<10x224xf32> to vector<10x224xbf16>
    %c3_62 = arith.constant 3 : index
    %c0_63 = arith.constant 0 : index
    %c0_64 = arith.constant 0 : index
    %78 = vector.load %arg6[%c3_62, %c0_63, %c0_64] : memref<5x224x320xbf16, #tpu.memory_space<vmem>>, vector<1x224x320xbf16>
    %79 = vector.shape_cast %78 : vector<1x224x320xbf16> to vector<224x320xbf16>
    %cst_65 = arith.constant dense<0.000000e+00> : vector<10x320xf32>
    %80 = tpu.matmul %77, %79, %cst_65 {dimension_numbers = #tpu.dot_dimension_numbers<[1], [0], [0], [1], [0, 0, 1, 1], [], []>} : vector<10x224xbf16>, vector<224x320xbf16>, vector<10x320xf32> -> vector<10x320xf32>
    %81 = arith.addf %75, %80 : vector<10x320xf32>
    %82 = vector.extract_strided_slice %56 {offsets = [4, 0], sizes = [10, 224], strides = [1, 1]} : vector<14x224xf32> to vector<10x224xf32>
    %83 = arith.truncf %82 : vector<10x224xf32> to vector<10x224xbf16>
    %c4_66 = arith.constant 4 : index
    %c0_67 = arith.constant 0 : index
    %c0_68 = arith.constant 0 : index
    %84 = vector.load %arg6[%c4_66, %c0_67, %c0_68] : memref<5x224x320xbf16, #tpu.memory_space<vmem>>, vector<1x224x320xbf16>
    %85 = vector.shape_cast %84 : vector<1x224x320xbf16> to vector<224x320xbf16>
    %cst_69 = arith.constant dense<0.000000e+00> : vector<10x320xf32>
    %86 = tpu.matmul %83, %85, %cst_69 {dimension_numbers = #tpu.dot_dimension_numbers<[1], [0], [0], [1], [0, 0, 1, 1], [], []>} : vector<10x224xbf16>, vector<224x320xbf16>, vector<10x320xf32> -> vector<10x320xf32>
    %87 = arith.addf %81, %86 : vector<10x320xf32>
    %c0_70 = arith.constant 0 : index
    %c0_71 = arith.constant 0 : index
    %88 = vector.load %arg7[%c0_70, %c0_71] : memref<1x320xf32, #tpu.memory_space<vmem>>, vector<1x320xf32>
    %89 = vector.broadcast %88 : vector<1x320xf32> to vector<10x320xf32>
    %90 = arith.addf %87, %89 : vector<10x320xf32>
    %cst_72 = arith.constant 0.000000e+00 : f32
    %91 = vector.broadcast %cst_72 : f32 to vector<10x320xf32>
    %92 = arith.maximumf %90, %91 : vector<10x320xf32>
    %93 = arith.truncf %92 : vector<10x320xf32> to vector<10x320xbf16>
    %c0_73 = arith.constant 0 : index
    %c0_74 = arith.constant 0 : index
    %c0_75 = arith.constant 0 : index
    %94 = vector.load %arg8[%c0_73, %c0_74, %c0_75] : memref<2x5x10xbf16, #tpu.memory_space<vmem>>, vector<1x5x10xbf16>
    %95 = vector.shape_cast %94 : vector<1x5x10xbf16> to vector<5x10xbf16>
    %cst_76 = arith.constant dense<0.000000e+00> : vector<5x320xf32>
    %96 = tpu.matmul %95, %93, %cst_76 {dimension_numbers = #tpu.dot_dimension_numbers<[1], [0], [0], [1], [0, 0, 1, 1], [], []>} : vector<5x10xbf16>, vector<10x320xbf16>, vector<5x320xf32> -> vector<5x320xf32>
    %c1_77 = arith.constant 1 : index
    %c0_78 = arith.constant 0 : index
    %c0_79 = arith.constant 0 : index
    %97 = vector.load %arg8[%c1_77, %c0_78, %c0_79] : memref<2x5x10xbf16, #tpu.memory_space<vmem>>, vector<1x5x10xbf16>
    %98 = vector.shape_cast %97 : vector<1x5x10xbf16> to vector<5x10xbf16>
    %cst_80 = arith.constant dense<0.000000e+00> : vector<5x320xf32>
    %99 = tpu.matmul %98, %93, %cst_80 {dimension_numbers = #tpu.dot_dimension_numbers<[1], [0], [0], [1], [0, 0, 1, 1], [], []>} : vector<5x10xbf16>, vector<10x320xbf16>, vector<5x320xf32> -> vector<5x320xf32>
    %100 = arith.maximumf %96, %99 : vector<5x320xf32>
    %101 = arith.truncf %100 : vector<5x320xf32> to vector<5x320xbf16>
    %c0_81 = arith.constant 0 : index
    %c0_82 = arith.constant 0 : index
    %c0_83 = arith.constant 0 : index
    %102 = vector.load %arg9[%c0_81, %c0_82, %c0_83] : memref<2x320x160xbf16, #tpu.memory_space<vmem>>, vector<1x320x160xbf16>
    %103 = vector.shape_cast %102 : vector<1x320x160xbf16> to vector<320x160xbf16>
    %cst_84 = arith.constant dense<0.000000e+00> : vector<5x160xf32>
    %104 = tpu.matmul %101, %103, %cst_84 {dimension_numbers = #tpu.dot_dimension_numbers<[1], [0], [0], [1], [0, 0, 1, 1], [], []>} : vector<5x320xbf16>, vector<320x160xbf16>, vector<5x160xf32> -> vector<5x160xf32>
    %c1_85 = arith.constant 1 : index
    %c0_86 = arith.constant 0 : index
    %c0_87 = arith.constant 0 : index
    %105 = vector.load %arg9[%c1_85, %c0_86, %c0_87] : memref<2x320x160xbf16, #tpu.memory_space<vmem>>, vector<1x320x160xbf16>
    %106 = vector.shape_cast %105 : vector<1x320x160xbf16> to vector<320x160xbf16>
    %cst_88 = arith.constant dense<0.000000e+00> : vector<5x160xf32>
    %107 = tpu.matmul %101, %106, %cst_88 {dimension_numbers = #tpu.dot_dimension_numbers<[1], [0], [0], [1], [0, 0, 1, 1], [], []>} : vector<5x320xbf16>, vector<320x160xbf16>, vector<5x160xf32> -> vector<5x160xf32>
    %108 = arith.maximumf %104, %107 : vector<5x160xf32>
    %cst_89 = arith.constant 0.000000e+00 : f32
    %109 = vector.broadcast %cst_89 : f32 to vector<1x120xf32>
    %110 = vector.extract_strided_slice %108 {offsets = [0, 0], sizes = [1, 160], strides = [1, 1]} : vector<5x160xf32> to vector<1x160xf32>
    %111 = arith.truncf %110 : vector<1x160xf32> to vector<1x160xbf16>
    %c0_90 = arith.constant 0 : index
    %c0_91 = arith.constant 0 : index
    %c0_92 = arith.constant 0 : index
    %112 = vector.load %arg10[%c0_90, %c0_91, %c0_92] : memref<5x160x120xbf16, #tpu.memory_space<vmem>>, vector<1x160x120xbf16>
    %113 = vector.shape_cast %112 : vector<1x160x120xbf16> to vector<160x120xbf16>
    %cst_93 = arith.constant dense<0.000000e+00> : vector<1x120xf32>
    %114 = tpu.matmul %111, %113, %cst_93 {dimension_numbers = #tpu.dot_dimension_numbers<[1], [0], [0], [1], [0, 0, 1, 1], [], []>} : vector<1x160xbf16>, vector<160x120xbf16>, vector<1x120xf32> -> vector<1x120xf32>
    %115 = arith.addf %109, %114 : vector<1x120xf32>
    %116 = vector.extract_strided_slice %108 {offsets = [1, 0], sizes = [1, 160], strides = [1, 1]} : vector<5x160xf32> to vector<1x160xf32>
    %117 = arith.truncf %116 : vector<1x160xf32> to vector<1x160xbf16>
    %c1_94 = arith.constant 1 : index
    %c0_95 = arith.constant 0 : index
    %c0_96 = arith.constant 0 : index
    %118 = vector.load %arg10[%c1_94, %c0_95, %c0_96] : memref<5x160x120xbf16, #tpu.memory_space<vmem>>, vector<1x160x120xbf16>
    %119 = vector.shape_cast %118 : vector<1x160x120xbf16> to vector<160x120xbf16>
    %cst_97 = arith.constant dense<0.000000e+00> : vector<1x120xf32>
    %120 = tpu.matmul %117, %119, %cst_97 {dimension_numbers = #tpu.dot_dimension_numbers<[1], [0], [0], [1], [0, 0, 1, 1], [], []>} : vector<1x160xbf16>, vector<160x120xbf16>, vector<1x120xf32> -> vector<1x120xf32>
    %121 = arith.addf %115, %120 : vector<1x120xf32>
    %122 = vector.extract_strided_slice %108 {offsets = [2, 0], sizes = [1, 160], strides = [1, 1]} : vector<5x160xf32> to vector<1x160xf32>
    %123 = arith.truncf %122 : vector<1x160xf32> to vector<1x160xbf16>
    %c2_98 = arith.constant 2 : index
    %c0_99 = arith.constant 0 : index
    %c0_100 = arith.constant 0 : index
    %124 = vector.load %arg10[%c2_98, %c0_99, %c0_100] : memref<5x160x120xbf16, #tpu.memory_space<vmem>>, vector<1x160x120xbf16>
    %125 = vector.shape_cast %124 : vector<1x160x120xbf16> to vector<160x120xbf16>
    %cst_101 = arith.constant dense<0.000000e+00> : vector<1x120xf32>
    %126 = tpu.matmul %123, %125, %cst_101 {dimension_numbers = #tpu.dot_dimension_numbers<[1], [0], [0], [1], [0, 0, 1, 1], [], []>} : vector<1x160xbf16>, vector<160x120xbf16>, vector<1x120xf32> -> vector<1x120xf32>
    %127 = arith.addf %121, %126 : vector<1x120xf32>
    %128 = vector.extract_strided_slice %108 {offsets = [3, 0], sizes = [1, 160], strides = [1, 1]} : vector<5x160xf32> to vector<1x160xf32>
    %129 = arith.truncf %128 : vector<1x160xf32> to vector<1x160xbf16>
    %c3_102 = arith.constant 3 : index
    %c0_103 = arith.constant 0 : index
    %c0_104 = arith.constant 0 : index
    %130 = vector.load %arg10[%c3_102, %c0_103, %c0_104] : memref<5x160x120xbf16, #tpu.memory_space<vmem>>, vector<1x160x120xbf16>
    %131 = vector.shape_cast %130 : vector<1x160x120xbf16> to vector<160x120xbf16>
    %cst_105 = arith.constant dense<0.000000e+00> : vector<1x120xf32>
    %132 = tpu.matmul %129, %131, %cst_105 {dimension_numbers = #tpu.dot_dimension_numbers<[1], [0], [0], [1], [0, 0, 1, 1], [], []>} : vector<1x160xbf16>, vector<160x120xbf16>, vector<1x120xf32> -> vector<1x120xf32>
    %133 = arith.addf %127, %132 : vector<1x120xf32>
    %134 = vector.extract_strided_slice %108 {offsets = [4, 0], sizes = [1, 160], strides = [1, 1]} : vector<5x160xf32> to vector<1x160xf32>
    %135 = arith.truncf %134 : vector<1x160xf32> to vector<1x160xbf16>
    %c4_106 = arith.constant 4 : index
    %c0_107 = arith.constant 0 : index
    %c0_108 = arith.constant 0 : index
    %136 = vector.load %arg10[%c4_106, %c0_107, %c0_108] : memref<5x160x120xbf16, #tpu.memory_space<vmem>>, vector<1x160x120xbf16>
    %137 = vector.shape_cast %136 : vector<1x160x120xbf16> to vector<160x120xbf16>
    %cst_109 = arith.constant dense<0.000000e+00> : vector<1x120xf32>
    %138 = tpu.matmul %135, %137, %cst_109 {dimension_numbers = #tpu.dot_dimension_numbers<[1], [0], [0], [1], [0, 0, 1, 1], [], []>} : vector<1x160xbf16>, vector<160x120xbf16>, vector<1x120xf32> -> vector<1x120xf32>
    %139 = arith.addf %133, %138 : vector<1x120xf32>
    %c0_110 = arith.constant 0 : index
    %c0_111 = arith.constant 0 : index
    %140 = vector.load %arg11[%c0_110, %c0_111] : memref<1x120xf32, #tpu.memory_space<vmem>>, vector<1x120xf32>
    %141 = arith.addf %139, %140 : vector<1x120xf32>
    %cst_112 = arith.constant 0.000000e+00 : f32
    %142 = vector.broadcast %cst_112 : f32 to vector<1x120xf32>
    %143 = arith.maximumf %141, %142 : vector<1x120xf32>
    %144 = arith.truncf %143 : vector<1x120xf32> to vector<1x120xbf16>
    %c0_113 = arith.constant 0 : index
    %c0_114 = arith.constant 0 : index
    %145 = vector.load %arg12[%c0_113, %c0_114] : memref<120x84xbf16, #tpu.memory_space<vmem>>, vector<120x84xbf16>
    %cst_115 = arith.constant dense<0.000000e+00> : vector<1x84xf32>
    %146 = tpu.matmul %144, %145, %cst_115 {dimension_numbers = #tpu.dot_dimension_numbers<[1], [0], [0], [1], [0, 0, 1, 1], [], []>} : vector<1x120xbf16>, vector<120x84xbf16>, vector<1x84xf32> -> vector<1x84xf32>
    %c0_116 = arith.constant 0 : index
    %c0_117 = arith.constant 0 : index
    %147 = vector.load %arg13[%c0_116, %c0_117] : memref<1x84xf32, #tpu.memory_space<vmem>>, vector<1x84xf32>
    %148 = arith.addf %146, %147 : vector<1x84xf32>
    %cst_118 = arith.constant 0.000000e+00 : f32
    %149 = vector.broadcast %cst_118 : f32 to vector<1x84xf32>
    %150 = arith.maximumf %148, %149 : vector<1x84xf32>
    %151 = arith.truncf %150 : vector<1x84xf32> to vector<1x84xbf16>
    %c0_119 = arith.constant 0 : index
    %c0_120 = arith.constant 0 : index
    %152 = vector.load %arg14[%c0_119, %c0_120] : memref<84x10xbf16, #tpu.memory_space<vmem>>, vector<84x10xbf16>
    %cst_121 = arith.constant dense<0.000000e+00> : vector<1x10xf32>
    %153 = tpu.matmul %151, %152, %cst_121 {dimension_numbers = #tpu.dot_dimension_numbers<[1], [0], [0], [1], [0, 0, 1, 1], [], []>} : vector<1x84xbf16>, vector<84x10xbf16>, vector<1x10xf32> -> vector<1x10xf32>
    %c0_122 = arith.constant 0 : index
    %c0_123 = arith.constant 0 : index
    %154 = vector.load %arg15[%c0_122, %c0_123] : memref<1x10xf32, #tpu.memory_space<vmem>>, vector<1x10xf32>
    %155 = arith.addf %153, %154 : vector<1x10xf32>
    %c0_124 = arith.constant 0 : index
    %c0_125 = arith.constant 0 : index
    %156 = vector.load %arg16[%c0_124, %c0_125] : memref<2x10xf32, #tpu.memory_space<vmem>>, vector<1x10xf32>
    tpu.vector_store %arg16[%c0_124, %c0_125], %155 {strides = array<i32>} : memref<2x10xf32, #tpu.memory_space<vmem>>, vector<1x10xf32>,
    %cst_126 = arith.constant 0.000000e+00 : f32
    %157 = vector.broadcast %cst_126 : f32 to vector<28x448xf32>
    %c1_127 = arith.constant 1 : index
    %c0_128 = arith.constant 0 : index
    %c0_129 = arith.constant 0 : index
    %158 = vector.load %arg1[%c1_127, %c0_128, %c0_129] : memref<2x32x96xf32, #tpu.memory_space<vmem>>, vector<1x28x96xf32>
    %159 = vector.shape_cast %158 : vector<1x28x96xf32> to vector<28x96xf32>
    %160 = arith.truncf %159 : vector<28x96xf32> to vector<28x96xbf16>
    %c0_130 = arith.constant 0 : index
    %c0_131 = arith.constant 0 : index
    %c0_132 = arith.constant 0 : index
    %161 = vector.load %arg2[%c0_130, %c0_131, %c0_132] : memref<5x96x448xbf16, #tpu.memory_space<vmem>>, vector<1x96x448xbf16>
    %162 = vector.shape_cast %161 : vector<1x96x448xbf16> to vector<96x448xbf16>
    %cst_133 = arith.constant dense<0.000000e+00> : vector<28x448xf32>
    %163 = tpu.matmul %160, %162, %cst_133 {dimension_numbers = #tpu.dot_dimension_numbers<[1], [0], [0], [1], [0, 0, 1, 1], [], []>} : vector<28x96xbf16>, vector<96x448xbf16>, vector<28x448xf32> -> vector<28x448xf32>
    %164 = arith.addf %157, %163 : vector<28x448xf32>
    %c1_134 = arith.constant 1 : index
    %c1_135 = arith.constant 1 : index
    %c0_136 = arith.constant 0 : index
    %165 = vector.load %arg1[%c1_134, %c1_135, %c0_136] : memref<2x32x96xf32, #tpu.memory_space<vmem>>, vector<1x28x96xf32>
    %166 = vector.shape_cast %165 : vector<1x28x96xf32> to vector<28x96xf32>
    %167 = arith.truncf %166 : vector<28x96xf32> to vector<28x96xbf16>
    %c1_137 = arith.constant 1 : index
    %c0_138 = arith.constant 0 : index
    %c0_139 = arith.constant 0 : index
    %168 = vector.load %arg2[%c1_137, %c0_138, %c0_139] : memref<5x96x448xbf16, #tpu.memory_space<vmem>>, vector<1x96x448xbf16>
    %169 = vector.shape_cast %168 : vector<1x96x448xbf16> to vector<96x448xbf16>
    %cst_140 = arith.constant dense<0.000000e+00> : vector<28x448xf32>
    %170 = tpu.matmul %167, %169, %cst_140 {dimension_numbers = #tpu.dot_dimension_numbers<[1], [0], [0], [1], [0, 0, 1, 1], [], []>} : vector<28x96xbf16>, vector<96x448xbf16>, vector<28x448xf32> -> vector<28x448xf32>
    %171 = arith.addf %164, %170 : vector<28x448xf32>
    %c1_141 = arith.constant 1 : index
    %c2_142 = arith.constant 2 : index
    %c0_143 = arith.constant 0 : index
    %172 = vector.load %arg1[%c1_141, %c2_142, %c0_143] : memref<2x32x96xf32, #tpu.memory_space<vmem>>, vector<1x28x96xf32>
    %173 = vector.shape_cast %172 : vector<1x28x96xf32> to vector<28x96xf32>
    %174 = arith.truncf %173 : vector<28x96xf32> to vector<28x96xbf16>
    %c2_144 = arith.constant 2 : index
    %c0_145 = arith.constant 0 : index
    %c0_146 = arith.constant 0 : index
    %175 = vector.load %arg2[%c2_144, %c0_145, %c0_146] : memref<5x96x448xbf16, #tpu.memory_space<vmem>>, vector<1x96x448xbf16>
    %176 = vector.shape_cast %175 : vector<1x96x448xbf16> to vector<96x448xbf16>
    %cst_147 = arith.constant dense<0.000000e+00> : vector<28x448xf32>
    %177 = tpu.matmul %174, %176, %cst_147 {dimension_numbers = #tpu.dot_dimension_numbers<[1], [0], [0], [1], [0, 0, 1, 1], [], []>} : vector<28x96xbf16>, vector<96x448xbf16>, vector<28x448xf32> -> vector<28x448xf32>
    %178 = arith.addf %171, %177 : vector<28x448xf32>
    %c1_148 = arith.constant 1 : index
    %c3_149 = arith.constant 3 : index
    %c0_150 = arith.constant 0 : index
    %179 = vector.load %arg1[%c1_148, %c3_149, %c0_150] : memref<2x32x96xf32, #tpu.memory_space<vmem>>, vector<1x28x96xf32>
    %180 = vector.shape_cast %179 : vector<1x28x96xf32> to vector<28x96xf32>
    %181 = arith.truncf %180 : vector<28x96xf32> to vector<28x96xbf16>
    %c3_151 = arith.constant 3 : index
    %c0_152 = arith.constant 0 : index
    %c0_153 = arith.constant 0 : index
    %182 = vector.load %arg2[%c3_151, %c0_152, %c0_153] : memref<5x96x448xbf16, #tpu.memory_space<vmem>>, vector<1x96x448xbf16>
    %183 = vector.shape_cast %182 : vector<1x96x448xbf16> to vector<96x448xbf16>
    %cst_154 = arith.constant dense<0.000000e+00> : vector<28x448xf32>
    %184 = tpu.matmul %181, %183, %cst_154 {dimension_numbers = #tpu.dot_dimension_numbers<[1], [0], [0], [1], [0, 0, 1, 1], [], []>} : vector<28x96xbf16>, vector<96x448xbf16>, vector<28x448xf32> -> vector<28x448xf32>
    %185 = arith.addf %178, %184 : vector<28x448xf32>
    %c1_155 = arith.constant 1 : index
    %c4_156 = arith.constant 4 : index
    %c0_157 = arith.constant 0 : index
    %186 = vector.load %arg1[%c1_155, %c4_156, %c0_157] : memref<2x32x96xf32, #tpu.memory_space<vmem>>, vector<1x28x96xf32>
    %187 = vector.shape_cast %186 : vector<1x28x96xf32> to vector<28x96xf32>
    %188 = arith.truncf %187 : vector<28x96xf32> to vector<28x96xbf16>
    %c4_158 = arith.constant 4 : index
    %c0_159 = arith.constant 0 : index
    %c0_160 = arith.constant 0 : index
    %189 = vector.load %arg2[%c4_158, %c0_159, %c0_160] : memref<5x96x448xbf16, #tpu.memory_space<vmem>>, vector<1x96x448xbf16>
    %190 = vector.shape_cast %189 : vector<1x96x448xbf16> to vector<96x448xbf16>
    %cst_161 = arith.constant dense<0.000000e+00> : vector<28x448xf32>
    %191 = tpu.matmul %188, %190, %cst_161 {dimension_numbers = #tpu.dot_dimension_numbers<[1], [0], [0], [1], [0, 0, 1, 1], [], []>} : vector<28x96xbf16>, vector<96x448xbf16>, vector<28x448xf32> -> vector<28x448xf32>
    %192 = arith.addf %185, %191 : vector<28x448xf32>
    %c0_162 = arith.constant 0 : index
    %c0_163 = arith.constant 0 : index
    %193 = vector.load %arg3[%c0_162, %c0_163] : memref<1x448xf32, #tpu.memory_space<vmem>>, vector<1x448xf32>
    %194 = vector.broadcast %193 : vector<1x448xf32> to vector<28x448xf32>
    %195 = arith.addf %192, %194 : vector<28x448xf32>
    %cst_164 = arith.constant 0.000000e+00 : f32
    %196 = vector.broadcast %cst_164 : f32 to vector<28x448xf32>
    %197 = arith.maximumf %195, %196 : vector<28x448xf32>
    %198 = arith.truncf %197 : vector<28x448xf32> to vector<28x448xbf16>
    %c0_165 = arith.constant 0 : index
    %c0_166 = arith.constant 0 : index
    %c0_167 = arith.constant 0 : index
    %199 = vector.load %arg4[%c0_165, %c0_166, %c0_167] : memref<2x14x28xbf16, #tpu.memory_space<vmem>>, vector<1x14x28xbf16>
    %200 = vector.shape_cast %199 : vector<1x14x28xbf16> to vector<14x28xbf16>
    %cst_168 = arith.constant dense<0.000000e+00> : vector<14x448xf32>
    %201 = tpu.matmul %200, %198, %cst_168 {dimension_numbers = #tpu.dot_dimension_numbers<[1], [0], [0], [1], [0, 0, 1, 1], [], []>} : vector<14x28xbf16>, vector<28x448xbf16>, vector<14x448xf32> -> vector<14x448xf32>
    %c1_169 = arith.constant 1 : index
    %c0_170 = arith.constant 0 : index
    %c0_171 = arith.constant 0 : index
    %202 = vector.load %arg4[%c1_169, %c0_170, %c0_171] : memref<2x14x28xbf16, #tpu.memory_space<vmem>>, vector<1x14x28xbf16>
    %203 = vector.shape_cast %202 : vector<1x14x28xbf16> to vector<14x28xbf16>
    %cst_172 = arith.constant dense<0.000000e+00> : vector<14x448xf32>
    %204 = tpu.matmul %203, %198, %cst_172 {dimension_numbers = #tpu.dot_dimension_numbers<[1], [0], [0], [1], [0, 0, 1, 1], [], []>} : vector<14x28xbf16>, vector<28x448xbf16>, vector<14x448xf32> -> vector<14x448xf32>
    %205 = arith.maximumf %201, %204 : vector<14x448xf32>
    %206 = arith.truncf %205 : vector<14x448xf32> to vector<14x448xbf16>
    %c0_173 = arith.constant 0 : index
    %c0_174 = arith.constant 0 : index
    %c0_175 = arith.constant 0 : index
    %207 = vector.load %arg5[%c0_173, %c0_174, %c0_175] : memref<2x448x224xbf16, #tpu.memory_space<vmem>>, vector<1x448x224xbf16>
    %208 = vector.shape_cast %207 : vector<1x448x224xbf16> to vector<448x224xbf16>
    %cst_176 = arith.constant dense<0.000000e+00> : vector<14x224xf32>
    %209 = tpu.matmul %206, %208, %cst_176 {dimension_numbers = #tpu.dot_dimension_numbers<[1], [0], [0], [1], [0, 0, 1, 1], [], []>} : vector<14x448xbf16>, vector<448x224xbf16>, vector<14x224xf32> -> vector<14x224xf32>
    %c1_177 = arith.constant 1 : index
    %c0_178 = arith.constant 0 : index
    %c0_179 = arith.constant 0 : index
    %210 = vector.load %arg5[%c1_177, %c0_178, %c0_179] : memref<2x448x224xbf16, #tpu.memory_space<vmem>>, vector<1x448x224xbf16>
    %211 = vector.shape_cast %210 : vector<1x448x224xbf16> to vector<448x224xbf16>
    %cst_180 = arith.constant dense<0.000000e+00> : vector<14x224xf32>
    %212 = tpu.matmul %206, %211, %cst_180 {dimension_numbers = #tpu.dot_dimension_numbers<[1], [0], [0], [1], [0, 0, 1, 1], [], []>} : vector<14x448xbf16>, vector<448x224xbf16>, vector<14x224xf32> -> vector<14x224xf32>
    %213 = arith.maximumf %209, %212 : vector<14x224xf32>
    %cst_181 = arith.constant 0.000000e+00 : f32
    %214 = vector.broadcast %cst_181 : f32 to vector<10x320xf32>
    %215 = vector.extract_strided_slice %213 {offsets = [0, 0], sizes = [10, 224], strides = [1, 1]} : vector<14x224xf32> to vector<10x224xf32>
    %216 = arith.truncf %215 : vector<10x224xf32> to vector<10x224xbf16>
    %c0_182 = arith.constant 0 : index
    %c0_183 = arith.constant 0 : index
    %c0_184 = arith.constant 0 : index
    %217 = vector.load %arg6[%c0_182, %c0_183, %c0_184] : memref<5x224x320xbf16, #tpu.memory_space<vmem>>, vector<1x224x320xbf16>
    %218 = vector.shape_cast %217 : vector<1x224x320xbf16> to vector<224x320xbf16>
    %cst_185 = arith.constant dense<0.000000e+00> : vector<10x320xf32>
    %219 = tpu.matmul %216, %218, %cst_185 {dimension_numbers = #tpu.dot_dimension_numbers<[1], [0], [0], [1], [0, 0, 1, 1], [], []>} : vector<10x224xbf16>, vector<224x320xbf16>, vector<10x320xf32> -> vector<10x320xf32>
    %220 = arith.addf %214, %219 : vector<10x320xf32>
    %221 = vector.extract_strided_slice %213 {offsets = [1, 0], sizes = [10, 224], strides = [1, 1]} : vector<14x224xf32> to vector<10x224xf32>
    %222 = arith.truncf %221 : vector<10x224xf32> to vector<10x224xbf16>
    %c1_186 = arith.constant 1 : index
    %c0_187 = arith.constant 0 : index
    %c0_188 = arith.constant 0 : index
    %223 = vector.load %arg6[%c1_186, %c0_187, %c0_188] : memref<5x224x320xbf16, #tpu.memory_space<vmem>>, vector<1x224x320xbf16>
    %224 = vector.shape_cast %223 : vector<1x224x320xbf16> to vector<224x320xbf16>
    %cst_189 = arith.constant dense<0.000000e+00> : vector<10x320xf32>
    %225 = tpu.matmul %222, %224, %cst_189 {dimension_numbers = #tpu.dot_dimension_numbers<[1], [0], [0], [1], [0, 0, 1, 1], [], []>} : vector<10x224xbf16>, vector<224x320xbf16>, vector<10x320xf32> -> vector<10x320xf32>
    %226 = arith.addf %220, %225 : vector<10x320xf32>
    %227 = vector.extract_strided_slice %213 {offsets = [2, 0], sizes = [10, 224], strides = [1, 1]} : vector<14x224xf32> to vector<10x224xf32>
    %228 = arith.truncf %227 : vector<10x224xf32> to vector<10x224xbf16>
    %c2_190 = arith.constant 2 : index
    %c0_191 = arith.constant 0 : index
    %c0_192 = arith.constant 0 : index
    %229 = vector.load %arg6[%c2_190, %c0_191, %c0_192] : memref<5x224x320xbf16, #tpu.memory_space<vmem>>, vector<1x224x320xbf16>
    %230 = vector.shape_cast %229 : vector<1x224x320xbf16> to vector<224x320xbf16>
    %cst_193 = arith.constant dense<0.000000e+00> : vector<10x320xf32>
    %231 = tpu.matmul %228, %230, %cst_193 {dimension_numbers = #tpu.dot_dimension_numbers<[1], [0], [0], [1], [0, 0, 1, 1], [], []>} : vector<10x224xbf16>, vector<224x320xbf16>, vector<10x320xf32> -> vector<10x320xf32>
    %232 = arith.addf %226, %231 : vector<10x320xf32>
    %233 = vector.extract_strided_slice %213 {offsets = [3, 0], sizes = [10, 224], strides = [1, 1]} : vector<14x224xf32> to vector<10x224xf32>
    %234 = arith.truncf %233 : vector<10x224xf32> to vector<10x224xbf16>
    %c3_194 = arith.constant 3 : index
    %c0_195 = arith.constant 0 : index
    %c0_196 = arith.constant 0 : index
    %235 = vector.load %arg6[%c3_194, %c0_195, %c0_196] : memref<5x224x320xbf16, #tpu.memory_space<vmem>>, vector<1x224x320xbf16>
    %236 = vector.shape_cast %235 : vector<1x224x320xbf16> to vector<224x320xbf16>
    %cst_197 = arith.constant dense<0.000000e+00> : vector<10x320xf32>
    %237 = tpu.matmul %234, %236, %cst_197 {dimension_numbers = #tpu.dot_dimension_numbers<[1], [0], [0], [1], [0, 0, 1, 1], [], []>} : vector<10x224xbf16>, vector<224x320xbf16>, vector<10x320xf32> -> vector<10x320xf32>
    %238 = arith.addf %232, %237 : vector<10x320xf32>
    %239 = vector.extract_strided_slice %213 {offsets = [4, 0], sizes = [10, 224], strides = [1, 1]} : vector<14x224xf32> to vector<10x224xf32>
    %240 = arith.truncf %239 : vector<10x224xf32> to vector<10x224xbf16>
    %c4_198 = arith.constant 4 : index
    %c0_199 = arith.constant 0 : index
    %c0_200 = arith.constant 0 : index
    %241 = vector.load %arg6[%c4_198, %c0_199, %c0_200] : memref<5x224x320xbf16, #tpu.memory_space<vmem>>, vector<1x224x320xbf16>
    %242 = vector.shape_cast %241 : vector<1x224x320xbf16> to vector<224x320xbf16>
    %cst_201 = arith.constant dense<0.000000e+00> : vector<10x320xf32>
    %243 = tpu.matmul %240, %242, %cst_201 {dimension_numbers = #tpu.dot_dimension_numbers<[1], [0], [0], [1], [0, 0, 1, 1], [], []>} : vector<10x224xbf16>, vector<224x320xbf16>, vector<10x320xf32> -> vector<10x320xf32>
    %244 = arith.addf %238, %243 : vector<10x320xf32>
    %c0_202 = arith.constant 0 : index
    %c0_203 = arith.constant 0 : index
    %245 = vector.load %arg7[%c0_202, %c0_203] : memref<1x320xf32, #tpu.memory_space<vmem>>, vector<1x320xf32>
    %246 = vector.broadcast %245 : vector<1x320xf32> to vector<10x320xf32>
    %247 = arith.addf %244, %246 : vector<10x320xf32>
    %cst_204 = arith.constant 0.000000e+00 : f32
    %248 = vector.broadcast %cst_204 : f32 to vector<10x320xf32>
    %249 = arith.maximumf %247, %248 : vector<10x320xf32>
    %250 = arith.truncf %249 : vector<10x320xf32> to vector<10x320xbf16>
    %c0_205 = arith.constant 0 : index
    %c0_206 = arith.constant 0 : index
    %c0_207 = arith.constant 0 : index
    %251 = vector.load %arg8[%c0_205, %c0_206, %c0_207] : memref<2x5x10xbf16, #tpu.memory_space<vmem>>, vector<1x5x10xbf16>
    %252 = vector.shape_cast %251 : vector<1x5x10xbf16> to vector<5x10xbf16>
    %cst_208 = arith.constant dense<0.000000e+00> : vector<5x320xf32>
    %253 = tpu.matmul %252, %250, %cst_208 {dimension_numbers = #tpu.dot_dimension_numbers<[1], [0], [0], [1], [0, 0, 1, 1], [], []>} : vector<5x10xbf16>, vector<10x320xbf16>, vector<5x320xf32> -> vector<5x320xf32>
    %c1_209 = arith.constant 1 : index
    %c0_210 = arith.constant 0 : index
    %c0_211 = arith.constant 0 : index
    %254 = vector.load %arg8[%c1_209, %c0_210, %c0_211] : memref<2x5x10xbf16, #tpu.memory_space<vmem>>, vector<1x5x10xbf16>
    %255 = vector.shape_cast %254 : vector<1x5x10xbf16> to vector<5x10xbf16>
    %cst_212 = arith.constant dense<0.000000e+00> : vector<5x320xf32>
    %256 = tpu.matmul %255, %250, %cst_212 {dimension_numbers = #tpu.dot_dimension_numbers<[1], [0], [0], [1], [0, 0, 1, 1], [], []>} : vector<5x10xbf16>, vector<10x320xbf16>, vector<5x320xf32> -> vector<5x320xf32>
    %257 = arith.maximumf %253, %256 : vector<5x320xf32>
    %258 = arith.truncf %257 : vector<5x320xf32> to vector<5x320xbf16>
    %c0_213 = arith.constant 0 : index
    %c0_214 = arith.constant 0 : index
    %c0_215 = arith.constant 0 : index
    %259 = vector.load %arg9[%c0_213, %c0_214, %c0_215] : memref<2x320x160xbf16, #tpu.memory_space<vmem>>, vector<1x320x160xbf16>
    %260 = vector.shape_cast %259 : vector<1x320x160xbf16> to vector<320x160xbf16>
    %cst_216 = arith.constant dense<0.000000e+00> : vector<5x160xf32>
    %261 = tpu.matmul %258, %260, %cst_216 {dimension_numbers = #tpu.dot_dimension_numbers<[1], [0], [0], [1], [0, 0, 1, 1], [], []>} : vector<5x320xbf16>, vector<320x160xbf16>, vector<5x160xf32> -> vector<5x160xf32>
    %c1_217 = arith.constant 1 : index
    %c0_218 = arith.constant 0 : index
    %c0_219 = arith.constant 0 : index
    %262 = vector.load %arg9[%c1_217, %c0_218, %c0_219] : memref<2x320x160xbf16, #tpu.memory_space<vmem>>, vector<1x320x160xbf16>
    %263 = vector.shape_cast %262 : vector<1x320x160xbf16> to vector<320x160xbf16>
    %cst_220 = arith.constant dense<0.000000e+00> : vector<5x160xf32>
    %264 = tpu.matmul %258, %263, %cst_220 {dimension_numbers = #tpu.dot_dimension_numbers<[1], [0], [0], [1], [0, 0, 1, 1], [], []>} : vector<5x320xbf16>, vector<320x160xbf16>, vector<5x160xf32> -> vector<5x160xf32>
    %265 = arith.maximumf %261, %264 : vector<5x160xf32>
    %cst_221 = arith.constant 0.000000e+00 : f32
    %266 = vector.broadcast %cst_221 : f32 to vector<1x120xf32>
    %267 = vector.extract_strided_slice %265 {offsets = [0, 0], sizes = [1, 160], strides = [1, 1]} : vector<5x160xf32> to vector<1x160xf32>
    %268 = arith.truncf %267 : vector<1x160xf32> to vector<1x160xbf16>
    %c0_222 = arith.constant 0 : index
    %c0_223 = arith.constant 0 : index
    %c0_224 = arith.constant 0 : index
    %269 = vector.load %arg10[%c0_222, %c0_223, %c0_224] : memref<5x160x120xbf16, #tpu.memory_space<vmem>>, vector<1x160x120xbf16>
    %270 = vector.shape_cast %269 : vector<1x160x120xbf16> to vector<160x120xbf16>
    %cst_225 = arith.constant dense<0.000000e+00> : vector<1x120xf32>
    %271 = tpu.matmul %268, %270, %cst_225 {dimension_numbers = #tpu.dot_dimension_numbers<[1], [0], [0], [1], [0, 0, 1, 1], [], []>} : vector<1x160xbf16>, vector<160x120xbf16>, vector<1x120xf32> -> vector<1x120xf32>
    %272 = arith.addf %266, %271 : vector<1x120xf32>
    %273 = vector.extract_strided_slice %265 {offsets = [1, 0], sizes = [1, 160], strides = [1, 1]} : vector<5x160xf32> to vector<1x160xf32>
    %274 = arith.truncf %273 : vector<1x160xf32> to vector<1x160xbf16>
    %c1_226 = arith.constant 1 : index
    %c0_227 = arith.constant 0 : index
    %c0_228 = arith.constant 0 : index
    %275 = vector.load %arg10[%c1_226, %c0_227, %c0_228] : memref<5x160x120xbf16, #tpu.memory_space<vmem>>, vector<1x160x120xbf16>
    %276 = vector.shape_cast %275 : vector<1x160x120xbf16> to vector<160x120xbf16>
    %cst_229 = arith.constant dense<0.000000e+00> : vector<1x120xf32>
    %277 = tpu.matmul %274, %276, %cst_229 {dimension_numbers = #tpu.dot_dimension_numbers<[1], [0], [0], [1], [0, 0, 1, 1], [], []>} : vector<1x160xbf16>, vector<160x120xbf16>, vector<1x120xf32> -> vector<1x120xf32>
    %278 = arith.addf %272, %277 : vector<1x120xf32>
    %279 = vector.extract_strided_slice %265 {offsets = [2, 0], sizes = [1, 160], strides = [1, 1]} : vector<5x160xf32> to vector<1x160xf32>
    %280 = arith.truncf %279 : vector<1x160xf32> to vector<1x160xbf16>
    %c2_230 = arith.constant 2 : index
    %c0_231 = arith.constant 0 : index
    %c0_232 = arith.constant 0 : index
    %281 = vector.load %arg10[%c2_230, %c0_231, %c0_232] : memref<5x160x120xbf16, #tpu.memory_space<vmem>>, vector<1x160x120xbf16>
    %282 = vector.shape_cast %281 : vector<1x160x120xbf16> to vector<160x120xbf16>
    %cst_233 = arith.constant dense<0.000000e+00> : vector<1x120xf32>
    %283 = tpu.matmul %280, %282, %cst_233 {dimension_numbers = #tpu.dot_dimension_numbers<[1], [0], [0], [1], [0, 0, 1, 1], [], []>} : vector<1x160xbf16>, vector<160x120xbf16>, vector<1x120xf32> -> vector<1x120xf32>
    %284 = arith.addf %278, %283 : vector<1x120xf32>
    %285 = vector.extract_strided_slice %265 {offsets = [3, 0], sizes = [1, 160], strides = [1, 1]} : vector<5x160xf32> to vector<1x160xf32>
    %286 = arith.truncf %285 : vector<1x160xf32> to vector<1x160xbf16>
    %c3_234 = arith.constant 3 : index
    %c0_235 = arith.constant 0 : index
    %c0_236 = arith.constant 0 : index
    %287 = vector.load %arg10[%c3_234, %c0_235, %c0_236] : memref<5x160x120xbf16, #tpu.memory_space<vmem>>, vector<1x160x120xbf16>
    %288 = vector.shape_cast %287 : vector<1x160x120xbf16> to vector<160x120xbf16>
    %cst_237 = arith.constant dense<0.000000e+00> : vector<1x120xf32>
    %289 = tpu.matmul %286, %288, %cst_237 {dimension_numbers = #tpu.dot_dimension_numbers<[1], [0], [0], [1], [0, 0, 1, 1], [], []>} : vector<1x160xbf16>, vector<160x120xbf16>, vector<1x120xf32> -> vector<1x120xf32>
    %290 = arith.addf %284, %289 : vector<1x120xf32>
    %291 = vector.extract_strided_slice %265 {offsets = [4, 0], sizes = [1, 160], strides = [1, 1]} : vector<5x160xf32> to vector<1x160xf32>
    %292 = arith.truncf %291 : vector<1x160xf32> to vector<1x160xbf16>
    %c4_238 = arith.constant 4 : index
    %c0_239 = arith.constant 0 : index
    %c0_240 = arith.constant 0 : index
    %293 = vector.load %arg10[%c4_238, %c0_239, %c0_240] : memref<5x160x120xbf16, #tpu.memory_space<vmem>>, vector<1x160x120xbf16>
    %294 = vector.shape_cast %293 : vector<1x160x120xbf16> to vector<160x120xbf16>
    %cst_241 = arith.constant dense<0.000000e+00> : vector<1x120xf32>
    %295 = tpu.matmul %292, %294, %cst_241 {dimension_numbers = #tpu.dot_dimension_numbers<[1], [0], [0], [1], [0, 0, 1, 1], [], []>} : vector<1x160xbf16>, vector<160x120xbf16>, vector<1x120xf32> -> vector<1x120xf32>
    %296 = arith.addf %290, %295 : vector<1x120xf32>
    %c0_242 = arith.constant 0 : index
    %c0_243 = arith.constant 0 : index
    %297 = vector.load %arg11[%c0_242, %c0_243] : memref<1x120xf32, #tpu.memory_space<vmem>>, vector<1x120xf32>
    %298 = arith.addf %296, %297 : vector<1x120xf32>
    %cst_244 = arith.constant 0.000000e+00 : f32
    %299 = vector.broadcast %cst_244 : f32 to vector<1x120xf32>
    %300 = arith.maximumf %298, %299 : vector<1x120xf32>
    %301 = arith.truncf %300 : vector<1x120xf32> to vector<1x120xbf16>
    %c0_245 = arith.constant 0 : index
    %c0_246 = arith.constant 0 : index
    %302 = vector.load %arg12[%c0_245, %c0_246] : memref<120x84xbf16, #tpu.memory_space<vmem>>, vector<120x84xbf16>
    %cst_247 = arith.constant dense<0.000000e+00> : vector<1x84xf32>
    %303 = tpu.matmul %301, %302, %cst_247 {dimension_numbers = #tpu.dot_dimension_numbers<[1], [0], [0], [1], [0, 0, 1, 1], [], []>} : vector<1x120xbf16>, vector<120x84xbf16>, vector<1x84xf32> -> vector<1x84xf32>
    %c0_248 = arith.constant 0 : index
    %c0_249 = arith.constant 0 : index
    %304 = vector.load %arg13[%c0_248, %c0_249] : memref<1x84xf32, #tpu.memory_space<vmem>>, vector<1x84xf32>
    %305 = arith.addf %303, %304 : vector<1x84xf32>
    %cst_250 = arith.constant 0.000000e+00 : f32
    %306 = vector.broadcast %cst_250 : f32 to vector<1x84xf32>
    %307 = arith.maximumf %305, %306 : vector<1x84xf32>
    %308 = arith.truncf %307 : vector<1x84xf32> to vector<1x84xbf16>
    %c0_251 = arith.constant 0 : index
    %c0_252 = arith.constant 0 : index
    %309 = vector.load %arg14[%c0_251, %c0_252] : memref<84x10xbf16, #tpu.memory_space<vmem>>, vector<84x10xbf16>
    %cst_253 = arith.constant dense<0.000000e+00> : vector<1x10xf32>
    %310 = tpu.matmul %308, %309, %cst_253 {dimension_numbers = #tpu.dot_dimension_numbers<[1], [0], [0], [1], [0, 0, 1, 1], [], []>} : vector<1x84xbf16>, vector<84x10xbf16>, vector<1x10xf32> -> vector<1x10xf32>
    %c0_254 = arith.constant 0 : index
    %c0_255 = arith.constant 0 : index
    %311 = vector.load %arg15[%c0_254, %c0_255] : memref<1x10xf32, #tpu.memory_space<vmem>>, vector<1x10xf32>
    %312 = arith.addf %310, %311 : vector<1x10xf32>
    %c1_256 = arith.constant 1 : index
    %c0_257 = arith.constant 0 : index
    %313 = vector.load %arg16[%c1_256, %c0_257] : memref<2x10xf32, #tpu.memory_space<vmem>>, vector<1x10xf32>
    tpu.vector_store %arg16[%c1_256, %c0_257], %312 {strides = array<i32>} : memref<2x10xf32, #tpu.memory_space<vmem>>, vector<1x10xf32>,
    return
  }
  func.func @transform_0(%arg0: i32) -> (i32, i32, i32) {
    %c0_i32 = arith.constant 0 : i32
    %c0_i32_0 = arith.constant 0 : i32
    %c0_i32_1 = arith.constant 0 : i32
    %c0_i32_2 = arith.constant 0 : i32
    return %c0_i32, %c0_i32_0, %c0_i32_1 : i32, i32, i32
  }
  func.func @transform_1(%arg0: i32) -> (i32, i32, i32) {
    %c0_i32 = arith.constant 0 : i32
    %c0_i32_0 = arith.constant 0 : i32
    %c0_i32_1 = arith.constant 0 : i32
    %c0_i32_2 = arith.constant 0 : i32
    return %c0_i32, %c0_i32_0, %c0_i32_1 : i32, i32, i32
  }
  func.func @transform_2(%arg0: i32) -> (i32, i32) {
    %c0_i32 = arith.constant 0 : i32
    %c0_i32_0 = arith.constant 0 : i32
    %c0_i32_1 = arith.constant 0 : i32
    return %c0_i32, %c0_i32_0 : i32, i32
  }
  func.func @transform_3(%arg0: i32) -> (i32, i32, i32) {
    %c0_i32 = arith.constant 0 : i32
    %c0_i32_0 = arith.constant 0 : i32
    %c0_i32_1 = arith.constant 0 : i32
    %c0_i32_2 = arith.constant 0 : i32
    return %c0_i32, %c0_i32_0, %c0_i32_1 : i32, i32, i32
  }
  func.func @transform_4(%arg0: i32) -> (i32, i32, i32) {
    %c0_i32 = arith.constant 0 : i32
    %c0_i32_0 = arith.constant 0 : i32
    %c0_i32_1 = arith.constant 0 : i32
    %c0_i32_2 = arith.constant 0 : i32
    return %c0_i32, %c0_i32_0, %c0_i32_1 : i32, i32, i32
  }
  func.func @transform_5(%arg0: i32) -> (i32, i32, i32) {
    %c0_i32 = arith.constant 0 : i32
    %c0_i32_0 = arith.constant 0 : i32
    %c0_i32_1 = arith.constant 0 : i32
    %c0_i32_2 = arith.constant 0 : i32
    return %c0_i32, %c0_i32_0, %c0_i32_1 : i32, i32, i32
  }
  func.func @transform_6(%arg0: i32) -> (i32, i32) {
    %c0_i32 = arith.constant 0 : i32
    %c0_i32_0 = arith.constant 0 : i32
    %c0_i32_1 = arith.constant 0 : i32
    return %c0_i32, %c0_i32_0 : i32, i32
  }
  func.func @transform_7(%arg0: i32) -> (i32, i32, i32) {
    %c0_i32 = arith.constant 0 : i32
    %c0_i32_0 = arith.constant 0 : i32
    %c0_i32_1 = arith.constant 0 : i32
    %c0_i32_2 = arith.constant 0 : i32
    return %c0_i32, %c0_i32_0, %c0_i32_1 : i32, i32, i32
  }
  func.func @transform_8(%arg0: i32) -> (i32, i32, i32) {
    %c0_i32 = arith.constant 0 : i32
    %c0_i32_0 = arith.constant 0 : i32
    %c0_i32_1 = arith.constant 0 : i32
    %c0_i32_2 = arith.constant 0 : i32
    return %c0_i32, %c0_i32_0, %c0_i32_1 : i32, i32, i32
  }
  func.func @transform_9(%arg0: i32) -> (i32, i32, i32) {
    %c0_i32 = arith.constant 0 : i32
    %c0_i32_0 = arith.constant 0 : i32
    %c0_i32_1 = arith.constant 0 : i32
    %c0_i32_2 = arith.constant 0 : i32
    return %c0_i32, %c0_i32_0, %c0_i32_1 : i32, i32, i32
  }
  func.func @transform_10(%arg0: i32) -> (i32, i32) {
    %c0_i32 = arith.constant 0 : i32
    %c0_i32_0 = arith.constant 0 : i32
    %c0_i32_1 = arith.constant 0 : i32
    return %c0_i32, %c0_i32_0 : i32, i32
  }
  func.func @transform_11(%arg0: i32) -> (i32, i32) {
    %c0_i32 = arith.constant 0 : i32
    %c0_i32_0 = arith.constant 0 : i32
    %c0_i32_1 = arith.constant 0 : i32
    return %c0_i32, %c0_i32_0 : i32, i32
  }
  func.func @transform_12(%arg0: i32) -> (i32, i32) {
    %c0_i32 = arith.constant 0 : i32
    %c0_i32_0 = arith.constant 0 : i32
    %c0_i32_1 = arith.constant 0 : i32
    return %c0_i32, %c0_i32_0 : i32, i32
  }
  func.func @transform_13(%arg0: i32) -> (i32, i32) {
    %c0_i32 = arith.constant 0 : i32
    %c0_i32_0 = arith.constant 0 : i32
    %c0_i32_1 = arith.constant 0 : i32
    return %c0_i32, %c0_i32_0 : i32, i32
  }
  func.func @transform_14(%arg0: i32) -> (i32, i32) {
    %c0_i32 = arith.constant 0 : i32
    %c0_i32_0 = arith.constant 0 : i32
    %c0_i32_1 = arith.constant 0 : i32
    return %c0_i32, %c0_i32_0 : i32, i32
  }
  func.func @transform_15(%arg0: i32) -> (i32, i32) {
    %c0_i32 = arith.constant 0 : i32
    %c0_i32_0 = arith.constant 0 : i32
    %c0_i32_1 = arith.constant 0 : i32
    return %c0_i32, %c0_i32_0 : i32, i32
  }
}

</mosaic_0001>

<llo_original>
// kernel: basic_cnn_forward.1
$region0: #{basic_cnn_forward.1}
  #allocation0 [shape = 'u32[]', space=smem, size = 0x4, offset = 0x4, fixed_abs, tag = 'smem constant byte address 0x4 - core index']
  #allocation1 [shape = 'u32[72,128]{1,0:T(1,128)}', space=vmem, size = 0x9000, scoped, tag = 'internal scratch']
  %s0 = inlined_call_operand.vmem [shape: f32[2,32,96], index: 0, kind: input, shape index: {}]
  %s1 = inlined_call_operand.vmem [shape: bf16[5,96,448], index: 1, kind: input, shape index: {}]
  %s2 = inlined_call_operand.vmem [shape: f32[1,448], index: 2, kind: input, shape index: {}]
  %s3 = inlined_call_operand.vmem [shape: bf16[2,14,28], index: 3, kind: input, shape index: {}]
  %s4 = inlined_call_operand.vmem [shape: bf16[2,448,224], index: 4, kind: input, shape index: {}]
  %s5 = inlined_call_operand.vmem [shape: bf16[5,224,320], index: 5, kind: input, shape index: {}]
  %s6 = inlined_call_operand.vmem [shape: f32[1,320], index: 6, kind: input, shape index: {}]
  %s7 = inlined_call_operand.vmem [shape: bf16[2,5,10], index: 7, kind: input, shape index: {}]
  %s8 = inlined_call_operand.vmem [shape: bf16[2,320,160], index: 8, kind: input, shape index: {}]
  %s9 = inlined_call_operand.vmem [shape: bf16[5,160,120], index: 9, kind: input, shape index: {}]
  %s10 = inlined_call_operand.vmem [shape: f32[1,120], index: 10, kind: input, shape index: {}]
  %s11 = inlined_call_operand.vmem [shape: bf16[120,84], index: 11, kind: input, shape index: {}]
  %s12 = inlined_call_operand.vmem [shape: f32[1,84], index: 12, kind: input, shape index: {}]
  %s13 = inlined_call_operand.vmem [shape: bf16[84,10], index: 13, kind: input, shape index: {}]
  %s14 = inlined_call_operand.vmem [shape: f32[1,10], index: 14, kind: input, shape index: {}]
  %s15 = inlined_call_operand.hbm [shape: f32[2,10], index: 15, kind: output, shape index: {}]
  %s16 = sld [smem:[#allocation0]]
  $region70: #{basic_cnn_forward.1} parent=0
    _
  %s18 = ssub.s32 1, %s16
  %s19 = scalar_select 0, %s18, %s16
  $region1: #{basic_cnn_forward.1} parent=0
    #allocation2 [shape = 'u8[1024]{0}', space=vmem, size = 0x400, scoped, tag = 'output window, operand 0, single buffered']
    #allocation3 [shape = 's32[1]{0}', space=sflag, size = 0x4, scoped, tag = 'scoped memory for basic_cnn_forward.1']
    %20 = vsyncpa [#allocation3], 0
    // Predicated region
    $region2: #{basic_cnn_forward.1} parent=1 // pred_check
      _
    $region3: #{basic_cnn_forward.1} parent=1 // pred_check_branch
      %22 = sbr.rel (0) target = $region5
    $region4: #{basic_cnn_forward.1} parent=1 // pred_region
      _
    $region5: #{basic_cnn_forward.1} parent=1 // pred_fallthru
      _
    // Predicated region
    $region6: #{basic_cnn_forward.1} parent=1 // pred_check
      _
    $region7: #{basic_cnn_forward.1} parent=1 // pred_check_branch
      %24 = sbr.rel (0) target = $region9
    $region8: #{basic_cnn_forward.1} parent=1 // pred_region
      _
    $region9: #{basic_cnn_forward.1} parent=1 // pred_fallthru
      _
    // Predicated region
    $region10: #{basic_cnn_forward.1} parent=1 // pred_check
      _
    $region11: #{basic_cnn_forward.1} parent=1 // pred_check_branch
      %26 = sbr.rel (0) target = $region13
    $region12: #{basic_cnn_forward.1} parent=1 // pred_region
      _
    $region13: #{basic_cnn_forward.1} parent=1 // pred_fallthru
      _
    // Predicated region
    $region14: #{basic_cnn_forward.1} parent=1 // pred_check
      _
    $region15: #{basic_cnn_forward.1} parent=1 // pred_check_branch
      %28 = sbr.rel (0) target = $region17
    $region16: #{basic_cnn_forward.1} parent=1 // pred_region
      _
    $region17: #{basic_cnn_forward.1} parent=1 // pred_fallthru
      _
    // Predicated region
    $region18: #{basic_cnn_forward.1} parent=1 // pred_check
      _
    $region19: #{basic_cnn_forward.1} parent=1 // pred_check_branch
      %30 = sbr.rel (0) target = $region21
    $region20: #{basic_cnn_forward.1} parent=1 // pred_region
      _
    $region21: #{basic_cnn_forward.1} parent=1 // pred_fallthru
      _
    // Predicated region
    $region22: #{basic_cnn_forward.1} parent=1 // pred_check
      _
    $region23: #{basic_cnn_forward.1} parent=1 // pred_check_branch
      %32 = sbr.rel (0) target = $region25
    $region24: #{basic_cnn_forward.1} parent=1 // pred_region
      _
    $region25: #{basic_cnn_forward.1} parent=1 // pred_fallthru
      _
    // Predicated region
    $region26: #{basic_cnn_forward.1} parent=1 // pred_check
      _
    $region27: #{basic_cnn_forward.1} parent=1 // pred_check_branch
      %34 = sbr.rel (0) target = $region29
    $region28: #{basic_cnn_forward.1} parent=1 // pred_region
      _
    $region29: #{basic_cnn_forward.1} parent=1 // pred_fallthru
      _
    // Predicated region
    $region30: #{basic_cnn_forward.1} parent=1 // pred_check
      _
    $region31: #{basic_cnn_forward.1} parent=1 // pred_check_branch
      %36 = sbr.rel (0) target = $region33
    $region32: #{basic_cnn_forward.1} parent=1 // pred_region
      _
    $region33: #{basic_cnn_forward.1} parent=1 // pred_fallthru
      _
    // Predicated region
    $region34: #{basic_cnn_forward.1} parent=1 // pred_check
      _
    $region35: #{basic_cnn_forward.1} parent=1 // pred_check_branch
      %38 = sbr.rel (0) target = $region37
    $region36: #{basic_cnn_forward.1} parent=1 // pred_region
      _
    $region37: #{basic_cnn_forward.1} parent=1 // pred_fallthru
      _
    // Predicated region
    $region38: #{basic_cnn_forward.1} parent=1 // pred_check
      _
    $region39: #{basic_cnn_forward.1} parent=1 // pred_check_branch
      %40 = sbr.rel (0) target = $region41
    $region40: #{basic_cnn_forward.1} parent=1 // pred_region
      _
    $region41: #{basic_cnn_forward.1} parent=1 // pred_fallthru
      _
    // Predicated region
    $region42: #{basic_cnn_forward.1} parent=1 // pred_check
      _
    $region43: #{basic_cnn_forward.1} parent=1 // pred_check_branch
      %42 = sbr.rel (0) target = $region45
    $region44: #{basic_cnn_forward.1} parent=1 // pred_region
      _
    $region45: #{basic_cnn_forward.1} parent=1 // pred_fallthru
      _
    // Predicated region
    $region46: #{basic_cnn_forward.1} parent=1 // pred_check
      _
    $region47: #{basic_cnn_forward.1} parent=1 // pred_check_branch
      %44 = sbr.rel (0) target = $region49
    $region48: #{basic_cnn_forward.1} parent=1 // pred_region
      _
    $region49: #{basic_cnn_forward.1} parent=1 // pred_fallthru
      _
    // Predicated region
    $region50: #{basic_cnn_forward.1} parent=1 // pred_check
      _
    $region51: #{basic_cnn_forward.1} parent=1 // pred_check_branch
      %46 = sbr.rel (0) target = $region53
    $region52: #{basic_cnn_forward.1} parent=1 // pred_region
      _
    $region53: #{basic_cnn_forward.1} parent=1 // pred_fallthru
      _
    // Predicated region
    $region54: #{basic_cnn_forward.1} parent=1 // pred_check
      _
    $region55: #{basic_cnn_forward.1} parent=1 // pred_check_branch
      %48 = sbr.rel (0) target = $region57
    $region56: #{basic_cnn_forward.1} parent=1 // pred_region
      _
    $region57: #{basic_cnn_forward.1} parent=1 // pred_fallthru
      _
    // Predicated region
    $region58: #{basic_cnn_forward.1} parent=1 // pred_check
      _
    $region59: #{basic_cnn_forward.1} parent=1 // pred_check_branch
      %50 = sbr.rel (0) target = $region61
    $region60: #{basic_cnn_forward.1} parent=1 // pred_region
      _
    $region61: #{basic_cnn_forward.1} parent=1 // pred_fallthru
      _
    %v52 = vld [vmem:[%s0] sm:$0xff]
    %v53 = vld [vmem:[%s0 + $0x8] sm:$0xff]
    %v54 = vld [vmem:[%s0 + $0x10] sm:$0xff]
    %v55 = vld [vmem:[%s0 + $0x18] sm:$0xf]
    %v56 = vpack.c.bf16 %v53, %v52
    %v57 = vpack.c.bf16 %v55, %v54
    %v58 = vld [vmem:[%s1] sm:$0xff]
    %v59 = vld [vmem:[%s1 + $0x8] sm:$0xff]
    %v60 = vld [vmem:[%s1 + $0x10] sm:$0xff]
    %v61 = vld [vmem:[%s1 + $0x18] sm:$0xff]
    %v62 = vld [vmem:[%s1 + $0x20] sm:$0xff]
    %v63 = vld [vmem:[%s1 + $0x28] sm:$0xff]
    %v64 = vld [vmem:[%s1 + $0x30] sm:$0xff]
    %v65 = vld [vmem:[%s1 + $0x38] sm:$0xff]
    %v66 = vld [vmem:[%s1 + $0x40] sm:$0xff]
    %v67 = vld [vmem:[%s1 + $0x48] sm:$0xff]
    %v68 = vld [vmem:[%s1 + $0x50] sm:$0xff]
    %v69 = vld [vmem:[%s1 + $0x58] sm:$0xff]
    %v70 = vld [vmem:[%s1 + $0x60] sm:$0xff]
    %v71 = vld [vmem:[%s1 + $0x68] sm:$0xff]
    %v72 = vld [vmem:[%s1 + $0x70] sm:$0xff]
    %v73 = vld [vmem:[%s1 + $0x78] sm:$0xff]
    %v74 = vld [vmem:[%s1 + $0x80] sm:$0xff]
    %v75 = vld [vmem:[%s1 + $0x88] sm:$0xff]
    %v76 = vld [vmem:[%s1 + $0x90] sm:$0xff]
    %v77 = vld [vmem:[%s1 + $0x98] sm:$0xff]
    %v78 = vld [vmem:[%s1 + $0xa0] sm:$0xff]
    %v79 = vld [vmem:[%s1 + $0xa8] sm:$0xff]
    %v80 = vld [vmem:[%s1 + $0xb0] sm:$0xff]
    %v81 = vld [vmem:[%s1 + $0xb8] sm:$0xff]
    %v82 = vld [vmem:[%s0 + $0x1] sm:$0xff]
    %v83 = vld [vmem:[%s0 + $0x9] sm:$0xff]
    %v84 = vld [vmem:[%s0 + $0x11] sm:$0xff]
    %v85 = vld [vmem:[%s0 + $0x19] sm:$0xf]
    %v86 = vpack.c.bf16 %v83, %v82
    %v87 = vpack.c.bf16 %v85, %v84
    %s88 = scalar_lea.vmem %s1, 192
    %v89 = vld [vmem:[%s88] sm:$0xff]
    %v90 = vld [vmem:[%s88 + $0x8] sm:$0xff]
    %v91 = vld [vmem:[%s88 + $0x10] sm:$0xff]
    %v92 = vld [vmem:[%s88 + $0x18] sm:$0xff]
    %v93 = vld [vmem:[%s88 + $0x20] sm:$0xff]
    %v94 = vld [vmem:[%s88 + $0x28] sm:$0xff]
    %v95 = vld [vmem:[%s88 + $0x30] sm:$0xff]
    %v96 = vld [vmem:[%s88 + $0x38] sm:$0xff]
    %v97 = vld [vmem:[%s88 + $0x40] sm:$0xff]
    %v98 = vld [vmem:[%s88 + $0x48] sm:$0xff]
    %v99 = vld [vmem:[%s88 + $0x50] sm:$0xff]
    %v100 = vld [vmem:[%s88 + $0x58] sm:$0xff]
    %v101 = vld [vmem:[%s88 + $0x60] sm:$0xff]
    %v102 = vld [vmem:[%s88 + $0x68] sm:$0xff]
    %v103 = vld [vmem:[%s88 + $0x70] sm:$0xff]
    %v104 = vld [vmem:[%s88 + $0x78] sm:$0xff]
    %v105 = vld [vmem:[%s88 + $0x80] sm:$0xff]
    %v106 = vld [vmem:[%s88 + $0x88] sm:$0xff]
    %v107 = vld [vmem:[%s88 + $0x90] sm:$0xff]
    %v108 = vld [vmem:[%s88 + $0x98] sm:$0xff]
    %v109 = vld [vmem:[%s88 + $0xa0] sm:$0xff]
    %v110 = vld [vmem:[%s88 + $0xa8] sm:$0xff]
    %v111 = vld [vmem:[%s88 + $0xb0] sm:$0xff]
    %v112 = vld [vmem:[%s88 + $0xb8] sm:$0xff]
    %v137 = vunpack.c.l.b16 %v89
    %v138 = vunpack.c.h.b16 %v89
    %v139 = vunpack.c.l.b16 %v90
    %v140 = vunpack.c.h.b16 %v90
    %v141 = vunpack.c.l.b16 %v91
    %v142 = vunpack.c.h.b16 %v91
    %v143 = vunpack.c.l.b16 %v92
    %v144 = vunpack.c.h.b16 %v92
    %v145 = vunpack.c.l.b16 %v93
    %v146 = vunpack.c.h.b16 %v93
    %v147 = vunpack.c.l.b16 %v94
    %v148 = vunpack.c.h.b16 %v94
    %v149 = vunpack.c.l.b16 %v95
    %v150 = vunpack.c.h.b16 %v95
    %v151 = vunpack.c.l.b16 %v96
    %v152 = vunpack.c.h.b16 %v96
    %v153 = vunpack.c.l.b16 %v97
    %v154 = vunpack.c.h.b16 %v97
    %v155 = vunpack.c.l.b16 %v98
    %v156 = vunpack.c.h.b16 %v98
    %v157 = vunpack.c.l.b16 %v99
    %v158 = vunpack.c.h.b16 %v99
    %v159 = vunpack.c.l.b16 %v100
    %v160 = vunpack.c.h.b16 %v100
    %v161 = vunpack.c.l.b16 %v101
    %v162 = vunpack.c.h.b16 %v101
    %v163 = vunpack.c.l.b16 %v102
    %v164 = vunpack.c.h.b16 %v102
    %v165 = vunpack.c.l.b16 %v103
    %v166 = vunpack.c.h.b16 %v103
    %v167 = vunpack.c.l.b16 %v104
    %v168 = vunpack.c.h.b16 %v104
    %v169 = vunpack.c.l.b16 %v105
    %v170 = vunpack.c.h.b16 %v105
    %v171 = vunpack.c.l.b16 %v106
    %v172 = vunpack.c.h.b16 %v106
    %v173 = vunpack.c.l.b16 %v107
    %v174 = vunpack.c.h.b16 %v107
    %v175 = vunpack.c.l.b16 %v108
    %v176 = vunpack.c.h.b16 %v108
    %v177 = vunpack.c.l.b16 %v109
    %v178 = vunpack.c.h.b16 %v109
    %v179 = vunpack.c.l.b16 %v110
    %v180 = vunpack.c.h.b16 %v110
    %v181 = vunpack.c.l.b16 %v111
    %v182 = vunpack.c.h.b16 %v111
    %v183 = vunpack.c.l.b16 %v112
    %v184 = vunpack.c.h.b16 %v112
    %v185 = vpack.c.b16 %v141, %v137
    %v186 = vpack.c.b16 %v142, %v138
    %v187 = vpack.c.b16 %v143, %v139
    %v188 = vpack.c.b16 %v144, %v140
    %v189 = vpack.c.b16 %v149, %v145
    %v190 = vpack.c.b16 %v150, %v146
    %v191 = vpack.c.b16 %v151, %v147
    %v192 = vpack.c.b16 %v152, %v148
    %v193 = vpack.c.b16 %v157, %v153
    %v194 = vpack.c.b16 %v158, %v154
    %v195 = vpack.c.b16 %v159, %v155
    %v196 = vpack.c.b16 %v160, %v156
    %v197 = vpack.c.b16 %v165, %v161
    %v198 = vpack.c.b16 %v166, %v162
    %v199 = vpack.c.b16 %v167, %v163
    %v200 = vpack.c.b16 %v168, %v164
    %v201 = vpack.c.b16 %v173, %v169
    %v202 = vpack.c.b16 %v174, %v170
    %v203 = vpack.c.b16 %v175, %v171
    %v204 = vpack.c.b16 %v176, %v172
    %v205 = vpack.c.b16 %v181, %v177
    %v206 = vpack.c.b16 %v182, %v178
    %v207 = vpack.c.b16 %v183, %v179
    %v208 = vpack.c.b16 %v184, %v180
    %vm233 = vcmask 785408
    %v235 = vsel %vm233, %v86, 0
    %v238 = vsel %vm233, %v87, 0
    %240 = vmatpush.bf16.msra.mxu0 0
    %241 = vmatpush.bf16.msra.mxu0 0
    %242 = vmatpush.bf16.msra.mxu0 %v205
    %243 = vmatpush.bf16.msra.mxu0 %v201
    %244 = vmatpush.bf16.msra.mxu0 %v197
    %245 = vmatpush.bf16.msra.mxu0 %v193
    %246 = vmatpush.bf16.msra.mxu0 %v189
    %247 = vmatpush.bf16.msra.mxu0 %v185
    %248 = vmatmul.bf16.gmra.mxu0 %v235
    %v249 = vpop.f32.mrf.mxu0
    %v250 = vadd.f32 0.0, %v249
    %v251 = vpop.f32.mrf.mxu0
    %v252 = vadd.f32 0.0, %v251
    %253 = vmatmul.bf16.gmra.mxu0 %v238
    %v254 = vpop.f32.mrf.mxu0
    %v255 = vadd.f32 0.0, %v254
    %v256 = vpop.f32.mrf.mxu0
    %v257 = vadd.f32 0.0, %v256
    %258 = vdwg.mxu0
    %259 = vmatpush.bf16.msra.mxu0 0
    %260 = vmatpush.bf16.msra.mxu0 0
    %261 = vmatpush.bf16.msra.mxu0 %v206
    %262 = vmatpush.bf16.msra.mxu0 %v202
    %263 = vmatpush.bf16.msra.mxu0 %v198
    %264 = vmatpush.bf16.msra.mxu0 %v194
    %265 = vmatpush.bf16.msra.mxu0 %v190
    %266 = vmatpush.bf16.msra.mxu0 %v186
    %267 = vmatmul.bf16.gmra.mxu0 %v235
    %v268 = vpop.f32.mrf.mxu0
    %v269 = vadd.f32 0.0, %v268
    %v270 = vpop.f32.mrf.mxu0
    %v271 = vadd.f32 0.0, %v270
    %272 = vmatmul.bf16.gmra.mxu0 %v238
    %v273 = vpop.f32.mrf.mxu0
    %v274 = vadd.f32 0.0, %v273
    %v275 = vpop.f32.mrf.mxu0
    %v276 = vadd.f32 0.0, %v275
    %277 = vdwg.mxu0
    %278 = vmatpush.bf16.msra.mxu0 0
    %279 = vmatpush.bf16.msra.mxu0 0
    %280 = vmatpush.bf16.msra.mxu0 %v207
    %281 = vmatpush.bf16.msra.mxu0 %v203
    %282 = vmatpush.bf16.msra.mxu0 %v199
    %283 = vmatpush.bf16.msra.mxu0 %v195
    %284 = vmatpush.bf16.msra.mxu0 %v191
    %285 = vmatpush.bf16.msra.mxu0 %v187
    %286 = vmatmul.bf16.gmra.mxu0 %v235
    %v287 = vpop.f32.mrf.mxu0
    %v288 = vadd.f32 0.0, %v287
    %v289 = vpop.f32.mrf.mxu0
    %v290 = vadd.f32 0.0, %v289
    %291 = vmatmul.bf16.gmra.mxu0 %v238
    %v292 = vpop.f32.mrf.mxu0
    %v293 = vadd.f32 0.0, %v292
    %v294 = vpop.f32.mrf.mxu0
    %v295 = vadd.f32 0.0, %v294
    %296 = vdwg.mxu0
    %297 = vmatpush.bf16.msra.mxu0 0
    %298 = vmatpush.bf16.msra.mxu0 0
    %299 = vmatpush.bf16.msra.mxu0 %v208
    %300 = vmatpush.bf16.msra.mxu0 %v204
    %301 = vmatpush.bf16.msra.mxu0 %v200
    %302 = vmatpush.bf16.msra.mxu0 %v196
    %303 = vmatpush.bf16.msra.mxu0 %v192
    %304 = vmatpush.bf16.msra.mxu0 %v188
    %305 = vmatmul.bf16.gmra.mxu0 %v235
    %v306 = vpop.f32.mrf.mxu0
    %v307 = vadd.f32 0.0, %v306
    %v308 = vpop.f32.mrf.mxu0
    %v309 = vadd.f32 0.0, %v308
    %310 = vmatmul.bf16.gmra.mxu0 %v238
    %v311 = vpop.f32.mrf.mxu0
    %v312 = vadd.f32 0.0, %v311
    %v313 = vpop.f32.mrf.mxu0
    %v314 = vadd.f32 0.0, %v313
    %315 = vdwg.mxu0
    %v340 = vunpack.c.l.b16 %v58
    %v341 = vunpack.c.h.b16 %v58
    %v342 = vunpack.c.l.b16 %v59
    %v343 = vunpack.c.h.b16 %v59
    %v344 = vunpack.c.l.b16 %v60
    %v345 = vunpack.c.h.b16 %v60
    %v346 = vunpack.c.l.b16 %v61
    %v347 = vunpack.c.h.b16 %v61
    %v348 = vunpack.c.l.b16 %v62
    %v349 = vunpack.c.h.b16 %v62
    %v350 = vunpack.c.l.b16 %v63
    %v351 = vunpack.c.h.b16 %v63
    %v352 = vunpack.c.l.b16 %v64
    %v353 = vunpack.c.h.b16 %v64
    %v354 = vunpack.c.l.b16 %v65
    %v355 = vunpack.c.h.b16 %v65
    %v356 = vunpack.c.l.b16 %v66
    %v357 = vunpack.c.h.b16 %v66
    %v358 = vunpack.c.l.b16 %v67
    %v359 = vunpack.c.h.b16 %v67
    %v360 = vunpack.c.l.b16 %v68
    %v361 = vunpack.c.h.b16 %v68
    %v362 = vunpack.c.l.b16 %v69
    %v363 = vunpack.c.h.b16 %v69
    %v364 = vunpack.c.l.b16 %v70
    %v365 = vunpack.c.h.b16 %v70
    %v366 = vunpack.c.l.b16 %v71
    %v367 = vunpack.c.h.b16 %v71
    %v368 = vunpack.c.l.b16 %v72
    %v369 = vunpack.c.h.b16 %v72
    %v370 = vunpack.c.l.b16 %v73
    %v371 = vunpack.c.h.b16 %v73
    %v372 = vunpack.c.l.b16 %v74
    %v373 = vunpack.c.h.b16 %v74
    %v374 = vunpack.c.l.b16 %v75
    %v375 = vunpack.c.h.b16 %v75
    %v376 = vunpack.c.l.b16 %v76
    %v377 = vunpack.c.h.b16 %v76
    %v378 = vunpack.c.l.b16 %v77
    %v379 = vunpack.c.h.b16 %v77
    %v380 = vunpack.c.l.b16 %v78
    %v381 = vunpack.c.h.b16 %v78
    %v382 = vunpack.c.l.b16 %v79
    %v383 = vunpack.c.h.b16 %v79
    %v384 = vunpack.c.l.b16 %v80
    %v385 = vunpack.c.h.b16 %v80
    %v386 = vunpack.c.l.b16 %v81
    %v387 = vunpack.c.h.b16 %v81
    %v388 = vpack.c.b16 %v344, %v340
    %v389 = vpack.c.b16 %v345, %v341
    %v390 = vpack.c.b16 %v346, %v342
    %v391 = vpack.c.b16 %v347, %v343
    %v392 = vpack.c.b16 %v352, %v348
    %v393 = vpack.c.b16 %v353, %v349
    %v394 = vpack.c.b16 %v354, %v350
    %v395 = vpack.c.b16 %v355, %v351
    %v396 = vpack.c.b16 %v360, %v356
    %v397 = vpack.c.b16 %v361, %v357
    %v398 = vpack.c.b16 %v362, %v358
    %v399 = vpack.c.b16 %v363, %v359
    %v400 = vpack.c.b16 %v368, %v364
    %v401 = vpack.c.b16 %v369, %v365
    %v402 = vpack.c.b16 %v370, %v366
    %v403 = vpack.c.b16 %v371, %v367
    %v404 = vpack.c.b16 %v376, %v372
    %v405 = vpack.c.b16 %v377, %v373
    %v406 = vpack.c.b16 %v378, %v374
    %v407 = vpack.c.b16 %v379, %v375
    %v408 = vpack.c.b16 %v384, %v380
    %v409 = vpack.c.b16 %v385, %v381
    %v410 = vpack.c.b16 %v386, %v382
    %v411 = vpack.c.b16 %v387, %v383
    %v437 = vsel %vm233, %v56, 0
    %v440 = vsel %vm233, %v57, 0
    %442 = vmatpush.bf16.msra.mxu0 0
    %443 = vmatpush.bf16.msra.mxu0 0
    %444 = vmatpush.bf16.msra.mxu0 %v408
    %445 = vmatpush.bf16.msra.mxu0 %v404
    %446 = vmatpush.bf16.msra.mxu0 %v400
    %447 = vmatpush.bf16.msra.mxu0 %v396
    %448 = vmatpush.bf16.msra.mxu0 %v392
    %449 = vmatpush.bf16.msra.mxu0 %v388
    %450 = vmatmul.bf16.gmra.mxu0 %v437
    %v451 = vpop.f32.mrf.mxu0
    %v452 = vadd.f32 %v250, %v451
    %v453 = vpop.f32.mrf.mxu0
    %v454 = vadd.f32 %v252, %v453
    %455 = vmatmul.bf16.gmra.mxu0 %v440
    %v456 = vpop.f32.mrf.mxu0
    %v457 = vadd.f32 %v255, %v456
    %v458 = vpop.f32.mrf.mxu0
    %v459 = vadd.f32 %v257, %v458
    %460 = vdwg.mxu0
    %461 = vmatpush.bf16.msra.mxu0 0
    %462 = vmatpush.bf16.msra.mxu0 0
    %463 = vmatpush.bf16.msra.mxu0 %v409
    %464 = vmatpush.bf16.msra.mxu0 %v405
    %465 = vmatpush.bf16.msra.mxu0 %v401
    %466 = vmatpush.bf16.msra.mxu0 %v397
    %467 = vmatpush.bf16.msra.mxu0 %v393
    %468 = vmatpush.bf16.msra.mxu0 %v389
    %469 = vmatmul.bf16.gmra.mxu0 %v437
    %v470 = vpop.f32.mrf.mxu0
    %v471 = vadd.f32 %v269, %v470
    %v472 = vpop.f32.mrf.mxu0
    %v473 = vadd.f32 %v271, %v472
    %474 = vmatmul.bf16.gmra.mxu0 %v440
    %v475 = vpop.f32.mrf.mxu0
    %v476 = vadd.f32 %v274, %v475
    %v477 = vpop.f32.mrf.mxu0
    %v478 = vadd.f32 %v276, %v477
    %479 = vdwg.mxu0
    %480 = vmatpush.bf16.msra.mxu0 0
    %481 = vmatpush.bf16.msra.mxu0 0
    %482 = vmatpush.bf16.msra.mxu0 %v410
    %483 = vmatpush.bf16.msra.mxu0 %v406
    %484 = vmatpush.bf16.msra.mxu0 %v402
    %485 = vmatpush.bf16.msra.mxu0 %v398
    %486 = vmatpush.bf16.msra.mxu0 %v394
    %487 = vmatpush.bf16.msra.mxu0 %v390
    %488 = vmatmul.bf16.gmra.mxu0 %v437
    %v489 = vpop.f32.mrf.mxu0
    %v490 = vadd.f32 %v288, %v489
    %v491 = vpop.f32.mrf.mxu0
    %v492 = vadd.f32 %v290, %v491
    %493 = vmatmul.bf16.gmra.mxu0 %v440
    %v494 = vpop.f32.mrf.mxu0
    %v495 = vadd.f32 %v293, %v494
    %v496 = vpop.f32.mrf.mxu0
    %v497 = vadd.f32 %v295, %v496
    %498 = vdwg.mxu0
    %499 = vmatpush.bf16.msra.mxu0 0
    %500 = vmatpush.bf16.msra.mxu0 0
    %501 = vmatpush.bf16.msra.mxu0 %v411
    %502 = vmatpush.bf16.msra.mxu0 %v407
    %503 = vmatpush.bf16.msra.mxu0 %v403
    %504 = vmatpush.bf16.msra.mxu0 %v399
    %505 = vmatpush.bf16.msra.mxu0 %v395
    %506 = vmatpush.bf16.msra.mxu0 %v391
    %507 = vmatmul.bf16.gmra.mxu0 %v437
    %v508 = vpop.f32.mrf.mxu0
    %v509 = vadd.f32 %v307, %v508
    %v510 = vpop.f32.mrf.mxu0
    %v511 = vadd.f32 %v309, %v510
    %512 = vmatmul.bf16.gmra.mxu0 %v440
    %v513 = vpop.f32.mrf.mxu0
    %v514 = vadd.f32 %v312, %v513
    %v515 = vpop.f32.mrf.mxu0
    %v516 = vadd.f32 %v314, %v515
    %517 = vdwg.mxu0
    %v518 = vld [vmem:[%s0 + $0x2] sm:$0xff]
    %v519 = vld [vmem:[%s0 + $0xa] sm:$0xff]
    %v520 = vld [vmem:[%s0 + $0x12] sm:$0xff]
    %v521 = vld [vmem:[%s0 + $0x1a] sm:$0xf]
    %v522 = vpack.c.bf16 %v519, %v518
    %v523 = vpack.c.bf16 %v521, %v520
    %s524 = scalar_lea.vmem %s1, 384
    %v525 = vld [vmem:[%s524] sm:$0xff]
    %v526 = vld [vmem:[%s524 + $0x8] sm:$0xff]
    %v527 = vld [vmem:[%s524 + $0x10] sm:$0xff]
    %v528 = vld [vmem:[%s524 + $0x18] sm:$0xff]
    %v529 = vld [vmem:[%s524 + $0x20] sm:$0xff]
    %v530 = vld [vmem:[%s524 + $0x28] sm:$0xff]
    %v531 = vld [vmem:[%s524 + $0x30] sm:$0xff]
    %v532 = vld [vmem:[%s524 + $0x38] sm:$0xff]
    %v533 = vld [vmem:[%s524 + $0x40] sm:$0xff]
    %v534 = vld [vmem:[%s524 + $0x48] sm:$0xff]
    %v535 = vld [vmem:[%s524 + $0x50] sm:$0xff]
    %v536 = vld [vmem:[%s524 + $0x58] sm:$0xff]
    %v537 = vld [vmem:[%s524 + $0x60] sm:$0xff]
    %v538 = vld [vmem:[%s524 + $0x68] sm:$0xff]
    %v539 = vld [vmem:[%s524 + $0x70] sm:$0xff]
    %v540 = vld [vmem:[%s524 + $0x78] sm:$0xff]
    %v541 = vld [vmem:[%s524 + $0x80] sm:$0xff]
    %v542 = vld [vmem:[%s524 + $0x88] sm:$0xff]
    %v543 = vld [vmem:[%s524 + $0x90] sm:$0xff]
    %v544 = vld [vmem:[%s524 + $0x98] sm:$0xff]
    %v545 = vld [vmem:[%s524 + $0xa0] sm:$0xff]
    %v546 = vld [vmem:[%s524 + $0xa8] sm:$0xff]
    %v547 = vld [vmem:[%s524 + $0xb0] sm:$0xff]
    %v548 = vld [vmem:[%s524 + $0xb8] sm:$0xff]
    %v573 = vunpack.c.l.b16 %v525
    %v574 = vunpack.c.h.b16 %v525
    %v575 = vunpack.c.l.b16 %v526
    %v576 = vunpack.c.h.b16 %v526
    %v577 = vunpack.c.l.b16 %v527
    %v578 = vunpack.c.h.b16 %v527
    %v579 = vunpack.c.l.b16 %v528
    %v580 = vunpack.c.h.b16 %v528
    %v581 = vunpack.c.l.b16 %v529
    %v582 = vunpack.c.h.b16 %v529
    %v583 = vunpack.c.l.b16 %v530
    %v584 = vunpack.c.h.b16 %v530
    %v585 = vunpack.c.l.b16 %v531
    %v586 = vunpack.c.h.b16 %v531
    %v587 = vunpack.c.l.b16 %v532
    %v588 = vunpack.c.h.b16 %v532
    %v589 = vunpack.c.l.b16 %v533
    %v590 = vunpack.c.h.b16 %v533
    %v591 = vunpack.c.l.b16 %v534
    %v592 = vunpack.c.h.b16 %v534
    %v593 = vunpack.c.l.b16 %v535
    %v594 = vunpack.c.h.b16 %v535
    %v595 = vunpack.c.l.b16 %v536
    %v596 = vunpack.c.h.b16 %v536
    %v597 = vunpack.c.l.b16 %v537
    %v598 = vunpack.c.h.b16 %v537
    %v599 = vunpack.c.l.b16 %v538
    %v600 = vunpack.c.h.b16 %v538
    %v601 = vunpack.c.l.b16 %v539
    %v602 = vunpack.c.h.b16 %v539
    %v603 = vunpack.c.l.b16 %v540
    %v604 = vunpack.c.h.b16 %v540
    %v605 = vunpack.c.l.b16 %v541
    %v606 = vunpack.c.h.b16 %v541
    %v607 = vunpack.c.l.b16 %v542
    %v608 = vunpack.c.h.b16 %v542
    %v609 = vunpack.c.l.b16 %v543
    %v610 = vunpack.c.h.b16 %v543
    %v611 = vunpack.c.l.b16 %v544
    %v612 = vunpack.c.h.b16 %v544
    %v613 = vunpack.c.l.b16 %v545
    %v614 = vunpack.c.h.b16 %v545
    %v615 = vunpack.c.l.b16 %v546
    %v616 = vunpack.c.h.b16 %v546
    %v617 = vunpack.c.l.b16 %v547
    %v618 = vunpack.c.h.b16 %v547
    %v619 = vunpack.c.l.b16 %v548
    %v620 = vunpack.c.h.b16 %v548
    %v621 = vpack.c.b16 %v577, %v573
    %v622 = vpack.c.b16 %v578, %v574
    %v623 = vpack.c.b16 %v579, %v575
    %v624 = vpack.c.b16 %v580, %v576
    %v625 = vpack.c.b16 %v585, %v581
    %v626 = vpack.c.b16 %v586, %v582
    %v627 = vpack.c.b16 %v587, %v583
    %v628 = vpack.c.b16 %v588, %v584
    %v629 = vpack.c.b16 %v593, %v589
    %v630 = vpack.c.b16 %v594, %v590
    %v631 = vpack.c.b16 %v595, %v591
    %v632 = vpack.c.b16 %v596, %v592
    %v633 = vpack.c.b16 %v601, %v597
    %v634 = vpack.c.b16 %v602, %v598
    %v635 = vpack.c.b16 %v603, %v599
    %v636 = vpack.c.b16 %v604, %v600
    %v637 = vpack.c.b16 %v609, %v605
    %v638 = vpack.c.b16 %v610, %v606
    %v639 = vpack.c.b16 %v611, %v607
    %v640 = vpack.c.b16 %v612, %v608
    %v641 = vpack.c.b16 %v617, %v613
    %v642 = vpack.c.b16 %v618, %v614
    %v643 = vpack.c.b16 %v619, %v615
    %v644 = vpack.c.b16 %v620, %v616
    %v670 = vsel %vm233, %v522, 0
    %v673 = vsel %vm233, %v523, 0
    %675 = vmatpush.bf16.msra.mxu0 0
    %676 = vmatpush.bf16.msra.mxu0 0
    %677 = vmatpush.bf16.msra.mxu0 %v641
    %678 = vmatpush.bf16.msra.mxu0 %v637
    %679 = vmatpush.bf16.msra.mxu0 %v633
    %680 = vmatpush.bf16.msra.mxu0 %v629
    %681 = vmatpush.bf16.msra.mxu0 %v625
    %682 = vmatpush.bf16.msra.mxu0 %v621
    %683 = vmatmul.bf16.gmra.mxu0 %v670
    %v684 = vpop.f32.mrf.mxu0
    %v685 = vadd.f32 0.0, %v684
    %v686 = vpop.f32.mrf.mxu0
    %v687 = vadd.f32 0.0, %v686
    %688 = vmatmul.bf16.gmra.mxu0 %v673
    %v689 = vpop.f32.mrf.mxu0
    %v690 = vadd.f32 0.0, %v689
    %v691 = vpop.f32.mrf.mxu0
    %v692 = vadd.f32 0.0, %v691
    %693 = vdwg.mxu0
    %694 = vmatpush.bf16.msra.mxu0 0
    %695 = vmatpush.bf16.msra.mxu0 0
    %696 = vmatpush.bf16.msra.mxu0 %v642
    %697 = vmatpush.bf16.msra.mxu0 %v638
    %698 = vmatpush.bf16.msra.mxu0 %v634
    %699 = vmatpush.bf16.msra.mxu0 %v630
    %700 = vmatpush.bf16.msra.mxu0 %v626
    %701 = vmatpush.bf16.msra.mxu0 %v622
    %702 = vmatmul.bf16.gmra.mxu0 %v670
    %v703 = vpop.f32.mrf.mxu0
    %v704 = vadd.f32 0.0, %v703
    %v705 = vpop.f32.mrf.mxu0
    %v706 = vadd.f32 0.0, %v705
    %707 = vmatmul.bf16.gmra.mxu0 %v673
    %v708 = vpop.f32.mrf.mxu0
    %v709 = vadd.f32 0.0, %v708
    %v710 = vpop.f32.mrf.mxu0
    %v711 = vadd.f32 0.0, %v710
    %712 = vdwg.mxu0
    %713 = vmatpush.bf16.msra.mxu0 0
    %714 = vmatpush.bf16.msra.mxu0 0
    %715 = vmatpush.bf16.msra.mxu0 %v643
    %716 = vmatpush.bf16.msra.mxu0 %v639
    %717 = vmatpush.bf16.msra.mxu0 %v635
    %718 = vmatpush.bf16.msra.mxu0 %v631
    %719 = vmatpush.bf16.msra.mxu0 %v627
    %720 = vmatpush.bf16.msra.mxu0 %v623
    %721 = vmatmul.bf16.gmra.mxu0 %v670
    %v722 = vpop.f32.mrf.mxu0
    %v723 = vadd.f32 0.0, %v722
    %v724 = vpop.f32.mrf.mxu0
    %v725 = vadd.f32 0.0, %v724
    %726 = vmatmul.bf16.gmra.mxu0 %v673
    %v727 = vpop.f32.mrf.mxu0
    %v728 = vadd.f32 0.0, %v727
    %v729 = vpop.f32.mrf.mxu0
    %v730 = vadd.f32 0.0, %v729
    %731 = vdwg.mxu0
    %732 = vmatpush.bf16.msra.mxu0 0
    %733 = vmatpush.bf16.msra.mxu0 0
    %734 = vmatpush.bf16.msra.mxu0 %v644
    %735 = vmatpush.bf16.msra.mxu0 %v640
    %736 = vmatpush.bf16.msra.mxu0 %v636
    %737 = vmatpush.bf16.msra.mxu0 %v632
    %738 = vmatpush.bf16.msra.mxu0 %v628
    %739 = vmatpush.bf16.msra.mxu0 %v624
    %740 = vmatmul.bf16.gmra.mxu0 %v670
    %v741 = vpop.f32.mrf.mxu0
    %v742 = vadd.f32 0.0, %v741
    %v743 = vpop.f32.mrf.mxu0
    %v744 = vadd.f32 0.0, %v743
    %745 = vmatmul.bf16.gmra.mxu0 %v673
    %v746 = vpop.f32.mrf.mxu0
    %v747 = vadd.f32 0.0, %v746
    %v748 = vpop.f32.mrf.mxu0
    %v749 = vadd.f32 0.0, %v748
    %750 = vdwg.mxu0
    %v751 = vadd.f32 %v452, %v685
    %v752 = vadd.f32 %v471, %v704
    %v753 = vadd.f32 %v490, %v723
    %v754 = vadd.f32 %v509, %v742
    %v755 = vadd.f32 %v454, %v687
    %v756 = vadd.f32 %v473, %v706
    %v757 = vadd.f32 %v492, %v725
    %v758 = vadd.f32 %v511, %v744
    %v759 = vadd.f32 %v457, %v690
    %v760 = vadd.f32 %v476, %v709
    %v761 = vadd.f32 %v495, %v728
    %v762 = vadd.f32 %v514, %v747
    %v763 = vadd.f32 %v459, %v692
    %v764 = vadd.f32 %v478, %v711
    %v765 = vadd.f32 %v497, %v730
    %v766 = vadd.f32 %v516, %v749
    %v767 = vld [vmem:[%s0 + $0x3] sm:$0xff]
    %v768 = vld [vmem:[%s0 + $0xb] sm:$0xff]
    %v769 = vld [vmem:[%s0 + $0x13] sm:$0xff]
    %v770 = vld [vmem:[%s0 + $0x1b] sm:$0xf]
    %v771 = vpack.c.bf16 %v768, %v767
    %v772 = vpack.c.bf16 %v770, %v769
    %s773 = scalar_lea.vmem %s1, 576
    %v774 = vld [vmem:[%s773] sm:$0xff]
    %v775 = vld [vmem:[%s773 + $0x8] sm:$0xff]
    %v776 = vld [vmem:[%s773 + $0x10] sm:$0xff]
    %v777 = vld [vmem:[%s773 + $0x18] sm:$0xff]
    %v778 = vld [vmem:[%s773 + $0x20] sm:$0xff]
    %v779 = vld [vmem:[%s773 + $0x28] sm:$0xff]
    %v780 = vld [vmem:[%s773 + $0x30] sm:$0xff]
    %v781 = vld [vmem:[%s773 + $0x38] sm:$0xff]
    %v782 = vld [vmem:[%s773 + $0x40] sm:$0xff]
    %v783 = vld [vmem:[%s773 + $0x48] sm:$0xff]
    %v784 = vld [vmem:[%s773 + $0x50] sm:$0xff]
    %v785 = vld [vmem:[%s773 + $0x58] sm:$0xff]
    %v786 = vld [vmem:[%s773 + $0x60] sm:$0xff]
    %v787 = vld [vmem:[%s773 + $0x68] sm:$0xff]
    %v788 = vld [vmem:[%s773 + $0x70] sm:$0xff]
    %v789 = vld [vmem:[%s773 + $0x78] sm:$0xff]
    %v790 = vld [vmem:[%s773 + $0x80] sm:$0xff]
    %v791 = vld [vmem:[%s773 + $0x88] sm:$0xff]
    %v792 = vld [vmem:[%s773 + $0x90] sm:$0xff]
    %v793 = vld [vmem:[%s773 + $0x98] sm:$0xff]
    %v794 = vld [vmem:[%s773 + $0xa0] sm:$0xff]
    %v795 = vld [vmem:[%s773 + $0xa8] sm:$0xff]
    %v796 = vld [vmem:[%s773 + $0xb0] sm:$0xff]
    %v797 = vld [vmem:[%s773 + $0xb8] sm:$0xff]
    %v822 = vunpack.c.l.b16 %v774
    %v823 = vunpack.c.h.b16 %v774
    %v824 = vunpack.c.l.b16 %v775
    %v825 = vunpack.c.h.b16 %v775
    %v826 = vunpack.c.l.b16 %v776
    %v827 = vunpack.c.h.b16 %v776
    %v828 = vunpack.c.l.b16 %v777
    %v829 = vunpack.c.h.b16 %v777
    %v830 = vunpack.c.l.b16 %v778
    %v831 = vunpack.c.h.b16 %v778
    %v832 = vunpack.c.l.b16 %v779
    %v833 = vunpack.c.h.b16 %v779
    %v834 = vunpack.c.l.b16 %v780
    %v835 = vunpack.c.h.b16 %v780
    %v836 = vunpack.c.l.b16 %v781
    %v837 = vunpack.c.h.b16 %v781
    %v838 = vunpack.c.l.b16 %v782
    %v839 = vunpack.c.h.b16 %v782
    %v840 = vunpack.c.l.b16 %v783
    %v841 = vunpack.c.h.b16 %v783
    %v842 = vunpack.c.l.b16 %v784
    %v843 = vunpack.c.h.b16 %v784
    %v844 = vunpack.c.l.b16 %v785
    %v845 = vunpack.c.h.b16 %v785
    %v846 = vunpack.c.l.b16 %v786
    %v847 = vunpack.c.h.b16 %v786
    %v848 = vunpack.c.l.b16 %v787
    %v849 = vunpack.c.h.b16 %v787
    %v850 = vunpack.c.l.b16 %v788
    %v851 = vunpack.c.h.b16 %v788
    %v852 = vunpack.c.l.b16 %v789
    %v853 = vunpack.c.h.b16 %v789
    %v854 = vunpack.c.l.b16 %v790
    %v855 = vunpack.c.h.b16 %v790
    %v856 = vunpack.c.l.b16 %v791
    %v857 = vunpack.c.h.b16 %v791
    %v858 = vunpack.c.l.b16 %v792
    %v859 = vunpack.c.h.b16 %v792
    %v860 = vunpack.c.l.b16 %v793
    %v861 = vunpack.c.h.b16 %v793
    %v862 = vunpack.c.l.b16 %v794
    %v863 = vunpack.c.h.b16 %v794
    %v864 = vunpack.c.l.b16 %v795
    %v865 = vunpack.c.h.b16 %v795
    %v866 = vunpack.c.l.b16 %v796
    %v867 = vunpack.c.h.b16 %v796
    %v868 = vunpack.c.l.b16 %v797
    %v869 = vunpack.c.h.b16 %v797
    %v870 = vpack.c.b16 %v826, %v822
    %v871 = vpack.c.b16 %v827, %v823
    %v872 = vpack.c.b16 %v828, %v824
    %v873 = vpack.c.b16 %v829, %v825
    %v874 = vpack.c.b16 %v834, %v830
    %v875 = vpack.c.b16 %v835, %v831
    %v876 = vpack.c.b16 %v836, %v832
    %v877 = vpack.c.b16 %v837, %v833
    %v878 = vpack.c.b16 %v842, %v838
    %v879 = vpack.c.b16 %v843, %v839
    %v880 = vpack.c.b16 %v844, %v840
    %v881 = vpack.c.b16 %v845, %v841
    %v882 = vpack.c.b16 %v850, %v846
    %v883 = vpack.c.b16 %v851, %v847
    %v884 = vpack.c.b16 %v852, %v848
    %v885 = vpack.c.b16 %v853, %v849
    %v886 = vpack.c.b16 %v858, %v854
    %v887 = vpack.c.b16 %v859, %v855
    %v888 = vpack.c.b16 %v860, %v856
    %v889 = vpack.c.b16 %v861, %v857
    %v890 = vpack.c.b16 %v866, %v862
    %v891 = vpack.c.b16 %v867, %v863
    %v892 = vpack.c.b16 %v868, %v864
    %v893 = vpack.c.b16 %v869, %v865
    %v919 = vsel %vm233, %v771, 0
    %v922 = vsel %vm233, %v772, 0
    %924 = vmatpush.bf16.msra.mxu0 0
    %925 = vmatpush.bf16.msra.mxu0 0
    %926 = vmatpush.bf16.msra.mxu0 %v890
    %927 = vmatpush.bf16.msra.mxu0 %v886
    %928 = vmatpush.bf16.msra.mxu0 %v882
    %929 = vmatpush.bf16.msra.mxu0 %v878
    %930 = vmatpush.bf16.msra.mxu0 %v874
    %931 = vmatpush.bf16.msra.mxu0 %v870
    %932 = vmatmul.bf16.gmra.mxu0 %v919
    %v933 = vpop.f32.mrf.mxu0
    %v934 = vadd.f32 0.0, %v933
    %v935 = vpop.f32.mrf.mxu0
    %v936 = vadd.f32 0.0, %v935
    %937 = vmatmul.bf16.gmra.mxu0 %v922
    %v938 = vpop.f32.mrf.mxu0
    %v939 = vadd.f32 0.0, %v938
    %v940 = vpop.f32.mrf.mxu0
    %v941 = vadd.f32 0.0, %v940
    %942 = vdwg.mxu0
    %943 = vmatpush.bf16.msra.mxu0 0
    %944 = vmatpush.bf16.msra.mxu0 0
    %945 = vmatpush.bf16.msra.mxu0 %v891
    %946 = vmatpush.bf16.msra.mxu0 %v887
    %947 = vmatpush.bf16.msra.mxu0 %v883
    %948 = vmatpush.bf16.msra.mxu0 %v879
    %949 = vmatpush.bf16.msra.mxu0 %v875
    %950 = vmatpush.bf16.msra.mxu0 %v871
    %951 = vmatmul.bf16.gmra.mxu0 %v919
    %v952 = vpop.f32.mrf.mxu0
    %v953 = vadd.f32 0.0, %v952
    %v954 = vpop.f32.mrf.mxu0
    %v955 = vadd.f32 0.0, %v954
    %956 = vmatmul.bf16.gmra.mxu0 %v922
    %v957 = vpop.f32.mrf.mxu0
    %v958 = vadd.f32 0.0, %v957
    %v959 = vpop.f32.mrf.mxu0
    %v960 = vadd.f32 0.0, %v959
    %961 = vdwg.mxu0
    %962 = vmatpush.bf16.msra.mxu0 0
    %963 = vmatpush.bf16.msra.mxu0 0
    %964 = vmatpush.bf16.msra.mxu0 %v892
    %965 = vmatpush.bf16.msra.mxu0 %v888
    %966 = vmatpush.bf16.msra.mxu0 %v884
    %967 = vmatpush.bf16.msra.mxu0 %v880
    %968 = vmatpush.bf16.msra.mxu0 %v876
    %969 = vmatpush.bf16.msra.mxu0 %v872
    %970 = vmatmul.bf16.gmra.mxu0 %v919
    %v971 = vpop.f32.mrf.mxu0
    %v972 = vadd.f32 0.0, %v971
    %v973 = vpop.f32.mrf.mxu0
    %v974 = vadd.f32 0.0, %v973
    %975 = vmatmul.bf16.gmra.mxu0 %v922
    %v976 = vpop.f32.mrf.mxu0
    %v977 = vadd.f32 0.0, %v976
    %v978 = vpop.f32.mrf.mxu0
    %v979 = vadd.f32 0.0, %v978
    %980 = vdwg.mxu0
    %981 = vmatpush.bf16.msra.mxu0 0
    %982 = vmatpush.bf16.msra.mxu0 0
    %983 = vmatpush.bf16.msra.mxu0 %v893
    %984 = vmatpush.bf16.msra.mxu0 %v889
    %985 = vmatpush.bf16.msra.mxu0 %v885
    %986 = vmatpush.bf16.msra.mxu0 %v881
    %987 = vmatpush.bf16.msra.mxu0 %v877
    %988 = vmatpush.bf16.msra.mxu0 %v873
    %989 = vmatmul.bf16.gmra.mxu0 %v919
    %v990 = vpop.f32.mrf.mxu0
    %v991 = vadd.f32 0.0, %v990
    %v992 = vpop.f32.mrf.mxu0
    %v993 = vadd.f32 0.0, %v992
    %994 = vmatmul.bf16.gmra.mxu0 %v922
    %v995 = vpop.f32.mrf.mxu0
    %v996 = vadd.f32 0.0, %v995
    %v997 = vpop.f32.mrf.mxu0
    %v998 = vadd.f32 0.0, %v997
    %999 = vdwg.mxu0
    %v1000 = vadd.f32 %v751, %v934
    %v1001 = vadd.f32 %v752, %v953
    %v1002 = vadd.f32 %v753, %v972
    %v1003 = vadd.f32 %v754, %v991
    %v1004 = vadd.f32 %v755, %v936
    %v1005 = vadd.f32 %v756, %v955
    %v1006 = vadd.f32 %v757, %v974
    %v1007 = vadd.f32 %v758, %v993
    %v1008 = vadd.f32 %v759, %v939
    %v1009 = vadd.f32 %v760, %v958
    %v1010 = vadd.f32 %v761, %v977
    %v1011 = vadd.f32 %v762, %v996
    %v1012 = vadd.f32 %v763, %v941
    %v1013 = vadd.f32 %v764, %v960
    %v1014 = vadd.f32 %v765, %v979
    %v1015 = vadd.f32 %v766, %v998
    %v1016 = vld [vmem:[%s0 + $0x4] sm:$0xff]
    %v1017 = vld [vmem:[%s0 + $0xc] sm:$0xff]
    %v1018 = vld [vmem:[%s0 + $0x14] sm:$0xff]
    %v1019 = vld [vmem:[%s0 + $0x1c] sm:$0xf]
    %v1020 = vpack.c.bf16 %v1017, %v1016
    %v1021 = vpack.c.bf16 %v1019, %v1018
    %s1022 = scalar_lea.vmem %s1, 768
    %v1023 = vld [vmem:[%s1022] sm:$0xff]
    %v1024 = vld [vmem:[%s1022 + $0x8] sm:$0xff]
    %v1025 = vld [vmem:[%s1022 + $0x10] sm:$0xff]
    %v1026 = vld [vmem:[%s1022 + $0x18] sm:$0xff]
    %v1027 = vld [vmem:[%s1022 + $0x20] sm:$0xff]
    %v1028 = vld [vmem:[%s1022 + $0x28] sm:$0xff]
    %v1029 = vld [vmem:[%s1022 + $0x30] sm:$0xff]
    %v1030 = vld [vmem:[%s1022 + $0x38] sm:$0xff]
    %v1031 = vld [vmem:[%s1022 + $0x40] sm:$0xff]
    %v1032 = vld [vmem:[%s1022 + $0x48] sm:$0xff]
    %v1033 = vld [vmem:[%s1022 + $0x50] sm:$0xff]
    %v1034 = vld [vmem:[%s1022 + $0x58] sm:$0xff]
    %v1035 = vld [vmem:[%s1022 + $0x60] sm:$0xff]
    %v1036 = vld [vmem:[%s1022 + $0x68] sm:$0xff]
    %v1037 = vld [vmem:[%s1022 + $0x70] sm:$0xff]
    %v1038 = vld [vmem:[%s1022 + $0x78] sm:$0xff]
    %v1039 = vld [vmem:[%s1022 + $0x80] sm:$0xff]
    %v1040 = vld [vmem:[%s1022 + $0x88] sm:$0xff]
    %v1041 = vld [vmem:[%s1022 + $0x90] sm:$0xff]
    %v1042 = vld [vmem:[%s1022 + $0x98] sm:$0xff]
    %v1043 = vld [vmem:[%s1022 + $0xa0] sm:$0xff]
    %v1044 = vld [vmem:[%s1022 + $0xa8] sm:$0xff]
    %v1045 = vld [vmem:[%s1022 + $0xb0] sm:$0xff]
    %v1046 = vld [vmem:[%s1022 + $0xb8] sm:$0xff]
    %v1071 = vunpack.c.l.b16 %v1023
    %v1072 = vunpack.c.h.b16 %v1023
    %v1073 = vunpack.c.l.b16 %v1024
    %v1074 = vunpack.c.h.b16 %v1024
    %v1075 = vunpack.c.l.b16 %v1025
    %v1076 = vunpack.c.h.b16 %v1025
    %v1077 = vunpack.c.l.b16 %v1026
    %v1078 = vunpack.c.h.b16 %v1026
    %v1079 = vunpack.c.l.b16 %v1027
    %v1080 = vunpack.c.h.b16 %v1027
    %v1081 = vunpack.c.l.b16 %v1028
    %v1082 = vunpack.c.h.b16 %v1028
    %v1083 = vunpack.c.l.b16 %v1029
    %v1084 = vunpack.c.h.b16 %v1029
    %v1085 = vunpack.c.l.b16 %v1030
    %v1086 = vunpack.c.h.b16 %v1030
    %v1087 = vunpack.c.l.b16 %v1031
    %v1088 = vunpack.c.h.b16 %v1031
    %v1089 = vunpack.c.l.b16 %v1032
    %v1090 = vunpack.c.h.b16 %v1032
    %v1091 = vunpack.c.l.b16 %v1033
    %v1092 = vunpack.c.h.b16 %v1033
    %v1093 = vunpack.c.l.b16 %v1034
    %v1094 = vunpack.c.h.b16 %v1034
    %v1095 = vunpack.c.l.b16 %v1035
    %v1096 = vunpack.c.h.b16 %v1035
    %v1097 = vunpack.c.l.b16 %v1036
    %v1098 = vunpack.c.h.b16 %v1036
    %v1099 = vunpack.c.l.b16 %v1037
    %v1100 = vunpack.c.h.b16 %v1037
    %v1101 = vunpack.c.l.b16 %v1038
    %v1102 = vunpack.c.h.b16 %v1038
    %v1103 = vunpack.c.l.b16 %v1039
    %v1104 = vunpack.c.h.b16 %v1039
    %v1105 = vunpack.c.l.b16 %v1040
    %v1106 = vunpack.c.h.b16 %v1040
    %v1107 = vunpack.c.l.b16 %v1041
    %v1108 = vunpack.c.h.b16 %v1041
    %v1109 = vunpack.c.l.b16 %v1042
    %v1110 = vunpack.c.h.b16 %v1042
    %v1111 = vunpack.c.l.b16 %v1043
    %v1112 = vunpack.c.h.b16 %v1043
    %v1113 = vunpack.c.l.b16 %v1044
    %v1114 = vunpack.c.h.b16 %v1044
    %v1115 = vunpack.c.l.b16 %v1045
    %v1116 = vunpack.c.h.b16 %v1045
    %v1117 = vunpack.c.l.b16 %v1046
    %v1118 = vunpack.c.h.b16 %v1046
    %v1119 = vpack.c.b16 %v1075, %v1071
    %v1120 = vpack.c.b16 %v1076, %v1072
    %v1121 = vpack.c.b16 %v1077, %v1073
    %v1122 = vpack.c.b16 %v1078, %v1074
    %v1123 = vpack.c.b16 %v1083, %v1079
    %v1124 = vpack.c.b16 %v1084, %v1080
    %v1125 = vpack.c.b16 %v1085, %v1081
    %v1126 = vpack.c.b16 %v1086, %v1082
    %v1127 = vpack.c.b16 %v1091, %v1087
    %v1128 = vpack.c.b16 %v1092, %v1088
    %v1129 = vpack.c.b16 %v1093, %v1089
    %v1130 = vpack.c.b16 %v1094, %v1090
    %v1131 = vpack.c.b16 %v1099, %v1095
    %v1132 = vpack.c.b16 %v1100, %v1096
    %v1133 = vpack.c.b16 %v1101, %v1097
    %v1134 = vpack.c.b16 %v1102, %v1098
    %v1135 = vpack.c.b16 %v1107, %v1103
    %v1136 = vpack.c.b16 %v1108, %v1104
    %v1137 = vpack.c.b16 %v1109, %v1105
    %v1138 = vpack.c.b16 %v1110, %v1106
    %v1139 = vpack.c.b16 %v1115, %v1111
    %v1140 = vpack.c.b16 %v1116, %v1112
    %v1141 = vpack.c.b16 %v1117, %v1113
    %v1142 = vpack.c.b16 %v1118, %v1114
    %v1168 = vsel %vm233, %v1020, 0
    %v1171 = vsel %vm233, %v1021, 0
    %1173 = vmatpush.bf16.msra.mxu0 0
    %1174 = vmatpush.bf16.msra.mxu0 0
    %1175 = vmatpush.bf16.msra.mxu0 %v1139
    %1176 = vmatpush.bf16.msra.mxu0 %v1135
    %1177 = vmatpush.bf16.msra.mxu0 %v1131
    %1178 = vmatpush.bf16.msra.mxu0 %v1127
    %1179 = vmatpush.bf16.msra.mxu0 %v1123
    %1180 = vmatpush.bf16.msra.mxu0 %v1119
    %1181 = vmatmul.bf16.gmra.mxu0 %v1168
    %v1182 = vpop.f32.mrf.mxu0
    %v1183 = vadd.f32 0.0, %v1182
    %v1184 = vpop.f32.mrf.mxu0
    %v1185 = vadd.f32 0.0, %v1184
    %1186 = vmatmul.bf16.gmra.mxu0 %v1171
    %v1187 = vpop.f32.mrf.mxu0
    %v1188 = vadd.f32 0.0, %v1187
    %v1189 = vpop.f32.mrf.mxu0
    %v1190 = vadd.f32 0.0, %v1189
    %1191 = vdwg.mxu0
    %1192 = vmatpush.bf16.msra.mxu0 0
    %1193 = vmatpush.bf16.msra.mxu0 0
    %1194 = vmatpush.bf16.msra.mxu0 %v1140
    %1195 = vmatpush.bf16.msra.mxu0 %v1136
    %1196 = vmatpush.bf16.msra.mxu0 %v1132
    %1197 = vmatpush.bf16.msra.mxu0 %v1128
    %1198 = vmatpush.bf16.msra.mxu0 %v1124
    %1199 = vmatpush.bf16.msra.mxu0 %v1120
    %1200 = vmatmul.bf16.gmra.mxu0 %v1168
    %v1201 = vpop.f32.mrf.mxu0
    %v1202 = vadd.f32 0.0, %v1201
    %v1203 = vpop.f32.mrf.mxu0
    %v1204 = vadd.f32 0.0, %v1203
    %1205 = vmatmul.bf16.gmra.mxu0 %v1171
    %v1206 = vpop.f32.mrf.mxu0
    %v1207 = vadd.f32 0.0, %v1206
    %v1208 = vpop.f32.mrf.mxu0
    %v1209 = vadd.f32 0.0, %v1208
    %1210 = vdwg.mxu0
    %1211 = vmatpush.bf16.msra.mxu0 0
    %1212 = vmatpush.bf16.msra.mxu0 0
    %1213 = vmatpush.bf16.msra.mxu0 %v1141
    %1214 = vmatpush.bf16.msra.mxu0 %v1137
    %1215 = vmatpush.bf16.msra.mxu0 %v1133
    %1216 = vmatpush.bf16.msra.mxu0 %v1129
    %1217 = vmatpush.bf16.msra.mxu0 %v1125
    %1218 = vmatpush.bf16.msra.mxu0 %v1121
    %1219 = vmatmul.bf16.gmra.mxu0 %v1168
    %v1220 = vpop.f32.mrf.mxu0
    %v1221 = vadd.f32 0.0, %v1220
    %v1222 = vpop.f32.mrf.mxu0
    %v1223 = vadd.f32 0.0, %v1222
    %1224 = vmatmul.bf16.gmra.mxu0 %v1171
    %v1225 = vpop.f32.mrf.mxu0
    %v1226 = vadd.f32 0.0, %v1225
    %v1227 = vpop.f32.mrf.mxu0
    %v1228 = vadd.f32 0.0, %v1227
    %1229 = vdwg.mxu0
    %1230 = vmatpush.bf16.msra.mxu0 0
    %1231 = vmatpush.bf16.msra.mxu0 0
    %1232 = vmatpush.bf16.msra.mxu0 %v1142
    %1233 = vmatpush.bf16.msra.mxu0 %v1138
    %1234 = vmatpush.bf16.msra.mxu0 %v1134
    %1235 = vmatpush.bf16.msra.mxu0 %v1130
    %1236 = vmatpush.bf16.msra.mxu0 %v1126
    %1237 = vmatpush.bf16.msra.mxu0 %v1122
    %1238 = vmatmul.bf16.gmra.mxu0 %v1168
    %v1239 = vpop.f32.mrf.mxu0
    %v1240 = vadd.f32 0.0, %v1239
    %v1241 = vpop.f32.mrf.mxu0
    %v1242 = vadd.f32 0.0, %v1241
    %1243 = vmatmul.bf16.gmra.mxu0 %v1171
    %v1244 = vpop.f32.mrf.mxu0
    %v1245 = vadd.f32 0.0, %v1244
    %v1246 = vpop.f32.mrf.mxu0
    %v1247 = vadd.f32 0.0, %v1246
    %1248 = vdwg.mxu0
    %v1249 = vadd.f32 %v1000, %v1183
    %v1250 = vadd.f32 %v1001, %v1202
    %v1251 = vadd.f32 %v1002, %v1221
    %v1252 = vadd.f32 %v1003, %v1240
    %v1253 = vadd.f32 %v1004, %v1185
    %v1254 = vadd.f32 %v1005, %v1204
    %v1255 = vadd.f32 %v1006, %v1223
    %v1256 = vadd.f32 %v1007, %v1242
    %v1257 = vadd.f32 %v1008, %v1188
    %v1258 = vadd.f32 %v1009, %v1207
    %v1259 = vadd.f32 %v1010, %v1226
    %v1260 = vadd.f32 %v1011, %v1245
    %v1261 = vadd.f32 %v1012, %v1190
    %v1262 = vadd.f32 %v1013, %v1209
    %v1263 = vadd.f32 %v1014, %v1228
    %v1264 = vadd.f32 %v1015, %v1247
    %v1265 = vld [vmem:[%s2] sm:$0xf]
    %v1267 = vperm.slane %v1265, 0
    %v1268 = vperm.slane %v1265, 1
    %v1269 = vperm.slane %v1265, 2
    %v1270 = vperm.slane %v1265, 3
    %v1275 = vadd.f32 %v1249, %v1267
    %v1276 = vadd.f32 %v1250, %v1268
    %v1277 = vadd.f32 %v1251, %v1269
    %v1278 = vadd.f32 %v1252, %v1270
    %v1279 = vadd.f32 %v1253, %v1267
    %v1280 = vadd.f32 %v1254, %v1268
    %v1281 = vadd.f32 %v1255, %v1269
    %v1282 = vadd.f32 %v1256, %v1270
    %v1283 = vadd.f32 %v1257, %v1267
    %v1284 = vadd.f32 %v1258, %v1268
    %v1285 = vadd.f32 %v1259, %v1269
    %v1286 = vadd.f32 %v1260, %v1270
    %v1287 = vadd.f32 %v1261, %v1267
    %v1288 = vadd.f32 %v1262, %v1268
    %v1289 = vadd.f32 %v1263, %v1269
    %v1290 = vadd.f32 %v1264, %v1270
    %v1291 = vmax.f32 %v1275, 0.0
    %v1292 = vmax.f32 %v1276, 0.0
    %v1293 = vmax.f32 %v1277, 0.0
    %v1294 = vmax.f32 %v1278, 0.0
    %v1295 = vmax.f32 %v1279, 0.0
    %v1296 = vmax.f32 %v1280, 0.0
    %v1297 = vmax.f32 %v1281, 0.0
    %v1298 = vmax.f32 %v1282, 0.0
    %v1299 = vmax.f32 %v1283, 0.0
    %v1300 = vmax.f32 %v1284, 0.0
    %v1301 = vmax.f32 %v1285, 0.0
    %v1302 = vmax.f32 %v1286, 0.0
    %v1303 = vmax.f32 %v1287, 0.0
    %v1304 = vmax.f32 %v1288, 0.0
    %v1305 = vmax.f32 %v1289, 0.0
    %v1306 = vmax.f32 %v1290, 0.0
    %v1307 = vpack.c.bf16 %v1295, %v1291
    %v1308 = vpack.c.bf16 %v1296, %v1292
    %v1309 = vpack.c.bf16 %v1297, %v1293
    %v1310 = vpack.c.bf16 %v1298, %v1294
    %v1311 = vpack.c.bf16 %v1303, %v1299
    %v1312 = vpack.c.bf16 %v1304, %v1300
    %v1313 = vpack.c.bf16 %v1305, %v1301
    %v1314 = vpack.c.bf16 %v1306, %v1302
    %v1315 = vld [vmem:[%s3] sm:$0xf]
    %v1316 = vld [vmem:[%s3 + $0x4] sm:$0x7]
    %v1319 = vunpack.c.l.b16 %v1315
    %v1320 = vunpack.c.l.b16 %v1316
    %v1321 = vpack.c.b16 %v1320, %v1319
    %vm1322 = vcmask 228352
    %v1324 = vsel %vm1322, %v1321, 0
    %vm1326 = vcmask 1045504
    %v1328 = vsel %vm1326, %v1311, 0
    %v1331 = vsel %vm1326, %v1312, 0
    %v1334 = vsel %vm1326, %v1313, 0
    %v1337 = vsel %vm1326, %v1314, 0
    %1339 = vmatpush.bf16.msra.mxu0 0
    %1340 = vmatpush.bf16.msra.mxu0 0
    %1341 = vmatpush.bf16.msra.mxu0 0
    %1342 = vmatpush.bf16.msra.mxu0 0
    %1343 = vmatpush.bf16.msra.mxu0 0
    %1344 = vmatpush.bf16.msra.mxu0 0
    %1345 = vmatpush.bf16.msra.mxu0 %v1328
    %1346 = vmatpush.bf16.msra.mxu0 %v1307
    %1347 = vmatmul.bf16.gmra.mxu0 %v1324
    %v1348 = vpop.f32.mrf.mxu0
    %v1349 = vadd.f32 0.0, %v1348
    %v1350 = vpop.f32.mrf.mxu0
    %v1351 = vadd.f32 0.0, %v1350
    %1352 = vdwg.mxu0
    %1353 = vmatpush.bf16.msra.mxu0 0
    %1354 = vmatpush.bf16.msra.mxu0 0
    %1355 = vmatpush.bf16.msra.mxu0 0
    %1356 = vmatpush.bf16.msra.mxu0 0
    %1357 = vmatpush.bf16.msra.mxu0 0
    %1358 = vmatpush.bf16.msra.mxu0 0
    %1359 = vmatpush.bf16.msra.mxu0 %v1331
    %1360 = vmatpush.bf16.msra.mxu0 %v1308
    %1361 = vmatmul.bf16.gmra.mxu0 %v1324
    %v1362 = vpop.f32.mrf.mxu0
    %v1363 = vadd.f32 0.0, %v1362
    %v1364 = vpop.f32.mrf.mxu0
    %v1365 = vadd.f32 0.0, %v1364
    %1366 = vdwg.mxu0
    %1367 = vmatpush.bf16.msra.mxu0 0
    %1368 = vmatpush.bf16.msra.mxu0 0
    %1369 = vmatpush.bf16.msra.mxu0 0
    %1370 = vmatpush.bf16.msra.mxu0 0
    %1371 = vmatpush.bf16.msra.mxu0 0
    %1372 = vmatpush.bf16.msra.mxu0 0
    %1373 = vmatpush.bf16.msra.mxu0 %v1334
    %1374 = vmatpush.bf16.msra.mxu0 %v1309
    %1375 = vmatmul.bf16.gmra.mxu0 %v1324
    %v1376 = vpop.f32.mrf.mxu0
    %v1377 = vadd.f32 0.0, %v1376
    %v1378 = vpop.f32.mrf.mxu0
    %v1379 = vadd.f32 0.0, %v1378
    %1380 = vdwg.mxu0
    %1381 = vmatpush.bf16.msra.mxu0 0
    %1382 = vmatpush.bf16.msra.mxu0 0
    %1383 = vmatpush.bf16.msra.mxu0 0
    %1384 = vmatpush.bf16.msra.mxu0 0
    %1385 = vmatpush.bf16.msra.mxu0 0
    %1386 = vmatpush.bf16.msra.mxu0 0
    %1387 = vmatpush.bf16.msra.mxu0 %v1337
    %1388 = vmatpush.bf16.msra.mxu0 %v1310
    %1389 = vmatmul.bf16.gmra.mxu0 %v1324
    %v1390 = vpop.f32.mrf.mxu0
    %v1391 = vadd.f32 0.0, %v1390
    %v1392 = vpop.f32.mrf.mxu0
    %v1393 = vadd.f32 0.0, %v1392
    %1394 = vdwg.mxu0
    %s1395 = scalar_lea.vmem %s3, 8
    %v1396 = vld [vmem:[%s1395] sm:$0xf]
    %v1397 = vld [vmem:[%s1395 + $0x4] sm:$0x7]
    %v1400 = vunpack.c.l.b16 %v1396
    %v1401 = vunpack.c.l.b16 %v1397
    %v1402 = vpack.c.b16 %v1401, %v1400
    %v1404 = vsel %vm1322, %v1402, 0
    %1406 = vmatpush.bf16.msra.mxu0 0
    %1407 = vmatpush.bf16.msra.mxu0 0
    %1408 = vmatpush.bf16.msra.mxu0 0
    %1409 = vmatpush.bf16.msra.mxu0 0
    %1410 = vmatpush.bf16.msra.mxu0 0
    %1411 = vmatpush.bf16.msra.mxu0 0
    %1412 = vmatpush.bf16.msra.mxu0 %v1328
    %1413 = vmatpush.bf16.msra.mxu0 %v1307
    %1414 = vmatmul.bf16.gmra.mxu0 %v1404
    %v1415 = vpop.f32.mrf.mxu0
    %v1416 = vadd.f32 0.0, %v1415
    %v1417 = vpop.f32.mrf.mxu0
    %v1418 = vadd.f32 0.0, %v1417
    %1419 = vdwg.mxu0
    %1420 = vmatpush.bf16.msra.mxu0 0
    %1421 = vmatpush.bf16.msra.mxu0 0
    %1422 = vmatpush.bf16.msra.mxu0 0
    %1423 = vmatpush.bf16.msra.mxu0 0
    %1424 = vmatpush.bf16.msra.mxu0 0
    %1425 = vmatpush.bf16.msra.mxu0 0
    %1426 = vmatpush.bf16.msra.mxu0 %v1331
    %1427 = vmatpush.bf16.msra.mxu0 %v1308
    %1428 = vmatmul.bf16.gmra.mxu0 %v1404
    %v1429 = vpop.f32.mrf.mxu0
    %v1430 = vadd.f32 0.0, %v1429
    %v1431 = vpop.f32.mrf.mxu0
    %v1432 = vadd.f32 0.0, %v1431
    %1433 = vdwg.mxu0
    %1434 = vmatpush.bf16.msra.mxu0 0
    %1435 = vmatpush.bf16.msra.mxu0 0
    %1436 = vmatpush.bf16.msra.mxu0 0
    %1437 = vmatpush.bf16.msra.mxu0 0
    %1438 = vmatpush.bf16.msra.mxu0 0
    %1439 = vmatpush.bf16.msra.mxu0 0
    %1440 = vmatpush.bf16.msra.mxu0 %v1334
    %1441 = vmatpush.bf16.msra.mxu0 %v1309
    %1442 = vmatmul.bf16.gmra.mxu0 %v1404
    %v1443 = vpop.f32.mrf.mxu0
    %v1444 = vadd.f32 0.0, %v1443
    %v1445 = vpop.f32.mrf.mxu0
    %v1446 = vadd.f32 0.0, %v1445
    %1447 = vdwg.mxu0
    %1448 = vmatpush.bf16.msra.mxu0 0
    %1449 = vmatpush.bf16.msra.mxu0 0
    %1450 = vmatpush.bf16.msra.mxu0 0
    %1451 = vmatpush.bf16.msra.mxu0 0
    %1452 = vmatpush.bf16.msra.mxu0 0
    %1453 = vmatpush.bf16.msra.mxu0 0
    %1454 = vmatpush.bf16.msra.mxu0 %v1337
    %1455 = vmatpush.bf16.msra.mxu0 %v1310
    %1456 = vmatmul.bf16.gmra.mxu0 %v1404
    %v1457 = vpop.f32.mrf.mxu0
    %v1458 = vadd.f32 0.0, %v1457
    %v1459 = vpop.f32.mrf.mxu0
    %v1460 = vadd.f32 0.0, %v1459
    %1461 = vdwg.mxu0
    %v1462 = vmax.f32 %v1349, %v1416
    %v1463 = vmax.f32 %v1363, %v1430
    %v1464 = vmax.f32 %v1377, %v1444
    %v1465 = vmax.f32 %v1391, %v1458
    %v1466 = vmax.f32 %v1351, %v1418
    %v1467 = vmax.f32 %v1365, %v1432
    %v1468 = vmax.f32 %v1379, %v1446
    %v1469 = vmax.f32 %v1393, %v1460
    %v1470 = vpack.c.bf16 %v1466, %v1462
    %v1471 = vpack.c.bf16 %v1467, %v1463
    %v1472 = vpack.c.bf16 %v1468, %v1464
    %v1473 = vpack.c.bf16 %v1469, %v1465
    %v1474 = vld [vmem:[%s4] sm:$0xff]
    %v1475 = vld [vmem:[%s4 + $0x8] sm:$0xff]
    %v1476 = vld [vmem:[%s4 + $0x10] sm:$0xff]
    %v1477 = vld [vmem:[%s4 + $0x18] sm:$0xff]
    %v1478 = vld [vmem:[%s4 + $0x20] sm:$0xff]
    %v1479 = vld [vmem:[%s4 + $0x28] sm:$0xff]
    %v1480 = vld [vmem:[%s4 + $0x30] sm:$0xff]
    %v1481 = vld [vmem:[%s4 + $0x38] sm:$0xff]
    %v1482 = vld [vmem:[%s4 + $0x40] sm:$0xff]
    %v1483 = vld [vmem:[%s4 + $0x48] sm:$0xff]
    %v1484 = vld [vmem:[%s4 + $0x50] sm:$0xff]
    %v1485 = vld [vmem:[%s4 + $0x58] sm:$0xff]
    %v1486 = vld [vmem:[%s4 + $0x60] sm:$0xff]
    %v1487 = vld [vmem:[%s4 + $0x68] sm:$0xff]
    %v1488 = vld [vmem:[%s4 + $0x70] sm:$0xff]
    %v1489 = vld [vmem:[%s4 + $0x78] sm:$0xff]
    %v1490 = vld [vmem:[%s4 + $0x80] sm:$0xff]
    %v1491 = vld [vmem:[%s4 + $0x88] sm:$0xff]
    %v1492 = vld [vmem:[%s4 + $0x90] sm:$0xff]
    %v1493 = vld [vmem:[%s4 + $0x98] sm:$0xff]
    %v1494 = vld [vmem:[%s4 + $0xa0] sm:$0xff]
    %v1495 = vld [vmem:[%s4 + $0xa8] sm:$0xff]
    %v1496 = vld [vmem:[%s4 + $0xb0] sm:$0xff]
    %v1497 = vld [vmem:[%s4 + $0xb8] sm:$0xff]
    %v1498 = vld [vmem:[%s4 + $0xc0] sm:$0xff]
    %v1499 = vld [vmem:[%s4 + $0xc8] sm:$0xff]
    %v1500 = vld [vmem:[%s4 + $0xd0] sm:$0xff]
    %v1501 = vld [vmem:[%s4 + $0xd8] sm:$0xff]
    %v1502 = vld [vmem:[%s4 + $0xe0] sm:$0xff]
    %v1503 = vld [vmem:[%s4 + $0xe8] sm:$0xff]
    %v1504 = vld [vmem:[%s4 + $0xf0] sm:$0xff]
    %v1505 = vld [vmem:[%s4 + $0xf8] sm:$0xff]
    %v1506 = vld [vmem:[%s4 + $0x100] sm:$0xff]
    %v1507 = vld [vmem:[%s4 + $0x108] sm:$0xff]
    %v1508 = vld [vmem:[%s4 + $0x110] sm:$0xff]
    %v1509 = vld [vmem:[%s4 + $0x118] sm:$0xff]
    %v1510 = vld [vmem:[%s4 + $0x120] sm:$0xff]
    %v1511 = vld [vmem:[%s4 + $0x128] sm:$0xff]
    %v1512 = vld [vmem:[%s4 + $0x130] sm:$0xff]
    %v1513 = vld [vmem:[%s4 + $0x138] sm:$0xff]
    %v1514 = vld [vmem:[%s4 + $0x140] sm:$0xff]
    %v1515 = vld [vmem:[%s4 + $0x148] sm:$0xff]
    %v1516 = vld [vmem:[%s4 + $0x150] sm:$0xff]
    %v1517 = vld [vmem:[%s4 + $0x158] sm:$0xff]
    %v1518 = vld [vmem:[%s4 + $0x160] sm:$0xff]
    %v1519 = vld [vmem:[%s4 + $0x168] sm:$0xff]
    %v1520 = vld [vmem:[%s4 + $0x170] sm:$0xff]
    %v1521 = vld [vmem:[%s4 + $0x178] sm:$0xff]
    %v1522 = vld [vmem:[%s4 + $0x180] sm:$0xff]
    %v1523 = vld [vmem:[%s4 + $0x188] sm:$0xff]
    %v1524 = vld [vmem:[%s4 + $0x190] sm:$0xff]
    %v1525 = vld [vmem:[%s4 + $0x198] sm:$0xff]
    %v1526 = vld [vmem:[%s4 + $0x1a0] sm:$0xff]
    %v1527 = vld [vmem:[%s4 + $0x1a8] sm:$0xff]
    %v1528 = vld [vmem:[%s4 + $0x1b0] sm:$0xff]
    %v1529 = vld [vmem:[%s4 + $0x1b8] sm:$0xff]
    %v1586 = vunpack.c.l.b16 %v1474
    %v1587 = vunpack.c.h.b16 %v1474
    %v1588 = vunpack.c.l.b16 %v1475
    %v1589 = vunpack.c.h.b16 %v1475
    %v1590 = vunpack.c.l.b16 %v1476
    %v1591 = vunpack.c.h.b16 %v1476
    %v1592 = vunpack.c.l.b16 %v1477
    %v1593 = vunpack.c.h.b16 %v1477
    %v1594 = vunpack.c.l.b16 %v1478
    %v1595 = vunpack.c.h.b16 %v1478
    %v1596 = vunpack.c.l.b16 %v1479
    %v1597 = vunpack.c.h.b16 %v1479
    %v1598 = vunpack.c.l.b16 %v1480
    %v1599 = vunpack.c.h.b16 %v1480
    %v1600 = vunpack.c.l.b16 %v1481
    %v1601 = vunpack.c.h.b16 %v1481
    %v1602 = vunpack.c.l.b16 %v1482
    %v1603 = vunpack.c.h.b16 %v1482
    %v1604 = vunpack.c.l.b16 %v1483
    %v1605 = vunpack.c.h.b16 %v1483
    %v1606 = vunpack.c.l.b16 %v1484
    %v1607 = vunpack.c.h.b16 %v1484
    %v1608 = vunpack.c.l.b16 %v1485
    %v1609 = vunpack.c.h.b16 %v1485
    %v1610 = vunpack.c.l.b16 %v1486
    %v1611 = vunpack.c.h.b16 %v1486
    %v1612 = vunpack.c.l.b16 %v1487
    %v1613 = vunpack.c.h.b16 %v1487
    %v1614 = vunpack.c.l.b16 %v1488
    %v1615 = vunpack.c.h.b16 %v1488
    %v1616 = vunpack.c.l.b16 %v1489
    %v1617 = vunpack.c.h.b16 %v1489
    %v1618 = vunpack.c.l.b16 %v1490
    %v1619 = vunpack.c.h.b16 %v1490
    %v1620 = vunpack.c.l.b16 %v1491
    %v1621 = vunpack.c.h.b16 %v1491
    %v1622 = vunpack.c.l.b16 %v1492
    %v1623 = vunpack.c.h.b16 %v1492
    %v1624 = vunpack.c.l.b16 %v1493
    %v1625 = vunpack.c.h.b16 %v1493
    %v1626 = vunpack.c.l.b16 %v1494
    %v1627 = vunpack.c.h.b16 %v1494
    %v1628 = vunpack.c.l.b16 %v1495
    %v1629 = vunpack.c.h.b16 %v1495
    %v1630 = vunpack.c.l.b16 %v1496
    %v1631 = vunpack.c.h.b16 %v1496
    %v1632 = vunpack.c.l.b16 %v1497
    %v1633 = vunpack.c.h.b16 %v1497
    %v1634 = vunpack.c.l.b16 %v1498
    %v1635 = vunpack.c.h.b16 %v1498
    %v1636 = vunpack.c.l.b16 %v1499
    %v1637 = vunpack.c.h.b16 %v1499
    %v1638 = vunpack.c.l.b16 %v1500
    %v1639 = vunpack.c.h.b16 %v1500
    %v1640 = vunpack.c.l.b16 %v1501
    %v1641 = vunpack.c.h.b16 %v1501
    %v1642 = vunpack.c.l.b16 %v1502
    %v1643 = vunpack.c.h.b16 %v1502
    %v1644 = vunpack.c.l.b16 %v1503
    %v1645 = vunpack.c.h.b16 %v1503
    %v1646 = vunpack.c.l.b16 %v1504
    %v1647 = vunpack.c.h.b16 %v1504
    %v1648 = vunpack.c.l.b16 %v1505
    %v1649 = vunpack.c.h.b16 %v1505
    %v1650 = vunpack.c.l.b16 %v1506
    %v1651 = vunpack.c.h.b16 %v1506
    %v1652 = vunpack.c.l.b16 %v1507
    %v1653 = vunpack.c.h.b16 %v1507
    %v1654 = vunpack.c.l.b16 %v1508
    %v1655 = vunpack.c.h.b16 %v1508
    %v1656 = vunpack.c.l.b16 %v1509
    %v1657 = vunpack.c.h.b16 %v1509
    %v1658 = vunpack.c.l.b16 %v1510
    %v1659 = vunpack.c.h.b16 %v1510
    %v1660 = vunpack.c.l.b16 %v1511
    %v1661 = vunpack.c.h.b16 %v1511
    %v1662 = vunpack.c.l.b16 %v1512
    %v1663 = vunpack.c.h.b16 %v1512
    %v1664 = vunpack.c.l.b16 %v1513
    %v1665 = vunpack.c.h.b16 %v1513
    %v1666 = vunpack.c.l.b16 %v1514
    %v1667 = vunpack.c.h.b16 %v1514
    %v1668 = vunpack.c.l.b16 %v1515
    %v1669 = vunpack.c.h.b16 %v1515
    %v1670 = vunpack.c.l.b16 %v1516
    %v1671 = vunpack.c.h.b16 %v1516
    %v1672 = vunpack.c.l.b16 %v1517
    %v1673 = vunpack.c.h.b16 %v1517
    %v1674 = vunpack.c.l.b16 %v1518
    %v1675 = vunpack.c.h.b16 %v1518
    %v1676 = vunpack.c.l.b16 %v1519
    %v1677 = vunpack.c.h.b16 %v1519
    %v1678 = vunpack.c.l.b16 %v1520
    %v1679 = vunpack.c.h.b16 %v1520
    %v1680 = vunpack.c.l.b16 %v1521
    %v1681 = vunpack.c.h.b16 %v1521
    %v1682 = vunpack.c.l.b16 %v1522
    %v1683 = vunpack.c.h.b16 %v1522
    %v1684 = vunpack.c.l.b16 %v1523
    %v1685 = vunpack.c.h.b16 %v1523
    %v1686 = vunpack.c.l.b16 %v1524
    %v1687 = vunpack.c.h.b16 %v1524
    %v1688 = vunpack.c.l.b16 %v1525
    %v1689 = vunpack.c.h.b16 %v1525
    %v1690 = vunpack.c.l.b16 %v1526
    %v1691 = vunpack.c.h.b16 %v1526
    %v1692 = vunpack.c.l.b16 %v1527
    %v1693 = vunpack.c.h.b16 %v1527
    %v1694 = vunpack.c.l.b16 %v1528
    %v1695 = vunpack.c.h.b16 %v1528
    %v1696 = vunpack.c.l.b16 %v1529
    %v1697 = vunpack.c.h.b16 %v1529
    %v1698 = vpack.c.b16 %v1588, %v1586
    %v1699 = vpack.c.b16 %v1589, %v1587
    %v1700 = vpack.c.b16 %v1592, %v1590
    %v1701 = vpack.c.b16 %v1593, %v1591
    %v1702 = vpack.c.b16 %v1596, %v1594
    %v1703 = vpack.c.b16 %v1597, %v1595
    %v1704 = vpack.c.b16 %v1600, %v1598
    %v1705 = vpack.c.b16 %v1601, %v1599
    %v1706 = vpack.c.b16 %v1604, %v1602
    %v1707 = vpack.c.b16 %v1605, %v1603
    %v1708 = vpack.c.b16 %v1608, %v1606
    %v1709 = vpack.c.b16 %v1609, %v1607
    %v1710 = vpack.c.b16 %v1612, %v1610
    %v1711 = vpack.c.b16 %v1613, %v1611
    %v1712 = vpack.c.b16 %v1616, %v1614
    %v1713 = vpack.c.b16 %v1617, %v1615
    %v1714 = vpack.c.b16 %v1620, %v1618
    %v1715 = vpack.c.b16 %v1621, %v1619
    %v1716 = vpack.c.b16 %v1624, %v1622
    %v1717 = vpack.c.b16 %v1625, %v1623
    %v1718 = vpack.c.b16 %v1628, %v1626
    %v1719 = vpack.c.b16 %v1629, %v1627
    %v1720 = vpack.c.b16 %v1632, %v1630
    %v1721 = vpack.c.b16 %v1633, %v1631
    %v1722 = vpack.c.b16 %v1636, %v1634
    %v1723 = vpack.c.b16 %v1637, %v1635
    %v1724 = vpack.c.b16 %v1640, %v1638
    %v1725 = vpack.c.b16 %v1641, %v1639
    %v1726 = vpack.c.b16 %v1644, %v1642
    %v1727 = vpack.c.b16 %v1645, %v1643
    %v1728 = vpack.c.b16 %v1648, %v1646
    %v1729 = vpack.c.b16 %v1649, %v1647
    %v1730 = vpack.c.b16 %v1652, %v1650
    %v1731 = vpack.c.b16 %v1653, %v1651
    %v1732 = vpack.c.b16 %v1656, %v1654
    %v1733 = vpack.c.b16 %v1657, %v1655
    %v1734 = vpack.c.b16 %v1660, %v1658
    %v1735 = vpack.c.b16 %v1661, %v1659
    %v1736 = vpack.c.b16 %v1664, %v1662
    %v1737 = vpack.c.b16 %v1665, %v1663
    %v1738 = vpack.c.b16 %v1668, %v1666
    %v1739 = vpack.c.b16 %v1669, %v1667
    %v1740 = vpack.c.b16 %v1672, %v1670
    %v1741 = vpack.c.b16 %v1673, %v1671
    %v1742 = vpack.c.b16 %v1676, %v1674
    %v1743 = vpack.c.b16 %v1677, %v1675
    %v1744 = vpack.c.b16 %v1680, %v1678
    %v1745 = vpack.c.b16 %v1681, %v1679
    %v1746 = vpack.c.b16 %v1684, %v1682
    %v1747 = vpack.c.b16 %v1685, %v1683
    %v1748 = vpack.c.b16 %v1688, %v1686
    %v1749 = vpack.c.b16 %v1689, %v1687
    %v1750 = vpack.c.b16 %v1692, %v1690
    %v1751 = vpack.c.b16 %v1693, %v1691
    %v1752 = vpack.c.b16 %v1696, %v1694
    %v1753 = vpack.c.b16 %v1697, %v1695
    %vm1810 = vcmask 523264
    %v1812 = vsel %vm1810, %v1473, 0
    %1814 = vmatpush.bf16.msra.mxu0 %v1712
    %1815 = vmatpush.bf16.msra.mxu0 %v1710
    %1816 = vmatpush.bf16.msra.mxu0 %v1708
    %1817 = vmatpush.bf16.msra.mxu0 %v1706
    %1818 = vmatpush.bf16.msra.mxu0 %v1704
    %1819 = vmatpush.bf16.msra.mxu0 %v1702
    %1820 = vmatpush.bf16.msra.mxu0 %v1700
    %1821 = vmatpush.bf16.msra.mxu0 %v1698
    %1822 = vmatmul.bf16.gmra.mxu0 %v1470
    %v1823 = vpop.f32.mrf.mxu0
    %v1824 = vadd.f32 0.0, %v1823
    %v1825 = vpop.f32.mrf.mxu0
    %v1826 = vadd.f32 0.0, %v1825
    %1827 = vdwg.mxu0
    %1828 = vmatpush.bf16.msra.mxu0 %v1728
    %1829 = vmatpush.bf16.msra.mxu0 %v1726
    %1830 = vmatpush.bf16.msra.mxu0 %v1724
    %1831 = vmatpush.bf16.msra.mxu0 %v1722
    %1832 = vmatpush.bf16.msra.mxu0 %v1720
    %1833 = vmatpush.bf16.msra.mxu0 %v1718
    %1834 = vmatpush.bf16.msra.mxu0 %v1716
    %1835 = vmatpush.bf16.msra.mxu0 %v1714
    %1836 = vmatmul.bf16.gmra.mxu0 %v1471
    %v1837 = vpop.f32.mrf.mxu0
    %v1838 = vadd.f32 %v1824, %v1837
    %v1839 = vpop.f32.mrf.mxu0
    %v1840 = vadd.f32 %v1826, %v1839
    %1841 = vdwg.mxu0
    %1842 = vmatpush.bf16.msra.mxu0 %v1744
    %1843 = vmatpush.bf16.msra.mxu0 %v1742
    %1844 = vmatpush.bf16.msra.mxu0 %v1740
    %1845 = vmatpush.bf16.msra.mxu0 %v1738
    %1846 = vmatpush.bf16.msra.mxu0 %v1736
    %1847 = vmatpush.bf16.msra.mxu0 %v1734
    %1848 = vmatpush.bf16.msra.mxu0 %v1732
    %1849 = vmatpush.bf16.msra.mxu0 %v1730
    %1850 = vmatmul.bf16.gmra.mxu0 %v1472
    %v1851 = vpop.f32.mrf.mxu0
    %v1852 = vadd.f32 %v1838, %v1851
    %v1853 = vpop.f32.mrf.mxu0
    %v1854 = vadd.f32 %v1840, %v1853
    %1855 = vdwg.mxu0
    %1856 = vmatpush.bf16.msra.mxu0 0
    %1857 = vmatpush.bf16.msra.mxu0 0
    %1858 = vmatpush.bf16.msra.mxu0 0
    %1859 = vmatpush.bf16.msra.mxu0 0
    %1860 = vmatpush.bf16.msra.mxu0 %v1752
    %1861 = vmatpush.bf16.msra.mxu0 %v1750
    %1862 = vmatpush.bf16.msra.mxu0 %v1748
    %1863 = vmatpush.bf16.msra.mxu0 %v1746
    %1864 = vmatmul.bf16.gmra.mxu0 %v1812
    %v1865 = vpop.f32.mrf.mxu0
    %v1866 = vadd.f32 %v1852, %v1865
    %v1867 = vpop.f32.mrf.mxu0
    %v1868 = vadd.f32 %v1854, %v1867
    %1869 = vdwg.mxu0
    %1870 = vmatpush.bf16.msra.mxu0 %v1713
    %1871 = vmatpush.bf16.msra.mxu0 %v1711
    %1872 = vmatpush.bf16.msra.mxu0 %v1709
    %1873 = vmatpush.bf16.msra.mxu0 %v1707
    %1874 = vmatpush.bf16.msra.mxu0 %v1705
    %1875 = vmatpush.bf16.msra.mxu0 %v1703
    %1876 = vmatpush.bf16.msra.mxu0 %v1701
    %1877 = vmatpush.bf16.msra.mxu0 %v1699
    %1878 = vmatmul.bf16.gmra.mxu0 %v1470
    %v1879 = vpop.f32.mrf.mxu0
    %v1880 = vadd.f32 0.0, %v1879
    %v1881 = vpop.f32.mrf.mxu0
    %v1882 = vadd.f32 0.0, %v1881
    %1883 = vdwg.mxu0
    %1884 = vmatpush.bf16.msra.mxu0 %v1729
    %1885 = vmatpush.bf16.msra.mxu0 %v1727
    %1886 = vmatpush.bf16.msra.mxu0 %v1725
    %1887 = vmatpush.bf16.msra.mxu0 %v1723
    %1888 = vmatpush.bf16.msra.mxu0 %v1721
    %1889 = vmatpush.bf16.msra.mxu0 %v1719
    %1890 = vmatpush.bf16.msra.mxu0 %v1717
    %1891 = vmatpush.bf16.msra.mxu0 %v1715
    %1892 = vmatmul.bf16.gmra.mxu0 %v1471
    %v1893 = vpop.f32.mrf.mxu0
    %v1894 = vadd.f32 %v1880, %v1893
    %v1895 = vpop.f32.mrf.mxu0
    %v1896 = vadd.f32 %v1882, %v1895
    %1897 = vdwg.mxu0
    %1898 = vmatpush.bf16.msra.mxu0 %v1745
    %1899 = vmatpush.bf16.msra.mxu0 %v1743
    %1900 = vmatpush.bf16.msra.mxu0 %v1741
    %1901 = vmatpush.bf16.msra.mxu0 %v1739
    %1902 = vmatpush.bf16.msra.mxu0 %v1737
    %1903 = vmatpush.bf16.msra.mxu0 %v1735
    %1904 = vmatpush.bf16.msra.mxu0 %v1733
    %1905 = vmatpush.bf16.msra.mxu0 %v1731
    %1906 = vmatmul.bf16.gmra.mxu0 %v1472
    %v1907 = vpop.f32.mrf.mxu0
    %v1908 = vadd.f32 %v1894, %v1907
    %v1909 = vpop.f32.mrf.mxu0
    %v1910 = vadd.f32 %v1896, %v1909
    %1911 = vdwg.mxu0
    %1912 = vmatpush.bf16.msra.mxu0 0
    %1913 = vmatpush.bf16.msra.mxu0 0
    %1914 = vmatpush.bf16.msra.mxu0 0
    %1915 = vmatpush.bf16.msra.mxu0 0
    %1916 = vmatpush.bf16.msra.mxu0 %v1753
    %1917 = vmatpush.bf16.msra.mxu0 %v1751
    %1918 = vmatpush.bf16.msra.mxu0 %v1749
    %1919 = vmatpush.bf16.msra.mxu0 %v1747
    %1920 = vmatmul.bf16.gmra.mxu0 %v1812
    %v1921 = vpop.f32.mrf.mxu0
    %v1922 = vadd.f32 %v1908, %v1921
    %v1923 = vpop.f32.mrf.mxu0
    %v1924 = vadd.f32 %v1910, %v1923
    %1925 = vdwg.mxu0
    %s1926 = scalar_lea.vmem %s4, 448
    %v1927 = vld [vmem:[%s1926] sm:$0xff]
    %v1928 = vld [vmem:[%s1926 + $0x8] sm:$0xff]
    %v1929 = vld [vmem:[%s1926 + $0x10] sm:$0xff]
    %v1930 = vld [vmem:[%s1926 + $0x18] sm:$0xff]
    %v1931 = vld [vmem:[%s1926 + $0x20] sm:$0xff]
    %v1932 = vld [vmem:[%s1926 + $0x28] sm:$0xff]
    %v1933 = vld [vmem:[%s1926 + $0x30] sm:$0xff]
    %v1934 = vld [vmem:[%s1926 + $0x38] sm:$0xff]
    %v1935 = vld [vmem:[%s1926 + $0x40] sm:$0xff]
    %v1936 = vld [vmem:[%s1926 + $0x48] sm:$0xff]
    %v1937 = vld [vmem:[%s1926 + $0x50] sm:$0xff]
    %v1938 = vld [vmem:[%s1926 + $0x58] sm:$0xff]
    %v1939 = vld [vmem:[%s1926 + $0x60] sm:$0xff]
    %v1940 = vld [vmem:[%s1926 + $0x68] sm:$0xff]
    %v1941 = vld [vmem:[%s1926 + $0x70] sm:$0xff]
    %v1942 = vld [vmem:[%s1926 + $0x78] sm:$0xff]
    %v1943 = vld [vmem:[%s1926 + $0x80] sm:$0xff]
    %v1944 = vld [vmem:[%s1926 + $0x88] sm:$0xff]
    %v1945 = vld [vmem:[%s1926 + $0x90] sm:$0xff]
    %v1946 = vld [vmem:[%s1926 + $0x98] sm:$0xff]
    %v1947 = vld [vmem:[%s1926 + $0xa0] sm:$0xff]
    %v1948 = vld [vmem:[%s1926 + $0xa8] sm:$0xff]
    %v1949 = vld [vmem:[%s1926 + $0xb0] sm:$0xff]
    %v1950 = vld [vmem:[%s1926 + $0xb8] sm:$0xff]
    %v1951 = vld [vmem:[%s1926 + $0xc0] sm:$0xff]
    %v1952 = vld [vmem:[%s1926 + $0xc8] sm:$0xff]
    %v1953 = vld [vmem:[%s1926 + $0xd0] sm:$0xff]
    %v1954 = vld [vmem:[%s1926 + $0xd8] sm:$0xff]
    %v1955 = vld [vmem:[%s1926 + $0xe0] sm:$0xff]
    %v1956 = vld [vmem:[%s1926 + $0xe8] sm:$0xff]
    %v1957 = vld [vmem:[%s1926 + $0xf0] sm:$0xff]
    %v1958 = vld [vmem:[%s1926 + $0xf8] sm:$0xff]
    %v1959 = vld [vmem:[%s1926 + $0x100] sm:$0xff]
    %v1960 = vld [vmem:[%s1926 + $0x108] sm:$0xff]
    %v1961 = vld [vmem:[%s1926 + $0x110] sm:$0xff]
    %v1962 = vld [vmem:[%s1926 + $0x118] sm:$0xff]
    %v1963 = vld [vmem:[%s1926 + $0x120] sm:$0xff]
    %v1964 = vld [vmem:[%s1926 + $0x128] sm:$0xff]
    %v1965 = vld [vmem:[%s1926 + $0x130] sm:$0xff]
    %v1966 = vld [vmem:[%s1926 + $0x138] sm:$0xff]
    %v1967 = vld [vmem:[%s1926 + $0x140] sm:$0xff]
    %v1968 = vld [vmem:[%s1926 + $0x148] sm:$0xff]
    %v1969 = vld [vmem:[%s1926 + $0x150] sm:$0xff]
    %v1970 = vld [vmem:[%s1926 + $0x158] sm:$0xff]
    %v1971 = vld [vmem:[%s1926 + $0x160] sm:$0xff]
    %v1972 = vld [vmem:[%s1926 + $0x168] sm:$0xff]
    %v1973 = vld [vmem:[%s1926 + $0x170] sm:$0xff]
    %v1974 = vld [vmem:[%s1926 + $0x178] sm:$0xff]
    %v1975 = vld [vmem:[%s1926 + $0x180] sm:$0xff]
    %v1976 = vld [vmem:[%s1926 + $0x188] sm:$0xff]
    %v1977 = vld [vmem:[%s1926 + $0x190] sm:$0xff]
    %v1978 = vld [vmem:[%s1926 + $0x198] sm:$0xff]
    %v1979 = vld [vmem:[%s1926 + $0x1a0] sm:$0xff]
    %v1980 = vld [vmem:[%s1926 + $0x1a8] sm:$0xff]
    %v1981 = vld [vmem:[%s1926 + $0x1b0] sm:$0xff]
    %v1982 = vld [vmem:[%s1926 + $0x1b8] sm:$0xff]
    %v2039 = vunpack.c.l.b16 %v1927
    %v2040 = vunpack.c.h.b16 %v1927
    %v2041 = vunpack.c.l.b16 %v1928
    %v2042 = vunpack.c.h.b16 %v1928
    %v2043 = vunpack.c.l.b16 %v1929
    %v2044 = vunpack.c.h.b16 %v1929
    %v2045 = vunpack.c.l.b16 %v1930
    %v2046 = vunpack.c.h.b16 %v1930
    %v2047 = vunpack.c.l.b16 %v1931
    %v2048 = vunpack.c.h.b16 %v1931
    %v2049 = vunpack.c.l.b16 %v1932
    %v2050 = vunpack.c.h.b16 %v1932
    %v2051 = vunpack.c.l.b16 %v1933
    %v2052 = vunpack.c.h.b16 %v1933
    %v2053 = vunpack.c.l.b16 %v1934
    %v2054 = vunpack.c.h.b16 %v1934
    %v2055 = vunpack.c.l.b16 %v1935
    %v2056 = vunpack.c.h.b16 %v1935
    %v2057 = vunpack.c.l.b16 %v1936
    %v2058 = vunpack.c.h.b16 %v1936
    %v2059 = vunpack.c.l.b16 %v1937
    %v2060 = vunpack.c.h.b16 %v1937
    %v2061 = vunpack.c.l.b16 %v1938
    %v2062 = vunpack.c.h.b16 %v1938
    %v2063 = vunpack.c.l.b16 %v1939
    %v2064 = vunpack.c.h.b16 %v1939
    %v2065 = vunpack.c.l.b16 %v1940
    %v2066 = vunpack.c.h.b16 %v1940
    %v2067 = vunpack.c.l.b16 %v1941
    %v2068 = vunpack.c.h.b16 %v1941
    %v2069 = vunpack.c.l.b16 %v1942
    %v2070 = vunpack.c.h.b16 %v1942
    %v2071 = vunpack.c.l.b16 %v1943
    %v2072 = vunpack.c.h.b16 %v1943
    %v2073 = vunpack.c.l.b16 %v1944
    %v2074 = vunpack.c.h.b16 %v1944
    %v2075 = vunpack.c.l.b16 %v1945
    %v2076 = vunpack.c.h.b16 %v1945
    %v2077 = vunpack.c.l.b16 %v1946
    %v2078 = vunpack.c.h.b16 %v1946
    %v2079 = vunpack.c.l.b16 %v1947
    %v2080 = vunpack.c.h.b16 %v1947
    %v2081 = vunpack.c.l.b16 %v1948
    %v2082 = vunpack.c.h.b16 %v1948
    %v2083 = vunpack.c.l.b16 %v1949
    %v2084 = vunpack.c.h.b16 %v1949
    %v2085 = vunpack.c.l.b16 %v1950
    %v2086 = vunpack.c.h.b16 %v1950
    %v2087 = vunpack.c.l.b16 %v1951
    %v2088 = vunpack.c.h.b16 %v1951
    %v2089 = vunpack.c.l.b16 %v1952
    %v2090 = vunpack.c.h.b16 %v1952
    %v2091 = vunpack.c.l.b16 %v1953
    %v2092 = vunpack.c.h.b16 %v1953
    %v2093 = vunpack.c.l.b16 %v1954
    %v2094 = vunpack.c.h.b16 %v1954
    %v2095 = vunpack.c.l.b16 %v1955
    %v2096 = vunpack.c.h.b16 %v1955
    %v2097 = vunpack.c.l.b16 %v1956
    %v2098 = vunpack.c.h.b16 %v1956
    %v2099 = vunpack.c.l.b16 %v1957
    %v2100 = vunpack.c.h.b16 %v1957
    %v2101 = vunpack.c.l.b16 %v1958
    %v2102 = vunpack.c.h.b16 %v1958
    %v2103 = vunpack.c.l.b16 %v1959
    %v2104 = vunpack.c.h.b16 %v1959
    %v2105 = vunpack.c.l.b16 %v1960
    %v2106 = vunpack.c.h.b16 %v1960
    %v2107 = vunpack.c.l.b16 %v1961
    %v2108 = vunpack.c.h.b16 %v1961
    %v2109 = vunpack.c.l.b16 %v1962
    %v2110 = vunpack.c.h.b16 %v1962
    %v2111 = vunpack.c.l.b16 %v1963
    %v2112 = vunpack.c.h.b16 %v1963
    %v2113 = vunpack.c.l.b16 %v1964
    %v2114 = vunpack.c.h.b16 %v1964
    %v2115 = vunpack.c.l.b16 %v1965
    %v2116 = vunpack.c.h.b16 %v1965
    %v2117 = vunpack.c.l.b16 %v1966
    %v2118 = vunpack.c.h.b16 %v1966
    %v2119 = vunpack.c.l.b16 %v1967
    %v2120 = vunpack.c.h.b16 %v1967
    %v2121 = vunpack.c.l.b16 %v1968
    %v2122 = vunpack.c.h.b16 %v1968
    %v2123 = vunpack.c.l.b16 %v1969
    %v2124 = vunpack.c.h.b16 %v1969
    %v2125 = vunpack.c.l.b16 %v1970
    %v2126 = vunpack.c.h.b16 %v1970
    %v2127 = vunpack.c.l.b16 %v1971
    %v2128 = vunpack.c.h.b16 %v1971
    %v2129 = vunpack.c.l.b16 %v1972
    %v2130 = vunpack.c.h.b16 %v1972
    %v2131 = vunpack.c.l.b16 %v1973
    %v2132 = vunpack.c.h.b16 %v1973
    %v2133 = vunpack.c.l.b16 %v1974
    %v2134 = vunpack.c.h.b16 %v1974
    %v2135 = vunpack.c.l.b16 %v1975
    %v2136 = vunpack.c.h.b16 %v1975
    %v2137 = vunpack.c.l.b16 %v1976
    %v2138 = vunpack.c.h.b16 %v1976
    %v2139 = vunpack.c.l.b16 %v1977
    %v2140 = vunpack.c.h.b16 %v1977
    %v2141 = vunpack.c.l.b16 %v1978
    %v2142 = vunpack.c.h.b16 %v1978
    %v2143 = vunpack.c.l.b16 %v1979
    %v2144 = vunpack.c.h.b16 %v1979
    %v2145 = vunpack.c.l.b16 %v1980
    %v2146 = vunpack.c.h.b16 %v1980
    %v2147 = vunpack.c.l.b16 %v1981
    %v2148 = vunpack.c.h.b16 %v1981
    %v2149 = vunpack.c.l.b16 %v1982
    %v2150 = vunpack.c.h.b16 %v1982
    %v2151 = vpack.c.b16 %v2041, %v2039
    %v2152 = vpack.c.b16 %v2042, %v2040
    %v2153 = vpack.c.b16 %v2045, %v2043
    %v2154 = vpack.c.b16 %v2046, %v2044
    %v2155 = vpack.c.b16 %v2049, %v2047
    %v2156 = vpack.c.b16 %v2050, %v2048
    %v2157 = vpack.c.b16 %v2053, %v2051
    %v2158 = vpack.c.b16 %v2054, %v2052
    %v2159 = vpack.c.b16 %v2057, %v2055
    %v2160 = vpack.c.b16 %v2058, %v2056
    %v2161 = vpack.c.b16 %v2061, %v2059
    %v2162 = vpack.c.b16 %v2062, %v2060
    %v2163 = vpack.c.b16 %v2065, %v2063
    %v2164 = vpack.c.b16 %v2066, %v2064
    %v2165 = vpack.c.b16 %v2069, %v2067
    %v2166 = vpack.c.b16 %v2070, %v2068
    %v2167 = vpack.c.b16 %v2073, %v2071
    %v2168 = vpack.c.b16 %v2074, %v2072
    %v2169 = vpack.c.b16 %v2077, %v2075
    %v2170 = vpack.c.b16 %v2078, %v2076
    %v2171 = vpack.c.b16 %v2081, %v2079
    %v2172 = vpack.c.b16 %v2082, %v2080
    %v2173 = vpack.c.b16 %v2085, %v2083
    %v2174 = vpack.c.b16 %v2086, %v2084
    %v2175 = vpack.c.b16 %v2089, %v2087
    %v2176 = vpack.c.b16 %v2090, %v2088
    %v2177 = vpack.c.b16 %v2093, %v2091
    %v2178 = vpack.c.b16 %v2094, %v2092
    %v2179 = vpack.c.b16 %v2097, %v2095
    %v2180 = vpack.c.b16 %v2098, %v2096
    %v2181 = vpack.c.b16 %v2101, %v2099
    %v2182 = vpack.c.b16 %v2102, %v2100
    %v2183 = vpack.c.b16 %v2105, %v2103
    %v2184 = vpack.c.b16 %v2106, %v2104
    %v2185 = vpack.c.b16 %v2109, %v2107
    %v2186 = vpack.c.b16 %v2110, %v2108
    %v2187 = vpack.c.b16 %v2113, %v2111
    %v2188 = vpack.c.b16 %v2114, %v2112
    %v2189 = vpack.c.b16 %v2117, %v2115
    %v2190 = vpack.c.b16 %v2118, %v2116
    %v2191 = vpack.c.b16 %v2121, %v2119
    %v2192 = vpack.c.b16 %v2122, %v2120
    %v2193 = vpack.c.b16 %v2125, %v2123
    %v2194 = vpack.c.b16 %v2126, %v2124
    %v2195 = vpack.c.b16 %v2129, %v2127
    %v2196 = vpack.c.b16 %v2130, %v2128
    %v2197 = vpack.c.b16 %v2133, %v2131
    %v2198 = vpack.c.b16 %v2134, %v2132
    %v2199 = vpack.c.b16 %v2137, %v2135
    %v2200 = vpack.c.b16 %v2138, %v2136
    %v2201 = vpack.c.b16 %v2141, %v2139
    %v2202 = vpack.c.b16 %v2142, %v2140
    %v2203 = vpack.c.b16 %v2145, %v2143
    %v2204 = vpack.c.b16 %v2146, %v2144
    %v2205 = vpack.c.b16 %v2149, %v2147
    %v2206 = vpack.c.b16 %v2150, %v2148
    %2263 = vmatpush.bf16.msra.mxu0 %v2165
    %2264 = vmatpush.bf16.msra.mxu0 %v2163
    %2265 = vmatpush.bf16.msra.mxu0 %v2161
    %2266 = vmatpush.bf16.msra.mxu0 %v2159
    %2267 = vmatpush.bf16.msra.mxu0 %v2157
    %2268 = vmatpush.bf16.msra.mxu0 %v2155
    %2269 = vmatpush.bf16.msra.mxu0 %v2153
    %2270 = vmatpush.bf16.msra.mxu0 %v2151
    %2271 = vmatmul.bf16.gmra.mxu0 %v1470
    %v2272 = vpop.f32.mrf.mxu0
    %v2273 = vadd.f32 0.0, %v2272
    %v2274 = vpop.f32.mrf.mxu0
    %v2275 = vadd.f32 0.0, %v2274
    %2276 = vdwg.mxu0
    %2277 = vmatpush.bf16.msra.mxu0 %v2181
    %2278 = vmatpush.bf16.msra.mxu0 %v2179
    %2279 = vmatpush.bf16.msra.mxu0 %v2177
    %2280 = vmatpush.bf16.msra.mxu0 %v2175
    %2281 = vmatpush.bf16.msra.mxu0 %v2173
    %2282 = vmatpush.bf16.msra.mxu0 %v2171
    %2283 = vmatpush.bf16.msra.mxu0 %v2169
    %2284 = vmatpush.bf16.msra.mxu0 %v2167
    %2285 = vmatmul.bf16.gmra.mxu0 %v1471
    %v2286 = vpop.f32.mrf.mxu0
    %v2287 = vadd.f32 %v2273, %v2286
    %v2288 = vpop.f32.mrf.mxu0
    %v2289 = vadd.f32 %v2275, %v2288
    %2290 = vdwg.mxu0
    %2291 = vmatpush.bf16.msra.mxu0 %v2197
    %2292 = vmatpush.bf16.msra.mxu0 %v2195
    %2293 = vmatpush.bf16.msra.mxu0 %v2193
    %2294 = vmatpush.bf16.msra.mxu0 %v2191
    %2295 = vmatpush.bf16.msra.mxu0 %v2189
    %2296 = vmatpush.bf16.msra.mxu0 %v2187
    %2297 = vmatpush.bf16.msra.mxu0 %v2185
    %2298 = vmatpush.bf16.msra.mxu0 %v2183
    %2299 = vmatmul.bf16.gmra.mxu0 %v1472
    %v2300 = vpop.f32.mrf.mxu0
    %v2301 = vadd.f32 %v2287, %v2300
    %v2302 = vpop.f32.mrf.mxu0
    %v2303 = vadd.f32 %v2289, %v2302
    %2304 = vdwg.mxu0
    %2305 = vmatpush.bf16.msra.mxu0 0
    %2306 = vmatpush.bf16.msra.mxu0 0
    %2307 = vmatpush.bf16.msra.mxu0 0
    %2308 = vmatpush.bf16.msra.mxu0 0
    %2309 = vmatpush.bf16.msra.mxu0 %v2205
    %2310 = vmatpush.bf16.msra.mxu0 %v2203
    %2311 = vmatpush.bf16.msra.mxu0 %v2201
    %2312 = vmatpush.bf16.msra.mxu0 %v2199
    %2313 = vmatmul.bf16.gmra.mxu0 %v1812
    %v2314 = vpop.f32.mrf.mxu0
    %v2315 = vadd.f32 %v2301, %v2314
    %v2316 = vpop.f32.mrf.mxu0
    %v2317 = vadd.f32 %v2303, %v2316
    %2318 = vdwg.mxu0
    %2319 = vmatpush.bf16.msra.mxu0 %v2166
    %2320 = vmatpush.bf16.msra.mxu0 %v2164
    %2321 = vmatpush.bf16.msra.mxu0 %v2162
    %2322 = vmatpush.bf16.msra.mxu0 %v2160
    %2323 = vmatpush.bf16.msra.mxu0 %v2158
    %2324 = vmatpush.bf16.msra.mxu0 %v2156
    %2325 = vmatpush.bf16.msra.mxu0 %v2154
    %2326 = vmatpush.bf16.msra.mxu0 %v2152
    %2327 = vmatmul.bf16.gmra.mxu0 %v1470
    %v2328 = vpop.f32.mrf.mxu0
    %v2329 = vadd.f32 0.0, %v2328
    %v2330 = vpop.f32.mrf.mxu0
    %v2331 = vadd.f32 0.0, %v2330
    %2332 = vdwg.mxu0
    %2333 = vmatpush.bf16.msra.mxu0 %v2182
    %2334 = vmatpush.bf16.msra.mxu0 %v2180
    %2335 = vmatpush.bf16.msra.mxu0 %v2178
    %2336 = vmatpush.bf16.msra.mxu0 %v2176
    %2337 = vmatpush.bf16.msra.mxu0 %v2174
    %2338 = vmatpush.bf16.msra.mxu0 %v2172
    %2339 = vmatpush.bf16.msra.mxu0 %v2170
    %2340 = vmatpush.bf16.msra.mxu0 %v2168
    %2341 = vmatmul.bf16.gmra.mxu0 %v1471
    %v2342 = vpop.f32.mrf.mxu0
    %v2343 = vadd.f32 %v2329, %v2342
    %v2344 = vpop.f32.mrf.mxu0
    %v2345 = vadd.f32 %v2331, %v2344
    %2346 = vdwg.mxu0
    %2347 = vmatpush.bf16.msra.mxu0 %v2198
    %2348 = vmatpush.bf16.msra.mxu0 %v2196
    %2349 = vmatpush.bf16.msra.mxu0 %v2194
    %2350 = vmatpush.bf16.msra.mxu0 %v2192
    %2351 = vmatpush.bf16.msra.mxu0 %v2190
    %2352 = vmatpush.bf16.msra.mxu0 %v2188
    %2353 = vmatpush.bf16.msra.mxu0 %v2186
    %2354 = vmatpush.bf16.msra.mxu0 %v2184
    %2355 = vmatmul.bf16.gmra.mxu0 %v1472
    %v2356 = vpop.f32.mrf.mxu0
    %v2357 = vadd.f32 %v2343, %v2356
    %v2358 = vpop.f32.mrf.mxu0
    %v2359 = vadd.f32 %v2345, %v2358
    %2360 = vdwg.mxu0
    %2361 = vmatpush.bf16.msra.mxu0 0
    %2362 = vmatpush.bf16.msra.mxu0 0
    %2363 = vmatpush.bf16.msra.mxu0 0
    %2364 = vmatpush.bf16.msra.mxu0 0
    %2365 = vmatpush.bf16.msra.mxu0 %v2206
    %2366 = vmatpush.bf16.msra.mxu0 %v2204
    %2367 = vmatpush.bf16.msra.mxu0 %v2202
    %2368 = vmatpush.bf16.msra.mxu0 %v2200
    %2369 = vmatmul.bf16.gmra.mxu0 %v1812
    %v2370 = vpop.f32.mrf.mxu0
    %v2371 = vadd.f32 %v2357, %v2370
    %v2372 = vpop.f32.mrf.mxu0
    %v2373 = vadd.f32 %v2359, %v2372
    %2374 = vdwg.mxu0
    %v2375 = vmax.f32 %v1866, %v2315
    %v2376 = vmax.f32 %v1922, %v2371
    %v2377 = vmax.f32 %v1868, %v2317
    %v2378 = vmax.f32 %v1924, %v2373
    %v2379 = vpack.c.bf16 %v2377, %v2375
    %v2380 = vpack.c.bf16 %v2378, %v2376
    %v2381 = vld [vmem:[%s5] sm:$0xff]
    %v2382 = vld [vmem:[%s5 + $0x8] sm:$0xf]
    %v2383 = vld [vmem:[%s5 + $0xc] sm:$0xff]
    %v2384 = vld [vmem:[%s5 + $0x14] sm:$0xf]
    %v2385 = vld [vmem:[%s5 + $0x18] sm:$0xff]
    %v2386 = vld [vmem:[%s5 + $0x20] sm:$0xf]
    %v2387 = vld [vmem:[%s5 + $0x24] sm:$0xff]
    %v2388 = vld [vmem:[%s5 + $0x2c] sm:$0xf]
    %v2389 = vld [vmem:[%s5 + $0x30] sm:$0xff]
    %v2390 = vld [vmem:[%s5 + $0x38] sm:$0xf]
    %v2391 = vld [vmem:[%s5 + $0x3c] sm:$0xff]
    %v2392 = vld [vmem:[%s5 + $0x44] sm:$0xf]
    %v2393 = vld [vmem:[%s5 + $0x48] sm:$0xff]
    %v2394 = vld [vmem:[%s5 + $0x50] sm:$0xf]
    %v2395 = vld [vmem:[%s5 + $0x54] sm:$0xff]
    %v2396 = vld [vmem:[%s5 + $0x5c] sm:$0xf]
    %v2397 = vld [vmem:[%s5 + $0x60] sm:$0xff]
    %v2398 = vld [vmem:[%s5 + $0x68] sm:$0xf]
    %v2399 = vld [vmem:[%s5 + $0x6c] sm:$0xff]
    %v2400 = vld [vmem:[%s5 + $0x74] sm:$0xf]
    %v2401 = vld [vmem:[%s5 + $0x78] sm:$0xff]
    %v2402 = vld [vmem:[%s5 + $0x80] sm:$0xf]
    %v2403 = vld [vmem:[%s5 + $0x84] sm:$0xff]
    %v2404 = vld [vmem:[%s5 + $0x8c] sm:$0xf]
    %v2405 = vld [vmem:[%s5 + $0x90] sm:$0xff]
    %v2406 = vld [vmem:[%s5 + $0x98] sm:$0xf]
    %v2407 = vld [vmem:[%s5 + $0x9c] sm:$0xff]
    %v2408 = vld [vmem:[%s5 + $0xa4] sm:$0xf]
    %v2409 = vld [vmem:[%s5 + $0xa8] sm:$0xff]
    %v2410 = vld [vmem:[%s5 + $0xb0] sm:$0xf]
    %v2411 = vld [vmem:[%s5 + $0xb4] sm:$0xff]
    %v2412 = vld [vmem:[%s5 + $0xbc] sm:$0xf]
    %v2413 = vld [vmem:[%s5 + $0xc0] sm:$0xff]
    %v2414 = vld [vmem:[%s5 + $0xc8] sm:$0xf]
    %v2415 = vld [vmem:[%s5 + $0xcc] sm:$0xff]
    %v2416 = vld [vmem:[%s5 + $0xd4] sm:$0xf]
    %v2417 = vld [vmem:[%s5 + $0xd8] sm:$0xff]
    %v2418 = vld [vmem:[%s5 + $0xe0] sm:$0xf]
    %v2419 = vld [vmem:[%s5 + $0xe4] sm:$0xff]
    %v2420 = vld [vmem:[%s5 + $0xec] sm:$0xf]
    %v2421 = vld [vmem:[%s5 + $0xf0] sm:$0xff]
    %v2422 = vld [vmem:[%s5 + $0xf8] sm:$0xf]
    %v2423 = vld [vmem:[%s5 + $0xfc] sm:$0xff]
    %v2424 = vld [vmem:[%s5 + $0x104] sm:$0xf]
    %v2425 = vld [vmem:[%s5 + $0x108] sm:$0xff]
    %v2426 = vld [vmem:[%s5 + $0x110] sm:$0xf]
    %v2427 = vld [vmem:[%s5 + $0x114] sm:$0xff]
    %v2428 = vld [vmem:[%s5 + $0x11c] sm:$0xf]
    %v2429 = vld [vmem:[%s5 + $0x120] sm:$0xff]
    %v2430 = vld [vmem:[%s5 + $0x128] sm:$0xf]
    %v2431 = vld [vmem:[%s5 + $0x12c] sm:$0xff]
    %v2432 = vld [vmem:[%s5 + $0x134] sm:$0xf]
    %v2433 = vld [vmem:[%s5 + $0x138] sm:$0xff]
    %v2434 = vld [vmem:[%s5 + $0x140] sm:$0xf]
    %v2435 = vld [vmem:[%s5 + $0x144] sm:$0xff]
    %v2436 = vld [vmem:[%s5 + $0x14c] sm:$0xf]
    %s2437 = scalar_lea.vmem %s5, 336
    %v2438 = vld [vmem:[%s2437] sm:$0xff]
    %v2439 = vld [vmem:[%s2437 + $0x8] sm:$0xf]
    %v2440 = vld [vmem:[%s2437 + $0xc] sm:$0xff]
    %v2441 = vld [vmem:[%s2437 + $0x14] sm:$0xf]
    %v2442 = vld [vmem:[%s2437 + $0x18] sm:$0xff]
    %v2443 = vld [vmem:[%s2437 + $0x20] sm:$0xf]
    %v2444 = vld [vmem:[%s2437 + $0x24] sm:$0xff]
    %v2445 = vld [vmem:[%s2437 + $0x2c] sm:$0xf]
    %v2446 = vld [vmem:[%s2437 + $0x30] sm:$0xff]
    %v2447 = vld [vmem:[%s2437 + $0x38] sm:$0xf]
    %v2448 = vld [vmem:[%s2437 + $0x3c] sm:$0xff]
    %v2449 = vld [vmem:[%s2437 + $0x44] sm:$0xf]
    %v2450 = vld [vmem:[%s2437 + $0x48] sm:$0xff]
    %v2451 = vld [vmem:[%s2437 + $0x50] sm:$0xf]
    %v2452 = vld [vmem:[%s2437 + $0x54] sm:$0xff]
    %v2453 = vld [vmem:[%s2437 + $0x5c] sm:$0xf]
    %v2454 = vld [vmem:[%s2437 + $0x60] sm:$0xff]
    %v2455 = vld [vmem:[%s2437 + $0x68] sm:$0xf]
    %v2456 = vld [vmem:[%s2437 + $0x6c] sm:$0xff]
    %v2457 = vld [vmem:[%s2437 + $0x74] sm:$0xf]
    %v2458 = vld [vmem:[%s2437 + $0x78] sm:$0xff]
    %v2459 = vld [vmem:[%s2437 + $0x80] sm:$0xf]
    %v2460 = vld [vmem:[%s2437 + $0x84] sm:$0xff]
    %v2461 = vld [vmem:[%s2437 + $0x8c] sm:$0xf]
    %v2462 = vld [vmem:[%s2437 + $0x90] sm:$0xff]
    %v2463 = vld [vmem:[%s2437 + $0x98] sm:$0xf]
    %v2464 = vld [vmem:[%s2437 + $0x9c] sm:$0xff]
    %v2465 = vld [vmem:[%s2437 + $0xa4] sm:$0xf]
    %v2466 = vld [vmem:[%s2437 + $0xa8] sm:$0xff]
    %v2467 = vld [vmem:[%s2437 + $0xb0] sm:$0xf]
    %v2468 = vld [vmem:[%s2437 + $0xb4] sm:$0xff]
    %v2469 = vld [vmem:[%s2437 + $0xbc] sm:$0xf]
    %v2470 = vld [vmem:[%s2437 + $0xc0] sm:$0xff]
    %v2471 = vld [vmem:[%s2437 + $0xc8] sm:$0xf]
    %v2472 = vld [vmem:[%s2437 + $0xcc] sm:$0xff]
    %v2473 = vld [vmem:[%s2437 + $0xd4] sm:$0xf]
    %v2474 = vld [vmem:[%s2437 + $0xd8] sm:$0xff]
    %v2475 = vld [vmem:[%s2437 + $0xe0] sm:$0xf]
    %v2476 = vld [vmem:[%s2437 + $0xe4] sm:$0xff]
    %v2477 = vld [vmem:[%s2437 + $0xec] sm:$0xf]
    %v2478 = vld [vmem:[%s2437 + $0xf0] sm:$0xff]
    %v2479 = vld [vmem:[%s2437 + $0xf8] sm:$0xf]
    %v2480 = vld [vmem:[%s2437 + $0xfc] sm:$0xff]
    %v2481 = vld [vmem:[%s2437 + $0x104] sm:$0xf]
    %v2482 = vld [vmem:[%s2437 + $0x108] sm:$0xff]
    %v2483 = vld [vmem:[%s2437 + $0x110] sm:$0xf]
    %v2484 = vld [vmem:[%s2437 + $0x114] sm:$0xff]
    %v2485 = vld [vmem:[%s2437 + $0x11c] sm:$0xf]
    %v2486 = vld [vmem:[%s2437 + $0x120] sm:$0xff]
    %v2487 = vld [vmem:[%s2437 + $0x128] sm:$0xf]
    %v2488 = vld [vmem:[%s2437 + $0x12c] sm:$0xff]
    %v2489 = vld [vmem:[%s2437 + $0x134] sm:$0xf]
    %v2490 = vld [vmem:[%s2437 + $0x138] sm:$0xff]
    %v2491 = vld [vmem:[%s2437 + $0x140] sm:$0xf]
    %v2492 = vld [vmem:[%s2437 + $0x144] sm:$0xff]
    %v2493 = vld [vmem:[%s2437 + $0x14c] sm:$0xf]
    %v2495 = vshrl.u32 %v2379, 16
    %v2497 = vshll.u32 %v2379, 16
    %v2499 = vrot.slane %v2497, 1
    %v2500 = vor.u32 %v2495, %v2499
    %v2502 = vshrl.u32 %v2380, 16
    %v2504 = vshll.u32 %v2380, 16
    %v2506 = vrot.slane %v2504, 1
    %v2507 = vor.u32 %v2502, %v2506
    %v2565 = vunpack.c.l.b16 %v2438
    %v2566 = vunpack.c.h.b16 %v2438
    %v2567 = vunpack.c.l.b16 %v2439
    %v2568 = vunpack.c.l.b16 %v2440
    %v2569 = vunpack.c.h.b16 %v2440
    %v2570 = vunpack.c.l.b16 %v2441
    %v2571 = vunpack.c.l.b16 %v2442
    %v2572 = vunpack.c.h.b16 %v2442
    %v2573 = vunpack.c.l.b16 %v2443
    %v2574 = vunpack.c.l.b16 %v2444
    %v2575 = vunpack.c.h.b16 %v2444
    %v2576 = vunpack.c.l.b16 %v2445
    %v2577 = vunpack.c.l.b16 %v2446
    %v2578 = vunpack.c.h.b16 %v2446
    %v2579 = vunpack.c.l.b16 %v2447
    %v2580 = vunpack.c.l.b16 %v2448
    %v2581 = vunpack.c.h.b16 %v2448
    %v2582 = vunpack.c.l.b16 %v2449
    %v2583 = vunpack.c.l.b16 %v2450
    %v2584 = vunpack.c.h.b16 %v2450
    %v2585 = vunpack.c.l.b16 %v2451
    %v2586 = vunpack.c.l.b16 %v2452
    %v2587 = vunpack.c.h.b16 %v2452
    %v2588 = vunpack.c.l.b16 %v2453
    %v2589 = vunpack.c.l.b16 %v2454
    %v2590 = vunpack.c.h.b16 %v2454
    %v2591 = vunpack.c.l.b16 %v2455
    %v2592 = vunpack.c.l.b16 %v2456
    %v2593 = vunpack.c.h.b16 %v2456
    %v2594 = vunpack.c.l.b16 %v2457
    %v2595 = vunpack.c.l.b16 %v2458
    %v2596 = vunpack.c.h.b16 %v2458
    %v2597 = vunpack.c.l.b16 %v2459
    %v2598 = vunpack.c.l.b16 %v2460
    %v2599 = vunpack.c.h.b16 %v2460
    %v2600 = vunpack.c.l.b16 %v2461
    %v2601 = vunpack.c.l.b16 %v2462
    %v2602 = vunpack.c.h.b16 %v2462
    %v2603 = vunpack.c.l.b16 %v2463
    %v2604 = vunpack.c.l.b16 %v2464
    %v2605 = vunpack.c.h.b16 %v2464
    %v2606 = vunpack.c.l.b16 %v2465
    %v2607 = vunpack.c.l.b16 %v2466
    %v2608 = vunpack.c.h.b16 %v2466
    %v2609 = vunpack.c.l.b16 %v2467
    %v2610 = vunpack.c.l.b16 %v2468
    %v2611 = vunpack.c.h.b16 %v2468
    %v2612 = vunpack.c.l.b16 %v2469
    %v2613 = vunpack.c.l.b16 %v2470
    %v2614 = vunpack.c.h.b16 %v2470
    %v2615 = vunpack.c.l.b16 %v2471
    %v2616 = vunpack.c.l.b16 %v2472
    %v2617 = vunpack.c.h.b16 %v2472
    %v2618 = vunpack.c.l.b16 %v2473
    %v2619 = vunpack.c.l.b16 %v2474
    %v2620 = vunpack.c.h.b16 %v2474
    %v2621 = vunpack.c.l.b16 %v2475
    %v2622 = vunpack.c.l.b16 %v2476
    %v2623 = vunpack.c.h.b16 %v2476
    %v2624 = vunpack.c.l.b16 %v2477
    %v2625 = vunpack.c.l.b16 %v2478
    %v2626 = vunpack.c.h.b16 %v2478
    %v2627 = vunpack.c.l.b16 %v2479
    %v2628 = vunpack.c.l.b16 %v2480
    %v2629 = vunpack.c.h.b16 %v2480
    %v2630 = vunpack.c.l.b16 %v2481
    %v2631 = vunpack.c.l.b16 %v2482
    %v2632 = vunpack.c.h.b16 %v2482
    %v2633 = vunpack.c.l.b16 %v2483
    %v2634 = vunpack.c.l.b16 %v2484
    %v2635 = vunpack.c.h.b16 %v2484
    %v2636 = vunpack.c.l.b16 %v2485
    %v2637 = vunpack.c.l.b16 %v2486
    %v2638 = vunpack.c.h.b16 %v2486
    %v2639 = vunpack.c.l.b16 %v2487
    %v2640 = vunpack.c.l.b16 %v2488
    %v2641 = vunpack.c.h.b16 %v2488
    %v2642 = vunpack.c.l.b16 %v2489
    %v2643 = vunpack.c.l.b16 %v2490
    %v2644 = vunpack.c.h.b16 %v2490
    %v2645 = vunpack.c.l.b16 %v2491
    %v2646 = vunpack.c.l.b16 %v2492
    %v2647 = vunpack.c.h.b16 %v2492
    %v2648 = vunpack.c.l.b16 %v2493
    %v2649 = vpack.c.b16 %v2568, %v2565
    %v2650 = vpack.c.b16 %v2569, %v2566
    %v2651 = vpack.c.b16 %v2570, %v2567
    %v2652 = vpack.c.b16 %v2574, %v2571
    %v2653 = vpack.c.b16 %v2575, %v2572
    %v2654 = vpack.c.b16 %v2576, %v2573
    %v2655 = vpack.c.b16 %v2580, %v2577
    %v2656 = vpack.c.b16 %v2581, %v2578
    %v2657 = vpack.c.b16 %v2582, %v2579
    %v2658 = vpack.c.b16 %v2586, %v2583
    %v2659 = vpack.c.b16 %v2587, %v2584
    %v2660 = vpack.c.b16 %v2588, %v2585
    %v2661 = vpack.c.b16 %v2592, %v2589
    %v2662 = vpack.c.b16 %v2593, %v2590
    %v2663 = vpack.c.b16 %v2594, %v2591
    %v2664 = vpack.c.b16 %v2598, %v2595
    %v2665 = vpack.c.b16 %v2599, %v2596
    %v2666 = vpack.c.b16 %v2600, %v2597
    %v2667 = vpack.c.b16 %v2604, %v2601
    %v2668 = vpack.c.b16 %v2605, %v2602
    %v2669 = vpack.c.b16 %v2606, %v2603
    %v2670 = vpack.c.b16 %v2610, %v2607
    %v2671 = vpack.c.b16 %v2611, %v2608
    %v2672 = vpack.c.b16 %v2612, %v2609
    %v2673 = vpack.c.b16 %v2616, %v2613
    %v2674 = vpack.c.b16 %v2617, %v2614
    %v2675 = vpack.c.b16 %v2618, %v2615
    %v2676 = vpack.c.b16 %v2622, %v2619
    %v2677 = vpack.c.b16 %v2623, %v2620
    %v2678 = vpack.c.b16 %v2624, %v2621
    %v2679 = vpack.c.b16 %v2628, %v2625
    %v2680 = vpack.c.b16 %v2629, %v2626
    %v2681 = vpack.c.b16 %v2630, %v2627
    %v2682 = vpack.c.b16 %v2634, %v2631
    %v2683 = vpack.c.b16 %v2635, %v2632
    %v2684 = vpack.c.b16 %v2636, %v2633
    %v2685 = vpack.c.b16 %v2640, %v2637
    %v2686 = vpack.c.b16 %v2641, %v2638
    %v2687 = vpack.c.b16 %v2642, %v2639
    %v2688 = vpack.c.b16 %v2646, %v2643
    %v2689 = vpack.c.b16 %v2647, %v2644
    %v2690 = vpack.c.b16 %v2648, %v2645
    %v2734 = vsel %vm233, %v2507, 0
    %2736 = vmatpush.bf16.msra.mxu0 %v2670
    %2737 = vmatpush.bf16.msra.mxu0 %v2667
    %2738 = vmatpush.bf16.msra.mxu0 %v2664
    %2739 = vmatpush.bf16.msra.mxu0 %v2661
    %2740 = vmatpush.bf16.msra.mxu0 %v2658
    %2741 = vmatpush.bf16.msra.mxu0 %v2655
    %2742 = vmatpush.bf16.msra.mxu0 %v2652
    %2743 = vmatpush.bf16.msra.mxu0 %v2649
    %2744 = vmatmul.bf16.gmra.mxu0 %v2500
    %v2745 = vpop.f32.mrf.mxu0
    %v2746 = vadd.f32 0.0, %v2745
    %v2747 = vpop.f32.mrf.mxu0
    %v2748 = vadd.f32 0.0, %v2747
    %2749 = vdwg.mxu0
    %2750 = vmatpush.bf16.msra.mxu0 0
    %2751 = vmatpush.bf16.msra.mxu0 0
    %2752 = vmatpush.bf16.msra.mxu0 %v2688
    %2753 = vmatpush.bf16.msra.mxu0 %v2685
    %2754 = vmatpush.bf16.msra.mxu0 %v2682
    %2755 = vmatpush.bf16.msra.mxu0 %v2679
    %2756 = vmatpush.bf16.msra.mxu0 %v2676
    %2757 = vmatpush.bf16.msra.mxu0 %v2673
    %2758 = vmatmul.bf16.gmra.mxu0 %v2734
    %v2759 = vpop.f32.mrf.mxu0
    %v2760 = vadd.f32 %v2746, %v2759
    %v2761 = vpop.f32.mrf.mxu0
    %v2762 = vadd.f32 %v2748, %v2761
    %2763 = vdwg.mxu0
    %2764 = vmatpush.bf16.msra.mxu0 %v2671
    %2765 = vmatpush.bf16.msra.mxu0 %v2668
    %2766 = vmatpush.bf16.msra.mxu0 %v2665
    %2767 = vmatpush.bf16.msra.mxu0 %v2662
    %2768 = vmatpush.bf16.msra.mxu0 %v2659
    %2769 = vmatpush.bf16.msra.mxu0 %v2656
    %2770 = vmatpush.bf16.msra.mxu0 %v2653
    %2771 = vmatpush.bf16.msra.mxu0 %v2650
    %2772 = vmatmul.bf16.gmra.mxu0 %v2500
    %v2773 = vpop.f32.mrf.mxu0
    %v2774 = vadd.f32 0.0, %v2773
    %v2775 = vpop.f32.mrf.mxu0
    %v2776 = vadd.f32 0.0, %v2775
    %2777 = vdwg.mxu0
    %2778 = vmatpush.bf16.msra.mxu0 0
    %2779 = vmatpush.bf16.msra.mxu0 0
    %2780 = vmatpush.bf16.msra.mxu0 %v2689
    %2781 = vmatpush.bf16.msra.mxu0 %v2686
    %2782 = vmatpush.bf16.msra.mxu0 %v2683
    %2783 = vmatpush.bf16.msra.mxu0 %v2680
    %2784 = vmatpush.bf16.msra.mxu0 %v2677
    %2785 = vmatpush.bf16.msra.mxu0 %v2674
    %2786 = vmatmul.bf16.gmra.mxu0 %v2734
    %v2787 = vpop.f32.mrf.mxu0
    %v2788 = vadd.f32 %v2774, %v2787
    %v2789 = vpop.f32.mrf.mxu0
    %v2790 = vadd.f32 %v2776, %v2789
    %2791 = vdwg.mxu0
    %2792 = vmatpush.bf16.msra.mxu0 %v2672
    %2793 = vmatpush.bf16.msra.mxu0 %v2669
    %2794 = vmatpush.bf16.msra.mxu0 %v2666
    %2795 = vmatpush.bf16.msra.mxu0 %v2663
    %2796 = vmatpush.bf16.msra.mxu0 %v2660
    %2797 = vmatpush.bf16.msra.mxu0 %v2657
    %2798 = vmatpush.bf16.msra.mxu0 %v2654
    %2799 = vmatpush.bf16.msra.mxu0 %v2651
    %2800 = vmatmul.bf16.gmra.mxu0 %v2500
    %v2801 = vpop.f32.mrf.mxu0
    %v2802 = vadd.f32 0.0, %v2801
    %v2803 = vpop.f32.mrf.mxu0
    %v2804 = vadd.f32 0.0, %v2803
    %2805 = vdwg.mxu0
    %2806 = vmatpush.bf16.msra.mxu0 0
    %2807 = vmatpush.bf16.msra.mxu0 0
    %2808 = vmatpush.bf16.msra.mxu0 %v2690
    %2809 = vmatpush.bf16.msra.mxu0 %v2687
    %2810 = vmatpush.bf16.msra.mxu0 %v2684
    %2811 = vmatpush.bf16.msra.mxu0 %v2681
    %2812 = vmatpush.bf16.msra.mxu0 %v2678
    %2813 = vmatpush.bf16.msra.mxu0 %v2675
    %2814 = vmatmul.bf16.gmra.mxu0 %v2734
    %v2815 = vpop.f32.mrf.mxu0
    %v2816 = vadd.f32 %v2802, %v2815
    %v2817 = vpop.f32.mrf.mxu0
    %v2818 = vadd.f32 %v2804, %v2817
    %2819 = vdwg.mxu0
    %v2876 = vunpack.c.l.b16 %v2381
    %v2877 = vunpack.c.h.b16 %v2381
    %v2878 = vunpack.c.l.b16 %v2382
    %v2879 = vunpack.c.l.b16 %v2383
    %v2880 = vunpack.c.h.b16 %v2383
    %v2881 = vunpack.c.l.b16 %v2384
    %v2882 = vunpack.c.l.b16 %v2385
    %v2883 = vunpack.c.h.b16 %v2385
    %v2884 = vunpack.c.l.b16 %v2386
    %v2885 = vunpack.c.l.b16 %v2387
    %v2886 = vunpack.c.h.b16 %v2387
    %v2887 = vunpack.c.l.b16 %v2388
    %v2888 = vunpack.c.l.b16 %v2389
    %v2889 = vunpack.c.h.b16 %v2389
    %v2890 = vunpack.c.l.b16 %v2390
    %v2891 = vunpack.c.l.b16 %v2391
    %v2892 = vunpack.c.h.b16 %v2391
    %v2893 = vunpack.c.l.b16 %v2392
    %v2894 = vunpack.c.l.b16 %v2393
    %v2895 = vunpack.c.h.b16 %v2393
    %v2896 = vunpack.c.l.b16 %v2394
    %v2897 = vunpack.c.l.b16 %v2395
    %v2898 = vunpack.c.h.b16 %v2395
    %v2899 = vunpack.c.l.b16 %v2396
    %v2900 = vunpack.c.l.b16 %v2397
    %v2901 = vunpack.c.h.b16 %v2397
    %v2902 = vunpack.c.l.b16 %v2398
    %v2903 = vunpack.c.l.b16 %v2399
    %v2904 = vunpack.c.h.b16 %v2399
    %v2905 = vunpack.c.l.b16 %v2400
    %v2906 = vunpack.c.l.b16 %v2401
    %v2907 = vunpack.c.h.b16 %v2401
    %v2908 = vunpack.c.l.b16 %v2402
    %v2909 = vunpack.c.l.b16 %v2403
    %v2910 = vunpack.c.h.b16 %v2403
    %v2911 = vunpack.c.l.b16 %v2404
    %v2912 = vunpack.c.l.b16 %v2405
    %v2913 = vunpack.c.h.b16 %v2405
    %v2914 = vunpack.c.l.b16 %v2406
    %v2915 = vunpack.c.l.b16 %v2407
    %v2916 = vunpack.c.h.b16 %v2407
    %v2917 = vunpack.c.l.b16 %v2408
    %v2918 = vunpack.c.l.b16 %v2409
    %v2919 = vunpack.c.h.b16 %v2409
    %v2920 = vunpack.c.l.b16 %v2410
    %v2921 = vunpack.c.l.b16 %v2411
    %v2922 = vunpack.c.h.b16 %v2411
    %v2923 = vunpack.c.l.b16 %v2412
    %v2924 = vunpack.c.l.b16 %v2413
    %v2925 = vunpack.c.h.b16 %v2413
    %v2926 = vunpack.c.l.b16 %v2414
    %v2927 = vunpack.c.l.b16 %v2415
    %v2928 = vunpack.c.h.b16 %v2415
    %v2929 = vunpack.c.l.b16 %v2416
    %v2930 = vunpack.c.l.b16 %v2417
    %v2931 = vunpack.c.h.b16 %v2417
    %v2932 = vunpack.c.l.b16 %v2418
    %v2933 = vunpack.c.l.b16 %v2419
    %v2934 = vunpack.c.h.b16 %v2419
    %v2935 = vunpack.c.l.b16 %v2420
    %v2936 = vunpack.c.l.b16 %v2421
    %v2937 = vunpack.c.h.b16 %v2421
    %v2938 = vunpack.c.l.b16 %v2422
    %v2939 = vunpack.c.l.b16 %v2423
    %v2940 = vunpack.c.h.b16 %v2423
    %v2941 = vunpack.c.l.b16 %v2424
    %v2942 = vunpack.c.l.b16 %v2425
    %v2943 = vunpack.c.h.b16 %v2425
    %v2944 = vunpack.c.l.b16 %v2426
    %v2945 = vunpack.c.l.b16 %v2427
    %v2946 = vunpack.c.h.b16 %v2427
    %v2947 = vunpack.c.l.b16 %v2428
    %v2948 = vunpack.c.l.b16 %v2429
    %v2949 = vunpack.c.h.b16 %v2429
    %v2950 = vunpack.c.l.b16 %v2430
    %v2951 = vunpack.c.l.b16 %v2431
    %v2952 = vunpack.c.h.b16 %v2431
    %v2953 = vunpack.c.l.b16 %v2432
    %v2954 = vunpack.c.l.b16 %v2433
    %v2955 = vunpack.c.h.b16 %v2433
    %v2956 = vunpack.c.l.b16 %v2434
    %v2957 = vunpack.c.l.b16 %v2435
    %v2958 = vunpack.c.h.b16 %v2435
    %v2959 = vunpack.c.l.b16 %v2436
    %v2960 = vpack.c.b16 %v2879, %v2876
    %v2961 = vpack.c.b16 %v2880, %v2877
    %v2962 = vpack.c.b16 %v2881, %v2878
    %v2963 = vpack.c.b16 %v2885, %v2882
    %v2964 = vpack.c.b16 %v2886, %v2883
    %v2965 = vpack.c.b16 %v2887, %v2884
    %v2966 = vpack.c.b16 %v2891, %v2888
    %v2967 = vpack.c.b16 %v2892, %v2889
    %v2968 = vpack.c.b16 %v2893, %v2890
    %v2969 = vpack.c.b16 %v2897, %v2894
    %v2970 = vpack.c.b16 %v2898, %v2895
    %v2971 = vpack.c.b16 %v2899, %v2896
    %v2972 = vpack.c.b16 %v2903, %v2900
    %v2973 = vpack.c.b16 %v2904, %v2901
    %v2974 = vpack.c.b16 %v2905, %v2902
    %v2975 = vpack.c.b16 %v2909, %v2906
    %v2976 = vpack.c.b16 %v2910, %v2907
    %v2977 = vpack.c.b16 %v2911, %v2908
    %v2978 = vpack.c.b16 %v2915, %v2912
    %v2979 = vpack.c.b16 %v2916, %v2913
    %v2980 = vpack.c.b16 %v2917, %v2914
    %v2981 = vpack.c.b16 %v2921, %v2918
    %v2982 = vpack.c.b16 %v2922, %v2919
    %v2983 = vpack.c.b16 %v2923, %v2920
    %v2984 = vpack.c.b16 %v2927, %v2924
    %v2985 = vpack.c.b16 %v2928, %v2925
    %v2986 = vpack.c.b16 %v2929, %v2926
    %v2987 = vpack.c.b16 %v2933, %v2930
    %v2988 = vpack.c.b16 %v2934, %v2931
    %v2989 = vpack.c.b16 %v2935, %v2932
    %v2990 = vpack.c.b16 %v2939, %v2936
    %v2991 = vpack.c.b16 %v2940, %v2937
    %v2992 = vpack.c.b16 %v2941, %v2938
    %v2993 = vpack.c.b16 %v2945, %v2942
    %v2994 = vpack.c.b16 %v2946, %v2943
    %v2995 = vpack.c.b16 %v2947, %v2944
    %v2996 = vpack.c.b16 %v2951, %v2948
    %v2997 = vpack.c.b16 %v2952, %v2949
    %v2998 = vpack.c.b16 %v2953, %v2950
    %v2999 = vpack.c.b16 %v2957, %v2954
    %v3000 = vpack.c.b16 %v2958, %v2955
    %v3001 = vpack.c.b16 %v2959, %v2956
    %v3044 = vsel %vm233, %v2380, 0
    %3046 = vmatpush.bf16.msra.mxu0 %v2981
    %3047 = vmatpush.bf16.msra.mxu0 %v2978
    %3048 = vmatpush.bf16.msra.mxu0 %v2975
    %3049 = vmatpush.bf16.msra.mxu0 %v2972
    %3050 = vmatpush.bf16.msra.mxu0 %v2969
    %3051 = vmatpush.bf16.msra.mxu0 %v2966
    %3052 = vmatpush.bf16.msra.mxu0 %v2963
    %3053 = vmatpush.bf16.msra.mxu0 %v2960
    %3054 = vmatmul.bf16.gmra.mxu0 %v2379
    %v3055 = vpop.f32.mrf.mxu0
    %v3056 = vadd.f32 %v2760, %v3055
    %v3057 = vpop.f32.mrf.mxu0
    %v3058 = vadd.f32 %v2762, %v3057
    %3059 = vdwg.mxu0
    %3060 = vmatpush.bf16.msra.mxu0 0
    %3061 = vmatpush.bf16.msra.mxu0 0
    %3062 = vmatpush.bf16.msra.mxu0 %v2999
    %3063 = vmatpush.bf16.msra.mxu0 %v2996
    %3064 = vmatpush.bf16.msra.mxu0 %v2993
    %3065 = vmatpush.bf16.msra.mxu0 %v2990
    %3066 = vmatpush.bf16.msra.mxu0 %v2987
    %3067 = vmatpush.bf16.msra.mxu0 %v2984
    %3068 = vmatmul.bf16.gmra.mxu0 %v3044
    %v3069 = vpop.f32.mrf.mxu0
    %v3070 = vadd.f32 %v3056, %v3069
    %v3071 = vpop.f32.mrf.mxu0
    %v3072 = vadd.f32 %v3058, %v3071
    %3073 = vdwg.mxu0
    %3074 = vmatpush.bf16.msra.mxu0 %v2982
    %3075 = vmatpush.bf16.msra.mxu0 %v2979
    %3076 = vmatpush.bf16.msra.mxu0 %v2976
    %3077 = vmatpush.bf16.msra.mxu0 %v2973
    %3078 = vmatpush.bf16.msra.mxu0 %v2970
    %3079 = vmatpush.bf16.msra.mxu0 %v2967
    %3080 = vmatpush.bf16.msra.mxu0 %v2964
    %3081 = vmatpush.bf16.msra.mxu0 %v2961
    %3082 = vmatmul.bf16.gmra.mxu0 %v2379
    %v3083 = vpop.f32.mrf.mxu0
    %v3084 = vadd.f32 %v2788, %v3083
    %v3085 = vpop.f32.mrf.mxu0
    %v3086 = vadd.f32 %v2790, %v3085
    %3087 = vdwg.mxu0
    %3088 = vmatpush.bf16.msra.mxu0 0
    %3089 = vmatpush.bf16.msra.mxu0 0
    %3090 = vmatpush.bf16.msra.mxu0 %v3000
    %3091 = vmatpush.bf16.msra.mxu0 %v2997
    %3092 = vmatpush.bf16.msra.mxu0 %v2994
    %3093 = vmatpush.bf16.msra.mxu0 %v2991
    %3094 = vmatpush.bf16.msra.mxu0 %v2988
    %3095 = vmatpush.bf16.msra.mxu0 %v2985
    %3096 = vmatmul.bf16.gmra.mxu0 %v3044
    %v3097 = vpop.f32.mrf.mxu0
    %v3098 = vadd.f32 %v3084, %v3097
    %v3099 = vpop.f32.mrf.mxu0
    %v3100 = vadd.f32 %v3086, %v3099
    %3101 = vdwg.mxu0
    %3102 = vmatpush.bf16.msra.mxu0 %v2983
    %3103 = vmatpush.bf16.msra.mxu0 %v2980
    %3104 = vmatpush.bf16.msra.mxu0 %v2977
    %3105 = vmatpush.bf16.msra.mxu0 %v2974
    %3106 = vmatpush.bf16.msra.mxu0 %v2971
    %3107 = vmatpush.bf16.msra.mxu0 %v2968
    %3108 = vmatpush.bf16.msra.mxu0 %v2965
    %3109 = vmatpush.bf16.msra.mxu0 %v2962
    %3110 = vmatmul.bf16.gmra.mxu0 %v2379
    %v3111 = vpop.f32.mrf.mxu0
    %v3112 = vadd.f32 %v2816, %v3111
    %v3113 = vpop.f32.mrf.mxu0
    %v3114 = vadd.f32 %v2818, %v3113
    %3115 = vdwg.mxu0
    %3116 = vmatpush.bf16.msra.mxu0 0
    %3117 = vmatpush.bf16.msra.mxu0 0
    %3118 = vmatpush.bf16.msra.mxu0 %v3001
    %3119 = vmatpush.bf16.msra.mxu0 %v2998
    %3120 = vmatpush.bf16.msra.mxu0 %v2995
    %3121 = vmatpush.bf16.msra.mxu0 %v2992
    %3122 = vmatpush.bf16.msra.mxu0 %v2989
    %3123 = vmatpush.bf16.msra.mxu0 %v2986
    %3124 = vmatmul.bf16.gmra.mxu0 %v3044
    %v3125 = vpop.f32.mrf.mxu0
    %v3126 = vadd.f32 %v3112, %v3125
    %v3127 = vpop.f32.mrf.mxu0
    %v3128 = vadd.f32 %v3114, %v3127
    %3129 = vdwg.mxu0
    %s3130 = scalar_lea.vmem %s5, 672
    %v3131 = vld [vmem:[%s3130] sm:$0xff]
    %v3132 = vld [vmem:[%s3130 + $0x8] sm:$0xf]
    %v3133 = vld [vmem:[%s3130 + $0xc] sm:$0xff]
    %v3134 = vld [vmem:[%s3130 + $0x14] sm:$0xf]
    %v3135 = vld [vmem:[%s3130 + $0x18] sm:$0xff]
    %v3136 = vld [vmem:[%s3130 + $0x20] sm:$0xf]
    %v3137 = vld [vmem:[%s3130 + $0x24] sm:$0xff]
    %v3138 = vld [vmem:[%s3130 + $0x2c] sm:$0xf]
    %v3139 = vld [vmem:[%s3130 + $0x30] sm:$0xff]
    %v3140 = vld [vmem:[%s3130 + $0x38] sm:$0xf]
    %v3141 = vld [vmem:[%s3130 + $0x3c] sm:$0xff]
    %v3142 = vld [vmem:[%s3130 + $0x44] sm:$0xf]
    %v3143 = vld [vmem:[%s3130 + $0x48] sm:$0xff]
    %v3144 = vld [vmem:[%s3130 + $0x50] sm:$0xf]
    %v3145 = vld [vmem:[%s3130 + $0x54] sm:$0xff]
    %v3146 = vld [vmem:[%s3130 + $0x5c] sm:$0xf]
    %v3147 = vld [vmem:[%s3130 + $0x60] sm:$0xff]
    %v3148 = vld [vmem:[%s3130 + $0x68] sm:$0xf]
    %v3149 = vld [vmem:[%s3130 + $0x6c] sm:$0xff]
    %v3150 = vld [vmem:[%s3130 + $0x74] sm:$0xf]
    %v3151 = vld [vmem:[%s3130 + $0x78] sm:$0xff]
    %v3152 = vld [vmem:[%s3130 + $0x80] sm:$0xf]
    %v3153 = vld [vmem:[%s3130 + $0x84] sm:$0xff]
    %v3154 = vld [vmem:[%s3130 + $0x8c] sm:$0xf]
    %v3155 = vld [vmem:[%s3130 + $0x90] sm:$0xff]
    %v3156 = vld [vmem:[%s3130 + $0x98] sm:$0xf]
    %v3157 = vld [vmem:[%s3130 + $0x9c] sm:$0xff]
    %v3158 = vld [vmem:[%s3130 + $0xa4] sm:$0xf]
    %v3159 = vld [vmem:[%s3130 + $0xa8] sm:$0xff]
    %v3160 = vld [vmem:[%s3130 + $0xb0] sm:$0xf]
    %v3161 = vld [vmem:[%s3130 + $0xb4] sm:$0xff]
    %v3162 = vld [vmem:[%s3130 + $0xbc] sm:$0xf]
    %v3163 = vld [vmem:[%s3130 + $0xc0] sm:$0xff]
    %v3164 = vld [vmem:[%s3130 + $0xc8] sm:$0xf]
    %v3165 = vld [vmem:[%s3130 + $0xcc] sm:$0xff]
    %v3166 = vld [vmem:[%s3130 + $0xd4] sm:$0xf]
    %v3167 = vld [vmem:[%s3130 + $0xd8] sm:$0xff]
    %v3168 = vld [vmem:[%s3130 + $0xe0] sm:$0xf]
    %v3169 = vld [vmem:[%s3130 + $0xe4] sm:$0xff]
    %v3170 = vld [vmem:[%s3130 + $0xec] sm:$0xf]
    %v3171 = vld [vmem:[%s3130 + $0xf0] sm:$0xff]
    %v3172 = vld [vmem:[%s3130 + $0xf8] sm:$0xf]
    %v3173 = vld [vmem:[%s3130 + $0xfc] sm:$0xff]
    %v3174 = vld [vmem:[%s3130 + $0x104] sm:$0xf]
    %v3175 = vld [vmem:[%s3130 + $0x108] sm:$0xff]
    %v3176 = vld [vmem:[%s3130 + $0x110] sm:$0xf]
    %v3177 = vld [vmem:[%s3130 + $0x114] sm:$0xff]
    %v3178 = vld [vmem:[%s3130 + $0x11c] sm:$0xf]
    %v3179 = vld [vmem:[%s3130 + $0x120] sm:$0xff]
    %v3180 = vld [vmem:[%s3130 + $0x128] sm:$0xf]
    %v3181 = vld [vmem:[%s3130 + $0x12c] sm:$0xff]
    %v3182 = vld [vmem:[%s3130 + $0x134] sm:$0xf]
    %v3183 = vld [vmem:[%s3130 + $0x138] sm:$0xff]
    %v3184 = vld [vmem:[%s3130 + $0x140] sm:$0xf]
    %v3185 = vld [vmem:[%s3130 + $0x144] sm:$0xff]
    %v3186 = vld [vmem:[%s3130 + $0x14c] sm:$0xf]
    %v3189 = vrot.slane %v2379, 1
    %v3190 = vrot.slane %v2380, 1
    %v3248 = vunpack.c.l.b16 %v3131
    %v3249 = vunpack.c.h.b16 %v3131
    %v3250 = vunpack.c.l.b16 %v3132
    %v3251 = vunpack.c.l.b16 %v3133
    %v3252 = vunpack.c.h.b16 %v3133
    %v3253 = vunpack.c.l.b16 %v3134
    %v3254 = vunpack.c.l.b16 %v3135
    %v3255 = vunpack.c.h.b16 %v3135
    %v3256 = vunpack.c.l.b16 %v3136
    %v3257 = vunpack.c.l.b16 %v3137
    %v3258 = vunpack.c.h.b16 %v3137
    %v3259 = vunpack.c.l.b16 %v3138
    %v3260 = vunpack.c.l.b16 %v3139
    %v3261 = vunpack.c.h.b16 %v3139
    %v3262 = vunpack.c.l.b16 %v3140
    %v3263 = vunpack.c.l.b16 %v3141
    %v3264 = vunpack.c.h.b16 %v3141
    %v3265 = vunpack.c.l.b16 %v3142
    %v3266 = vunpack.c.l.b16 %v3143
    %v3267 = vunpack.c.h.b16 %v3143
    %v3268 = vunpack.c.l.b16 %v3144
    %v3269 = vunpack.c.l.b16 %v3145
    %v3270 = vunpack.c.h.b16 %v3145
    %v3271 = vunpack.c.l.b16 %v3146
    %v3272 = vunpack.c.l.b16 %v3147
    %v3273 = vunpack.c.h.b16 %v3147
    %v3274 = vunpack.c.l.b16 %v3148
    %v3275 = vunpack.c.l.b16 %v3149
    %v3276 = vunpack.c.h.b16 %v3149
    %v3277 = vunpack.c.l.b16 %v3150
    %v3278 = vunpack.c.l.b16 %v3151
    %v3279 = vunpack.c.h.b16 %v3151
    %v3280 = vunpack.c.l.b16 %v3152
    %v3281 = vunpack.c.l.b16 %v3153
    %v3282 = vunpack.c.h.b16 %v3153
    %v3283 = vunpack.c.l.b16 %v3154
    %v3284 = vunpack.c.l.b16 %v3155
    %v3285 = vunpack.c.h.b16 %v3155
    %v3286 = vunpack.c.l.b16 %v3156
    %v3287 = vunpack.c.l.b16 %v3157
    %v3288 = vunpack.c.h.b16 %v3157
    %v3289 = vunpack.c.l.b16 %v3158
    %v3290 = vunpack.c.l.b16 %v3159
    %v3291 = vunpack.c.h.b16 %v3159
    %v3292 = vunpack.c.l.b16 %v3160
    %v3293 = vunpack.c.l.b16 %v3161
    %v3294 = vunpack.c.h.b16 %v3161
    %v3295 = vunpack.c.l.b16 %v3162
    %v3296 = vunpack.c.l.b16 %v3163
    %v3297 = vunpack.c.h.b16 %v3163
    %v3298 = vunpack.c.l.b16 %v3164
    %v3299 = vunpack.c.l.b16 %v3165
    %v3300 = vunpack.c.h.b16 %v3165
    %v3301 = vunpack.c.l.b16 %v3166
    %v3302 = vunpack.c.l.b16 %v3167
    %v3303 = vunpack.c.h.b16 %v3167
    %v3304 = vunpack.c.l.b16 %v3168
    %v3305 = vunpack.c.l.b16 %v3169
    %v3306 = vunpack.c.h.b16 %v3169
    %v3307 = vunpack.c.l.b16 %v3170
    %v3308 = vunpack.c.l.b16 %v3171
    %v3309 = vunpack.c.h.b16 %v3171
    %v3310 = vunpack.c.l.b16 %v3172
    %v3311 = vunpack.c.l.b16 %v3173
    %v3312 = vunpack.c.h.b16 %v3173
    %v3313 = vunpack.c.l.b16 %v3174
    %v3314 = vunpack.c.l.b16 %v3175
    %v3315 = vunpack.c.h.b16 %v3175
    %v3316 = vunpack.c.l.b16 %v3176
    %v3317 = vunpack.c.l.b16 %v3177
    %v3318 = vunpack.c.h.b16 %v3177
    %v3319 = vunpack.c.l.b16 %v3178
    %v3320 = vunpack.c.l.b16 %v3179
    %v3321 = vunpack.c.h.b16 %v3179
    %v3322 = vunpack.c.l.b16 %v3180
    %v3323 = vunpack.c.l.b16 %v3181
    %v3324 = vunpack.c.h.b16 %v3181
    %v3325 = vunpack.c.l.b16 %v3182
    %v3326 = vunpack.c.l.b16 %v3183
    %v3327 = vunpack.c.h.b16 %v3183
    %v3328 = vunpack.c.l.b16 %v3184
    %v3329 = vunpack.c.l.b16 %v3185
    %v3330 = vunpack.c.h.b16 %v3185
    %v3331 = vunpack.c.l.b16 %v3186
    %v3332 = vpack.c.b16 %v3251, %v3248
    %v3333 = vpack.c.b16 %v3252, %v3249
    %v3334 = vpack.c.b16 %v3253, %v3250
    %v3335 = vpack.c.b16 %v3257, %v3254
    %v3336 = vpack.c.b16 %v3258, %v3255
    %v3337 = vpack.c.b16 %v3259, %v3256
    %v3338 = vpack.c.b16 %v3263, %v3260
    %v3339 = vpack.c.b16 %v3264, %v3261
    %v3340 = vpack.c.b16 %v3265, %v3262
    %v3341 = vpack.c.b16 %v3269, %v3266
    %v3342 = vpack.c.b16 %v3270, %v3267
    %v3343 = vpack.c.b16 %v3271, %v3268
    %v3344 = vpack.c.b16 %v3275, %v3272
    %v3345 = vpack.c.b16 %v3276, %v3273
    %v3346 = vpack.c.b16 %v3277, %v3274
    %v3347 = vpack.c.b16 %v3281, %v3278
    %v3348 = vpack.c.b16 %v3282, %v3279
    %v3349 = vpack.c.b16 %v3283, %v3280
    %v3350 = vpack.c.b16 %v3287, %v3284
    %v3351 = vpack.c.b16 %v3288, %v3285
    %v3352 = vpack.c.b16 %v3289, %v3286
    %v3353 = vpack.c.b16 %v3293, %v3290
    %v3354 = vpack.c.b16 %v3294, %v3291
    %v3355 = vpack.c.b16 %v3295, %v3292
    %v3356 = vpack.c.b16 %v3299, %v3296
    %v3357 = vpack.c.b16 %v3300, %v3297
    %v3358 = vpack.c.b16 %v3301, %v3298
    %v3359 = vpack.c.b16 %v3305, %v3302
    %v3360 = vpack.c.b16 %v3306, %v3303
    %v3361 = vpack.c.b16 %v3307, %v3304
    %v3362 = vpack.c.b16 %v3311, %v3308
    %v3363 = vpack.c.b16 %v3312, %v3309
    %v3364 = vpack.c.b16 %v3313, %v3310
    %v3365 = vpack.c.b16 %v3317, %v3314
    %v3366 = vpack.c.b16 %v3318, %v3315
    %v3367 = vpack.c.b16 %v3319, %v3316
    %v3368 = vpack.c.b16 %v3323, %v3320
    %v3369 = vpack.c.b16 %v3324, %v3321
    %v3370 = vpack.c.b16 %v3325, %v3322
    %v3371 = vpack.c.b16 %v3329, %v3326
    %v3372 = vpack.c.b16 %v3330, %v3327
    %v3373 = vpack.c.b16 %v3331, %v3328
    %v3417 = vsel %vm233, %v3190, 0
    %3419 = vmatpush.bf16.msra.mxu0 %v3353
    %3420 = vmatpush.bf16.msra.mxu0 %v3350
    %3421 = vmatpush.bf16.msra.mxu0 %v3347
    %3422 = vmatpush.bf16.msra.mxu0 %v3344
    %3423 = vmatpush.bf16.msra.mxu0 %v3341
    %3424 = vmatpush.bf16.msra.mxu0 %v3338
    %3425 = vmatpush.bf16.msra.mxu0 %v3335
    %3426 = vmatpush.bf16.msra.mxu0 %v3332
    %3427 = vmatmul.bf16.gmra.mxu0 %v3189
    %v3428 = vpop.f32.mrf.mxu0
    %v3429 = vadd.f32 0.0, %v3428
    %v3430 = vpop.f32.mrf.mxu0
    %v3431 = vadd.f32 0.0, %v3430
    %3432 = vdwg.mxu0
    %3433 = vmatpush.bf16.msra.mxu0 0
    %3434 = vmatpush.bf16.msra.mxu0 0
    %3435 = vmatpush.bf16.msra.mxu0 %v3371
    %3436 = vmatpush.bf16.msra.mxu0 %v3368
    %3437 = vmatpush.bf16.msra.mxu0 %v3365
    %3438 = vmatpush.bf16.msra.mxu0 %v3362
    %3439 = vmatpush.bf16.msra.mxu0 %v3359
    %3440 = vmatpush.bf16.msra.mxu0 %v3356
    %3441 = vmatmul.bf16.gmra.mxu0 %v3417
    %v3442 = vpop.f32.mrf.mxu0
    %v3443 = vadd.f32 %v3429, %v3442
    %v3444 = vpop.f32.mrf.mxu0
    %v3445 = vadd.f32 %v3431, %v3444
    %3446 = vdwg.mxu0
    %3447 = vmatpush.bf16.msra.mxu0 %v3354
    %3448 = vmatpush.bf16.msra.mxu0 %v3351
    %3449 = vmatpush.bf16.msra.mxu0 %v3348
    %3450 = vmatpush.bf16.msra.mxu0 %v3345
    %3451 = vmatpush.bf16.msra.mxu0 %v3342
    %3452 = vmatpush.bf16.msra.mxu0 %v3339
    %3453 = vmatpush.bf16.msra.mxu0 %v3336
    %3454 = vmatpush.bf16.msra.mxu0 %v3333
    %3455 = vmatmul.bf16.gmra.mxu0 %v3189
    %v3456 = vpop.f32.mrf.mxu0
    %v3457 = vadd.f32 0.0, %v3456
    %v3458 = vpop.f32.mrf.mxu0
    %v3459 = vadd.f32 0.0, %v3458
    %3460 = vdwg.mxu0
    %3461 = vmatpush.bf16.msra.mxu0 0
    %3462 = vmatpush.bf16.msra.mxu0 0
    %3463 = vmatpush.bf16.msra.mxu0 %v3372
    %3464 = vmatpush.bf16.msra.mxu0 %v3369
    %3465 = vmatpush.bf16.msra.mxu0 %v3366
    %3466 = vmatpush.bf16.msra.mxu0 %v3363
    %3467 = vmatpush.bf16.msra.mxu0 %v3360
    %3468 = vmatpush.bf16.msra.mxu0 %v3357
    %3469 = vmatmul.bf16.gmra.mxu0 %v3417
    %v3470 = vpop.f32.mrf.mxu0
    %v3471 = vadd.f32 %v3457, %v3470
    %v3472 = vpop.f32.mrf.mxu0
    %v3473 = vadd.f32 %v3459, %v3472
    %3474 = vdwg.mxu0
    %3475 = vmatpush.bf16.msra.mxu0 %v3355
    %3476 = vmatpush.bf16.msra.mxu0 %v3352
    %3477 = vmatpush.bf16.msra.mxu0 %v3349
    %3478 = vmatpush.bf16.msra.mxu0 %v3346
    %3479 = vmatpush.bf16.msra.mxu0 %v3343
    %3480 = vmatpush.bf16.msra.mxu0 %v3340
    %3481 = vmatpush.bf16.msra.mxu0 %v3337
    %3482 = vmatpush.bf16.msra.mxu0 %v3334
    %3483 = vmatmul.bf16.gmra.mxu0 %v3189
    %v3484 = vpop.f32.mrf.mxu0
    %v3485 = vadd.f32 0.0, %v3484
    %v3486 = vpop.f32.mrf.mxu0
    %v3487 = vadd.f32 0.0, %v3486
    %3488 = vdwg.mxu0
    %3489 = vmatpush.bf16.msra.mxu0 0
    %3490 = vmatpush.bf16.msra.mxu0 0
    %3491 = vmatpush.bf16.msra.mxu0 %v3373
    %3492 = vmatpush.bf16.msra.mxu0 %v3370
    %3493 = vmatpush.bf16.msra.mxu0 %v3367
    %3494 = vmatpush.bf16.msra.mxu0 %v3364
    %3495 = vmatpush.bf16.msra.mxu0 %v3361
    %3496 = vmatpush.bf16.msra.mxu0 %v3358
    %3497 = vmatmul.bf16.gmra.mxu0 %v3417
    %v3498 = vpop.f32.mrf.mxu0
    %v3499 = vadd.f32 %v3485, %v3498
    %v3500 = vpop.f32.mrf.mxu0
    %v3501 = vadd.f32 %v3487, %v3500
    %3502 = vdwg.mxu0
    %v3503 = vadd.f32 %v3070, %v3443
    %v3504 = vadd.f32 %v3098, %v3471
    %v3505 = vadd.f32 %v3126, %v3499
    %v3506 = vadd.f32 %v3072, %v3445
    %v3507 = vadd.f32 %v3100, %v3473
    %v3508 = vadd.f32 %v3128, %v3501
    %s3509 = scalar_lea.vmem %s5, 1008
    %v3510 = vld [vmem:[%s3509] sm:$0xff]
    %v3511 = vld [vmem:[%s3509 + $0x8] sm:$0xf]
    %v3512 = vld [vmem:[%s3509 + $0xc] sm:$0xff]
    %v3513 = vld [vmem:[%s3509 + $0x14] sm:$0xf]
    %v3514 = vld [vmem:[%s3509 + $0x18] sm:$0xff]
    %v3515 = vld [vmem:[%s3509 + $0x20] sm:$0xf]
    %v3516 = vld [vmem:[%s3509 + $0x24] sm:$0xff]
    %v3517 = vld [vmem:[%s3509 + $0x2c] sm:$0xf]
    %v3518 = vld [vmem:[%s3509 + $0x30] sm:$0xff]
    %v3519 = vld [vmem:[%s3509 + $0x38] sm:$0xf]
    %v3520 = vld [vmem:[%s3509 + $0x3c] sm:$0xff]
    %v3521 = vld [vmem:[%s3509 + $0x44] sm:$0xf]
    %v3522 = vld [vmem:[%s3509 + $0x48] sm:$0xff]
    %v3523 = vld [vmem:[%s3509 + $0x50] sm:$0xf]
    %v3524 = vld [vmem:[%s3509 + $0x54] sm:$0xff]
    %v3525 = vld [vmem:[%s3509 + $0x5c] sm:$0xf]
    %v3526 = vld [vmem:[%s3509 + $0x60] sm:$0xff]
    %v3527 = vld [vmem:[%s3509 + $0x68] sm:$0xf]
    %v3528 = vld [vmem:[%s3509 + $0x6c] sm:$0xff]
    %v3529 = vld [vmem:[%s3509 + $0x74] sm:$0xf]
    %v3530 = vld [vmem:[%s3509 + $0x78] sm:$0xff]
    %v3531 = vld [vmem:[%s3509 + $0x80] sm:$0xf]
    %v3532 = vld [vmem:[%s3509 + $0x84] sm:$0xff]
    %v3533 = vld [vmem:[%s3509 + $0x8c] sm:$0xf]
    %v3534 = vld [vmem:[%s3509 + $0x90] sm:$0xff]
    %v3535 = vld [vmem:[%s3509 + $0x98] sm:$0xf]
    %v3536 = vld [vmem:[%s3509 + $0x9c] sm:$0xff]
    %v3537 = vld [vmem:[%s3509 + $0xa4] sm:$0xf]
    %v3538 = vld [vmem:[%s3509 + $0xa8] sm:$0xff]
    %v3539 = vld [vmem:[%s3509 + $0xb0] sm:$0xf]
    %v3540 = vld [vmem:[%s3509 + $0xb4] sm:$0xff]
    %v3541 = vld [vmem:[%s3509 + $0xbc] sm:$0xf]
    %v3542 = vld [vmem:[%s3509 + $0xc0] sm:$0xff]
    %v3543 = vld [vmem:[%s3509 + $0xc8] sm:$0xf]
    %v3544 = vld [vmem:[%s3509 + $0xcc] sm:$0xff]
    %v3545 = vld [vmem:[%s3509 + $0xd4] sm:$0xf]
    %v3546 = vld [vmem:[%s3509 + $0xd8] sm:$0xff]
    %v3547 = vld [vmem:[%s3509 + $0xe0] sm:$0xf]
    %v3548 = vld [vmem:[%s3509 + $0xe4] sm:$0xff]
    %v3549 = vld [vmem:[%s3509 + $0xec] sm:$0xf]
    %v3550 = vld [vmem:[%s3509 + $0xf0] sm:$0xff]
    %v3551 = vld [vmem:[%s3509 + $0xf8] sm:$0xf]
    %v3552 = vld [vmem:[%s3509 + $0xfc] sm:$0xff]
    %v3553 = vld [vmem:[%s3509 + $0x104] sm:$0xf]
    %v3554 = vld [vmem:[%s3509 + $0x108] sm:$0xff]
    %v3555 = vld [vmem:[%s3509 + $0x110] sm:$0xf]
    %v3556 = vld [vmem:[%s3509 + $0x114] sm:$0xff]
    %v3557 = vld [vmem:[%s3509 + $0x11c] sm:$0xf]
    %v3558 = vld [vmem:[%s3509 + $0x120] sm:$0xff]
    %v3559 = vld [vmem:[%s3509 + $0x128] sm:$0xf]
    %v3560 = vld [vmem:[%s3509 + $0x12c] sm:$0xff]
    %v3561 = vld [vmem:[%s3509 + $0x134] sm:$0xf]
    %v3562 = vld [vmem:[%s3509 + $0x138] sm:$0xff]
    %v3563 = vld [vmem:[%s3509 + $0x140] sm:$0xf]
    %v3564 = vld [vmem:[%s3509 + $0x144] sm:$0xff]
    %v3565 = vld [vmem:[%s3509 + $0x14c] sm:$0xf]
    %v3566 = vrot.slane %v2495, 1
    %v3567 = vrot.slane %v2497, 2
    %v3568 = vor.u32 %v3566, %v3567
    %v3569 = vrot.slane %v2502, 1
    %v3570 = vrot.slane %v2504, 2
    %v3571 = vor.u32 %v3569, %v3570
    %v3629 = vunpack.c.l.b16 %v3510
    %v3630 = vunpack.c.h.b16 %v3510
    %v3631 = vunpack.c.l.b16 %v3511
    %v3632 = vunpack.c.l.b16 %v3512
    %v3633 = vunpack.c.h.b16 %v3512
    %v3634 = vunpack.c.l.b16 %v3513
    %v3635 = vunpack.c.l.b16 %v3514
    %v3636 = vunpack.c.h.b16 %v3514
    %v3637 = vunpack.c.l.b16 %v3515
    %v3638 = vunpack.c.l.b16 %v3516
    %v3639 = vunpack.c.h.b16 %v3516
    %v3640 = vunpack.c.l.b16 %v3517
    %v3641 = vunpack.c.l.b16 %v3518
    %v3642 = vunpack.c.h.b16 %v3518
    %v3643 = vunpack.c.l.b16 %v3519
    %v3644 = vunpack.c.l.b16 %v3520
    %v3645 = vunpack.c.h.b16 %v3520
    %v3646 = vunpack.c.l.b16 %v3521
    %v3647 = vunpack.c.l.b16 %v3522
    %v3648 = vunpack.c.h.b16 %v3522
    %v3649 = vunpack.c.l.b16 %v3523
    %v3650 = vunpack.c.l.b16 %v3524
    %v3651 = vunpack.c.h.b16 %v3524
    %v3652 = vunpack.c.l.b16 %v3525
    %v3653 = vunpack.c.l.b16 %v3526
    %v3654 = vunpack.c.h.b16 %v3526
    %v3655 = vunpack.c.l.b16 %v3527
    %v3656 = vunpack.c.l.b16 %v3528
    %v3657 = vunpack.c.h.b16 %v3528
    %v3658 = vunpack.c.l.b16 %v3529
    %v3659 = vunpack.c.l.b16 %v3530
    %v3660 = vunpack.c.h.b16 %v3530
    %v3661 = vunpack.c.l.b16 %v3531
    %v3662 = vunpack.c.l.b16 %v3532
    %v3663 = vunpack.c.h.b16 %v3532
    %v3664 = vunpack.c.l.b16 %v3533
    %v3665 = vunpack.c.l.b16 %v3534
    %v3666 = vunpack.c.h.b16 %v3534
    %v3667 = vunpack.c.l.b16 %v3535
    %v3668 = vunpack.c.l.b16 %v3536
    %v3669 = vunpack.c.h.b16 %v3536
    %v3670 = vunpack.c.l.b16 %v3537
    %v3671 = vunpack.c.l.b16 %v3538
    %v3672 = vunpack.c.h.b16 %v3538
    %v3673 = vunpack.c.l.b16 %v3539
    %v3674 = vunpack.c.l.b16 %v3540
    %v3675 = vunpack.c.h.b16 %v3540
    %v3676 = vunpack.c.l.b16 %v3541
    %v3677 = vunpack.c.l.b16 %v3542
    %v3678 = vunpack.c.h.b16 %v3542
    %v3679 = vunpack.c.l.b16 %v3543
    %v3680 = vunpack.c.l.b16 %v3544
    %v3681 = vunpack.c.h.b16 %v3544
    %v3682 = vunpack.c.l.b16 %v3545
    %v3683 = vunpack.c.l.b16 %v3546
    %v3684 = vunpack.c.h.b16 %v3546
    %v3685 = vunpack.c.l.b16 %v3547
    %v3686 = vunpack.c.l.b16 %v3548
    %v3687 = vunpack.c.h.b16 %v3548
    %v3688 = vunpack.c.l.b16 %v3549
    %v3689 = vunpack.c.l.b16 %v3550
    %v3690 = vunpack.c.h.b16 %v3550
    %v3691 = vunpack.c.l.b16 %v3551
    %v3692 = vunpack.c.l.b16 %v3552
    %v3693 = vunpack.c.h.b16 %v3552
    %v3694 = vunpack.c.l.b16 %v3553
    %v3695 = vunpack.c.l.b16 %v3554
    %v3696 = vunpack.c.h.b16 %v3554
    %v3697 = vunpack.c.l.b16 %v3555
    %v3698 = vunpack.c.l.b16 %v3556
    %v3699 = vunpack.c.h.b16 %v3556
    %v3700 = vunpack.c.l.b16 %v3557
    %v3701 = vunpack.c.l.b16 %v3558
    %v3702 = vunpack.c.h.b16 %v3558
    %v3703 = vunpack.c.l.b16 %v3559
    %v3704 = vunpack.c.l.b16 %v3560
    %v3705 = vunpack.c.h.b16 %v3560
    %v3706 = vunpack.c.l.b16 %v3561
    %v3707 = vunpack.c.l.b16 %v3562
    %v3708 = vunpack.c.h.b16 %v3562
    %v3709 = vunpack.c.l.b16 %v3563
    %v3710 = vunpack.c.l.b16 %v3564
    %v3711 = vunpack.c.h.b16 %v3564
    %v3712 = vunpack.c.l.b16 %v3565
    %v3713 = vpack.c.b16 %v3632, %v3629
    %v3714 = vpack.c.b16 %v3633, %v3630
    %v3715 = vpack.c.b16 %v3634, %v3631
    %v3716 = vpack.c.b16 %v3638, %v3635
    %v3717 = vpack.c.b16 %v3639, %v3636
    %v3718 = vpack.c.b16 %v3640, %v3637
    %v3719 = vpack.c.b16 %v3644, %v3641
    %v3720 = vpack.c.b16 %v3645, %v3642
    %v3721 = vpack.c.b16 %v3646, %v3643
    %v3722 = vpack.c.b16 %v3650, %v3647
    %v3723 = vpack.c.b16 %v3651, %v3648
    %v3724 = vpack.c.b16 %v3652, %v3649
    %v3725 = vpack.c.b16 %v3656, %v3653
    %v3726 = vpack.c.b16 %v3657, %v3654
    %v3727 = vpack.c.b16 %v3658, %v3655
    %v3728 = vpack.c.b16 %v3662, %v3659
    %v3729 = vpack.c.b16 %v3663, %v3660
    %v3730 = vpack.c.b16 %v3664, %v3661
    %v3731 = vpack.c.b16 %v3668, %v3665
    %v3732 = vpack.c.b16 %v3669, %v3666
    %v3733 = vpack.c.b16 %v3670, %v3667
    %v3734 = vpack.c.b16 %v3674, %v3671
    %v3735 = vpack.c.b16 %v3675, %v3672
    %v3736 = vpack.c.b16 %v3676, %v3673
    %v3737 = vpack.c.b16 %v3680, %v3677
    %v3738 = vpack.c.b16 %v3681, %v3678
    %v3739 = vpack.c.b16 %v3682, %v3679
    %v3740 = vpack.c.b16 %v3686, %v3683
    %v3741 = vpack.c.b16 %v3687, %v3684
    %v3742 = vpack.c.b16 %v3688, %v3685
    %v3743 = vpack.c.b16 %v3692, %v3689
    %v3744 = vpack.c.b16 %v3693, %v3690
    %v3745 = vpack.c.b16 %v3694, %v3691
    %v3746 = vpack.c.b16 %v3698, %v3695
    %v3747 = vpack.c.b16 %v3699, %v3696
    %v3748 = vpack.c.b16 %v3700, %v3697
    %v3749 = vpack.c.b16 %v3704, %v3701
    %v3750 = vpack.c.b16 %v3705, %v3702
    %v3751 = vpack.c.b16 %v3706, %v3703
    %v3752 = vpack.c.b16 %v3710, %v3707
    %v3753 = vpack.c.b16 %v3711, %v3708
    %v3754 = vpack.c.b16 %v3712, %v3709
    %v3798 = vsel %vm233, %v3571, 0
    %3800 = vmatpush.bf16.msra.mxu0 %v3734
    %3801 = vmatpush.bf16.msra.mxu0 %v3731
    %3802 = vmatpush.bf16.msra.mxu0 %v3728
    %3803 = vmatpush.bf16.msra.mxu0 %v3725
    %3804 = vmatpush.bf16.msra.mxu0 %v3722
    %3805 = vmatpush.bf16.msra.mxu0 %v3719
    %3806 = vmatpush.bf16.msra.mxu0 %v3716
    %3807 = vmatpush.bf16.msra.mxu0 %v3713
    %3808 = vmatmul.bf16.gmra.mxu0 %v3568
    %v3809 = vpop.f32.mrf.mxu0
    %v3810 = vadd.f32 0.0, %v3809
    %v3811 = vpop.f32.mrf.mxu0
    %v3812 = vadd.f32 0.0, %v3811
    %3813 = vdwg.mxu0
    %3814 = vmatpush.bf16.msra.mxu0 0
    %3815 = vmatpush.bf16.msra.mxu0 0
    %3816 = vmatpush.bf16.msra.mxu0 %v3752
    %3817 = vmatpush.bf16.msra.mxu0 %v3749
    %3818 = vmatpush.bf16.msra.mxu0 %v3746
    %3819 = vmatpush.bf16.msra.mxu0 %v3743
    %3820 = vmatpush.bf16.msra.mxu0 %v3740
    %3821 = vmatpush.bf16.msra.mxu0 %v3737
    %3822 = vmatmul.bf16.gmra.mxu0 %v3798
    %v3823 = vpop.f32.mrf.mxu0
    %v3824 = vadd.f32 %v3810, %v3823
    %v3825 = vpop.f32.mrf.mxu0
    %v3826 = vadd.f32 %v3812, %v3825
    %3827 = vdwg.mxu0
    %3828 = vmatpush.bf16.msra.mxu0 %v3735
    %3829 = vmatpush.bf16.msra.mxu0 %v3732
    %3830 = vmatpush.bf16.msra.mxu0 %v3729
    %3831 = vmatpush.bf16.msra.mxu0 %v3726
    %3832 = vmatpush.bf16.msra.mxu0 %v3723
    %3833 = vmatpush.bf16.msra.mxu0 %v3720
    %3834 = vmatpush.bf16.msra.mxu0 %v3717
    %3835 = vmatpush.bf16.msra.mxu0 %v3714
    %3836 = vmatmul.bf16.gmra.mxu0 %v3568
    %v3837 = vpop.f32.mrf.mxu0
    %v3838 = vadd.f32 0.0, %v3837
    %v3839 = vpop.f32.mrf.mxu0
    %v3840 = vadd.f32 0.0, %v3839
    %3841 = vdwg.mxu0
    %3842 = vmatpush.bf16.msra.mxu0 0
    %3843 = vmatpush.bf16.msra.mxu0 0
    %3844 = vmatpush.bf16.msra.mxu0 %v3753
    %3845 = vmatpush.bf16.msra.mxu0 %v3750
    %3846 = vmatpush.bf16.msra.mxu0 %v3747
    %3847 = vmatpush.bf16.msra.mxu0 %v3744
    %3848 = vmatpush.bf16.msra.mxu0 %v3741
    %3849 = vmatpush.bf16.msra.mxu0 %v3738
    %3850 = vmatmul.bf16.gmra.mxu0 %v3798
    %v3851 = vpop.f32.mrf.mxu0
    %v3852 = vadd.f32 %v3838, %v3851
    %v3853 = vpop.f32.mrf.mxu0
    %v3854 = vadd.f32 %v3840, %v3853
    %3855 = vdwg.mxu0
    %3856 = vmatpush.bf16.msra.mxu0 %v3736
    %3857 = vmatpush.bf16.msra.mxu0 %v3733
    %3858 = vmatpush.bf16.msra.mxu0 %v3730
    %3859 = vmatpush.bf16.msra.mxu0 %v3727
    %3860 = vmatpush.bf16.msra.mxu0 %v3724
    %3861 = vmatpush.bf16.msra.mxu0 %v3721
    %3862 = vmatpush.bf16.msra.mxu0 %v3718
    %3863 = vmatpush.bf16.msra.mxu0 %v3715
    %3864 = vmatmul.bf16.gmra.mxu0 %v3568
    %v3865 = vpop.f32.mrf.mxu0
    %v3866 = vadd.f32 0.0, %v3865
    %v3867 = vpop.f32.mrf.mxu0
    %v3868 = vadd.f32 0.0, %v3867
    %3869 = vdwg.mxu0
    %3870 = vmatpush.bf16.msra.mxu0 0
    %3871 = vmatpush.bf16.msra.mxu0 0
    %3872 = vmatpush.bf16.msra.mxu0 %v3754
    %3873 = vmatpush.bf16.msra.mxu0 %v3751
    %3874 = vmatpush.bf16.msra.mxu0 %v3748
    %3875 = vmatpush.bf16.msra.mxu0 %v3745
    %3876 = vmatpush.bf16.msra.mxu0 %v3742
    %3877 = vmatpush.bf16.msra.mxu0 %v3739
    %3878 = vmatmul.bf16.gmra.mxu0 %v3798
    %v3879 = vpop.f32.mrf.mxu0
    %v3880 = vadd.f32 %v3866, %v3879
    %v3881 = vpop.f32.mrf.mxu0
    %v3882 = vadd.f32 %v3868, %v3881
    %3883 = vdwg.mxu0
    %v3884 = vadd.f32 %v3503, %v3824
    %v3885 = vadd.f32 %v3504, %v3852
    %v3886 = vadd.f32 %v3505, %v3880
    %v3887 = vadd.f32 %v3506, %v3826
    %v3888 = vadd.f32 %v3507, %v3854
    %v3889 = vadd.f32 %v3508, %v3882
    %s3890 = scalar_lea.vmem %s5, 1344
    %v3891 = vld [vmem:[%s3890] sm:$0xff]
    %v3892 = vld [vmem:[%s3890 + $0x8] sm:$0xf]
    %v3893 = vld [vmem:[%s3890 + $0xc] sm:$0xff]
    %v3894 = vld [vmem:[%s3890 + $0x14] sm:$0xf]
    %v3895 = vld [vmem:[%s3890 + $0x18] sm:$0xff]
    %v3896 = vld [vmem:[%s3890 + $0x20] sm:$0xf]
    %v3897 = vld [vmem:[%s3890 + $0x24] sm:$0xff]
    %v3898 = vld [vmem:[%s3890 + $0x2c] sm:$0xf]
    %v3899 = vld [vmem:[%s3890 + $0x30] sm:$0xff]
    %v3900 = vld [vmem:[%s3890 + $0x38] sm:$0xf]
    %v3901 = vld [vmem:[%s3890 + $0x3c] sm:$0xff]
    %v3902 = vld [vmem:[%s3890 + $0x44] sm:$0xf]
    %v3903 = vld [vmem:[%s3890 + $0x48] sm:$0xff]
    %v3904 = vld [vmem:[%s3890 + $0x50] sm:$0xf]
    %v3905 = vld [vmem:[%s3890 + $0x54] sm:$0xff]
    %v3906 = vld [vmem:[%s3890 + $0x5c] sm:$0xf]
    %v3907 = vld [vmem:[%s3890 + $0x60] sm:$0xff]
    %v3908 = vld [vmem:[%s3890 + $0x68] sm:$0xf]
    %v3909 = vld [vmem:[%s3890 + $0x6c] sm:$0xff]
    %v3910 = vld [vmem:[%s3890 + $0x74] sm:$0xf]
    %v3911 = vld [vmem:[%s3890 + $0x78] sm:$0xff]
    %v3912 = vld [vmem:[%s3890 + $0x80] sm:$0xf]
    %v3913 = vld [vmem:[%s3890 + $0x84] sm:$0xff]
    %v3914 = vld [vmem:[%s3890 + $0x8c] sm:$0xf]
    %v3915 = vld [vmem:[%s3890 + $0x90] sm:$0xff]
    %v3916 = vld [vmem:[%s3890 + $0x98] sm:$0xf]
    %v3917 = vld [vmem:[%s3890 + $0x9c] sm:$0xff]
    %v3918 = vld [vmem:[%s3890 + $0xa4] sm:$0xf]
    %v3919 = vld [vmem:[%s3890 + $0xa8] sm:$0xff]
    %v3920 = vld [vmem:[%s3890 + $0xb0] sm:$0xf]
    %v3921 = vld [vmem:[%s3890 + $0xb4] sm:$0xff]
    %v3922 = vld [vmem:[%s3890 + $0xbc] sm:$0xf]
    %v3923 = vld [vmem:[%s3890 + $0xc0] sm:$0xff]
    %v3924 = vld [vmem:[%s3890 + $0xc8] sm:$0xf]
    %v3925 = vld [vmem:[%s3890 + $0xcc] sm:$0xff]
    %v3926 = vld [vmem:[%s3890 + $0xd4] sm:$0xf]
    %v3927 = vld [vmem:[%s3890 + $0xd8] sm:$0xff]
    %v3928 = vld [vmem:[%s3890 + $0xe0] sm:$0xf]
    %v3929 = vld [vmem:[%s3890 + $0xe4] sm:$0xff]
    %v3930 = vld [vmem:[%s3890 + $0xec] sm:$0xf]
    %v3931 = vld [vmem:[%s3890 + $0xf0] sm:$0xff]
    %v3932 = vld [vmem:[%s3890 + $0xf8] sm:$0xf]
    %v3933 = vld [vmem:[%s3890 + $0xfc] sm:$0xff]
    %v3934 = vld [vmem:[%s3890 + $0x104] sm:$0xf]
    %v3935 = vld [vmem:[%s3890 + $0x108] sm:$0xff]
    %v3936 = vld [vmem:[%s3890 + $0x110] sm:$0xf]
    %v3937 = vld [vmem:[%s3890 + $0x114] sm:$0xff]
    %v3938 = vld [vmem:[%s3890 + $0x11c] sm:$0xf]
    %v3939 = vld [vmem:[%s3890 + $0x120] sm:$0xff]
    %v3940 = vld [vmem:[%s3890 + $0x128] sm:$0xf]
    %v3941 = vld [vmem:[%s3890 + $0x12c] sm:$0xff]
    %v3942 = vld [vmem:[%s3890 + $0x134] sm:$0xf]
    %v3943 = vld [vmem:[%s3890 + $0x138] sm:$0xff]
    %v3944 = vld [vmem:[%s3890 + $0x140] sm:$0xf]
    %v3945 = vld [vmem:[%s3890 + $0x144] sm:$0xff]
    %v3946 = vld [vmem:[%s3890 + $0x14c] sm:$0xf]
    %v3947 = vrot.slane %v2379, 2
    %v3948 = vrot.slane %v2380, 2
    %v4006 = vunpack.c.l.b16 %v3891
    %v4007 = vunpack.c.h.b16 %v3891
    %v4008 = vunpack.c.l.b16 %v3892
    %v4009 = vunpack.c.l.b16 %v3893
    %v4010 = vunpack.c.h.b16 %v3893
    %v4011 = vunpack.c.l.b16 %v3894
    %v4012 = vunpack.c.l.b16 %v3895
    %v4013 = vunpack.c.h.b16 %v3895
    %v4014 = vunpack.c.l.b16 %v3896
    %v4015 = vunpack.c.l.b16 %v3897
    %v4016 = vunpack.c.h.b16 %v3897
    %v4017 = vunpack.c.l.b16 %v3898
    %v4018 = vunpack.c.l.b16 %v3899
    %v4019 = vunpack.c.h.b16 %v3899
    %v4020 = vunpack.c.l.b16 %v3900
    %v4021 = vunpack.c.l.b16 %v3901
    %v4022 = vunpack.c.h.b16 %v3901
    %v4023 = vunpack.c.l.b16 %v3902
    %v4024 = vunpack.c.l.b16 %v3903
    %v4025 = vunpack.c.h.b16 %v3903
    %v4026 = vunpack.c.l.b16 %v3904
    %v4027 = vunpack.c.l.b16 %v3905
    %v4028 = vunpack.c.h.b16 %v3905
    %v4029 = vunpack.c.l.b16 %v3906
    %v4030 = vunpack.c.l.b16 %v3907
    %v4031 = vunpack.c.h.b16 %v3907
    %v4032 = vunpack.c.l.b16 %v3908
    %v4033 = vunpack.c.l.b16 %v3909
    %v4034 = vunpack.c.h.b16 %v3909
    %v4035 = vunpack.c.l.b16 %v3910
    %v4036 = vunpack.c.l.b16 %v3911
    %v4037 = vunpack.c.h.b16 %v3911
    %v4038 = vunpack.c.l.b16 %v3912
    %v4039 = vunpack.c.l.b16 %v3913
    %v4040 = vunpack.c.h.b16 %v3913
    %v4041 = vunpack.c.l.b16 %v3914
    %v4042 = vunpack.c.l.b16 %v3915
    %v4043 = vunpack.c.h.b16 %v3915
    %v4044 = vunpack.c.l.b16 %v3916
    %v4045 = vunpack.c.l.b16 %v3917
    %v4046 = vunpack.c.h.b16 %v3917
    %v4047 = vunpack.c.l.b16 %v3918
    %v4048 = vunpack.c.l.b16 %v3919
    %v4049 = vunpack.c.h.b16 %v3919
    %v4050 = vunpack.c.l.b16 %v3920
    %v4051 = vunpack.c.l.b16 %v3921
    %v4052 = vunpack.c.h.b16 %v3921
    %v4053 = vunpack.c.l.b16 %v3922
    %v4054 = vunpack.c.l.b16 %v3923
    %v4055 = vunpack.c.h.b16 %v3923
    %v4056 = vunpack.c.l.b16 %v3924
    %v4057 = vunpack.c.l.b16 %v3925
    %v4058 = vunpack.c.h.b16 %v3925
    %v4059 = vunpack.c.l.b16 %v3926
    %v4060 = vunpack.c.l.b16 %v3927
    %v4061 = vunpack.c.h.b16 %v3927
    %v4062 = vunpack.c.l.b16 %v3928
    %v4063 = vunpack.c.l.b16 %v3929
    %v4064 = vunpack.c.h.b16 %v3929
    %v4065 = vunpack.c.l.b16 %v3930
    %v4066 = vunpack.c.l.b16 %v3931
    %v4067 = vunpack.c.h.b16 %v3931
    %v4068 = vunpack.c.l.b16 %v3932
    %v4069 = vunpack.c.l.b16 %v3933
    %v4070 = vunpack.c.h.b16 %v3933
    %v4071 = vunpack.c.l.b16 %v3934
    %v4072 = vunpack.c.l.b16 %v3935
    %v4073 = vunpack.c.h.b16 %v3935
    %v4074 = vunpack.c.l.b16 %v3936
    %v4075 = vunpack.c.l.b16 %v3937
    %v4076 = vunpack.c.h.b16 %v3937
    %v4077 = vunpack.c.l.b16 %v3938
    %v4078 = vunpack.c.l.b16 %v3939
    %v4079 = vunpack.c.h.b16 %v3939
    %v4080 = vunpack.c.l.b16 %v3940
    %v4081 = vunpack.c.l.b16 %v3941
    %v4082 = vunpack.c.h.b16 %v3941
    %v4083 = vunpack.c.l.b16 %v3942
    %v4084 = vunpack.c.l.b16 %v3943
    %v4085 = vunpack.c.h.b16 %v3943
    %v4086 = vunpack.c.l.b16 %v3944
    %v4087 = vunpack.c.l.b16 %v3945
    %v4088 = vunpack.c.h.b16 %v3945
    %v4089 = vunpack.c.l.b16 %v3946
    %v4090 = vpack.c.b16 %v4009, %v4006
    %v4091 = vpack.c.b16 %v4010, %v4007
    %v4092 = vpack.c.b16 %v4011, %v4008
    %v4093 = vpack.c.b16 %v4015, %v4012
    %v4094 = vpack.c.b16 %v4016, %v4013
    %v4095 = vpack.c.b16 %v4017, %v4014
    %v4096 = vpack.c.b16 %v4021, %v4018
    %v4097 = vpack.c.b16 %v4022, %v4019
    %v4098 = vpack.c.b16 %v4023, %v4020
    %v4099 = vpack.c.b16 %v4027, %v4024
    %v4100 = vpack.c.b16 %v4028, %v4025
    %v4101 = vpack.c.b16 %v4029, %v4026
    %v4102 = vpack.c.b16 %v4033, %v4030
    %v4103 = vpack.c.b16 %v4034, %v4031
    %v4104 = vpack.c.b16 %v4035, %v4032
    %v4105 = vpack.c.b16 %v4039, %v4036
    %v4106 = vpack.c.b16 %v4040, %v4037
    %v4107 = vpack.c.b16 %v4041, %v4038
    %v4108 = vpack.c.b16 %v4045, %v4042
    %v4109 = vpack.c.b16 %v4046, %v4043
    %v4110 = vpack.c.b16 %v4047, %v4044
    %v4111 = vpack.c.b16 %v4051, %v4048
    %v4112 = vpack.c.b16 %v4052, %v4049
    %v4113 = vpack.c.b16 %v4053, %v4050
    %v4114 = vpack.c.b16 %v4057, %v4054
    %v4115 = vpack.c.b16 %v4058, %v4055
    %v4116 = vpack.c.b16 %v4059, %v4056
    %v4117 = vpack.c.b16 %v4063, %v4060
    %v4118 = vpack.c.b16 %v4064, %v4061
    %v4119 = vpack.c.b16 %v4065, %v4062
    %v4120 = vpack.c.b16 %v4069, %v4066
    %v4121 = vpack.c.b16 %v4070, %v4067
    %v4122 = vpack.c.b16 %v4071, %v4068
    %v4123 = vpack.c.b16 %v4075, %v4072
    %v4124 = vpack.c.b16 %v4076, %v4073
    %v4125 = vpack.c.b16 %v4077, %v4074
    %v4126 = vpack.c.b16 %v4081, %v4078
    %v4127 = vpack.c.b16 %v4082, %v4079
    %v4128 = vpack.c.b16 %v4083, %v4080
    %v4129 = vpack.c.b16 %v4087, %v4084
    %v4130 = vpack.c.b16 %v4088, %v4085
    %v4131 = vpack.c.b16 %v4089, %v4086
    %v4175 = vsel %vm233, %v3948, 0
    %4177 = vmatpush.bf16.msra.mxu0 %v4111
    %4178 = vmatpush.bf16.msra.mxu0 %v4108
    %4179 = vmatpush.bf16.msra.mxu0 %v4105
    %4180 = vmatpush.bf16.msra.mxu0 %v4102
    %4181 = vmatpush.bf16.msra.mxu0 %v4099
    %4182 = vmatpush.bf16.msra.mxu0 %v4096
    %4183 = vmatpush.bf16.msra.mxu0 %v4093
    %4184 = vmatpush.bf16.msra.mxu0 %v4090
    %4185 = vmatmul.bf16.gmra.mxu0 %v3947
    %v4186 = vpop.f32.mrf.mxu0
    %v4187 = vadd.f32 0.0, %v4186
    %v4188 = vpop.f32.mrf.mxu0
    %v4189 = vadd.f32 0.0, %v4188
    %4190 = vdwg.mxu0
    %4191 = vmatpush.bf16.msra.mxu0 0
    %4192 = vmatpush.bf16.msra.mxu0 0
    %4193 = vmatpush.bf16.msra.mxu0 %v4129
    %4194 = vmatpush.bf16.msra.mxu0 %v4126
    %4195 = vmatpush.bf16.msra.mxu0 %v4123
    %4196 = vmatpush.bf16.msra.mxu0 %v4120
    %4197 = vmatpush.bf16.msra.mxu0 %v4117
    %4198 = vmatpush.bf16.msra.mxu0 %v4114
    %4199 = vmatmul.bf16.gmra.mxu0 %v4175
    %v4200 = vpop.f32.mrf.mxu0
    %v4201 = vadd.f32 %v4187, %v4200
    %v4202 = vpop.f32.mrf.mxu0
    %v4203 = vadd.f32 %v4189, %v4202
    %4204 = vdwg.mxu0
    %4205 = vmatpush.bf16.msra.mxu0 %v4112
    %4206 = vmatpush.bf16.msra.mxu0 %v4109
    %4207 = vmatpush.bf16.msra.mxu0 %v4106
    %4208 = vmatpush.bf16.msra.mxu0 %v4103
    %4209 = vmatpush.bf16.msra.mxu0 %v4100
    %4210 = vmatpush.bf16.msra.mxu0 %v4097
    %4211 = vmatpush.bf16.msra.mxu0 %v4094
    %4212 = vmatpush.bf16.msra.mxu0 %v4091
    %4213 = vmatmul.bf16.gmra.mxu0 %v3947
    %v4214 = vpop.f32.mrf.mxu0
    %v4215 = vadd.f32 0.0, %v4214
    %v4216 = vpop.f32.mrf.mxu0
    %v4217 = vadd.f32 0.0, %v4216
    %4218 = vdwg.mxu0
    %4219 = vmatpush.bf16.msra.mxu0 0
    %4220 = vmatpush.bf16.msra.mxu0 0
    %4221 = vmatpush.bf16.msra.mxu0 %v4130
    %4222 = vmatpush.bf16.msra.mxu0 %v4127
    %4223 = vmatpush.bf16.msra.mxu0 %v4124
    %4224 = vmatpush.bf16.msra.mxu0 %v4121
    %4225 = vmatpush.bf16.msra.mxu0 %v4118
    %4226 = vmatpush.bf16.msra.mxu0 %v4115
    %4227 = vmatmul.bf16.gmra.mxu0 %v4175
    %v4228 = vpop.f32.mrf.mxu0
    %v4229 = vadd.f32 %v4215, %v4228
    %v4230 = vpop.f32.mrf.mxu0
    %v4231 = vadd.f32 %v4217, %v4230
    %4232 = vdwg.mxu0
    %4233 = vmatpush.bf16.msra.mxu0 %v4113
    %4234 = vmatpush.bf16.msra.mxu0 %v4110
    %4235 = vmatpush.bf16.msra.mxu0 %v4107
    %4236 = vmatpush.bf16.msra.mxu0 %v4104
    %4237 = vmatpush.bf16.msra.mxu0 %v4101
    %4238 = vmatpush.bf16.msra.mxu0 %v4098
    %4239 = vmatpush.bf16.msra.mxu0 %v4095
    %4240 = vmatpush.bf16.msra.mxu0 %v4092
    %4241 = vmatmul.bf16.gmra.mxu0 %v3947
    %v4242 = vpop.f32.mrf.mxu0
    %v4243 = vadd.f32 0.0, %v4242
    %v4244 = vpop.f32.mrf.mxu0
    %v4245 = vadd.f32 0.0, %v4244
    %4246 = vdwg.mxu0
    %4247 = vmatpush.bf16.msra.mxu0 0
    %4248 = vmatpush.bf16.msra.mxu0 0
    %4249 = vmatpush.bf16.msra.mxu0 %v4131
    %4250 = vmatpush.bf16.msra.mxu0 %v4128
    %4251 = vmatpush.bf16.msra.mxu0 %v4125
    %4252 = vmatpush.bf16.msra.mxu0 %v4122
    %4253 = vmatpush.bf16.msra.mxu0 %v4119
    %4254 = vmatpush.bf16.msra.mxu0 %v4116
    %4255 = vmatmul.bf16.gmra.mxu0 %v4175
    %v4256 = vpop.f32.mrf.mxu0
    %v4257 = vadd.f32 %v4243, %v4256
    %v4258 = vpop.f32.mrf.mxu0
    %v4259 = vadd.f32 %v4245, %v4258
    %4260 = vdwg.mxu0
    %v4261 = vadd.f32 %v3884, %v4201
    %v4262 = vadd.f32 %v3885, %v4229
    %v4263 = vadd.f32 %v3886, %v4257
    %v4264 = vadd.f32 %v3887, %v4203
    %v4265 = vadd.f32 %v3888, %v4231
    %v4266 = vadd.f32 %v3889, %v4259
    %v4267 = vld [vmem:[%s6] sm:$0x7]
    %v4269 = vperm.slane %v4267, 0
    %v4270 = vperm.slane %v4267, 1
    %v4271 = vperm.slane %v4267, 2
    %v4275 = vadd.f32 %v4261, %v4269
    %v4276 = vadd.f32 %v4262, %v4270
    %v4277 = vadd.f32 %v4263, %v4271
    %v4278 = vadd.f32 %v4264, %v4269
    %v4279 = vadd.f32 %v4265, %v4270
    %v4280 = vadd.f32 %v4266, %v4271
    %v4281 = vmax.f32 %v4275, 0.0
    %v4282 = vmax.f32 %v4276, 0.0
    %v4283 = vmax.f32 %v4277, 0.0
    %v4284 = vmax.f32 %v4278, 0.0
    %v4285 = vmax.f32 %v4279, 0.0
    %v4286 = vmax.f32 %v4280, 0.0
    %v4287 = vpack.c.bf16 %v4284, %v4281
    %v4288 = vpack.c.bf16 %v4285, %v4282
    %v4289 = vpack.c.bf16 %v4286, %v4283
    %v4290 = vld [vmem:[%s7] sm:$0x7]
    %vm4291 = vcmask 80896
    %v4293 = vsel %vm4291, %v4290, 0
    %vm4295 = vcmask 1044480
    %v4297 = vsel %vm4295, %v4287, 0
    %v4300 = vsel %vm4295, %v4288, 0
    %v4303 = vsel %vm4295, %v4289, 0
    %4305 = vmatpush.bf16.msra.mxu0 0
    %4306 = vmatpush.bf16.msra.mxu0 0
    %4307 = vmatpush.bf16.msra.mxu0 0
    %4308 = vmatpush.bf16.msra.mxu0 0
    %4309 = vmatpush.bf16.msra.mxu0 0
    %4310 = vmatpush.bf16.msra.mxu0 0
    %4311 = vmatpush.bf16.msra.mxu0 0
    %4312 = vmatpush.bf16.msra.mxu0 %v4297
    %4313 = vmatmul.bf16.gmra.mxu0 %v4293
    %v4314 = vpop.f32.mrf.mxu0
    %v4315 = vadd.f32 0.0, %v4314
    %v4316 = vpop.f32.mrf.mxu0
    %4317 = vdwg.mxu0
    %4318 = vmatpush.bf16.msra.mxu0 0
    %4319 = vmatpush.bf16.msra.mxu0 0
    %4320 = vmatpush.bf16.msra.mxu0 0
    %4321 = vmatpush.bf16.msra.mxu0 0
    %4322 = vmatpush.bf16.msra.mxu0 0
    %4323 = vmatpush.bf16.msra.mxu0 0
    %4324 = vmatpush.bf16.msra.mxu0 0
    %4325 = vmatpush.bf16.msra.mxu0 %v4300
    %4326 = vmatmul.bf16.gmra.mxu0 %v4293
    %v4327 = vpop.f32.mrf.mxu0
    %v4328 = vadd.f32 0.0, %v4327
    %v4329 = vpop.f32.mrf.mxu0
    %4330 = vdwg.mxu0
    %4331 = vmatpush.bf16.msra.mxu0 0
    %4332 = vmatpush.bf16.msra.mxu0 0
    %4333 = vmatpush.bf16.msra.mxu0 0
    %4334 = vmatpush.bf16.msra.mxu0 0
    %4335 = vmatpush.bf16.msra.mxu0 0
    %4336 = vmatpush.bf16.msra.mxu0 0
    %4337 = vmatpush.bf16.msra.mxu0 0
    %4338 = vmatpush.bf16.msra.mxu0 %v4303
    %4339 = vmatmul.bf16.gmra.mxu0 %v4293
    %v4340 = vpop.f32.mrf.mxu0
    %v4341 = vadd.f32 0.0, %v4340
    %v4342 = vpop.f32.mrf.mxu0
    %4343 = vdwg.mxu0
    %s4344 = scalar_lea.vmem %s7, 4
    %v4345 = vld [vmem:[%s4344] sm:$0x7]
    %v4347 = vsel %vm4291, %v4345, 0
    %4349 = vmatpush.bf16.msra.mxu0 0
    %4350 = vmatpush.bf16.msra.mxu0 0
    %4351 = vmatpush.bf16.msra.mxu0 0
    %4352 = vmatpush.bf16.msra.mxu0 0
    %4353 = vmatpush.bf16.msra.mxu0 0
    %4354 = vmatpush.bf16.msra.mxu0 0
    %4355 = vmatpush.bf16.msra.mxu0 0
    %4356 = vmatpush.bf16.msra.mxu0 %v4297
    %4357 = vmatmul.bf16.gmra.mxu0 %v4347
    %v4358 = vpop.f32.mrf.mxu0
    %v4359 = vadd.f32 0.0, %v4358
    %v4360 = vpop.f32.mrf.mxu0
    %4361 = vdwg.mxu0
    %4362 = vmatpush.bf16.msra.mxu0 0
    %4363 = vmatpush.bf16.msra.mxu0 0
    %4364 = vmatpush.bf16.msra.mxu0 0
    %4365 = vmatpush.bf16.msra.mxu0 0
    %4366 = vmatpush.bf16.msra.mxu0 0
    %4367 = vmatpush.bf16.msra.mxu0 0
    %4368 = vmatpush.bf16.msra.mxu0 0
    %4369 = vmatpush.bf16.msra.mxu0 %v4300
    %4370 = vmatmul.bf16.gmra.mxu0 %v4347
    %v4371 = vpop.f32.mrf.mxu0
    %v4372 = vadd.f32 0.0, %v4371
    %v4373 = vpop.f32.mrf.mxu0
    %4374 = vdwg.mxu0
    %4375 = vmatpush.bf16.msra.mxu0 0
    %4376 = vmatpush.bf16.msra.mxu0 0
    %4377 = vmatpush.bf16.msra.mxu0 0
    %4378 = vmatpush.bf16.msra.mxu0 0
    %4379 = vmatpush.bf16.msra.mxu0 0
    %4380 = vmatpush.bf16.msra.mxu0 0
    %4381 = vmatpush.bf16.msra.mxu0 0
    %4382 = vmatpush.bf16.msra.mxu0 %v4303
    %4383 = vmatmul.bf16.gmra.mxu0 %v4347
    %v4384 = vpop.f32.mrf.mxu0
    %v4385 = vadd.f32 0.0, %v4384
    %v4386 = vpop.f32.mrf.mxu0
    %4387 = vdwg.mxu0
    %v4388 = vmax.f32 %v4315, %v4359
    %v4389 = vmax.f32 %v4328, %v4372
    %v4390 = vmax.f32 %v4341, %v4385
    %v4391 = vpack.c.bf16 %v4388, %v4388
    %v4392 = vpack.c.bf16 %v4389, %v4389
    %v4393 = vpack.c.bf16 %v4390, %v4390
    %v4394 = vld [vmem:[%s8] sm:$0xff]
    %v4395 = vld [vmem:[%s8 + $0x8] sm:$0xff]
    %v4396 = vld [vmem:[%s8 + $0x10] sm:$0xff]
    %v4397 = vld [vmem:[%s8 + $0x18] sm:$0xff]
    %v4398 = vld [vmem:[%s8 + $0x20] sm:$0xff]
    %v4399 = vld [vmem:[%s8 + $0x28] sm:$0xff]
    %v4400 = vld [vmem:[%s8 + $0x30] sm:$0xff]
    %v4401 = vld [vmem:[%s8 + $0x38] sm:$0xff]
    %v4402 = vld [vmem:[%s8 + $0x40] sm:$0xff]
    %v4403 = vld [vmem:[%s8 + $0x48] sm:$0xff]
    %v4404 = vld [vmem:[%s8 + $0x50] sm:$0xff]
    %v4405 = vld [vmem:[%s8 + $0x58] sm:$0xff]
    %v4406 = vld [vmem:[%s8 + $0x60] sm:$0xff]
    %v4407 = vld [vmem:[%s8 + $0x68] sm:$0xff]
    %v4408 = vld [vmem:[%s8 + $0x70] sm:$0xff]
    %v4409 = vld [vmem:[%s8 + $0x78] sm:$0xff]
    %v4410 = vld [vmem:[%s8 + $0x80] sm:$0xff]
    %v4411 = vld [vmem:[%s8 + $0x88] sm:$0xff]
    %v4412 = vld [vmem:[%s8 + $0x90] sm:$0xff]
    %v4413 = vld [vmem:[%s8 + $0x98] sm:$0xff]
    %v4414 = vld [vmem:[%s8 + $0xa0] sm:$0xff]
    %v4415 = vld [vmem:[%s8 + $0xa8] sm:$0xff]
    %v4416 = vld [vmem:[%s8 + $0xb0] sm:$0xff]
    %v4417 = vld [vmem:[%s8 + $0xb8] sm:$0xff]
    %v4418 = vld [vmem:[%s8 + $0xc0] sm:$0xff]
    %v4419 = vld [vmem:[%s8 + $0xc8] sm:$0xff]
    %v4420 = vld [vmem:[%s8 + $0xd0] sm:$0xff]
    %v4421 = vld [vmem:[%s8 + $0xd8] sm:$0xff]
    %v4422 = vld [vmem:[%s8 + $0xe0] sm:$0xff]
    %v4423 = vld [vmem:[%s8 + $0xe8] sm:$0xff]
    %v4424 = vld [vmem:[%s8 + $0xf0] sm:$0xff]
    %v4425 = vld [vmem:[%s8 + $0xf8] sm:$0xff]
    %v4426 = vld [vmem:[%s8 + $0x100] sm:$0xff]
    %v4427 = vld [vmem:[%s8 + $0x108] sm:$0xff]
    %v4428 = vld [vmem:[%s8 + $0x110] sm:$0xff]
    %v4429 = vld [vmem:[%s8 + $0x118] sm:$0xff]
    %v4430 = vld [vmem:[%s8 + $0x120] sm:$0xff]
    %v4431 = vld [vmem:[%s8 + $0x128] sm:$0xff]
    %v4432 = vld [vmem:[%s8 + $0x130] sm:$0xff]
    %v4433 = vld [vmem:[%s8 + $0x138] sm:$0xff]
    %v4474 = vunpack.c.l.b16 %v4394
    %v4475 = vunpack.c.h.b16 %v4394
    %v4476 = vunpack.c.l.b16 %v4395
    %v4477 = vunpack.c.h.b16 %v4395
    %v4478 = vunpack.c.l.b16 %v4396
    %v4479 = vunpack.c.h.b16 %v4396
    %v4480 = vunpack.c.l.b16 %v4397
    %v4481 = vunpack.c.h.b16 %v4397
    %v4482 = vunpack.c.l.b16 %v4398
    %v4483 = vunpack.c.h.b16 %v4398
    %v4484 = vunpack.c.l.b16 %v4399
    %v4485 = vunpack.c.h.b16 %v4399
    %v4486 = vunpack.c.l.b16 %v4400
    %v4487 = vunpack.c.h.b16 %v4400
    %v4488 = vunpack.c.l.b16 %v4401
    %v4489 = vunpack.c.h.b16 %v4401
    %v4490 = vunpack.c.l.b16 %v4402
    %v4491 = vunpack.c.h.b16 %v4402
    %v4492 = vunpack.c.l.b16 %v4403
    %v4493 = vunpack.c.h.b16 %v4403
    %v4494 = vunpack.c.l.b16 %v4404
    %v4495 = vunpack.c.h.b16 %v4404
    %v4496 = vunpack.c.l.b16 %v4405
    %v4497 = vunpack.c.h.b16 %v4405
    %v4498 = vunpack.c.l.b16 %v4406
    %v4499 = vunpack.c.h.b16 %v4406
    %v4500 = vunpack.c.l.b16 %v4407
    %v4501 = vunpack.c.h.b16 %v4407
    %v4502 = vunpack.c.l.b16 %v4408
    %v4503 = vunpack.c.h.b16 %v4408
    %v4504 = vunpack.c.l.b16 %v4409
    %v4505 = vunpack.c.h.b16 %v4409
    %v4506 = vunpack.c.l.b16 %v4410
    %v4507 = vunpack.c.h.b16 %v4410
    %v4508 = vunpack.c.l.b16 %v4411
    %v4509 = vunpack.c.h.b16 %v4411
    %v4510 = vunpack.c.l.b16 %v4412
    %v4511 = vunpack.c.h.b16 %v4412
    %v4512 = vunpack.c.l.b16 %v4413
    %v4513 = vunpack.c.h.b16 %v4413
    %v4514 = vunpack.c.l.b16 %v4414
    %v4515 = vunpack.c.h.b16 %v4414
    %v4516 = vunpack.c.l.b16 %v4415
    %v4517 = vunpack.c.h.b16 %v4415
    %v4518 = vunpack.c.l.b16 %v4416
    %v4519 = vunpack.c.h.b16 %v4416
    %v4520 = vunpack.c.l.b16 %v4417
    %v4521 = vunpack.c.h.b16 %v4417
    %v4522 = vunpack.c.l.b16 %v4418
    %v4523 = vunpack.c.h.b16 %v4418
    %v4524 = vunpack.c.l.b16 %v4419
    %v4525 = vunpack.c.h.b16 %v4419
    %v4526 = vunpack.c.l.b16 %v4420
    %v4527 = vunpack.c.h.b16 %v4420
    %v4528 = vunpack.c.l.b16 %v4421
    %v4529 = vunpack.c.h.b16 %v4421
    %v4530 = vunpack.c.l.b16 %v4422
    %v4531 = vunpack.c.h.b16 %v4422
    %v4532 = vunpack.c.l.b16 %v4423
    %v4533 = vunpack.c.h.b16 %v4423
    %v4534 = vunpack.c.l.b16 %v4424
    %v4535 = vunpack.c.h.b16 %v4424
    %v4536 = vunpack.c.l.b16 %v4425
    %v4537 = vunpack.c.h.b16 %v4425
    %v4538 = vunpack.c.l.b16 %v4426
    %v4539 = vunpack.c.h.b16 %v4426
    %v4540 = vunpack.c.l.b16 %v4427
    %v4541 = vunpack.c.h.b16 %v4427
    %v4542 = vunpack.c.l.b16 %v4428
    %v4543 = vunpack.c.h.b16 %v4428
    %v4544 = vunpack.c.l.b16 %v4429
    %v4545 = vunpack.c.h.b16 %v4429
    %v4546 = vunpack.c.l.b16 %v4430
    %v4547 = vunpack.c.h.b16 %v4430
    %v4548 = vunpack.c.l.b16 %v4431
    %v4549 = vunpack.c.h.b16 %v4431
    %v4550 = vunpack.c.l.b16 %v4432
    %v4551 = vunpack.c.h.b16 %v4432
    %v4552 = vunpack.c.l.b16 %v4433
    %v4553 = vunpack.c.h.b16 %v4433
    %v4554 = vpack.c.b16 %v4476, %v4474
    %v4555 = vpack.c.b16 %v4477, %v4475
    %v4556 = vpack.c.b16 %v4480, %v4478
    %v4557 = vpack.c.b16 %v4481, %v4479
    %v4558 = vpack.c.b16 %v4484, %v4482
    %v4559 = vpack.c.b16 %v4485, %v4483
    %v4560 = vpack.c.b16 %v4488, %v4486
    %v4561 = vpack.c.b16 %v4489, %v4487
    %v4562 = vpack.c.b16 %v4492, %v4490
    %v4563 = vpack.c.b16 %v4493, %v4491
    %v4564 = vpack.c.b16 %v4496, %v4494
    %v4565 = vpack.c.b16 %v4497, %v4495
    %v4566 = vpack.c.b16 %v4500, %v4498
    %v4567 = vpack.c.b16 %v4501, %v4499
    %v4568 = vpack.c.b16 %v4504, %v4502
    %v4569 = vpack.c.b16 %v4505, %v4503
    %v4570 = vpack.c.b16 %v4508, %v4506
    %v4571 = vpack.c.b16 %v4509, %v4507
    %v4572 = vpack.c.b16 %v4512, %v4510
    %v4573 = vpack.c.b16 %v4513, %v4511
    %v4574 = vpack.c.b16 %v4516, %v4514
    %v4575 = vpack.c.b16 %v4517, %v4515
    %v4576 = vpack.c.b16 %v4520, %v4518
    %v4577 = vpack.c.b16 %v4521, %v4519
    %v4578 = vpack.c.b16 %v4524, %v4522
    %v4579 = vpack.c.b16 %v4525, %v4523
    %v4580 = vpack.c.b16 %v4528, %v4526
    %v4581 = vpack.c.b16 %v4529, %v4527
    %v4582 = vpack.c.b16 %v4532, %v4530
    %v4583 = vpack.c.b16 %v4533, %v4531
    %v4584 = vpack.c.b16 %v4536, %v4534
    %v4585 = vpack.c.b16 %v4537, %v4535
    %v4586 = vpack.c.b16 %v4540, %v4538
    %v4587 = vpack.c.b16 %v4541, %v4539
    %v4588 = vpack.c.b16 %v4544, %v4542
    %v4589 = vpack.c.b16 %v4545, %v4543
    %v4590 = vpack.c.b16 %v4548, %v4546
    %v4591 = vpack.c.b16 %v4549, %v4547
    %v4592 = vpack.c.b16 %v4552, %v4550
    %v4593 = vpack.c.b16 %v4553, %v4551
    %v4635 = vsel %vm1810, %v4393, 0
    %4637 = vmatpush.bf16.msra.mxu0 %v4568
    %4638 = vmatpush.bf16.msra.mxu0 %v4566
    %4639 = vmatpush.bf16.msra.mxu0 %v4564
    %4640 = vmatpush.bf16.msra.mxu0 %v4562
    %4641 = vmatpush.bf16.msra.mxu0 %v4560
    %4642 = vmatpush.bf16.msra.mxu0 %v4558
    %4643 = vmatpush.bf16.msra.mxu0 %v4556
    %4644 = vmatpush.bf16.msra.mxu0 %v4554
    %4645 = vmatmul.bf16.gmra.mxu0 %v4391
    %v4646 = vpop.f32.mrf.mxu0
    %v4647 = vadd.f32 0.0, %v4646
    %v4648 = vpop.f32.mrf.mxu0
    %4649 = vdwg.mxu0
    %4650 = vmatpush.bf16.msra.mxu0 %v4584
    %4651 = vmatpush.bf16.msra.mxu0 %v4582
    %4652 = vmatpush.bf16.msra.mxu0 %v4580
    %4653 = vmatpush.bf16.msra.mxu0 %v4578
    %4654 = vmatpush.bf16.msra.mxu0 %v4576
    %4655 = vmatpush.bf16.msra.mxu0 %v4574
    %4656 = vmatpush.bf16.msra.mxu0 %v4572
    %4657 = vmatpush.bf16.msra.mxu0 %v4570
    %4658 = vmatmul.bf16.gmra.mxu0 %v4392
    %v4659 = vpop.f32.mrf.mxu0
    %v4660 = vadd.f32 %v4647, %v4659
    %v4661 = vpop.f32.mrf.mxu0
    %4662 = vdwg.mxu0
    %4663 = vmatpush.bf16.msra.mxu0 0
    %4664 = vmatpush.bf16.msra.mxu0 0
    %4665 = vmatpush.bf16.msra.mxu0 0
    %4666 = vmatpush.bf16.msra.mxu0 0
    %4667 = vmatpush.bf16.msra.mxu0 %v4592
    %4668 = vmatpush.bf16.msra.mxu0 %v4590
    %4669 = vmatpush.bf16.msra.mxu0 %v4588
    %4670 = vmatpush.bf16.msra.mxu0 %v4586
    %4671 = vmatmul.bf16.gmra.mxu0 %v4635
    %v4672 = vpop.f32.mrf.mxu0
    %v4673 = vadd.f32 %v4660, %v4672
    %v4674 = vpop.f32.mrf.mxu0
    %4675 = vdwg.mxu0
    %4676 = vmatpush.bf16.msra.mxu0 %v4569
    %4677 = vmatpush.bf16.msra.mxu0 %v4567
    %4678 = vmatpush.bf16.msra.mxu0 %v4565
    %4679 = vmatpush.bf16.msra.mxu0 %v4563
    %4680 = vmatpush.bf16.msra.mxu0 %v4561
    %4681 = vmatpush.bf16.msra.mxu0 %v4559
    %4682 = vmatpush.bf16.msra.mxu0 %v4557
    %4683 = vmatpush.bf16.msra.mxu0 %v4555
    %4684 = vmatmul.bf16.gmra.mxu0 %v4391
    %v4685 = vpop.f32.mrf.mxu0
    %v4686 = vadd.f32 0.0, %v4685
    %v4687 = vpop.f32.mrf.mxu0
    %4688 = vdwg.mxu0
    %4689 = vmatpush.bf16.msra.mxu0 %v4585
    %4690 = vmatpush.bf16.msra.mxu0 %v4583
    %4691 = vmatpush.bf16.msra.mxu0 %v4581
    %4692 = vmatpush.bf16.msra.mxu0 %v4579
    %4693 = vmatpush.bf16.msra.mxu0 %v4577
    %4694 = vmatpush.bf16.msra.mxu0 %v4575
    %4695 = vmatpush.bf16.msra.mxu0 %v4573
    %4696 = vmatpush.bf16.msra.mxu0 %v4571
    %4697 = vmatmul.bf16.gmra.mxu0 %v4392
    %v4698 = vpop.f32.mrf.mxu0
    %v4699 = vadd.f32 %v4686, %v4698
    %v4700 = vpop.f32.mrf.mxu0
    %4701 = vdwg.mxu0
    %4702 = vmatpush.bf16.msra.mxu0 0
    %4703 = vmatpush.bf16.msra.mxu0 0
    %4704 = vmatpush.bf16.msra.mxu0 0
    %4705 = vmatpush.bf16.msra.mxu0 0
    %4706 = vmatpush.bf16.msra.mxu0 %v4593
    %4707 = vmatpush.bf16.msra.mxu0 %v4591
    %4708 = vmatpush.bf16.msra.mxu0 %v4589
    %4709 = vmatpush.bf16.msra.mxu0 %v4587
    %4710 = vmatmul.bf16.gmra.mxu0 %v4635
    %v4711 = vpop.f32.mrf.mxu0
    %v4712 = vadd.f32 %v4699, %v4711
    %v4713 = vpop.f32.mrf.mxu0
    %4714 = vdwg.mxu0
    %s4715 = scalar_lea.vmem %s8, 320
    %v4716 = vld [vmem:[%s4715] sm:$0xff]
    %v4717 = vld [vmem:[%s4715 + $0x8] sm:$0xff]
    %v4718 = vld [vmem:[%s4715 + $0x10] sm:$0xff]
    %v4719 = vld [vmem:[%s4715 + $0x18] sm:$0xff]
    %v4720 = vld [vmem:[%s4715 + $0x20] sm:$0xff]
    %v4721 = vld [vmem:[%s4715 + $0x28] sm:$0xff]
    %v4722 = vld [vmem:[%s4715 + $0x30] sm:$0xff]
    %v4723 = vld [vmem:[%s4715 + $0x38] sm:$0xff]
    %v4724 = vld [vmem:[%s4715 + $0x40] sm:$0xff]
    %v4725 = vld [vmem:[%s4715 + $0x48] sm:$0xff]
    %v4726 = vld [vmem:[%s4715 + $0x50] sm:$0xff]
    %v4727 = vld [vmem:[%s4715 + $0x58] sm:$0xff]
    %v4728 = vld [vmem:[%s4715 + $0x60] sm:$0xff]
    %v4729 = vld [vmem:[%s4715 + $0x68] sm:$0xff]
    %v4730 = vld [vmem:[%s4715 + $0x70] sm:$0xff]
    %v4731 = vld [vmem:[%s4715 + $0x78] sm:$0xff]
    %v4732 = vld [vmem:[%s4715 + $0x80] sm:$0xff]
    %v4733 = vld [vmem:[%s4715 + $0x88] sm:$0xff]
    %v4734 = vld [vmem:[%s4715 + $0x90] sm:$0xff]
    %v4735 = vld [vmem:[%s4715 + $0x98] sm:$0xff]
    %v4736 = vld [vmem:[%s4715 + $0xa0] sm:$0xff]
    %v4737 = vld [vmem:[%s4715 + $0xa8] sm:$0xff]
    %v4738 = vld [vmem:[%s4715 + $0xb0] sm:$0xff]
    %v4739 = vld [vmem:[%s4715 + $0xb8] sm:$0xff]
    %v4740 = vld [vmem:[%s4715 + $0xc0] sm:$0xff]
    %v4741 = vld [vmem:[%s4715 + $0xc8] sm:$0xff]
    %v4742 = vld [vmem:[%s4715 + $0xd0] sm:$0xff]
    %v4743 = vld [vmem:[%s4715 + $0xd8] sm:$0xff]
    %v4744 = vld [vmem:[%s4715 + $0xe0] sm:$0xff]
    %v4745 = vld [vmem:[%s4715 + $0xe8] sm:$0xff]
    %v4746 = vld [vmem:[%s4715 + $0xf0] sm:$0xff]
    %v4747 = vld [vmem:[%s4715 + $0xf8] sm:$0xff]
    %v4748 = vld [vmem:[%s4715 + $0x100] sm:$0xff]
    %v4749 = vld [vmem:[%s4715 + $0x108] sm:$0xff]
    %v4750 = vld [vmem:[%s4715 + $0x110] sm:$0xff]
    %v4751 = vld [vmem:[%s4715 + $0x118] sm:$0xff]
    %v4752 = vld [vmem:[%s4715 + $0x120] sm:$0xff]
    %v4753 = vld [vmem:[%s4715 + $0x128] sm:$0xff]
    %v4754 = vld [vmem:[%s4715 + $0x130] sm:$0xff]
    %v4755 = vld [vmem:[%s4715 + $0x138] sm:$0xff]
    %v4796 = vunpack.c.l.b16 %v4716
    %v4797 = vunpack.c.h.b16 %v4716
    %v4798 = vunpack.c.l.b16 %v4717
    %v4799 = vunpack.c.h.b16 %v4717
    %v4800 = vunpack.c.l.b16 %v4718
    %v4801 = vunpack.c.h.b16 %v4718
    %v4802 = vunpack.c.l.b16 %v4719
    %v4803 = vunpack.c.h.b16 %v4719
    %v4804 = vunpack.c.l.b16 %v4720
    %v4805 = vunpack.c.h.b16 %v4720
    %v4806 = vunpack.c.l.b16 %v4721
    %v4807 = vunpack.c.h.b16 %v4721
    %v4808 = vunpack.c.l.b16 %v4722
    %v4809 = vunpack.c.h.b16 %v4722
    %v4810 = vunpack.c.l.b16 %v4723
    %v4811 = vunpack.c.h.b16 %v4723
    %v4812 = vunpack.c.l.b16 %v4724
    %v4813 = vunpack.c.h.b16 %v4724
    %v4814 = vunpack.c.l.b16 %v4725
    %v4815 = vunpack.c.h.b16 %v4725
    %v4816 = vunpack.c.l.b16 %v4726
    %v4817 = vunpack.c.h.b16 %v4726
    %v4818 = vunpack.c.l.b16 %v4727
    %v4819 = vunpack.c.h.b16 %v4727
    %v4820 = vunpack.c.l.b16 %v4728
    %v4821 = vunpack.c.h.b16 %v4728
    %v4822 = vunpack.c.l.b16 %v4729
    %v4823 = vunpack.c.h.b16 %v4729
    %v4824 = vunpack.c.l.b16 %v4730
    %v4825 = vunpack.c.h.b16 %v4730
    %v4826 = vunpack.c.l.b16 %v4731
    %v4827 = vunpack.c.h.b16 %v4731
    %v4828 = vunpack.c.l.b16 %v4732
    %v4829 = vunpack.c.h.b16 %v4732
    %v4830 = vunpack.c.l.b16 %v4733
    %v4831 = vunpack.c.h.b16 %v4733
    %v4832 = vunpack.c.l.b16 %v4734
    %v4833 = vunpack.c.h.b16 %v4734
    %v4834 = vunpack.c.l.b16 %v4735
    %v4835 = vunpack.c.h.b16 %v4735
    %v4836 = vunpack.c.l.b16 %v4736
    %v4837 = vunpack.c.h.b16 %v4736
    %v4838 = vunpack.c.l.b16 %v4737
    %v4839 = vunpack.c.h.b16 %v4737
    %v4840 = vunpack.c.l.b16 %v4738
    %v4841 = vunpack.c.h.b16 %v4738
    %v4842 = vunpack.c.l.b16 %v4739
    %v4843 = vunpack.c.h.b16 %v4739
    %v4844 = vunpack.c.l.b16 %v4740
    %v4845 = vunpack.c.h.b16 %v4740
    %v4846 = vunpack.c.l.b16 %v4741
    %v4847 = vunpack.c.h.b16 %v4741
    %v4848 = vunpack.c.l.b16 %v4742
    %v4849 = vunpack.c.h.b16 %v4742
    %v4850 = vunpack.c.l.b16 %v4743
    %v4851 = vunpack.c.h.b16 %v4743
    %v4852 = vunpack.c.l.b16 %v4744
    %v4853 = vunpack.c.h.b16 %v4744
    %v4854 = vunpack.c.l.b16 %v4745
    %v4855 = vunpack.c.h.b16 %v4745
    %v4856 = vunpack.c.l.b16 %v4746
    %v4857 = vunpack.c.h.b16 %v4746
    %v4858 = vunpack.c.l.b16 %v4747
    %v4859 = vunpack.c.h.b16 %v4747
    %v4860 = vunpack.c.l.b16 %v4748
    %v4861 = vunpack.c.h.b16 %v4748
    %v4862 = vunpack.c.l.b16 %v4749
    %v4863 = vunpack.c.h.b16 %v4749
    %v4864 = vunpack.c.l.b16 %v4750
    %v4865 = vunpack.c.h.b16 %v4750
    %v4866 = vunpack.c.l.b16 %v4751
    %v4867 = vunpack.c.h.b16 %v4751
    %v4868 = vunpack.c.l.b16 %v4752
    %v4869 = vunpack.c.h.b16 %v4752
    %v4870 = vunpack.c.l.b16 %v4753
    %v4871 = vunpack.c.h.b16 %v4753
    %v4872 = vunpack.c.l.b16 %v4754
    %v4873 = vunpack.c.h.b16 %v4754
    %v4874 = vunpack.c.l.b16 %v4755
    %v4875 = vunpack.c.h.b16 %v4755
    %v4876 = vpack.c.b16 %v4798, %v4796
    %v4877 = vpack.c.b16 %v4799, %v4797
    %v4878 = vpack.c.b16 %v4802, %v4800
    %v4879 = vpack.c.b16 %v4803, %v4801
    %v4880 = vpack.c.b16 %v4806, %v4804
    %v4881 = vpack.c.b16 %v4807, %v4805
    %v4882 = vpack.c.b16 %v4810, %v4808
    %v4883 = vpack.c.b16 %v4811, %v4809
    %v4884 = vpack.c.b16 %v4814, %v4812
    %v4885 = vpack.c.b16 %v4815, %v4813
    %v4886 = vpack.c.b16 %v4818, %v4816
    %v4887 = vpack.c.b16 %v4819, %v4817
    %v4888 = vpack.c.b16 %v4822, %v4820
    %v4889 = vpack.c.b16 %v4823, %v4821
    %v4890 = vpack.c.b16 %v4826, %v4824
    %v4891 = vpack.c.b16 %v4827, %v4825
    %v4892 = vpack.c.b16 %v4830, %v4828
    %v4893 = vpack.c.b16 %v4831, %v4829
    %v4894 = vpack.c.b16 %v4834, %v4832
    %v4895 = vpack.c.b16 %v4835, %v4833
    %v4896 = vpack.c.b16 %v4838, %v4836
    %v4897 = vpack.c.b16 %v4839, %v4837
    %v4898 = vpack.c.b16 %v4842, %v4840
    %v4899 = vpack.c.b16 %v4843, %v4841
    %v4900 = vpack.c.b16 %v4846, %v4844
    %v4901 = vpack.c.b16 %v4847, %v4845
    %v4902 = vpack.c.b16 %v4850, %v4848
    %v4903 = vpack.c.b16 %v4851, %v4849
    %v4904 = vpack.c.b16 %v4854, %v4852
    %v4905 = vpack.c.b16 %v4855, %v4853
    %v4906 = vpack.c.b16 %v4858, %v4856
    %v4907 = vpack.c.b16 %v4859, %v4857
    %v4908 = vpack.c.b16 %v4862, %v4860
    %v4909 = vpack.c.b16 %v4863, %v4861
    %v4910 = vpack.c.b16 %v4866, %v4864
    %v4911 = vpack.c.b16 %v4867, %v4865
    %v4912 = vpack.c.b16 %v4870, %v4868
    %v4913 = vpack.c.b16 %v4871, %v4869
    %v4914 = vpack.c.b16 %v4874, %v4872
    %v4915 = vpack.c.b16 %v4875, %v4873
    %4956 = vmatpush.bf16.msra.mxu0 %v4890
    %4957 = vmatpush.bf16.msra.mxu0 %v4888
    %4958 = vmatpush.bf16.msra.mxu0 %v4886
    %4959 = vmatpush.bf16.msra.mxu0 %v4884
    %4960 = vmatpush.bf16.msra.mxu0 %v4882
    %4961 = vmatpush.bf16.msra.mxu0 %v4880
    %4962 = vmatpush.bf16.msra.mxu0 %v4878
    %4963 = vmatpush.bf16.msra.mxu0 %v4876
    %4964 = vmatmul.bf16.gmra.mxu0 %v4391
    %v4965 = vpop.f32.mrf.mxu0
    %v4966 = vadd.f32 0.0, %v4965
    %v4967 = vpop.f32.mrf.mxu0
    %4968 = vdwg.mxu0
    %4969 = vmatpush.bf16.msra.mxu0 %v4906
    %4970 = vmatpush.bf16.msra.mxu0 %v4904
    %4971 = vmatpush.bf16.msra.mxu0 %v4902
    %4972 = vmatpush.bf16.msra.mxu0 %v4900
    %4973 = vmatpush.bf16.msra.mxu0 %v4898
    %4974 = vmatpush.bf16.msra.mxu0 %v4896
    %4975 = vmatpush.bf16.msra.mxu0 %v4894
    %4976 = vmatpush.bf16.msra.mxu0 %v4892
    %4977 = vmatmul.bf16.gmra.mxu0 %v4392
    %v4978 = vpop.f32.mrf.mxu0
    %v4979 = vadd.f32 %v4966, %v4978
    %v4980 = vpop.f32.mrf.mxu0
    %4981 = vdwg.mxu0
    %4982 = vmatpush.bf16.msra.mxu0 0
    %4983 = vmatpush.bf16.msra.mxu0 0
    %4984 = vmatpush.bf16.msra.mxu0 0
    %4985 = vmatpush.bf16.msra.mxu0 0
    %4986 = vmatpush.bf16.msra.mxu0 %v4914
    %4987 = vmatpush.bf16.msra.mxu0 %v4912
    %4988 = vmatpush.bf16.msra.mxu0 %v4910
    %4989 = vmatpush.bf16.msra.mxu0 %v4908
    %4990 = vmatmul.bf16.gmra.mxu0 %v4635
    %v4991 = vpop.f32.mrf.mxu0
    %v4992 = vadd.f32 %v4979, %v4991
    %v4993 = vpop.f32.mrf.mxu0
    %4994 = vdwg.mxu0
    %4995 = vmatpush.bf16.msra.mxu0 %v4891
    %4996 = vmatpush.bf16.msra.mxu0 %v4889
    %4997 = vmatpush.bf16.msra.mxu0 %v4887
    %4998 = vmatpush.bf16.msra.mxu0 %v4885
    %4999 = vmatpush.bf16.msra.mxu0 %v4883
    %5000 = vmatpush.bf16.msra.mxu0 %v4881
    %5001 = vmatpush.bf16.msra.mxu0 %v4879
    %5002 = vmatpush.bf16.msra.mxu0 %v4877
    %5003 = vmatmul.bf16.gmra.mxu0 %v4391
    %v5004 = vpop.f32.mrf.mxu0
    %v5005 = vadd.f32 0.0, %v5004
    %v5006 = vpop.f32.mrf.mxu0
    %5007 = vdwg.mxu0
    %5008 = vmatpush.bf16.msra.mxu0 %v4907
    %5009 = vmatpush.bf16.msra.mxu0 %v4905
    %5010 = vmatpush.bf16.msra.mxu0 %v4903
    %5011 = vmatpush.bf16.msra.mxu0 %v4901
    %5012 = vmatpush.bf16.msra.mxu0 %v4899
    %5013 = vmatpush.bf16.msra.mxu0 %v4897
    %5014 = vmatpush.bf16.msra.mxu0 %v4895
    %5015 = vmatpush.bf16.msra.mxu0 %v4893
    %5016 = vmatmul.bf16.gmra.mxu0 %v4392
    %v5017 = vpop.f32.mrf.mxu0
    %v5018 = vadd.f32 %v5005, %v5017
    %v5019 = vpop.f32.mrf.mxu0
    %5020 = vdwg.mxu0
    %5021 = vmatpush.bf16.msra.mxu0 0
    %5022 = vmatpush.bf16.msra.mxu0 0
    %5023 = vmatpush.bf16.msra.mxu0 0
    %5024 = vmatpush.bf16.msra.mxu0 0
    %5025 = vmatpush.bf16.msra.mxu0 %v4915
    %5026 = vmatpush.bf16.msra.mxu0 %v4913
    %5027 = vmatpush.bf16.msra.mxu0 %v4911
    %5028 = vmatpush.bf16.msra.mxu0 %v4909
    %5029 = vmatmul.bf16.gmra.mxu0 %v4635
    %v5030 = vpop.f32.mrf.mxu0
    %v5031 = vadd.f32 %v5018, %v5030
    %v5032 = vpop.f32.mrf.mxu0
    %5033 = vdwg.mxu0
    %v5034 = vmax.f32 %v4673, %v4992
    %v5035 = vmax.f32 %v4712, %v5031
    %v5036 = vpack.c.bf16 %v5034, %v5034
    %v5037 = vpack.c.bf16 %v5035, %v5035
    %v5038 = vld [vmem:[%s9] sm:$0xf]
    %v5039 = vld [vmem:[%s9 + $0x4] sm:$0xf]
    %v5040 = vld [vmem:[%s9 + $0x8] sm:$0xf]
    %v5041 = vld [vmem:[%s9 + $0xc] sm:$0xf]
    %v5042 = vld [vmem:[%s9 + $0x10] sm:$0xf]
    %v5043 = vld [vmem:[%s9 + $0x14] sm:$0xf]
    %v5044 = vld [vmem:[%s9 + $0x18] sm:$0xf]
    %v5045 = vld [vmem:[%s9 + $0x1c] sm:$0xf]
    %v5046 = vld [vmem:[%s9 + $0x20] sm:$0xf]
    %v5047 = vld [vmem:[%s9 + $0x24] sm:$0xf]
    %v5048 = vld [vmem:[%s9 + $0x28] sm:$0xf]
    %v5049 = vld [vmem:[%s9 + $0x2c] sm:$0xf]
    %v5050 = vld [vmem:[%s9 + $0x30] sm:$0xf]
    %v5051 = vld [vmem:[%s9 + $0x34] sm:$0xf]
    %v5052 = vld [vmem:[%s9 + $0x38] sm:$0xf]
    %v5053 = vld [vmem:[%s9 + $0x3c] sm:$0xf]
    %v5054 = vld [vmem:[%s9 + $0x40] sm:$0xf]
    %v5055 = vld [vmem:[%s9 + $0x44] sm:$0xf]
    %v5056 = vld [vmem:[%s9 + $0x48] sm:$0xf]
    %v5057 = vld [vmem:[%s9 + $0x4c] sm:$0xf]
    %s5058 = scalar_lea.vmem %s9, 80
    %v5059 = vld [vmem:[%s5058] sm:$0xf]
    %v5060 = vld [vmem:[%s5058 + $0x4] sm:$0xf]
    %v5061 = vld [vmem:[%s5058 + $0x8] sm:$0xf]
    %v5062 = vld [vmem:[%s5058 + $0xc] sm:$0xf]
    %v5063 = vld [vmem:[%s5058 + $0x10] sm:$0xf]
    %v5064 = vld [vmem:[%s5058 + $0x14] sm:$0xf]
    %v5065 = vld [vmem:[%s5058 + $0x18] sm:$0xf]
    %v5066 = vld [vmem:[%s5058 + $0x1c] sm:$0xf]
    %v5067 = vld [vmem:[%s5058 + $0x20] sm:$0xf]
    %v5068 = vld [vmem:[%s5058 + $0x24] sm:$0xf]
    %v5069 = vld [vmem:[%s5058 + $0x28] sm:$0xf]
    %v5070 = vld [vmem:[%s5058 + $0x2c] sm:$0xf]
    %v5071 = vld [vmem:[%s5058 + $0x30] sm:$0xf]
    %v5072 = vld [vmem:[%s5058 + $0x34] sm:$0xf]
    %v5073 = vld [vmem:[%s5058 + $0x38] sm:$0xf]
    %v5074 = vld [vmem:[%s5058 + $0x3c] sm:$0xf]
    %v5075 = vld [vmem:[%s5058 + $0x40] sm:$0xf]
    %v5076 = vld [vmem:[%s5058 + $0x44] sm:$0xf]
    %v5077 = vld [vmem:[%s5058 + $0x48] sm:$0xf]
    %v5078 = vld [vmem:[%s5058 + $0x4c] sm:$0xf]
    %v5080 = vshrl.u32 %v5036, 16
    %v5083 = vshrl.u32 %v5037, 16
    %v5106 = vunpack.c.l.b16 %v5059
    %v5107 = vunpack.c.l.b16 %v5060
    %v5108 = vunpack.c.l.b16 %v5061
    %v5109 = vunpack.c.l.b16 %v5062
    %v5110 = vunpack.c.l.b16 %v5063
    %v5111 = vunpack.c.l.b16 %v5064
    %v5112 = vunpack.c.l.b16 %v5065
    %v5113 = vunpack.c.l.b16 %v5066
    %v5114 = vunpack.c.l.b16 %v5067
    %v5115 = vunpack.c.l.b16 %v5068
    %v5116 = vunpack.c.l.b16 %v5069
    %v5117 = vunpack.c.l.b16 %v5070
    %v5118 = vunpack.c.l.b16 %v5071
    %v5119 = vunpack.c.l.b16 %v5072
    %v5120 = vunpack.c.l.b16 %v5073
    %v5121 = vunpack.c.l.b16 %v5074
    %v5122 = vunpack.c.l.b16 %v5075
    %v5123 = vunpack.c.l.b16 %v5076
    %v5124 = vunpack.c.l.b16 %v5077
    %v5125 = vunpack.c.l.b16 %v5078
    %v5126 = vpack.c.b16 %v5107, %v5106
    %v5127 = vpack.c.b16 %v5109, %v5108
    %v5128 = vpack.c.b16 %v5111, %v5110
    %v5129 = vpack.c.b16 %v5113, %v5112
    %v5130 = vpack.c.b16 %v5115, %v5114
    %v5131 = vpack.c.b16 %v5117, %v5116
    %v5132 = vpack.c.b16 %v5119, %v5118
    %v5133 = vpack.c.b16 %v5121, %v5120
    %v5134 = vpack.c.b16 %v5123, %v5122
    %v5135 = vpack.c.b16 %v5125, %v5124
    %vm5146 = vcmask 261120
    %v5148 = vsel %vm5146, %v5083, 0
    %5150 = vmatpush.bf16.msra.mxu0 %v5133
    %5151 = vmatpush.bf16.msra.mxu0 %v5132
    %5152 = vmatpush.bf16.msra.mxu0 %v5131
    %5153 = vmatpush.bf16.msra.mxu0 %v5130
    %5154 = vmatpush.bf16.msra.mxu0 %v5129
    %5155 = vmatpush.bf16.msra.mxu0 %v5128
    %5156 = vmatpush.bf16.msra.mxu0 %v5127
    %5157 = vmatpush.bf16.msra.mxu0 %v5126
    %5158 = vmatmul.bf16.gmra.mxu0 %v5080
    %v5159 = vpop.f32.mrf.mxu0
    %v5160 = vadd.f32 0.0, %v5159
    %v5161 = vpop.f32.mrf.mxu0
    %5162 = vdwg.mxu0
    %5163 = vmatpush.bf16.msra.mxu0 0
    %5164 = vmatpush.bf16.msra.mxu0 0
    %5165 = vmatpush.bf16.msra.mxu0 0
    %5166 = vmatpush.bf16.msra.mxu0 0
    %5167 = vmatpush.bf16.msra.mxu0 0
    %5168 = vmatpush.bf16.msra.mxu0 0
    %5169 = vmatpush.bf16.msra.mxu0 %v5135
    %5170 = vmatpush.bf16.msra.mxu0 %v5134
    %5171 = vmatmul.bf16.gmra.mxu0 %v5148
    %v5172 = vpop.f32.mrf.mxu0
    %v5173 = vadd.f32 %v5160, %v5172
    %v5174 = vpop.f32.mrf.mxu0
    %5175 = vdwg.mxu0
    %v5196 = vunpack.c.l.b16 %v5038
    %v5197 = vunpack.c.l.b16 %v5039
    %v5198 = vunpack.c.l.b16 %v5040
    %v5199 = vunpack.c.l.b16 %v5041
    %v5200 = vunpack.c.l.b16 %v5042
    %v5201 = vunpack.c.l.b16 %v5043
    %v5202 = vunpack.c.l.b16 %v5044
    %v5203 = vunpack.c.l.b16 %v5045
    %v5204 = vunpack.c.l.b16 %v5046
    %v5205 = vunpack.c.l.b16 %v5047
    %v5206 = vunpack.c.l.b16 %v5048
    %v5207 = vunpack.c.l.b16 %v5049
    %v5208 = vunpack.c.l.b16 %v5050
    %v5209 = vunpack.c.l.b16 %v5051
    %v5210 = vunpack.c.l.b16 %v5052
    %v5211 = vunpack.c.l.b16 %v5053
    %v5212 = vunpack.c.l.b16 %v5054
    %v5213 = vunpack.c.l.b16 %v5055
    %v5214 = vunpack.c.l.b16 %v5056
    %v5215 = vunpack.c.l.b16 %v5057
    %v5216 = vpack.c.b16 %v5197, %v5196
    %v5217 = vpack.c.b16 %v5199, %v5198
    %v5218 = vpack.c.b16 %v5201, %v5200
    %v5219 = vpack.c.b16 %v5203, %v5202
    %v5220 = vpack.c.b16 %v5205, %v5204
    %v5221 = vpack.c.b16 %v5207, %v5206
    %v5222 = vpack.c.b16 %v5209, %v5208
    %v5223 = vpack.c.b16 %v5211, %v5210
    %v5224 = vpack.c.b16 %v5213, %v5212
    %v5225 = vpack.c.b16 %v5215, %v5214
    %v5236 = vsel %vm5146, %v5037, 0
    %5238 = vmatpush.bf16.msra.mxu0 %v5223
    %5239 = vmatpush.bf16.msra.mxu0 %v5222
    %5240 = vmatpush.bf16.msra.mxu0 %v5221
    %5241 = vmatpush.bf16.msra.mxu0 %v5220
    %5242 = vmatpush.bf16.msra.mxu0 %v5219
    %5243 = vmatpush.bf16.msra.mxu0 %v5218
    %5244 = vmatpush.bf16.msra.mxu0 %v5217
    %5245 = vmatpush.bf16.msra.mxu0 %v5216
    %5246 = vmatmul.bf16.gmra.mxu0 %v5036
    %v5247 = vpop.f32.mrf.mxu0
    %v5248 = vadd.f32 %v5173, %v5247
    %v5249 = vpop.f32.mrf.mxu0
    %5250 = vdwg.mxu0
    %5251 = vmatpush.bf16.msra.mxu0 0
    %5252 = vmatpush.bf16.msra.mxu0 0
    %5253 = vmatpush.bf16.msra.mxu0 0
    %5254 = vmatpush.bf16.msra.mxu0 0
    %5255 = vmatpush.bf16.msra.mxu0 0
    %5256 = vmatpush.bf16.msra.mxu0 0
    %5257 = vmatpush.bf16.msra.mxu0 %v5225
    %5258 = vmatpush.bf16.msra.mxu0 %v5224
    %5259 = vmatmul.bf16.gmra.mxu0 %v5236
    %v5260 = vpop.f32.mrf.mxu0
    %v5261 = vadd.f32 %v5248, %v5260
    %v5262 = vpop.f32.mrf.mxu0
    %5263 = vdwg.mxu0
    %s5264 = scalar_lea.vmem %s9, 160
    %v5265 = vld [vmem:[%s5264] sm:$0xf]
    %v5266 = vld [vmem:[%s5264 + $0x4] sm:$0xf]
    %v5267 = vld [vmem:[%s5264 + $0x8] sm:$0xf]
    %v5268 = vld [vmem:[%s5264 + $0xc] sm:$0xf]
    %v5269 = vld [vmem:[%s5264 + $0x10] sm:$0xf]
    %v5270 = vld [vmem:[%s5264 + $0x14] sm:$0xf]
    %v5271 = vld [vmem:[%s5264 + $0x18] sm:$0xf]
    %v5272 = vld [vmem:[%s5264 + $0x1c] sm:$0xf]
    %v5273 = vld [vmem:[%s5264 + $0x20] sm:$0xf]
    %v5274 = vld [vmem:[%s5264 + $0x24] sm:$0xf]
    %v5275 = vld [vmem:[%s5264 + $0x28] sm:$0xf]
    %v5276 = vld [vmem:[%s5264 + $0x2c] sm:$0xf]
    %v5277 = vld [vmem:[%s5264 + $0x30] sm:$0xf]
    %v5278 = vld [vmem:[%s5264 + $0x34] sm:$0xf]
    %v5279 = vld [vmem:[%s5264 + $0x38] sm:$0xf]
    %v5280 = vld [vmem:[%s5264 + $0x3c] sm:$0xf]
    %v5281 = vld [vmem:[%s5264 + $0x40] sm:$0xf]
    %v5282 = vld [vmem:[%s5264 + $0x44] sm:$0xf]
    %v5283 = vld [vmem:[%s5264 + $0x48] sm:$0xf]
    %v5284 = vld [vmem:[%s5264 + $0x4c] sm:$0xf]
    %v5287 = vrot.slane %v5036, 1
    %v5288 = vrot.slane %v5037, 1
    %v5310 = vunpack.c.l.b16 %v5265
    %v5311 = vunpack.c.l.b16 %v5266
    %v5312 = vunpack.c.l.b16 %v5267
    %v5313 = vunpack.c.l.b16 %v5268
    %v5314 = vunpack.c.l.b16 %v5269
    %v5315 = vunpack.c.l.b16 %v5270
    %v5316 = vunpack.c.l.b16 %v5271
    %v5317 = vunpack.c.l.b16 %v5272
    %v5318 = vunpack.c.l.b16 %v5273
    %v5319 = vunpack.c.l.b16 %v5274
    %v5320 = vunpack.c.l.b16 %v5275
    %v5321 = vunpack.c.l.b16 %v5276
    %v5322 = vunpack.c.l.b16 %v5277
    %v5323 = vunpack.c.l.b16 %v5278
    %v5324 = vunpack.c.l.b16 %v5279
    %v5325 = vunpack.c.l.b16 %v5280
    %v5326 = vunpack.c.l.b16 %v5281
    %v5327 = vunpack.c.l.b16 %v5282
    %v5328 = vunpack.c.l.b16 %v5283
    %v5329 = vunpack.c.l.b16 %v5284
    %v5330 = vpack.c.b16 %v5311, %v5310
    %v5331 = vpack.c.b16 %v5313, %v5312
    %v5332 = vpack.c.b16 %v5315, %v5314
    %v5333 = vpack.c.b16 %v5317, %v5316
    %v5334 = vpack.c.b16 %v5319, %v5318
    %v5335 = vpack.c.b16 %v5321, %v5320
    %v5336 = vpack.c.b16 %v5323, %v5322
    %v5337 = vpack.c.b16 %v5325, %v5324
    %v5338 = vpack.c.b16 %v5327, %v5326
    %v5339 = vpack.c.b16 %v5329, %v5328
    %v5351 = vsel %vm5146, %v5288, 0
    %5353 = vmatpush.bf16.msra.mxu0 %v5337
    %5354 = vmatpush.bf16.msra.mxu0 %v5336
    %5355 = vmatpush.bf16.msra.mxu0 %v5335
    %5356 = vmatpush.bf16.msra.mxu0 %v5334
    %5357 = vmatpush.bf16.msra.mxu0 %v5333
    %5358 = vmatpush.bf16.msra.mxu0 %v5332
    %5359 = vmatpush.bf16.msra.mxu0 %v5331
    %5360 = vmatpush.bf16.msra.mxu0 %v5330
    %5361 = vmatmul.bf16.gmra.mxu0 %v5287
    %v5362 = vpop.f32.mrf.mxu0
    %v5363 = vadd.f32 0.0, %v5362
    %v5364 = vpop.f32.mrf.mxu0
    %5365 = vdwg.mxu0
    %5366 = vmatpush.bf16.msra.mxu0 0
    %5367 = vmatpush.bf16.msra.mxu0 0
    %5368 = vmatpush.bf16.msra.mxu0 0
    %5369 = vmatpush.bf16.msra.mxu0 0
    %5370 = vmatpush.bf16.msra.mxu0 0
    %5371 = vmatpush.bf16.msra.mxu0 0
    %5372 = vmatpush.bf16.msra.mxu0 %v5339
    %5373 = vmatpush.bf16.msra.mxu0 %v5338
    %5374 = vmatmul.bf16.gmra.mxu0 %v5351
    %v5375 = vpop.f32.mrf.mxu0
    %v5376 = vadd.f32 %v5363, %v5375
    %v5377 = vpop.f32.mrf.mxu0
    %5378 = vdwg.mxu0
    %v5379 = vadd.f32 %v5261, %v5376
    %s5380 = scalar_lea.vmem %s9, 240
    %v5381 = vld [vmem:[%s5380] sm:$0xf]
    %v5382 = vld [vmem:[%s5380 + $0x4] sm:$0xf]
    %v5383 = vld [vmem:[%s5380 + $0x8] sm:$0xf]
    %v5384 = vld [vmem:[%s5380 + $0xc] sm:$0xf]
    %v5385 = vld [vmem:[%s5380 + $0x10] sm:$0xf]
    %v5386 = vld [vmem:[%s5380 + $0x14] sm:$0xf]
    %v5387 = vld [vmem:[%s5380 + $0x18] sm:$0xf]
    %v5388 = vld [vmem:[%s5380 + $0x1c] sm:$0xf]
    %v5389 = vld [vmem:[%s5380 + $0x20] sm:$0xf]
    %v5390 = vld [vmem:[%s5380 + $0x24] sm:$0xf]
    %v5391 = vld [vmem:[%s5380 + $0x28] sm:$0xf]
    %v5392 = vld [vmem:[%s5380 + $0x2c] sm:$0xf]
    %v5393 = vld [vmem:[%s5380 + $0x30] sm:$0xf]
    %v5394 = vld [vmem:[%s5380 + $0x34] sm:$0xf]
    %v5395 = vld [vmem:[%s5380 + $0x38] sm:$0xf]
    %v5396 = vld [vmem:[%s5380 + $0x3c] sm:$0xf]
    %v5397 = vld [vmem:[%s5380 + $0x40] sm:$0xf]
    %v5398 = vld [vmem:[%s5380 + $0x44] sm:$0xf]
    %v5399 = vld [vmem:[%s5380 + $0x48] sm:$0xf]
    %v5400 = vld [vmem:[%s5380 + $0x4c] sm:$0xf]
    %v5401 = vrot.slane %v5080, 1
    %v5402 = vrot.slane %v5083, 1
    %v5424 = vunpack.c.l.b16 %v5381
    %v5425 = vunpack.c.l.b16 %v5382
    %v5426 = vunpack.c.l.b16 %v5383
    %v5427 = vunpack.c.l.b16 %v5384
    %v5428 = vunpack.c.l.b16 %v5385
    %v5429 = vunpack.c.l.b16 %v5386
    %v5430 = vunpack.c.l.b16 %v5387
    %v5431 = vunpack.c.l.b16 %v5388
    %v5432 = vunpack.c.l.b16 %v5389
    %v5433 = vunpack.c.l.b16 %v5390
    %v5434 = vunpack.c.l.b16 %v5391
    %v5435 = vunpack.c.l.b16 %v5392
    %v5436 = vunpack.c.l.b16 %v5393
    %v5437 = vunpack.c.l.b16 %v5394
    %v5438 = vunpack.c.l.b16 %v5395
    %v5439 = vunpack.c.l.b16 %v5396
    %v5440 = vunpack.c.l.b16 %v5397
    %v5441 = vunpack.c.l.b16 %v5398
    %v5442 = vunpack.c.l.b16 %v5399
    %v5443 = vunpack.c.l.b16 %v5400
    %v5444 = vpack.c.b16 %v5425, %v5424
    %v5445 = vpack.c.b16 %v5427, %v5426
    %v5446 = vpack.c.b16 %v5429, %v5428
    %v5447 = vpack.c.b16 %v5431, %v5430
    %v5448 = vpack.c.b16 %v5433, %v5432
    %v5449 = vpack.c.b16 %v5435, %v5434
    %v5450 = vpack.c.b16 %v5437, %v5436
    %v5451 = vpack.c.b16 %v5439, %v5438
    %v5452 = vpack.c.b16 %v5441, %v5440
    %v5453 = vpack.c.b16 %v5443, %v5442
    %v5465 = vsel %vm5146, %v5402, 0
    %5467 = vmatpush.bf16.msra.mxu0 %v5451
    %5468 = vmatpush.bf16.msra.mxu0 %v5450
    %5469 = vmatpush.bf16.msra.mxu0 %v5449
    %5470 = vmatpush.bf16.msra.mxu0 %v5448
    %5471 = vmatpush.bf16.msra.mxu0 %v5447
    %5472 = vmatpush.bf16.msra.mxu0 %v5446
    %5473 = vmatpush.bf16.msra.mxu0 %v5445
    %5474 = vmatpush.bf16.msra.mxu0 %v5444
    %5475 = vmatmul.bf16.gmra.mxu0 %v5401
    %v5476 = vpop.f32.mrf.mxu0
    %v5477 = vadd.f32 0.0, %v5476
    %v5478 = vpop.f32.mrf.mxu0
    %5479 = vdwg.mxu0
    %5480 = vmatpush.bf16.msra.mxu0 0
    %5481 = vmatpush.bf16.msra.mxu0 0
    %5482 = vmatpush.bf16.msra.mxu0 0
    %5483 = vmatpush.bf16.msra.mxu0 0
    %5484 = vmatpush.bf16.msra.mxu0 0
    %5485 = vmatpush.bf16.msra.mxu0 0
    %5486 = vmatpush.bf16.msra.mxu0 %v5453
    %5487 = vmatpush.bf16.msra.mxu0 %v5452
    %5488 = vmatmul.bf16.gmra.mxu0 %v5465
    %v5489 = vpop.f32.mrf.mxu0
    %v5490 = vadd.f32 %v5477, %v5489
    %v5491 = vpop.f32.mrf.mxu0
    %5492 = vdwg.mxu0
    %v5493 = vadd.f32 %v5379, %v5490
    %s5494 = scalar_lea.vmem %s9, 320
    %v5495 = vld [vmem:[%s5494] sm:$0xf]
    %v5496 = vld [vmem:[%s5494 + $0x4] sm:$0xf]
    %v5497 = vld [vmem:[%s5494 + $0x8] sm:$0xf]
    %v5498 = vld [vmem:[%s5494 + $0xc] sm:$0xf]
    %v5499 = vld [vmem:[%s5494 + $0x10] sm:$0xf]
    %v5500 = vld [vmem:[%s5494 + $0x14] sm:$0xf]
    %v5501 = vld [vmem:[%s5494 + $0x18] sm:$0xf]
    %v5502 = vld [vmem:[%s5494 + $0x1c] sm:$0xf]
    %v5503 = vld [vmem:[%s5494 + $0x20] sm:$0xf]
    %v5504 = vld [vmem:[%s5494 + $0x24] sm:$0xf]
    %v5505 = vld [vmem:[%s5494 + $0x28] sm:$0xf]
    %v5506 = vld [vmem:[%s5494 + $0x2c] sm:$0xf]
    %v5507 = vld [vmem:[%s5494 + $0x30] sm:$0xf]
    %v5508 = vld [vmem:[%s5494 + $0x34] sm:$0xf]
    %v5509 = vld [vmem:[%s5494 + $0x38] sm:$0xf]
    %v5510 = vld [vmem:[%s5494 + $0x3c] sm:$0xf]
    %v5511 = vld [vmem:[%s5494 + $0x40] sm:$0xf]
    %v5512 = vld [vmem:[%s5494 + $0x44] sm:$0xf]
    %v5513 = vld [vmem:[%s5494 + $0x48] sm:$0xf]
    %v5514 = vld [vmem:[%s5494 + $0x4c] sm:$0xf]
    %v5515 = vrot.slane %v5036, 2
    %v5516 = vrot.slane %v5037, 2
    %v5538 = vunpack.c.l.b16 %v5495
    %v5539 = vunpack.c.l.b16 %v5496
    %v5540 = vunpack.c.l.b16 %v5497
    %v5541 = vunpack.c.l.b16 %v5498
    %v5542 = vunpack.c.l.b16 %v5499
    %v5543 = vunpack.c.l.b16 %v5500
    %v5544 = vunpack.c.l.b16 %v5501
    %v5545 = vunpack.c.l.b16 %v5502
    %v5546 = vunpack.c.l.b16 %v5503
    %v5547 = vunpack.c.l.b16 %v5504
    %v5548 = vunpack.c.l.b16 %v5505
    %v5549 = vunpack.c.l.b16 %v5506
    %v5550 = vunpack.c.l.b16 %v5507
    %v5551 = vunpack.c.l.b16 %v5508
    %v5552 = vunpack.c.l.b16 %v5509
    %v5553 = vunpack.c.l.b16 %v5510
    %v5554 = vunpack.c.l.b16 %v5511
    %v5555 = vunpack.c.l.b16 %v5512
    %v5556 = vunpack.c.l.b16 %v5513
    %v5557 = vunpack.c.l.b16 %v5514
    %v5558 = vpack.c.b16 %v5539, %v5538
    %v5559 = vpack.c.b16 %v5541, %v5540
    %v5560 = vpack.c.b16 %v5543, %v5542
    %v5561 = vpack.c.b16 %v5545, %v5544
    %v5562 = vpack.c.b16 %v5547, %v5546
    %v5563 = vpack.c.b16 %v5549, %v5548
    %v5564 = vpack.c.b16 %v5551, %v5550
    %v5565 = vpack.c.b16 %v5553, %v5552
    %v5566 = vpack.c.b16 %v5555, %v5554
    %v5567 = vpack.c.b16 %v5557, %v5556
    %v5579 = vsel %vm5146, %v5516, 0
    %5581 = vmatpush.bf16.msra.mxu0 %v5565
    %5582 = vmatpush.bf16.msra.mxu0 %v5564
    %5583 = vmatpush.bf16.msra.mxu0 %v5563
    %5584 = vmatpush.bf16.msra.mxu0 %v5562
    %5585 = vmatpush.bf16.msra.mxu0 %v5561
    %5586 = vmatpush.bf16.msra.mxu0 %v5560
    %5587 = vmatpush.bf16.msra.mxu0 %v5559
    %5588 = vmatpush.bf16.msra.mxu0 %v5558
    %5589 = vmatmul.bf16.gmra.mxu0 %v5515
    %v5590 = vpop.f32.mrf.mxu0
    %v5591 = vadd.f32 0.0, %v5590
    %v5592 = vpop.f32.mrf.mxu0
    %5593 = vdwg.mxu0
    %5594 = vmatpush.bf16.msra.mxu0 0
    %5595 = vmatpush.bf16.msra.mxu0 0
    %5596 = vmatpush.bf16.msra.mxu0 0
    %5597 = vmatpush.bf16.msra.mxu0 0
    %5598 = vmatpush.bf16.msra.mxu0 0
    %5599 = vmatpush.bf16.msra.mxu0 0
    %5600 = vmatpush.bf16.msra.mxu0 %v5567
    %5601 = vmatpush.bf16.msra.mxu0 %v5566
    %5602 = vmatmul.bf16.gmra.mxu0 %v5579
    %v5603 = vpop.f32.mrf.mxu0
    %v5604 = vadd.f32 %v5591, %v5603
    %v5605 = vpop.f32.mrf.mxu0
    %5606 = vdwg.mxu0
    %v5607 = vadd.f32 %v5493, %v5604
    %v5608 = vld [vmem:[%s10] sm:$0x1]
    %v5609 = vadd.f32 %v5607, %v5608
    %v5610 = vmax.f32 %v5609, 0.0
    %v5611 = vpack.c.bf16 %v5610, %v5610
    %v5612 = vld [vmem:[%s11] sm:$0xf]
    %v5613 = vld [vmem:[%s11 + $0x4] sm:$0xf]
    %v5614 = vld [vmem:[%s11 + $0x8] sm:$0xf]
    %v5615 = vld [vmem:[%s11 + $0xc] sm:$0xf]
    %v5616 = vld [vmem:[%s11 + $0x10] sm:$0xf]
    %v5617 = vld [vmem:[%s11 + $0x14] sm:$0xf]
    %v5618 = vld [vmem:[%s11 + $0x18] sm:$0xf]
    %v5619 = vld [vmem:[%s11 + $0x1c] sm:$0xf]
    %v5620 = vld [vmem:[%s11 + $0x20] sm:$0xf]
    %v5621 = vld [vmem:[%s11 + $0x24] sm:$0xf]
    %v5622 = vld [vmem:[%s11 + $0x28] sm:$0xf]
    %v5623 = vld [vmem:[%s11 + $0x2c] sm:$0xf]
    %v5624 = vld [vmem:[%s11 + $0x30] sm:$0xf]
    %v5625 = vld [vmem:[%s11 + $0x34] sm:$0xf]
    %v5626 = vld [vmem:[%s11 + $0x38] sm:$0xf]
    %v5627 = vld [vmem:[%s12] sm:$0x1]
    %v5643 = vunpack.c.l.b16 %v5612
    %v5644 = vunpack.c.l.b16 %v5613
    %v5645 = vunpack.c.l.b16 %v5614
    %v5646 = vunpack.c.l.b16 %v5615
    %v5647 = vunpack.c.l.b16 %v5616
    %v5648 = vunpack.c.l.b16 %v5617
    %v5649 = vunpack.c.l.b16 %v5618
    %v5650 = vunpack.c.l.b16 %v5619
    %v5651 = vunpack.c.l.b16 %v5620
    %v5652 = vunpack.c.l.b16 %v5621
    %v5653 = vunpack.c.l.b16 %v5622
    %v5654 = vunpack.c.l.b16 %v5623
    %v5655 = vunpack.c.l.b16 %v5624
    %v5656 = vunpack.c.l.b16 %v5625
    %v5657 = vunpack.c.l.b16 %v5626
    %v5658 = vpack.c.b16 %v5644, %v5643
    %v5659 = vpack.c.b16 %v5646, %v5645
    %v5660 = vpack.c.b16 %v5648, %v5647
    %v5661 = vpack.c.b16 %v5650, %v5649
    %v5662 = vpack.c.b16 %v5652, %v5651
    %v5663 = vpack.c.b16 %v5654, %v5653
    %v5664 = vpack.c.b16 %v5656, %v5655
    %v5665 = vpack.c.b16 %v5657, %v5657
    %vm5673 = vcmask 982016
    %v5675 = vsel %vm5673, %v5611, 0
    %vm5677 = vcmask 1043456
    %v5679 = vsel %vm5677, %v5665, 0
    %5681 = vmatpush.bf16.msra.mxu0 %v5679
    %5682 = vmatpush.bf16.msra.mxu0 %v5664
    %5683 = vmatpush.bf16.msra.mxu0 %v5663
    %5684 = vmatpush.bf16.msra.mxu0 %v5662
    %5685 = vmatpush.bf16.msra.mxu0 %v5661
    %5686 = vmatpush.bf16.msra.mxu0 %v5660
    %5687 = vmatpush.bf16.msra.mxu0 %v5659
    %5688 = vmatpush.bf16.msra.mxu0 %v5658
    %5689 = vmatmul.bf16.gmra.mxu0 %v5675
    %v5690 = vpop.f32.mrf.mxu0
    %v5691 = vadd.f32 %v5627, %v5690
    %v5692 = vpop.f32.mrf.mxu0
    %5693 = vdwg.mxu0
    %v5694 = vmax.f32 %v5691, 0.0
    %v5695 = vpack.c.bf16 %v5694, %v5694
    %v5696 = vld [vmem:[%s13] sm:$0xf]
    %v5697 = vld [vmem:[%s13 + $0x4] sm:$0xf]
    %v5698 = vld [vmem:[%s13 + $0x8] sm:$0xf]
    %v5699 = vld [vmem:[%s13 + $0xc] sm:$0xf]
    %v5700 = vld [vmem:[%s13 + $0x10] sm:$0xf]
    %v5701 = vld [vmem:[%s13 + $0x14] sm:$0xf]
    %v5702 = vld [vmem:[%s13 + $0x18] sm:$0xf]
    %v5703 = vld [vmem:[%s13 + $0x1c] sm:$0xf]
    %v5704 = vld [vmem:[%s13 + $0x20] sm:$0xf]
    %v5705 = vld [vmem:[%s13 + $0x24] sm:$0xf]
    %v5706 = vld [vmem:[%s13 + $0x28] sm:$0x3]
    %v5707 = vld [vmem:[%s14] sm:$0x1]
    %v5719 = vunpack.c.l.b16 %v5696
    %v5720 = vunpack.c.l.b16 %v5697
    %v5721 = vunpack.c.l.b16 %v5698
    %v5722 = vunpack.c.l.b16 %v5699
    %v5723 = vunpack.c.l.b16 %v5700
    %v5724 = vunpack.c.l.b16 %v5701
    %v5725 = vunpack.c.l.b16 %v5702
    %v5726 = vunpack.c.l.b16 %v5703
    %v5727 = vunpack.c.l.b16 %v5704
    %v5728 = vunpack.c.l.b16 %v5705
    %v5729 = vunpack.c.l.b16 %v5706
    %v5730 = vpack.c.b16 %v5720, %v5719
    %v5731 = vpack.c.b16 %v5722, %v5721
    %v5732 = vpack.c.b16 %v5724, %v5723
    %v5733 = vpack.c.b16 %v5726, %v5725
    %v5734 = vpack.c.b16 %v5728, %v5727
    %v5735 = vpack.c.b16 %v5729, %v5729
    %vm5741 = vcmask 687104
    %v5743 = vsel %vm5741, %v5695, 0
    %vm5745 = vcmask 1041408
    %v5747 = vsel %vm5745, %v5735, 0
    %5749 = vmatpush.bf16.msra.mxu0 0
    %5750 = vmatpush.bf16.msra.mxu0 0
    %5751 = vmatpush.bf16.msra.mxu0 %v5747
    %5752 = vmatpush.bf16.msra.mxu0 %v5734
    %5753 = vmatpush.bf16.msra.mxu0 %v5733
    %5754 = vmatpush.bf16.msra.mxu0 %v5732
    %5755 = vmatpush.bf16.msra.mxu0 %v5731
    %5756 = vmatpush.bf16.msra.mxu0 %v5730
    %5757 = vmatmul.bf16.gmra.mxu0 %v5743
    %v5758 = vpop.f32.mrf.mxu0
    %v5759 = vadd.f32 %v5707, %v5758
    %v5760 = vpop.f32.mrf.mxu0
    %5761 = vdwg.mxu0
    %vm5762 = vcmask 73728
    %5763 = vst.msk [vmem:[#allocation2] sm:$0x1] %vm5762, %v5759
    %s5764 = scalar_lea.vmem %s0, 32
    %v5765 = vld [vmem:[%s5764] sm:$0xff]
    %v5766 = vld [vmem:[%s5764 + $0x8] sm:$0xff]
    %v5767 = vld [vmem:[%s5764 + $0x10] sm:$0xff]
    %v5768 = vld [vmem:[%s5764 + $0x18] sm:$0xf]
    %v5769 = vpack.c.bf16 %v5766, %v5765
    %v5770 = vpack.c.bf16 %v5768, %v5767
    %v5771 = vld [vmem:[%s1] sm:$0xff]
    %v5772 = vld [vmem:[%s1 + $0x8] sm:$0xff]
    %v5773 = vld [vmem:[%s1 + $0x10] sm:$0xff]
    %v5774 = vld [vmem:[%s1 + $0x18] sm:$0xff]
    %v5775 = vld [vmem:[%s1 + $0x20] sm:$0xff]
    %v5776 = vld [vmem:[%s1 + $0x28] sm:$0xff]
    %v5777 = vld [vmem:[%s1 + $0x30] sm:$0xff]
    %v5778 = vld [vmem:[%s1 + $0x38] sm:$0xff]
    %v5779 = vld [vmem:[%s1 + $0x40] sm:$0xff]
    %v5780 = vld [vmem:[%s1 + $0x48] sm:$0xff]
    %v5781 = vld [vmem:[%s1 + $0x50] sm:$0xff]
    %v5782 = vld [vmem:[%s1 + $0x58] sm:$0xff]
    %v5783 = vld [vmem:[%s1 + $0x60] sm:$0xff]
    %v5784 = vld [vmem:[%s1 + $0x68] sm:$0xff]
    %v5785 = vld [vmem:[%s1 + $0x70] sm:$0xff]
    %v5786 = vld [vmem:[%s1 + $0x78] sm:$0xff]
    %v5787 = vld [vmem:[%s1 + $0x80] sm:$0xff]
    %v5788 = vld [vmem:[%s1 + $0x88] sm:$0xff]
    %v5789 = vld [vmem:[%s1 + $0x90] sm:$0xff]
    %v5790 = vld [vmem:[%s1 + $0x98] sm:$0xff]
    %v5791 = vld [vmem:[%s1 + $0xa0] sm:$0xff]
    %v5792 = vld [vmem:[%s1 + $0xa8] sm:$0xff]
    %v5793 = vld [vmem:[%s1 + $0xb0] sm:$0xff]
    %v5794 = vld [vmem:[%s1 + $0xb8] sm:$0xff]
    %v5795 = vld [vmem:[%s5764 + $0x1] sm:$0xff]
    %v5796 = vld [vmem:[%s5764 + $0x9] sm:$0xff]
    %v5797 = vld [vmem:[%s5764 + $0x11] sm:$0xff]
    %v5798 = vld [vmem:[%s5764 + $0x19] sm:$0xf]
    %v5799 = vpack.c.bf16 %v5796, %v5795
    %v5800 = vpack.c.bf16 %v5798, %v5797
    %v5801 = vld [vmem:[%s88] sm:$0xff]
    %v5802 = vld [vmem:[%s88 + $0x8] sm:$0xff]
    %v5803 = vld [vmem:[%s88 + $0x10] sm:$0xff]
    %v5804 = vld [vmem:[%s88 + $0x18] sm:$0xff]
    %v5805 = vld [vmem:[%s88 + $0x20] sm:$0xff]
    %v5806 = vld [vmem:[%s88 + $0x28] sm:$0xff]
    %v5807 = vld [vmem:[%s88 + $0x30] sm:$0xff]
    %v5808 = vld [vmem:[%s88 + $0x38] sm:$0xff]
    %v5809 = vld [vmem:[%s88 + $0x40] sm:$0xff]
    %v5810 = vld [vmem:[%s88 + $0x48] sm:$0xff]
    %v5811 = vld [vmem:[%s88 + $0x50] sm:$0xff]
    %v5812 = vld [vmem:[%s88 + $0x58] sm:$0xff]
    %v5813 = vld [vmem:[%s88 + $0x60] sm:$0xff]
    %v5814 = vld [vmem:[%s88 + $0x68] sm:$0xff]
    %v5815 = vld [vmem:[%s88 + $0x70] sm:$0xff]
    %v5816 = vld [vmem:[%s88 + $0x78] sm:$0xff]
    %v5817 = vld [vmem:[%s88 + $0x80] sm:$0xff]
    %v5818 = vld [vmem:[%s88 + $0x88] sm:$0xff]
    %v5819 = vld [vmem:[%s88 + $0x90] sm:$0xff]
    %v5820 = vld [vmem:[%s88 + $0x98] sm:$0xff]
    %v5821 = vld [vmem:[%s88 + $0xa0] sm:$0xff]
    %v5822 = vld [vmem:[%s88 + $0xa8] sm:$0xff]
    %v5823 = vld [vmem:[%s88 + $0xb0] sm:$0xff]
    %v5824 = vld [vmem:[%s88 + $0xb8] sm:$0xff]
    %v5849 = vunpack.c.l.b16 %v5801
    %v5850 = vunpack.c.h.b16 %v5801
    %v5851 = vunpack.c.l.b16 %v5802
    %v5852 = vunpack.c.h.b16 %v5802
    %v5853 = vunpack.c.l.b16 %v5803
    %v5854 = vunpack.c.h.b16 %v5803
    %v5855 = vunpack.c.l.b16 %v5804
    %v5856 = vunpack.c.h.b16 %v5804
    %v5857 = vunpack.c.l.b16 %v5805
    %v5858 = vunpack.c.h.b16 %v5805
    %v5859 = vunpack.c.l.b16 %v5806
    %v5860 = vunpack.c.h.b16 %v5806
    %v5861 = vunpack.c.l.b16 %v5807
    %v5862 = vunpack.c.h.b16 %v5807
    %v5863 = vunpack.c.l.b16 %v5808
    %v5864 = vunpack.c.h.b16 %v5808
    %v5865 = vunpack.c.l.b16 %v5809
    %v5866 = vunpack.c.h.b16 %v5809
    %v5867 = vunpack.c.l.b16 %v5810
    %v5868 = vunpack.c.h.b16 %v5810
    %v5869 = vunpack.c.l.b16 %v5811
    %v5870 = vunpack.c.h.b16 %v5811
    %v5871 = vunpack.c.l.b16 %v5812
    %v5872 = vunpack.c.h.b16 %v5812
    %v5873 = vunpack.c.l.b16 %v5813
    %v5874 = vunpack.c.h.b16 %v5813
    %v5875 = vunpack.c.l.b16 %v5814
    %v5876 = vunpack.c.h.b16 %v5814
    %v5877 = vunpack.c.l.b16 %v5815
    %v5878 = vunpack.c.h.b16 %v5815
    %v5879 = vunpack.c.l.b16 %v5816
    %v5880 = vunpack.c.h.b16 %v5816
    %v5881 = vunpack.c.l.b16 %v5817
    %v5882 = vunpack.c.h.b16 %v5817
    %v5883 = vunpack.c.l.b16 %v5818
    %v5884 = vunpack.c.h.b16 %v5818
    %v5885 = vunpack.c.l.b16 %v5819
    %v5886 = vunpack.c.h.b16 %v5819
    %v5887 = vunpack.c.l.b16 %v5820
    %v5888 = vunpack.c.h.b16 %v5820
    %v5889 = vunpack.c.l.b16 %v5821
    %v5890 = vunpack.c.h.b16 %v5821
    %v5891 = vunpack.c.l.b16 %v5822
    %v5892 = vunpack.c.h.b16 %v5822
    %v5893 = vunpack.c.l.b16 %v5823
    %v5894 = vunpack.c.h.b16 %v5823
    %v5895 = vunpack.c.l.b16 %v5824
    %v5896 = vunpack.c.h.b16 %v5824
    %v5897 = vpack.c.b16 %v5853, %v5849
    %v5898 = vpack.c.b16 %v5854, %v5850
    %v5899 = vpack.c.b16 %v5855, %v5851
    %v5900 = vpack.c.b16 %v5856, %v5852
    %v5901 = vpack.c.b16 %v5861, %v5857
    %v5902 = vpack.c.b16 %v5862, %v5858
    %v5903 = vpack.c.b16 %v5863, %v5859
    %v5904 = vpack.c.b16 %v5864, %v5860
    %v5905 = vpack.c.b16 %v5869, %v5865
    %v5906 = vpack.c.b16 %v5870, %v5866
    %v5907 = vpack.c.b16 %v5871, %v5867
    %v5908 = vpack.c.b16 %v5872, %v5868
    %v5909 = vpack.c.b16 %v5877, %v5873
    %v5910 = vpack.c.b16 %v5878, %v5874
    %v5911 = vpack.c.b16 %v5879, %v5875
    %v5912 = vpack.c.b16 %v5880, %v5876
    %v5913 = vpack.c.b16 %v5885, %v5881
    %v5914 = vpack.c.b16 %v5886, %v5882
    %v5915 = vpack.c.b16 %v5887, %v5883
    %v5916 = vpack.c.b16 %v5888, %v5884
    %v5917 = vpack.c.b16 %v5893, %v5889
    %v5918 = vpack.c.b16 %v5894, %v5890
    %v5919 = vpack.c.b16 %v5895, %v5891
    %v5920 = vpack.c.b16 %v5896, %v5892
    %v5946 = vsel %vm233, %v5799, 0
    %v5949 = vsel %vm233, %v5800, 0
    %5951 = vmatpush.bf16.msra.mxu0 0
    %5952 = vmatpush.bf16.msra.mxu0 0
    %5953 = vmatpush.bf16.msra.mxu0 %v5917
    %5954 = vmatpush.bf16.msra.mxu0 %v5913
    %5955 = vmatpush.bf16.msra.mxu0 %v5909
    %5956 = vmatpush.bf16.msra.mxu0 %v5905
    %5957 = vmatpush.bf16.msra.mxu0 %v5901
    %5958 = vmatpush.bf16.msra.mxu0 %v5897
    %5959 = vmatmul.bf16.gmra.mxu0 %v5946
    %v5960 = vpop.f32.mrf.mxu0
    %v5961 = vadd.f32 0.0, %v5960
    %v5962 = vpop.f32.mrf.mxu0
    %v5963 = vadd.f32 0.0, %v5962
    %5964 = vmatmul.bf16.gmra.mxu0 %v5949
    %v5965 = vpop.f32.mrf.mxu0
    %v5966 = vadd.f32 0.0, %v5965
    %v5967 = vpop.f32.mrf.mxu0
    %v5968 = vadd.f32 0.0, %v5967
    %5969 = vdwg.mxu0
    %5970 = vmatpush.bf16.msra.mxu0 0
    %5971 = vmatpush.bf16.msra.mxu0 0
    %5972 = vmatpush.bf16.msra.mxu0 %v5918
    %5973 = vmatpush.bf16.msra.mxu0 %v5914
    %5974 = vmatpush.bf16.msra.mxu0 %v5910
    %5975 = vmatpush.bf16.msra.mxu0 %v5906
    %5976 = vmatpush.bf16.msra.mxu0 %v5902
    %5977 = vmatpush.bf16.msra.mxu0 %v5898
    %5978 = vmatmul.bf16.gmra.mxu0 %v5946
    %v5979 = vpop.f32.mrf.mxu0
    %v5980 = vadd.f32 0.0, %v5979
    %v5981 = vpop.f32.mrf.mxu0
    %v5982 = vadd.f32 0.0, %v5981
    %5983 = vmatmul.bf16.gmra.mxu0 %v5949
    %v5984 = vpop.f32.mrf.mxu0
    %v5985 = vadd.f32 0.0, %v5984
    %v5986 = vpop.f32.mrf.mxu0
    %v5987 = vadd.f32 0.0, %v5986
    %5988 = vdwg.mxu0
    %5989 = vmatpush.bf16.msra.mxu0 0
    %5990 = vmatpush.bf16.msra.mxu0 0
    %5991 = vmatpush.bf16.msra.mxu0 %v5919
    %5992 = vmatpush.bf16.msra.mxu0 %v5915
    %5993 = vmatpush.bf16.msra.mxu0 %v5911
    %5994 = vmatpush.bf16.msra.mxu0 %v5907
    %5995 = vmatpush.bf16.msra.mxu0 %v5903
    %5996 = vmatpush.bf16.msra.mxu0 %v5899
    %5997 = vmatmul.bf16.gmra.mxu0 %v5946
    %v5998 = vpop.f32.mrf.mxu0
    %v5999 = vadd.f32 0.0, %v5998
    %v6000 = vpop.f32.mrf.mxu0
    %v6001 = vadd.f32 0.0, %v6000
    %6002 = vmatmul.bf16.gmra.mxu0 %v5949
    %v6003 = vpop.f32.mrf.mxu0
    %v6004 = vadd.f32 0.0, %v6003
    %v6005 = vpop.f32.mrf.mxu0
    %v6006 = vadd.f32 0.0, %v6005
    %6007 = vdwg.mxu0
    %6008 = vmatpush.bf16.msra.mxu0 0
    %6009 = vmatpush.bf16.msra.mxu0 0
    %6010 = vmatpush.bf16.msra.mxu0 %v5920
    %6011 = vmatpush.bf16.msra.mxu0 %v5916
    %6012 = vmatpush.bf16.msra.mxu0 %v5912
    %6013 = vmatpush.bf16.msra.mxu0 %v5908
    %6014 = vmatpush.bf16.msra.mxu0 %v5904
    %6015 = vmatpush.bf16.msra.mxu0 %v5900
    %6016 = vmatmul.bf16.gmra.mxu0 %v5946
    %v6017 = vpop.f32.mrf.mxu0
    %v6018 = vadd.f32 0.0, %v6017
    %v6019 = vpop.f32.mrf.mxu0
    %v6020 = vadd.f32 0.0, %v6019
    %6021 = vmatmul.bf16.gmra.mxu0 %v5949
    %v6022 = vpop.f32.mrf.mxu0
    %v6023 = vadd.f32 0.0, %v6022
    %v6024 = vpop.f32.mrf.mxu0
    %v6025 = vadd.f32 0.0, %v6024
    %6026 = vdwg.mxu0
    %v6051 = vunpack.c.l.b16 %v5771
    %v6052 = vunpack.c.h.b16 %v5771
    %v6053 = vunpack.c.l.b16 %v5772
    %v6054 = vunpack.c.h.b16 %v5772
    %v6055 = vunpack.c.l.b16 %v5773
    %v6056 = vunpack.c.h.b16 %v5773
    %v6057 = vunpack.c.l.b16 %v5774
    %v6058 = vunpack.c.h.b16 %v5774
    %v6059 = vunpack.c.l.b16 %v5775
    %v6060 = vunpack.c.h.b16 %v5775
    %v6061 = vunpack.c.l.b16 %v5776
    %v6062 = vunpack.c.h.b16 %v5776
    %v6063 = vunpack.c.l.b16 %v5777
    %v6064 = vunpack.c.h.b16 %v5777
    %v6065 = vunpack.c.l.b16 %v5778
    %v6066 = vunpack.c.h.b16 %v5778
    %v6067 = vunpack.c.l.b16 %v5779
    %v6068 = vunpack.c.h.b16 %v5779
    %v6069 = vunpack.c.l.b16 %v5780
    %v6070 = vunpack.c.h.b16 %v5780
    %v6071 = vunpack.c.l.b16 %v5781
    %v6072 = vunpack.c.h.b16 %v5781
    %v6073 = vunpack.c.l.b16 %v5782
    %v6074 = vunpack.c.h.b16 %v5782
    %v6075 = vunpack.c.l.b16 %v5783
    %v6076 = vunpack.c.h.b16 %v5783
    %v6077 = vunpack.c.l.b16 %v5784
    %v6078 = vunpack.c.h.b16 %v5784
    %v6079 = vunpack.c.l.b16 %v5785
    %v6080 = vunpack.c.h.b16 %v5785
    %v6081 = vunpack.c.l.b16 %v5786
    %v6082 = vunpack.c.h.b16 %v5786
    %v6083 = vunpack.c.l.b16 %v5787
    %v6084 = vunpack.c.h.b16 %v5787
    %v6085 = vunpack.c.l.b16 %v5788
    %v6086 = vunpack.c.h.b16 %v5788
    %v6087 = vunpack.c.l.b16 %v5789
    %v6088 = vunpack.c.h.b16 %v5789
    %v6089 = vunpack.c.l.b16 %v5790
    %v6090 = vunpack.c.h.b16 %v5790
    %v6091 = vunpack.c.l.b16 %v5791
    %v6092 = vunpack.c.h.b16 %v5791
    %v6093 = vunpack.c.l.b16 %v5792
    %v6094 = vunpack.c.h.b16 %v5792
    %v6095 = vunpack.c.l.b16 %v5793
    %v6096 = vunpack.c.h.b16 %v5793
    %v6097 = vunpack.c.l.b16 %v5794
    %v6098 = vunpack.c.h.b16 %v5794
    %v6099 = vpack.c.b16 %v6055, %v6051
    %v6100 = vpack.c.b16 %v6056, %v6052
    %v6101 = vpack.c.b16 %v6057, %v6053
    %v6102 = vpack.c.b16 %v6058, %v6054
    %v6103 = vpack.c.b16 %v6063, %v6059
    %v6104 = vpack.c.b16 %v6064, %v6060
    %v6105 = vpack.c.b16 %v6065, %v6061
    %v6106 = vpack.c.b16 %v6066, %v6062
    %v6107 = vpack.c.b16 %v6071, %v6067
    %v6108 = vpack.c.b16 %v6072, %v6068
    %v6109 = vpack.c.b16 %v6073, %v6069
    %v6110 = vpack.c.b16 %v6074, %v6070
    %v6111 = vpack.c.b16 %v6079, %v6075
    %v6112 = vpack.c.b16 %v6080, %v6076
    %v6113 = vpack.c.b16 %v6081, %v6077
    %v6114 = vpack.c.b16 %v6082, %v6078
    %v6115 = vpack.c.b16 %v6087, %v6083
    %v6116 = vpack.c.b16 %v6088, %v6084
    %v6117 = vpack.c.b16 %v6089, %v6085
    %v6118 = vpack.c.b16 %v6090, %v6086
    %v6119 = vpack.c.b16 %v6095, %v6091
    %v6120 = vpack.c.b16 %v6096, %v6092
    %v6121 = vpack.c.b16 %v6097, %v6093
    %v6122 = vpack.c.b16 %v6098, %v6094
    %v6148 = vsel %vm233, %v5769, 0
    %v6151 = vsel %vm233, %v5770, 0
    %6153 = vmatpush.bf16.msra.mxu0 0
    %6154 = vmatpush.bf16.msra.mxu0 0
    %6155 = vmatpush.bf16.msra.mxu0 %v6119
    %6156 = vmatpush.bf16.msra.mxu0 %v6115
    %6157 = vmatpush.bf16.msra.mxu0 %v6111
    %6158 = vmatpush.bf16.msra.mxu0 %v6107
    %6159 = vmatpush.bf16.msra.mxu0 %v6103
    %6160 = vmatpush.bf16.msra.mxu0 %v6099
    %6161 = vmatmul.bf16.gmra.mxu0 %v6148
    %v6162 = vpop.f32.mrf.mxu0
    %v6163 = vadd.f32 %v5961, %v6162
    %v6164 = vpop.f32.mrf.mxu0
    %v6165 = vadd.f32 %v5963, %v6164
    %6166 = vmatmul.bf16.gmra.mxu0 %v6151
    %v6167 = vpop.f32.mrf.mxu0
    %v6168 = vadd.f32 %v5966, %v6167
    %v6169 = vpop.f32.mrf.mxu0
    %v6170 = vadd.f32 %v5968, %v6169
    %6171 = vdwg.mxu0
    %6172 = vmatpush.bf16.msra.mxu0 0
    %6173 = vmatpush.bf16.msra.mxu0 0
    %6174 = vmatpush.bf16.msra.mxu0 %v6120
    %6175 = vmatpush.bf16.msra.mxu0 %v6116
    %6176 = vmatpush.bf16.msra.mxu0 %v6112
    %6177 = vmatpush.bf16.msra.mxu0 %v6108
    %6178 = vmatpush.bf16.msra.mxu0 %v6104
    %6179 = vmatpush.bf16.msra.mxu0 %v6100
    %6180 = vmatmul.bf16.gmra.mxu0 %v6148
    %v6181 = vpop.f32.mrf.mxu0
    %v6182 = vadd.f32 %v5980, %v6181
    %v6183 = vpop.f32.mrf.mxu0
    %v6184 = vadd.f32 %v5982, %v6183
    %6185 = vmatmul.bf16.gmra.mxu0 %v6151
    %v6186 = vpop.f32.mrf.mxu0
    %v6187 = vadd.f32 %v5985, %v6186
    %v6188 = vpop.f32.mrf.mxu0
    %v6189 = vadd.f32 %v5987, %v6188
    %6190 = vdwg.mxu0
    %6191 = vmatpush.bf16.msra.mxu0 0
    %6192 = vmatpush.bf16.msra.mxu0 0
    %6193 = vmatpush.bf16.msra.mxu0 %v6121
    %6194 = vmatpush.bf16.msra.mxu0 %v6117
    %6195 = vmatpush.bf16.msra.mxu0 %v6113
    %6196 = vmatpush.bf16.msra.mxu0 %v6109
    %6197 = vmatpush.bf16.msra.mxu0 %v6105
    %6198 = vmatpush.bf16.msra.mxu0 %v6101
    %6199 = vmatmul.bf16.gmra.mxu0 %v6148
    %v6200 = vpop.f32.mrf.mxu0
    %v6201 = vadd.f32 %v5999, %v6200
    %v6202 = vpop.f32.mrf.mxu0
    %v6203 = vadd.f32 %v6001, %v6202
    %6204 = vmatmul.bf16.gmra.mxu0 %v6151
    %v6205 = vpop.f32.mrf.mxu0
    %v6206 = vadd.f32 %v6004, %v6205
    %v6207 = vpop.f32.mrf.mxu0
    %v6208 = vadd.f32 %v6006, %v6207
    %6209 = vdwg.mxu0
    %6210 = vmatpush.bf16.msra.mxu0 0
    %6211 = vmatpush.bf16.msra.mxu0 0
    %6212 = vmatpush.bf16.msra.mxu0 %v6122
    %6213 = vmatpush.bf16.msra.mxu0 %v6118
    %6214 = vmatpush.bf16.msra.mxu0 %v6114
    %6215 = vmatpush.bf16.msra.mxu0 %v6110
    %6216 = vmatpush.bf16.msra.mxu0 %v6106
    %6217 = vmatpush.bf16.msra.mxu0 %v6102
    %6218 = vmatmul.bf16.gmra.mxu0 %v6148
    %v6219 = vpop.f32.mrf.mxu0
    %v6220 = vadd.f32 %v6018, %v6219
    %v6221 = vpop.f32.mrf.mxu0
    %v6222 = vadd.f32 %v6020, %v6221
    %6223 = vmatmul.bf16.gmra.mxu0 %v6151
    %v6224 = vpop.f32.mrf.mxu0
    %v6225 = vadd.f32 %v6023, %v6224
    %v6226 = vpop.f32.mrf.mxu0
    %v6227 = vadd.f32 %v6025, %v6226
    %6228 = vdwg.mxu0
    %v6229 = vld [vmem:[%s5764 + $0x2] sm:$0xff]
    %v6230 = vld [vmem:[%s5764 + $0xa] sm:$0xff]
    %v6231 = vld [vmem:[%s5764 + $0x12] sm:$0xff]
    %v6232 = vld [vmem:[%s5764 + $0x1a] sm:$0xf]
    %v6233 = vpack.c.bf16 %v6230, %v6229
    %v6234 = vpack.c.bf16 %v6232, %v6231
    %v6235 = vld [vmem:[%s524] sm:$0xff]
    %v6236 = vld [vmem:[%s524 + $0x8] sm:$0xff]
    %v6237 = vld [vmem:[%s524 + $0x10] sm:$0xff]
    %v6238 = vld [vmem:[%s524 + $0x18] sm:$0xff]
    %v6239 = vld [vmem:[%s524 + $0x20] sm:$0xff]
    %v6240 = vld [vmem:[%s524 + $0x28] sm:$0xff]
    %v6241 = vld [vmem:[%s524 + $0x30] sm:$0xff]
    %v6242 = vld [vmem:[%s524 + $0x38] sm:$0xff]
    %v6243 = vld [vmem:[%s524 + $0x40] sm:$0xff]
    %v6244 = vld [vmem:[%s524 + $0x48] sm:$0xff]
    %v6245 = vld [vmem:[%s524 + $0x50] sm:$0xff]
    %v6246 = vld [vmem:[%s524 + $0x58] sm:$0xff]
    %v6247 = vld [vmem:[%s524 + $0x60] sm:$0xff]
    %v6248 = vld [vmem:[%s524 + $0x68] sm:$0xff]
    %v6249 = vld [vmem:[%s524 + $0x70] sm:$0xff]
    %v6250 = vld [vmem:[%s524 + $0x78] sm:$0xff]
    %v6251 = vld [vmem:[%s524 + $0x80] sm:$0xff]
    %v6252 = vld [vmem:[%s524 + $0x88] sm:$0xff]
    %v6253 = vld [vmem:[%s524 + $0x90] sm:$0xff]
    %v6254 = vld [vmem:[%s524 + $0x98] sm:$0xff]
    %v6255 = vld [vmem:[%s524 + $0xa0] sm:$0xff]
    %v6256 = vld [vmem:[%s524 + $0xa8] sm:$0xff]
    %v6257 = vld [vmem:[%s524 + $0xb0] sm:$0xff]
    %v6258 = vld [vmem:[%s524 + $0xb8] sm:$0xff]
    %v6283 = vunpack.c.l.b16 %v6235
    %v6284 = vunpack.c.h.b16 %v6235
    %v6285 = vunpack.c.l.b16 %v6236
    %v6286 = vunpack.c.h.b16 %v6236
    %v6287 = vunpack.c.l.b16 %v6237
    %v6288 = vunpack.c.h.b16 %v6237
    %v6289 = vunpack.c.l.b16 %v6238
    %v6290 = vunpack.c.h.b16 %v6238
    %v6291 = vunpack.c.l.b16 %v6239
    %v6292 = vunpack.c.h.b16 %v6239
    %v6293 = vunpack.c.l.b16 %v6240
    %v6294 = vunpack.c.h.b16 %v6240
    %v6295 = vunpack.c.l.b16 %v6241
    %v6296 = vunpack.c.h.b16 %v6241
    %v6297 = vunpack.c.l.b16 %v6242
    %v6298 = vunpack.c.h.b16 %v6242
    %v6299 = vunpack.c.l.b16 %v6243
    %v6300 = vunpack.c.h.b16 %v6243
    %v6301 = vunpack.c.l.b16 %v6244
    %v6302 = vunpack.c.h.b16 %v6244
    %v6303 = vunpack.c.l.b16 %v6245
    %v6304 = vunpack.c.h.b16 %v6245
    %v6305 = vunpack.c.l.b16 %v6246
    %v6306 = vunpack.c.h.b16 %v6246
    %v6307 = vunpack.c.l.b16 %v6247
    %v6308 = vunpack.c.h.b16 %v6247
    %v6309 = vunpack.c.l.b16 %v6248
    %v6310 = vunpack.c.h.b16 %v6248
    %v6311 = vunpack.c.l.b16 %v6249
    %v6312 = vunpack.c.h.b16 %v6249
    %v6313 = vunpack.c.l.b16 %v6250
    %v6314 = vunpack.c.h.b16 %v6250
    %v6315 = vunpack.c.l.b16 %v6251
    %v6316 = vunpack.c.h.b16 %v6251
    %v6317 = vunpack.c.l.b16 %v6252
    %v6318 = vunpack.c.h.b16 %v6252
    %v6319 = vunpack.c.l.b16 %v6253
    %v6320 = vunpack.c.h.b16 %v6253
    %v6321 = vunpack.c.l.b16 %v6254
    %v6322 = vunpack.c.h.b16 %v6254
    %v6323 = vunpack.c.l.b16 %v6255
    %v6324 = vunpack.c.h.b16 %v6255
    %v6325 = vunpack.c.l.b16 %v6256
    %v6326 = vunpack.c.h.b16 %v6256
    %v6327 = vunpack.c.l.b16 %v6257
    %v6328 = vunpack.c.h.b16 %v6257
    %v6329 = vunpack.c.l.b16 %v6258
    %v6330 = vunpack.c.h.b16 %v6258
    %v6331 = vpack.c.b16 %v6287, %v6283
    %v6332 = vpack.c.b16 %v6288, %v6284
    %v6333 = vpack.c.b16 %v6289, %v6285
    %v6334 = vpack.c.b16 %v6290, %v6286
    %v6335 = vpack.c.b16 %v6295, %v6291
    %v6336 = vpack.c.b16 %v6296, %v6292
    %v6337 = vpack.c.b16 %v6297, %v6293
    %v6338 = vpack.c.b16 %v6298, %v6294
    %v6339 = vpack.c.b16 %v6303, %v6299
    %v6340 = vpack.c.b16 %v6304, %v6300
    %v6341 = vpack.c.b16 %v6305, %v6301
    %v6342 = vpack.c.b16 %v6306, %v6302
    %v6343 = vpack.c.b16 %v6311, %v6307
    %v6344 = vpack.c.b16 %v6312, %v6308
    %v6345 = vpack.c.b16 %v6313, %v6309
    %v6346 = vpack.c.b16 %v6314, %v6310
    %v6347 = vpack.c.b16 %v6319, %v6315
    %v6348 = vpack.c.b16 %v6320, %v6316
    %v6349 = vpack.c.b16 %v6321, %v6317
    %v6350 = vpack.c.b16 %v6322, %v6318
    %v6351 = vpack.c.b16 %v6327, %v6323
    %v6352 = vpack.c.b16 %v6328, %v6324
    %v6353 = vpack.c.b16 %v6329, %v6325
    %v6354 = vpack.c.b16 %v6330, %v6326
    %v6380 = vsel %vm233, %v6233, 0
    %v6383 = vsel %vm233, %v6234, 0
    %6385 = vmatpush.bf16.msra.mxu0 0
    %6386 = vmatpush.bf16.msra.mxu0 0
    %6387 = vmatpush.bf16.msra.mxu0 %v6351
    %6388 = vmatpush.bf16.msra.mxu0 %v6347
    %6389 = vmatpush.bf16.msra.mxu0 %v6343
    %6390 = vmatpush.bf16.msra.mxu0 %v6339
    %6391 = vmatpush.bf16.msra.mxu0 %v6335
    %6392 = vmatpush.bf16.msra.mxu0 %v6331
    %6393 = vmatmul.bf16.gmra.mxu0 %v6380
    %v6394 = vpop.f32.mrf.mxu0
    %v6395 = vadd.f32 0.0, %v6394
    %v6396 = vpop.f32.mrf.mxu0
    %v6397 = vadd.f32 0.0, %v6396
    %6398 = vmatmul.bf16.gmra.mxu0 %v6383
    %v6399 = vpop.f32.mrf.mxu0
    %v6400 = vadd.f32 0.0, %v6399
    %v6401 = vpop.f32.mrf.mxu0
    %v6402 = vadd.f32 0.0, %v6401
    %6403 = vdwg.mxu0
    %6404 = vmatpush.bf16.msra.mxu0 0
    %6405 = vmatpush.bf16.msra.mxu0 0
    %6406 = vmatpush.bf16.msra.mxu0 %v6352
    %6407 = vmatpush.bf16.msra.mxu0 %v6348
    %6408 = vmatpush.bf16.msra.mxu0 %v6344
    %6409 = vmatpush.bf16.msra.mxu0 %v6340
    %6410 = vmatpush.bf16.msra.mxu0 %v6336
    %6411 = vmatpush.bf16.msra.mxu0 %v6332
    %6412 = vmatmul.bf16.gmra.mxu0 %v6380
    %v6413 = vpop.f32.mrf.mxu0
    %v6414 = vadd.f32 0.0, %v6413
    %v6415 = vpop.f32.mrf.mxu0
    %v6416 = vadd.f32 0.0, %v6415
    %6417 = vmatmul.bf16.gmra.mxu0 %v6383
    %v6418 = vpop.f32.mrf.mxu0
    %v6419 = vadd.f32 0.0, %v6418
    %v6420 = vpop.f32.mrf.mxu0
    %v6421 = vadd.f32 0.0, %v6420
    %6422 = vdwg.mxu0
    %6423 = vmatpush.bf16.msra.mxu0 0
    %6424 = vmatpush.bf16.msra.mxu0 0
    %6425 = vmatpush.bf16.msra.mxu0 %v6353
    %6426 = vmatpush.bf16.msra.mxu0 %v6349
    %6427 = vmatpush.bf16.msra.mxu0 %v6345
    %6428 = vmatpush.bf16.msra.mxu0 %v6341
    %6429 = vmatpush.bf16.msra.mxu0 %v6337
    %6430 = vmatpush.bf16.msra.mxu0 %v6333
    %6431 = vmatmul.bf16.gmra.mxu0 %v6380
    %v6432 = vpop.f32.mrf.mxu0
    %v6433 = vadd.f32 0.0, %v6432
    %v6434 = vpop.f32.mrf.mxu0
    %v6435 = vadd.f32 0.0, %v6434
    %6436 = vmatmul.bf16.gmra.mxu0 %v6383
    %v6437 = vpop.f32.mrf.mxu0
    %v6438 = vadd.f32 0.0, %v6437
    %v6439 = vpop.f32.mrf.mxu0
    %v6440 = vadd.f32 0.0, %v6439
    %6441 = vdwg.mxu0
    %6442 = vmatpush.bf16.msra.mxu0 0
    %6443 = vmatpush.bf16.msra.mxu0 0
    %6444 = vmatpush.bf16.msra.mxu0 %v6354
    %6445 = vmatpush.bf16.msra.mxu0 %v6350
    %6446 = vmatpush.bf16.msra.mxu0 %v6346
    %6447 = vmatpush.bf16.msra.mxu0 %v6342
    %6448 = vmatpush.bf16.msra.mxu0 %v6338
    %6449 = vmatpush.bf16.msra.mxu0 %v6334
    %6450 = vmatmul.bf16.gmra.mxu0 %v6380
    %v6451 = vpop.f32.mrf.mxu0
    %v6452 = vadd.f32 0.0, %v6451
    %v6453 = vpop.f32.mrf.mxu0
    %v6454 = vadd.f32 0.0, %v6453
    %6455 = vmatmul.bf16.gmra.mxu0 %v6383
    %v6456 = vpop.f32.mrf.mxu0
    %v6457 = vadd.f32 0.0, %v6456
    %v6458 = vpop.f32.mrf.mxu0
    %v6459 = vadd.f32 0.0, %v6458
    %6460 = vdwg.mxu0
    %v6461 = vadd.f32 %v6163, %v6395
    %v6462 = vadd.f32 %v6182, %v6414
    %v6463 = vadd.f32 %v6201, %v6433
    %v6464 = vadd.f32 %v6220, %v6452
    %v6465 = vadd.f32 %v6165, %v6397
    %v6466 = vadd.f32 %v6184, %v6416
    %v6467 = vadd.f32 %v6203, %v6435
    %v6468 = vadd.f32 %v6222, %v6454
    %v6469 = vadd.f32 %v6168, %v6400
    %v6470 = vadd.f32 %v6187, %v6419
    %v6471 = vadd.f32 %v6206, %v6438
    %v6472 = vadd.f32 %v6225, %v6457
    %v6473 = vadd.f32 %v6170, %v6402
    %v6474 = vadd.f32 %v6189, %v6421
    %v6475 = vadd.f32 %v6208, %v6440
    %v6476 = vadd.f32 %v6227, %v6459
    %v6477 = vld [vmem:[%s5764 + $0x3] sm:$0xff]
    %v6478 = vld [vmem:[%s5764 + $0xb] sm:$0xff]
    %v6479 = vld [vmem:[%s5764 + $0x13] sm:$0xff]
    %v6480 = vld [vmem:[%s5764 + $0x1b] sm:$0xf]
    %v6481 = vpack.c.bf16 %v6478, %v6477
    %v6482 = vpack.c.bf16 %v6480, %v6479
    %v6483 = vld [vmem:[%s773] sm:$0xff]
    %v6484 = vld [vmem:[%s773 + $0x8] sm:$0xff]
    %v6485 = vld [vmem:[%s773 + $0x10] sm:$0xff]
    %v6486 = vld [vmem:[%s773 + $0x18] sm:$0xff]
    %v6487 = vld [vmem:[%s773 + $0x20] sm:$0xff]
    %v6488 = vld [vmem:[%s773 + $0x28] sm:$0xff]
    %v6489 = vld [vmem:[%s773 + $0x30] sm:$0xff]
    %v6490 = vld [vmem:[%s773 + $0x38] sm:$0xff]
    %v6491 = vld [vmem:[%s773 + $0x40] sm:$0xff]
    %v6492 = vld [vmem:[%s773 + $0x48] sm:$0xff]
    %v6493 = vld [vmem:[%s773 + $0x50] sm:$0xff]
    %v6494 = vld [vmem:[%s773 + $0x58] sm:$0xff]
    %v6495 = vld [vmem:[%s773 + $0x60] sm:$0xff]
    %v6496 = vld [vmem:[%s773 + $0x68] sm:$0xff]
    %v6497 = vld [vmem:[%s773 + $0x70] sm:$0xff]
    %v6498 = vld [vmem:[%s773 + $0x78] sm:$0xff]
    %v6499 = vld [vmem:[%s773 + $0x80] sm:$0xff]
    %v6500 = vld [vmem:[%s773 + $0x88] sm:$0xff]
    %v6501 = vld [vmem:[%s773 + $0x90] sm:$0xff]
    %v6502 = vld [vmem:[%s773 + $0x98] sm:$0xff]
    %v6503 = vld [vmem:[%s773 + $0xa0] sm:$0xff]
    %v6504 = vld [vmem:[%s773 + $0xa8] sm:$0xff]
    %v6505 = vld [vmem:[%s773 + $0xb0] sm:$0xff]
    %v6506 = vld [vmem:[%s773 + $0xb8] sm:$0xff]
    %v6531 = vunpack.c.l.b16 %v6483
    %v6532 = vunpack.c.h.b16 %v6483
    %v6533 = vunpack.c.l.b16 %v6484
    %v6534 = vunpack.c.h.b16 %v6484
    %v6535 = vunpack.c.l.b16 %v6485
    %v6536 = vunpack.c.h.b16 %v6485
    %v6537 = vunpack.c.l.b16 %v6486
    %v6538 = vunpack.c.h.b16 %v6486
    %v6539 = vunpack.c.l.b16 %v6487
    %v6540 = vunpack.c.h.b16 %v6487
    %v6541 = vunpack.c.l.b16 %v6488
    %v6542 = vunpack.c.h.b16 %v6488
    %v6543 = vunpack.c.l.b16 %v6489
    %v6544 = vunpack.c.h.b16 %v6489
    %v6545 = vunpack.c.l.b16 %v6490
    %v6546 = vunpack.c.h.b16 %v6490
    %v6547 = vunpack.c.l.b16 %v6491
    %v6548 = vunpack.c.h.b16 %v6491
    %v6549 = vunpack.c.l.b16 %v6492
    %v6550 = vunpack.c.h.b16 %v6492
    %v6551 = vunpack.c.l.b16 %v6493
    %v6552 = vunpack.c.h.b16 %v6493
    %v6553 = vunpack.c.l.b16 %v6494
    %v6554 = vunpack.c.h.b16 %v6494
    %v6555 = vunpack.c.l.b16 %v6495
    %v6556 = vunpack.c.h.b16 %v6495
    %v6557 = vunpack.c.l.b16 %v6496
    %v6558 = vunpack.c.h.b16 %v6496
    %v6559 = vunpack.c.l.b16 %v6497
    %v6560 = vunpack.c.h.b16 %v6497
    %v6561 = vunpack.c.l.b16 %v6498
    %v6562 = vunpack.c.h.b16 %v6498
    %v6563 = vunpack.c.l.b16 %v6499
    %v6564 = vunpack.c.h.b16 %v6499
    %v6565 = vunpack.c.l.b16 %v6500
    %v6566 = vunpack.c.h.b16 %v6500
    %v6567 = vunpack.c.l.b16 %v6501
    %v6568 = vunpack.c.h.b16 %v6501
    %v6569 = vunpack.c.l.b16 %v6502
    %v6570 = vunpack.c.h.b16 %v6502
    %v6571 = vunpack.c.l.b16 %v6503
    %v6572 = vunpack.c.h.b16 %v6503
    %v6573 = vunpack.c.l.b16 %v6504
    %v6574 = vunpack.c.h.b16 %v6504
    %v6575 = vunpack.c.l.b16 %v6505
    %v6576 = vunpack.c.h.b16 %v6505
    %v6577 = vunpack.c.l.b16 %v6506
    %v6578 = vunpack.c.h.b16 %v6506
    %v6579 = vpack.c.b16 %v6535, %v6531
    %v6580 = vpack.c.b16 %v6536, %v6532
    %v6581 = vpack.c.b16 %v6537, %v6533
    %v6582 = vpack.c.b16 %v6538, %v6534
    %v6583 = vpack.c.b16 %v6543, %v6539
    %v6584 = vpack.c.b16 %v6544, %v6540
    %v6585 = vpack.c.b16 %v6545, %v6541
    %v6586 = vpack.c.b16 %v6546, %v6542
    %v6587 = vpack.c.b16 %v6551, %v6547
    %v6588 = vpack.c.b16 %v6552, %v6548
    %v6589 = vpack.c.b16 %v6553, %v6549
    %v6590 = vpack.c.b16 %v6554, %v6550
    %v6591 = vpack.c.b16 %v6559, %v6555
    %v6592 = vpack.c.b16 %v6560, %v6556
    %v6593 = vpack.c.b16 %v6561, %v6557
    %v6594 = vpack.c.b16 %v6562, %v6558
    %v6595 = vpack.c.b16 %v6567, %v6563
    %v6596 = vpack.c.b16 %v6568, %v6564
    %v6597 = vpack.c.b16 %v6569, %v6565
    %v6598 = vpack.c.b16 %v6570, %v6566
    %v6599 = vpack.c.b16 %v6575, %v6571
    %v6600 = vpack.c.b16 %v6576, %v6572
    %v6601 = vpack.c.b16 %v6577, %v6573
    %v6602 = vpack.c.b16 %v6578, %v6574
    %v6628 = vsel %vm233, %v6481, 0
    %v6631 = vsel %vm233, %v6482, 0
    %6633 = vmatpush.bf16.msra.mxu0 0
    %6634 = vmatpush.bf16.msra.mxu0 0
    %6635 = vmatpush.bf16.msra.mxu0 %v6599
    %6636 = vmatpush.bf16.msra.mxu0 %v6595
    %6637 = vmatpush.bf16.msra.mxu0 %v6591
    %6638 = vmatpush.bf16.msra.mxu0 %v6587
    %6639 = vmatpush.bf16.msra.mxu0 %v6583
    %6640 = vmatpush.bf16.msra.mxu0 %v6579
    %6641 = vmatmul.bf16.gmra.mxu0 %v6628
    %v6642 = vpop.f32.mrf.mxu0
    %v6643 = vadd.f32 0.0, %v6642
    %v6644 = vpop.f32.mrf.mxu0
    %v6645 = vadd.f32 0.0, %v6644
    %6646 = vmatmul.bf16.gmra.mxu0 %v6631
    %v6647 = vpop.f32.mrf.mxu0
    %v6648 = vadd.f32 0.0, %v6647
    %v6649 = vpop.f32.mrf.mxu0
    %v6650 = vadd.f32 0.0, %v6649
    %6651 = vdwg.mxu0
    %6652 = vmatpush.bf16.msra.mxu0 0
    %6653 = vmatpush.bf16.msra.mxu0 0
    %6654 = vmatpush.bf16.msra.mxu0 %v6600
    %6655 = vmatpush.bf16.msra.mxu0 %v6596
    %6656 = vmatpush.bf16.msra.mxu0 %v6592
    %6657 = vmatpush.bf16.msra.mxu0 %v6588
    %6658 = vmatpush.bf16.msra.mxu0 %v6584
    %6659 = vmatpush.bf16.msra.mxu0 %v6580
    %6660 = vmatmul.bf16.gmra.mxu0 %v6628
    %v6661 = vpop.f32.mrf.mxu0
    %v6662 = vadd.f32 0.0, %v6661
    %v6663 = vpop.f32.mrf.mxu0
    %v6664 = vadd.f32 0.0, %v6663
    %6665 = vmatmul.bf16.gmra.mxu0 %v6631
    %v6666 = vpop.f32.mrf.mxu0
    %v6667 = vadd.f32 0.0, %v6666
    %v6668 = vpop.f32.mrf.mxu0
    %v6669 = vadd.f32 0.0, %v6668
    %6670 = vdwg.mxu0
    %6671 = vmatpush.bf16.msra.mxu0 0
    %6672 = vmatpush.bf16.msra.mxu0 0
    %6673 = vmatpush.bf16.msra.mxu0 %v6601
    %6674 = vmatpush.bf16.msra.mxu0 %v6597
    %6675 = vmatpush.bf16.msra.mxu0 %v6593
    %6676 = vmatpush.bf16.msra.mxu0 %v6589
    %6677 = vmatpush.bf16.msra.mxu0 %v6585
    %6678 = vmatpush.bf16.msra.mxu0 %v6581
    %6679 = vmatmul.bf16.gmra.mxu0 %v6628
    %v6680 = vpop.f32.mrf.mxu0
    %v6681 = vadd.f32 0.0, %v6680
    %v6682 = vpop.f32.mrf.mxu0
    %v6683 = vadd.f32 0.0, %v6682
    %6684 = vmatmul.bf16.gmra.mxu0 %v6631
    %v6685 = vpop.f32.mrf.mxu0
    %v6686 = vadd.f32 0.0, %v6685
    %v6687 = vpop.f32.mrf.mxu0
    %v6688 = vadd.f32 0.0, %v6687
    %6689 = vdwg.mxu0
    %6690 = vmatpush.bf16.msra.mxu0 0
    %6691 = vmatpush.bf16.msra.mxu0 0
    %6692 = vmatpush.bf16.msra.mxu0 %v6602
    %6693 = vmatpush.bf16.msra.mxu0 %v6598
    %6694 = vmatpush.bf16.msra.mxu0 %v6594
    %6695 = vmatpush.bf16.msra.mxu0 %v6590
    %6696 = vmatpush.bf16.msra.mxu0 %v6586
    %6697 = vmatpush.bf16.msra.mxu0 %v6582
    %6698 = vmatmul.bf16.gmra.mxu0 %v6628
    %v6699 = vpop.f32.mrf.mxu0
    %v6700 = vadd.f32 0.0, %v6699
    %v6701 = vpop.f32.mrf.mxu0
    %v6702 = vadd.f32 0.0, %v6701
    %6703 = vmatmul.bf16.gmra.mxu0 %v6631
    %v6704 = vpop.f32.mrf.mxu0
    %v6705 = vadd.f32 0.0, %v6704
    %v6706 = vpop.f32.mrf.mxu0
    %v6707 = vadd.f32 0.0, %v6706
    %6708 = vdwg.mxu0
    %v6709 = vadd.f32 %v6461, %v6643
    %v6710 = vadd.f32 %v6462, %v6662
    %v6711 = vadd.f32 %v6463, %v6681
    %v6712 = vadd.f32 %v6464, %v6700
    %v6713 = vadd.f32 %v6465, %v6645
    %v6714 = vadd.f32 %v6466, %v6664
    %v6715 = vadd.f32 %v6467, %v6683
    %v6716 = vadd.f32 %v6468, %v6702
    %v6717 = vadd.f32 %v6469, %v6648
    %v6718 = vadd.f32 %v6470, %v6667
    %v6719 = vadd.f32 %v6471, %v6686
    %v6720 = vadd.f32 %v6472, %v6705
    %v6721 = vadd.f32 %v6473, %v6650
    %v6722 = vadd.f32 %v6474, %v6669
    %v6723 = vadd.f32 %v6475, %v6688
    %v6724 = vadd.f32 %v6476, %v6707
    %v6725 = vld [vmem:[%s5764 + $0x4] sm:$0xff]
    %v6726 = vld [vmem:[%s5764 + $0xc] sm:$0xff]
    %v6727 = vld [vmem:[%s5764 + $0x14] sm:$0xff]
    %v6728 = vld [vmem:[%s5764 + $0x1c] sm:$0xf]
    %v6729 = vpack.c.bf16 %v6726, %v6725
    %v6730 = vpack.c.bf16 %v6728, %v6727
    %v6731 = vld [vmem:[%s1022] sm:$0xff]
    %v6732 = vld [vmem:[%s1022 + $0x8] sm:$0xff]
    %v6733 = vld [vmem:[%s1022 + $0x10] sm:$0xff]
    %v6734 = vld [vmem:[%s1022 + $0x18] sm:$0xff]
    %v6735 = vld [vmem:[%s1022 + $0x20] sm:$0xff]
    %v6736 = vld [vmem:[%s1022 + $0x28] sm:$0xff]
    %v6737 = vld [vmem:[%s1022 + $0x30] sm:$0xff]
    %v6738 = vld [vmem:[%s1022 + $0x38] sm:$0xff]
    %v6739 = vld [vmem:[%s1022 + $0x40] sm:$0xff]
    %v6740 = vld [vmem:[%s1022 + $0x48] sm:$0xff]
    %v6741 = vld [vmem:[%s1022 + $0x50] sm:$0xff]
    %v6742 = vld [vmem:[%s1022 + $0x58] sm:$0xff]
    %v6743 = vld [vmem:[%s1022 + $0x60] sm:$0xff]
    %v6744 = vld [vmem:[%s1022 + $0x68] sm:$0xff]
    %v6745 = vld [vmem:[%s1022 + $0x70] sm:$0xff]
    %v6746 = vld [vmem:[%s1022 + $0x78] sm:$0xff]
    %v6747 = vld [vmem:[%s1022 + $0x80] sm:$0xff]
    %v6748 = vld [vmem:[%s1022 + $0x88] sm:$0xff]
    %v6749 = vld [vmem:[%s1022 + $0x90] sm:$0xff]
    %v6750 = vld [vmem:[%s1022 + $0x98] sm:$0xff]
    %v6751 = vld [vmem:[%s1022 + $0xa0] sm:$0xff]
    %v6752 = vld [vmem:[%s1022 + $0xa8] sm:$0xff]
    %v6753 = vld [vmem:[%s1022 + $0xb0] sm:$0xff]
    %v6754 = vld [vmem:[%s1022 + $0xb8] sm:$0xff]
    %v6779 = vunpack.c.l.b16 %v6731
    %v6780 = vunpack.c.h.b16 %v6731
    %v6781 = vunpack.c.l.b16 %v6732
    %v6782 = vunpack.c.h.b16 %v6732
    %v6783 = vunpack.c.l.b16 %v6733
    %v6784 = vunpack.c.h.b16 %v6733
    %v6785 = vunpack.c.l.b16 %v6734
    %v6786 = vunpack.c.h.b16 %v6734
    %v6787 = vunpack.c.l.b16 %v6735
    %v6788 = vunpack.c.h.b16 %v6735
    %v6789 = vunpack.c.l.b16 %v6736
    %v6790 = vunpack.c.h.b16 %v6736
    %v6791 = vunpack.c.l.b16 %v6737
    %v6792 = vunpack.c.h.b16 %v6737
    %v6793 = vunpack.c.l.b16 %v6738
    %v6794 = vunpack.c.h.b16 %v6738
    %v6795 = vunpack.c.l.b16 %v6739
    %v6796 = vunpack.c.h.b16 %v6739
    %v6797 = vunpack.c.l.b16 %v6740
    %v6798 = vunpack.c.h.b16 %v6740
    %v6799 = vunpack.c.l.b16 %v6741
    %v6800 = vunpack.c.h.b16 %v6741
    %v6801 = vunpack.c.l.b16 %v6742
    %v6802 = vunpack.c.h.b16 %v6742
    %v6803 = vunpack.c.l.b16 %v6743
    %v6804 = vunpack.c.h.b16 %v6743
    %v6805 = vunpack.c.l.b16 %v6744
    %v6806 = vunpack.c.h.b16 %v6744
    %v6807 = vunpack.c.l.b16 %v6745
    %v6808 = vunpack.c.h.b16 %v6745
    %v6809 = vunpack.c.l.b16 %v6746
    %v6810 = vunpack.c.h.b16 %v6746
    %v6811 = vunpack.c.l.b16 %v6747
    %v6812 = vunpack.c.h.b16 %v6747
    %v6813 = vunpack.c.l.b16 %v6748
    %v6814 = vunpack.c.h.b16 %v6748
    %v6815 = vunpack.c.l.b16 %v6749
    %v6816 = vunpack.c.h.b16 %v6749
    %v6817 = vunpack.c.l.b16 %v6750
    %v6818 = vunpack.c.h.b16 %v6750
    %v6819 = vunpack.c.l.b16 %v6751
    %v6820 = vunpack.c.h.b16 %v6751
    %v6821 = vunpack.c.l.b16 %v6752
    %v6822 = vunpack.c.h.b16 %v6752
    %v6823 = vunpack.c.l.b16 %v6753
    %v6824 = vunpack.c.h.b16 %v6753
    %v6825 = vunpack.c.l.b16 %v6754
    %v6826 = vunpack.c.h.b16 %v6754
    %v6827 = vpack.c.b16 %v6783, %v6779
    %v6828 = vpack.c.b16 %v6784, %v6780
    %v6829 = vpack.c.b16 %v6785, %v6781
    %v6830 = vpack.c.b16 %v6786, %v6782
    %v6831 = vpack.c.b16 %v6791, %v6787
    %v6832 = vpack.c.b16 %v6792, %v6788
    %v6833 = vpack.c.b16 %v6793, %v6789
    %v6834 = vpack.c.b16 %v6794, %v6790
    %v6835 = vpack.c.b16 %v6799, %v6795
    %v6836 = vpack.c.b16 %v6800, %v6796
    %v6837 = vpack.c.b16 %v6801, %v6797
    %v6838 = vpack.c.b16 %v6802, %v6798
    %v6839 = vpack.c.b16 %v6807, %v6803
    %v6840 = vpack.c.b16 %v6808, %v6804
    %v6841 = vpack.c.b16 %v6809, %v6805
    %v6842 = vpack.c.b16 %v6810, %v6806
    %v6843 = vpack.c.b16 %v6815, %v6811
    %v6844 = vpack.c.b16 %v6816, %v6812
    %v6845 = vpack.c.b16 %v6817, %v6813
    %v6846 = vpack.c.b16 %v6818, %v6814
    %v6847 = vpack.c.b16 %v6823, %v6819
    %v6848 = vpack.c.b16 %v6824, %v6820
    %v6849 = vpack.c.b16 %v6825, %v6821
    %v6850 = vpack.c.b16 %v6826, %v6822
    %v6876 = vsel %vm233, %v6729, 0
    %v6879 = vsel %vm233, %v6730, 0
    %6881 = vmatpush.bf16.msra.mxu0 0
    %6882 = vmatpush.bf16.msra.mxu0 0
    %6883 = vmatpush.bf16.msra.mxu0 %v6847
    %6884 = vmatpush.bf16.msra.mxu0 %v6843
    %6885 = vmatpush.bf16.msra.mxu0 %v6839
    %6886 = vmatpush.bf16.msra.mxu0 %v6835
    %6887 = vmatpush.bf16.msra.mxu0 %v6831
    %6888 = vmatpush.bf16.msra.mxu0 %v6827
    %6889 = vmatmul.bf16.gmra.mxu0 %v6876
    %v6890 = vpop.f32.mrf.mxu0
    %v6891 = vadd.f32 0.0, %v6890
    %v6892 = vpop.f32.mrf.mxu0
    %v6893 = vadd.f32 0.0, %v6892
    %6894 = vmatmul.bf16.gmra.mxu0 %v6879
    %v6895 = vpop.f32.mrf.mxu0
    %v6896 = vadd.f32 0.0, %v6895
    %v6897 = vpop.f32.mrf.mxu0
    %v6898 = vadd.f32 0.0, %v6897
    %6899 = vdwg.mxu0
    %6900 = vmatpush.bf16.msra.mxu0 0
    %6901 = vmatpush.bf16.msra.mxu0 0
    %6902 = vmatpush.bf16.msra.mxu0 %v6848
    %6903 = vmatpush.bf16.msra.mxu0 %v6844
    %6904 = vmatpush.bf16.msra.mxu0 %v6840
    %6905 = vmatpush.bf16.msra.mxu0 %v6836
    %6906 = vmatpush.bf16.msra.mxu0 %v6832
    %6907 = vmatpush.bf16.msra.mxu0 %v6828
    %6908 = vmatmul.bf16.gmra.mxu0 %v6876
    %v6909 = vpop.f32.mrf.mxu0
    %v6910 = vadd.f32 0.0, %v6909
    %v6911 = vpop.f32.mrf.mxu0
    %v6912 = vadd.f32 0.0, %v6911
    %6913 = vmatmul.bf16.gmra.mxu0 %v6879
    %v6914 = vpop.f32.mrf.mxu0
    %v6915 = vadd.f32 0.0, %v6914
    %v6916 = vpop.f32.mrf.mxu0
    %v6917 = vadd.f32 0.0, %v6916
    %6918 = vdwg.mxu0
    %6919 = vmatpush.bf16.msra.mxu0 0
    %6920 = vmatpush.bf16.msra.mxu0 0
    %6921 = vmatpush.bf16.msra.mxu0 %v6849
    %6922 = vmatpush.bf16.msra.mxu0 %v6845
    %6923 = vmatpush.bf16.msra.mxu0 %v6841
    %6924 = vmatpush.bf16.msra.mxu0 %v6837
    %6925 = vmatpush.bf16.msra.mxu0 %v6833
    %6926 = vmatpush.bf16.msra.mxu0 %v6829
    %6927 = vmatmul.bf16.gmra.mxu0 %v6876
    %v6928 = vpop.f32.mrf.mxu0
    %v6929 = vadd.f32 0.0, %v6928
    %v6930 = vpop.f32.mrf.mxu0
    %v6931 = vadd.f32 0.0, %v6930
    %6932 = vmatmul.bf16.gmra.mxu0 %v6879
    %v6933 = vpop.f32.mrf.mxu0
    %v6934 = vadd.f32 0.0, %v6933
    %v6935 = vpop.f32.mrf.mxu0
    %v6936 = vadd.f32 0.0, %v6935
    %6937 = vdwg.mxu0
    %6938 = vmatpush.bf16.msra.mxu0 0
    %6939 = vmatpush.bf16.msra.mxu0 0
    %6940 = vmatpush.bf16.msra.mxu0 %v6850
    %6941 = vmatpush.bf16.msra.mxu0 %v6846
    %6942 = vmatpush.bf16.msra.mxu0 %v6842
    %6943 = vmatpush.bf16.msra.mxu0 %v6838
    %6944 = vmatpush.bf16.msra.mxu0 %v6834
    %6945 = vmatpush.bf16.msra.mxu0 %v6830
    %6946 = vmatmul.bf16.gmra.mxu0 %v6876
    %v6947 = vpop.f32.mrf.mxu0
    %v6948 = vadd.f32 0.0, %v6947
    %v6949 = vpop.f32.mrf.mxu0
    %v6950 = vadd.f32 0.0, %v6949
    %6951 = vmatmul.bf16.gmra.mxu0 %v6879
    %v6952 = vpop.f32.mrf.mxu0
    %v6953 = vadd.f32 0.0, %v6952
    %v6954 = vpop.f32.mrf.mxu0
    %v6955 = vadd.f32 0.0, %v6954
    %6956 = vdwg.mxu0
    %v6957 = vadd.f32 %v6709, %v6891
    %v6958 = vadd.f32 %v6710, %v6910
    %v6959 = vadd.f32 %v6711, %v6929
    %v6960 = vadd.f32 %v6712, %v6948
    %v6961 = vadd.f32 %v6713, %v6893
    %v6962 = vadd.f32 %v6714, %v6912
    %v6963 = vadd.f32 %v6715, %v6931
    %v6964 = vadd.f32 %v6716, %v6950
    %v6965 = vadd.f32 %v6717, %v6896
    %v6966 = vadd.f32 %v6718, %v6915
    %v6967 = vadd.f32 %v6719, %v6934
    %v6968 = vadd.f32 %v6720, %v6953
    %v6969 = vadd.f32 %v6721, %v6898
    %v6970 = vadd.f32 %v6722, %v6917
    %v6971 = vadd.f32 %v6723, %v6936
    %v6972 = vadd.f32 %v6724, %v6955
    %v6973 = vld [vmem:[%s2] sm:$0xf]
    %v6975 = vperm.slane %v6973, 0
    %v6976 = vperm.slane %v6973, 1
    %v6977 = vperm.slane %v6973, 2
    %v6978 = vperm.slane %v6973, 3
    %v6983 = vadd.f32 %v6957, %v6975
    %v6984 = vadd.f32 %v6958, %v6976
    %v6985 = vadd.f32 %v6959, %v6977
    %v6986 = vadd.f32 %v6960, %v6978
    %v6987 = vadd.f32 %v6961, %v6975
    %v6988 = vadd.f32 %v6962, %v6976
    %v6989 = vadd.f32 %v6963, %v6977
    %v6990 = vadd.f32 %v6964, %v6978
    %v6991 = vadd.f32 %v6965, %v6975
    %v6992 = vadd.f32 %v6966, %v6976
    %v6993 = vadd.f32 %v6967, %v6977
    %v6994 = vadd.f32 %v6968, %v6978
    %v6995 = vadd.f32 %v6969, %v6975
    %v6996 = vadd.f32 %v6970, %v6976
    %v6997 = vadd.f32 %v6971, %v6977
    %v6998 = vadd.f32 %v6972, %v6978
    %v6999 = vmax.f32 %v6983, 0.0
    %v7000 = vmax.f32 %v6984, 0.0
    %v7001 = vmax.f32 %v6985, 0.0
    %v7002 = vmax.f32 %v6986, 0.0
    %v7003 = vmax.f32 %v6987, 0.0
    %v7004 = vmax.f32 %v6988, 0.0
    %v7005 = vmax.f32 %v6989, 0.0
    %v7006 = vmax.f32 %v6990, 0.0
    %v7007 = vmax.f32 %v6991, 0.0
    %v7008 = vmax.f32 %v6992, 0.0
    %v7009 = vmax.f32 %v6993, 0.0
    %v7010 = vmax.f32 %v6994, 0.0
    %v7011 = vmax.f32 %v6995, 0.0
    %v7012 = vmax.f32 %v6996, 0.0
    %v7013 = vmax.f32 %v6997, 0.0
    %v7014 = vmax.f32 %v6998, 0.0
    %v7015 = vpack.c.bf16 %v7003, %v6999
    %v7016 = vpack.c.bf16 %v7004, %v7000
    %v7017 = vpack.c.bf16 %v7005, %v7001
    %v7018 = vpack.c.bf16 %v7006, %v7002
    %v7019 = vpack.c.bf16 %v7011, %v7007
    %v7020 = vpack.c.bf16 %v7012, %v7008
    %v7021 = vpack.c.bf16 %v7013, %v7009
    %v7022 = vpack.c.bf16 %v7014, %v7010
    %v7023 = vld [vmem:[%s3] sm:$0xf]
    %v7024 = vld [vmem:[%s3 + $0x4] sm:$0x7]
    %v7027 = vunpack.c.l.b16 %v7023
    %v7028 = vunpack.c.l.b16 %v7024
    %v7029 = vpack.c.b16 %v7028, %v7027
    %v7031 = vsel %vm1322, %v7029, 0
    %v7034 = vsel %vm1326, %v7019, 0
    %v7037 = vsel %vm1326, %v7020, 0
    %v7040 = vsel %vm1326, %v7021, 0
    %v7043 = vsel %vm1326, %v7022, 0
    %7045 = vmatpush.bf16.msra.mxu0 0
    %7046 = vmatpush.bf16.msra.mxu0 0
    %7047 = vmatpush.bf16.msra.mxu0 0
    %7048 = vmatpush.bf16.msra.mxu0 0
    %7049 = vmatpush.bf16.msra.mxu0 0
    %7050 = vmatpush.bf16.msra.mxu0 0
    %7051 = vmatpush.bf16.msra.mxu0 %v7034
    %7052 = vmatpush.bf16.msra.mxu0 %v7015
    %7053 = vmatmul.bf16.gmra.mxu0 %v7031
    %v7054 = vpop.f32.mrf.mxu0
    %v7055 = vadd.f32 0.0, %v7054
    %v7056 = vpop.f32.mrf.mxu0
    %v7057 = vadd.f32 0.0, %v7056
    %7058 = vdwg.mxu0
    %7059 = vmatpush.bf16.msra.mxu0 0
    %7060 = vmatpush.bf16.msra.mxu0 0
    %7061 = vmatpush.bf16.msra.mxu0 0
    %7062 = vmatpush.bf16.msra.mxu0 0
    %7063 = vmatpush.bf16.msra.mxu0 0
    %7064 = vmatpush.bf16.msra.mxu0 0
    %7065 = vmatpush.bf16.msra.mxu0 %v7037
    %7066 = vmatpush.bf16.msra.mxu0 %v7016
    %7067 = vmatmul.bf16.gmra.mxu0 %v7031
    %v7068 = vpop.f32.mrf.mxu0
    %v7069 = vadd.f32 0.0, %v7068
    %v7070 = vpop.f32.mrf.mxu0
    %v7071 = vadd.f32 0.0, %v7070
    %7072 = vdwg.mxu0
    %7073 = vmatpush.bf16.msra.mxu0 0
    %7074 = vmatpush.bf16.msra.mxu0 0
    %7075 = vmatpush.bf16.msra.mxu0 0
    %7076 = vmatpush.bf16.msra.mxu0 0
    %7077 = vmatpush.bf16.msra.mxu0 0
    %7078 = vmatpush.bf16.msra.mxu0 0
    %7079 = vmatpush.bf16.msra.mxu0 %v7040
    %7080 = vmatpush.bf16.msra.mxu0 %v7017
    %7081 = vmatmul.bf16.gmra.mxu0 %v7031
    %v7082 = vpop.f32.mrf.mxu0
    %v7083 = vadd.f32 0.0, %v7082
    %v7084 = vpop.f32.mrf.mxu0
    %v7085 = vadd.f32 0.0, %v7084
    %7086 = vdwg.mxu0
    %7087 = vmatpush.bf16.msra.mxu0 0
    %7088 = vmatpush.bf16.msra.mxu0 0
    %7089 = vmatpush.bf16.msra.mxu0 0
    %7090 = vmatpush.bf16.msra.mxu0 0
    %7091 = vmatpush.bf16.msra.mxu0 0
    %7092 = vmatpush.bf16.msra.mxu0 0
    %7093 = vmatpush.bf16.msra.mxu0 %v7043
    %7094 = vmatpush.bf16.msra.mxu0 %v7018
    %7095 = vmatmul.bf16.gmra.mxu0 %v7031
    %v7096 = vpop.f32.mrf.mxu0
    %v7097 = vadd.f32 0.0, %v7096
    %v7098 = vpop.f32.mrf.mxu0
    %v7099 = vadd.f32 0.0, %v7098
    %7100 = vdwg.mxu0
    %v7101 = vld [vmem:[%s1395] sm:$0xf]
    %v7102 = vld [vmem:[%s1395 + $0x4] sm:$0x7]
    %v7105 = vunpack.c.l.b16 %v7101
    %v7106 = vunpack.c.l.b16 %v7102
    %v7107 = vpack.c.b16 %v7106, %v7105
    %v7109 = vsel %vm1322, %v7107, 0
    %7111 = vmatpush.bf16.msra.mxu0 0
    %7112 = vmatpush.bf16.msra.mxu0 0
    %7113 = vmatpush.bf16.msra.mxu0 0
    %7114 = vmatpush.bf16.msra.mxu0 0
    %7115 = vmatpush.bf16.msra.mxu0 0
    %7116 = vmatpush.bf16.msra.mxu0 0
    %7117 = vmatpush.bf16.msra.mxu0 %v7034
    %7118 = vmatpush.bf16.msra.mxu0 %v7015
    %7119 = vmatmul.bf16.gmra.mxu0 %v7109
    %v7120 = vpop.f32.mrf.mxu0
    %v7121 = vadd.f32 0.0, %v7120
    %v7122 = vpop.f32.mrf.mxu0
    %v7123 = vadd.f32 0.0, %v7122
    %7124 = vdwg.mxu0
    %7125 = vmatpush.bf16.msra.mxu0 0
    %7126 = vmatpush.bf16.msra.mxu0 0
    %7127 = vmatpush.bf16.msra.mxu0 0
    %7128 = vmatpush.bf16.msra.mxu0 0
    %7129 = vmatpush.bf16.msra.mxu0 0
    %7130 = vmatpush.bf16.msra.mxu0 0
    %7131 = vmatpush.bf16.msra.mxu0 %v7037
    %7132 = vmatpush.bf16.msra.mxu0 %v7016
    %7133 = vmatmul.bf16.gmra.mxu0 %v7109
    %v7134 = vpop.f32.mrf.mxu0
    %v7135 = vadd.f32 0.0, %v7134
    %v7136 = vpop.f32.mrf.mxu0
    %v7137 = vadd.f32 0.0, %v7136
    %7138 = vdwg.mxu0
    %7139 = vmatpush.bf16.msra.mxu0 0
    %7140 = vmatpush.bf16.msra.mxu0 0
    %7141 = vmatpush.bf16.msra.mxu0 0
    %7142 = vmatpush.bf16.msra.mxu0 0
    %7143 = vmatpush.bf16.msra.mxu0 0
    %7144 = vmatpush.bf16.msra.mxu0 0
    %7145 = vmatpush.bf16.msra.mxu0 %v7040
    %7146 = vmatpush.bf16.msra.mxu0 %v7017
    %7147 = vmatmul.bf16.gmra.mxu0 %v7109
    %v7148 = vpop.f32.mrf.mxu0
    %v7149 = vadd.f32 0.0, %v7148
    %v7150 = vpop.f32.mrf.mxu0
    %v7151 = vadd.f32 0.0, %v7150
    %7152 = vdwg.mxu0
    %7153 = vmatpush.bf16.msra.mxu0 0
    %7154 = vmatpush.bf16.msra.mxu0 0
    %7155 = vmatpush.bf16.msra.mxu0 0
    %7156 = vmatpush.bf16.msra.mxu0 0
    %7157 = vmatpush.bf16.msra.mxu0 0
    %7158 = vmatpush.bf16.msra.mxu0 0
    %7159 = vmatpush.bf16.msra.mxu0 %v7043
    %7160 = vmatpush.bf16.msra.mxu0 %v7018
    %7161 = vmatmul.bf16.gmra.mxu0 %v7109
    %v7162 = vpop.f32.mrf.mxu0
    %v7163 = vadd.f32 0.0, %v7162
    %v7164 = vpop.f32.mrf.mxu0
    %v7165 = vadd.f32 0.0, %v7164
    %7166 = vdwg.mxu0
    %v7167 = vmax.f32 %v7055, %v7121
    %v7168 = vmax.f32 %v7069, %v7135
    %v7169 = vmax.f32 %v7083, %v7149
    %v7170 = vmax.f32 %v7097, %v7163
    %v7171 = vmax.f32 %v7057, %v7123
    %v7172 = vmax.f32 %v7071, %v7137
    %v7173 = vmax.f32 %v7085, %v7151
    %v7174 = vmax.f32 %v7099, %v7165
    %v7175 = vpack.c.bf16 %v7171, %v7167
    %v7176 = vpack.c.bf16 %v7172, %v7168
    %v7177 = vpack.c.bf16 %v7173, %v7169
    %v7178 = vpack.c.bf16 %v7174, %v7170
    %v7179 = vld [vmem:[%s4] sm:$0xff]
    %v7180 = vld [vmem:[%s4 + $0x8] sm:$0xff]
    %v7181 = vld [vmem:[%s4 + $0x10] sm:$0xff]
    %v7182 = vld [vmem:[%s4 + $0x18] sm:$0xff]
    %v7183 = vld [vmem:[%s4 + $0x20] sm:$0xff]
    %v7184 = vld [vmem:[%s4 + $0x28] sm:$0xff]
    %v7185 = vld [vmem:[%s4 + $0x30] sm:$0xff]
    %v7186 = vld [vmem:[%s4 + $0x38] sm:$0xff]
    %v7187 = vld [vmem:[%s4 + $0x40] sm:$0xff]
    %v7188 = vld [vmem:[%s4 + $0x48] sm:$0xff]
    %v7189 = vld [vmem:[%s4 + $0x50] sm:$0xff]
    %v7190 = vld [vmem:[%s4 + $0x58] sm:$0xff]
    %v7191 = vld [vmem:[%s4 + $0x60] sm:$0xff]
    %v7192 = vld [vmem:[%s4 + $0x68] sm:$0xff]
    %v7193 = vld [vmem:[%s4 + $0x70] sm:$0xff]
    %v7194 = vld [vmem:[%s4 + $0x78] sm:$0xff]
    %v7195 = vld [vmem:[%s4 + $0x80] sm:$0xff]
    %v7196 = vld [vmem:[%s4 + $0x88] sm:$0xff]
    %v7197 = vld [vmem:[%s4 + $0x90] sm:$0xff]
    %v7198 = vld [vmem:[%s4 + $0x98] sm:$0xff]
    %v7199 = vld [vmem:[%s4 + $0xa0] sm:$0xff]
    %v7200 = vld [vmem:[%s4 + $0xa8] sm:$0xff]
    %v7201 = vld [vmem:[%s4 + $0xb0] sm:$0xff]
    %v7202 = vld [vmem:[%s4 + $0xb8] sm:$0xff]
    %v7203 = vld [vmem:[%s4 + $0xc0] sm:$0xff]
    %v7204 = vld [vmem:[%s4 + $0xc8] sm:$0xff]
    %v7205 = vld [vmem:[%s4 + $0xd0] sm:$0xff]
    %v7206 = vld [vmem:[%s4 + $0xd8] sm:$0xff]
    %v7207 = vld [vmem:[%s4 + $0xe0] sm:$0xff]
    %v7208 = vld [vmem:[%s4 + $0xe8] sm:$0xff]
    %v7209 = vld [vmem:[%s4 + $0xf0] sm:$0xff]
    %v7210 = vld [vmem:[%s4 + $0xf8] sm:$0xff]
    %v7211 = vld [vmem:[%s4 + $0x100] sm:$0xff]
    %v7212 = vld [vmem:[%s4 + $0x108] sm:$0xff]
    %v7213 = vld [vmem:[%s4 + $0x110] sm:$0xff]
    %v7214 = vld [vmem:[%s4 + $0x118] sm:$0xff]
    %v7215 = vld [vmem:[%s4 + $0x120] sm:$0xff]
    %v7216 = vld [vmem:[%s4 + $0x128] sm:$0xff]
    %v7217 = vld [vmem:[%s4 + $0x130] sm:$0xff]
    %v7218 = vld [vmem:[%s4 + $0x138] sm:$0xff]
    %v7219 = vld [vmem:[%s4 + $0x140] sm:$0xff]
    %v7220 = vld [vmem:[%s4 + $0x148] sm:$0xff]
    %v7221 = vld [vmem:[%s4 + $0x150] sm:$0xff]
    %v7222 = vld [vmem:[%s4 + $0x158] sm:$0xff]
    %v7223 = vld [vmem:[%s4 + $0x160] sm:$0xff]
    %v7224 = vld [vmem:[%s4 + $0x168] sm:$0xff]
    %v7225 = vld [vmem:[%s4 + $0x170] sm:$0xff]
    %v7226 = vld [vmem:[%s4 + $0x178] sm:$0xff]
    %v7227 = vld [vmem:[%s4 + $0x180] sm:$0xff]
    %v7228 = vld [vmem:[%s4 + $0x188] sm:$0xff]
    %v7229 = vld [vmem:[%s4 + $0x190] sm:$0xff]
    %v7230 = vld [vmem:[%s4 + $0x198] sm:$0xff]
    %v7231 = vld [vmem:[%s4 + $0x1a0] sm:$0xff]
    %v7232 = vld [vmem:[%s4 + $0x1a8] sm:$0xff]
    %v7233 = vld [vmem:[%s4 + $0x1b0] sm:$0xff]
    %v7234 = vld [vmem:[%s4 + $0x1b8] sm:$0xff]
    %v7291 = vunpack.c.l.b16 %v7179
    %v7292 = vunpack.c.h.b16 %v7179
    %v7293 = vunpack.c.l.b16 %v7180
    %v7294 = vunpack.c.h.b16 %v7180
    %v7295 = vunpack.c.l.b16 %v7181
    %v7296 = vunpack.c.h.b16 %v7181
    %v7297 = vunpack.c.l.b16 %v7182
    %v7298 = vunpack.c.h.b16 %v7182
    %v7299 = vunpack.c.l.b16 %v7183
    %v7300 = vunpack.c.h.b16 %v7183
    %v7301 = vunpack.c.l.b16 %v7184
    %v7302 = vunpack.c.h.b16 %v7184
    %v7303 = vunpack.c.l.b16 %v7185
    %v7304 = vunpack.c.h.b16 %v7185
    %v7305 = vunpack.c.l.b16 %v7186
    %v7306 = vunpack.c.h.b16 %v7186
    %v7307 = vunpack.c.l.b16 %v7187
    %v7308 = vunpack.c.h.b16 %v7187
    %v7309 = vunpack.c.l.b16 %v7188
    %v7310 = vunpack.c.h.b16 %v7188
    %v7311 = vunpack.c.l.b16 %v7189
    %v7312 = vunpack.c.h.b16 %v7189
    %v7313 = vunpack.c.l.b16 %v7190
    %v7314 = vunpack.c.h.b16 %v7190
    %v7315 = vunpack.c.l.b16 %v7191
    %v7316 = vunpack.c.h.b16 %v7191
    %v7317 = vunpack.c.l.b16 %v7192
    %v7318 = vunpack.c.h.b16 %v7192
    %v7319 = vunpack.c.l.b16 %v7193
    %v7320 = vunpack.c.h.b16 %v7193
    %v7321 = vunpack.c.l.b16 %v7194
    %v7322 = vunpack.c.h.b16 %v7194
    %v7323 = vunpack.c.l.b16 %v7195
    %v7324 = vunpack.c.h.b16 %v7195
    %v7325 = vunpack.c.l.b16 %v7196
    %v7326 = vunpack.c.h.b16 %v7196
    %v7327 = vunpack.c.l.b16 %v7197
    %v7328 = vunpack.c.h.b16 %v7197
    %v7329 = vunpack.c.l.b16 %v7198
    %v7330 = vunpack.c.h.b16 %v7198
    %v7331 = vunpack.c.l.b16 %v7199
    %v7332 = vunpack.c.h.b16 %v7199
    %v7333 = vunpack.c.l.b16 %v7200
    %v7334 = vunpack.c.h.b16 %v7200
    %v7335 = vunpack.c.l.b16 %v7201
    %v7336 = vunpack.c.h.b16 %v7201
    %v7337 = vunpack.c.l.b16 %v7202
    %v7338 = vunpack.c.h.b16 %v7202
    %v7339 = vunpack.c.l.b16 %v7203
    %v7340 = vunpack.c.h.b16 %v7203
    %v7341 = vunpack.c.l.b16 %v7204
    %v7342 = vunpack.c.h.b16 %v7204
    %v7343 = vunpack.c.l.b16 %v7205
    %v7344 = vunpack.c.h.b16 %v7205
    %v7345 = vunpack.c.l.b16 %v7206
    %v7346 = vunpack.c.h.b16 %v7206
    %v7347 = vunpack.c.l.b16 %v7207
    %v7348 = vunpack.c.h.b16 %v7207
    %v7349 = vunpack.c.l.b16 %v7208
    %v7350 = vunpack.c.h.b16 %v7208
    %v7351 = vunpack.c.l.b16 %v7209
    %v7352 = vunpack.c.h.b16 %v7209
    %v7353 = vunpack.c.l.b16 %v7210
    %v7354 = vunpack.c.h.b16 %v7210
    %v7355 = vunpack.c.l.b16 %v7211
    %v7356 = vunpack.c.h.b16 %v7211
    %v7357 = vunpack.c.l.b16 %v7212
    %v7358 = vunpack.c.h.b16 %v7212
    %v7359 = vunpack.c.l.b16 %v7213
    %v7360 = vunpack.c.h.b16 %v7213
    %v7361 = vunpack.c.l.b16 %v7214
    %v7362 = vunpack.c.h.b16 %v7214
    %v7363 = vunpack.c.l.b16 %v7215
    %v7364 = vunpack.c.h.b16 %v7215
    %v7365 = vunpack.c.l.b16 %v7216
    %v7366 = vunpack.c.h.b16 %v7216
    %v7367 = vunpack.c.l.b16 %v7217
    %v7368 = vunpack.c.h.b16 %v7217
    %v7369 = vunpack.c.l.b16 %v7218
    %v7370 = vunpack.c.h.b16 %v7218
    %v7371 = vunpack.c.l.b16 %v7219
    %v7372 = vunpack.c.h.b16 %v7219
    %v7373 = vunpack.c.l.b16 %v7220
    %v7374 = vunpack.c.h.b16 %v7220
    %v7375 = vunpack.c.l.b16 %v7221
    %v7376 = vunpack.c.h.b16 %v7221
    %v7377 = vunpack.c.l.b16 %v7222
    %v7378 = vunpack.c.h.b16 %v7222
    %v7379 = vunpack.c.l.b16 %v7223
    %v7380 = vunpack.c.h.b16 %v7223
    %v7381 = vunpack.c.l.b16 %v7224
    %v7382 = vunpack.c.h.b16 %v7224
    %v7383 = vunpack.c.l.b16 %v7225
    %v7384 = vunpack.c.h.b16 %v7225
    %v7385 = vunpack.c.l.b16 %v7226
    %v7386 = vunpack.c.h.b16 %v7226
    %v7387 = vunpack.c.l.b16 %v7227
    %v7388 = vunpack.c.h.b16 %v7227
    %v7389 = vunpack.c.l.b16 %v7228
    %v7390 = vunpack.c.h.b16 %v7228
    %v7391 = vunpack.c.l.b16 %v7229
    %v7392 = vunpack.c.h.b16 %v7229
    %v7393 = vunpack.c.l.b16 %v7230
    %v7394 = vunpack.c.h.b16 %v7230
    %v7395 = vunpack.c.l.b16 %v7231
    %v7396 = vunpack.c.h.b16 %v7231
    %v7397 = vunpack.c.l.b16 %v7232
    %v7398 = vunpack.c.h.b16 %v7232
    %v7399 = vunpack.c.l.b16 %v7233
    %v7400 = vunpack.c.h.b16 %v7233
    %v7401 = vunpack.c.l.b16 %v7234
    %v7402 = vunpack.c.h.b16 %v7234
    %v7403 = vpack.c.b16 %v7293, %v7291
    %v7404 = vpack.c.b16 %v7294, %v7292
    %v7405 = vpack.c.b16 %v7297, %v7295
    %v7406 = vpack.c.b16 %v7298, %v7296
    %v7407 = vpack.c.b16 %v7301, %v7299
    %v7408 = vpack.c.b16 %v7302, %v7300
    %v7409 = vpack.c.b16 %v7305, %v7303
    %v7410 = vpack.c.b16 %v7306, %v7304
    %v7411 = vpack.c.b16 %v7309, %v7307
    %v7412 = vpack.c.b16 %v7310, %v7308
    %v7413 = vpack.c.b16 %v7313, %v7311
    %v7414 = vpack.c.b16 %v7314, %v7312
    %v7415 = vpack.c.b16 %v7317, %v7315
    %v7416 = vpack.c.b16 %v7318, %v7316
    %v7417 = vpack.c.b16 %v7321, %v7319
    %v7418 = vpack.c.b16 %v7322, %v7320
    %v7419 = vpack.c.b16 %v7325, %v7323
    %v7420 = vpack.c.b16 %v7326, %v7324
    %v7421 = vpack.c.b16 %v7329, %v7327
    %v7422 = vpack.c.b16 %v7330, %v7328
    %v7423 = vpack.c.b16 %v7333, %v7331
    %v7424 = vpack.c.b16 %v7334, %v7332
    %v7425 = vpack.c.b16 %v7337, %v7335
    %v7426 = vpack.c.b16 %v7338, %v7336
    %v7427 = vpack.c.b16 %v7341, %v7339
    %v7428 = vpack.c.b16 %v7342, %v7340
    %v7429 = vpack.c.b16 %v7345, %v7343
    %v7430 = vpack.c.b16 %v7346, %v7344
    %v7431 = vpack.c.b16 %v7349, %v7347
    %v7432 = vpack.c.b16 %v7350, %v7348
    %v7433 = vpack.c.b16 %v7353, %v7351
    %v7434 = vpack.c.b16 %v7354, %v7352
    %v7435 = vpack.c.b16 %v7357, %v7355
    %v7436 = vpack.c.b16 %v7358, %v7356
    %v7437 = vpack.c.b16 %v7361, %v7359
    %v7438 = vpack.c.b16 %v7362, %v7360
    %v7439 = vpack.c.b16 %v7365, %v7363
    %v7440 = vpack.c.b16 %v7366, %v7364
    %v7441 = vpack.c.b16 %v7369, %v7367
    %v7442 = vpack.c.b16 %v7370, %v7368
    %v7443 = vpack.c.b16 %v7373, %v7371
    %v7444 = vpack.c.b16 %v7374, %v7372
    %v7445 = vpack.c.b16 %v7377, %v7375
    %v7446 = vpack.c.b16 %v7378, %v7376
    %v7447 = vpack.c.b16 %v7381, %v7379
    %v7448 = vpack.c.b16 %v7382, %v7380
    %v7449 = vpack.c.b16 %v7385, %v7383
    %v7450 = vpack.c.b16 %v7386, %v7384
    %v7451 = vpack.c.b16 %v7389, %v7387
    %v7452 = vpack.c.b16 %v7390, %v7388
    %v7453 = vpack.c.b16 %v7393, %v7391
    %v7454 = vpack.c.b16 %v7394, %v7392
    %v7455 = vpack.c.b16 %v7397, %v7395
    %v7456 = vpack.c.b16 %v7398, %v7396
    %v7457 = vpack.c.b16 %v7401, %v7399
    %v7458 = vpack.c.b16 %v7402, %v7400
    %v7516 = vsel %vm1810, %v7178, 0
    %7518 = vmatpush.bf16.msra.mxu0 %v7417
    %7519 = vmatpush.bf16.msra.mxu0 %v7415
    %7520 = vmatpush.bf16.msra.mxu0 %v7413
    %7521 = vmatpush.bf16.msra.mxu0 %v7411
    %7522 = vmatpush.bf16.msra.mxu0 %v7409
    %7523 = vmatpush.bf16.msra.mxu0 %v7407
    %7524 = vmatpush.bf16.msra.mxu0 %v7405
    %7525 = vmatpush.bf16.msra.mxu0 %v7403
    %7526 = vmatmul.bf16.gmra.mxu0 %v7175
    %v7527 = vpop.f32.mrf.mxu0
    %v7528 = vadd.f32 0.0, %v7527
    %v7529 = vpop.f32.mrf.mxu0
    %v7530 = vadd.f32 0.0, %v7529
    %7531 = vdwg.mxu0
    %7532 = vmatpush.bf16.msra.mxu0 %v7433
    %7533 = vmatpush.bf16.msra.mxu0 %v7431
    %7534 = vmatpush.bf16.msra.mxu0 %v7429
    %7535 = vmatpush.bf16.msra.mxu0 %v7427
    %7536 = vmatpush.bf16.msra.mxu0 %v7425
    %7537 = vmatpush.bf16.msra.mxu0 %v7423
    %7538 = vmatpush.bf16.msra.mxu0 %v7421
    %7539 = vmatpush.bf16.msra.mxu0 %v7419
    %7540 = vmatmul.bf16.gmra.mxu0 %v7176
    %v7541 = vpop.f32.mrf.mxu0
    %v7542 = vadd.f32 %v7528, %v7541
    %v7543 = vpop.f32.mrf.mxu0
    %v7544 = vadd.f32 %v7530, %v7543
    %7545 = vdwg.mxu0
    %7546 = vmatpush.bf16.msra.mxu0 %v7449
    %7547 = vmatpush.bf16.msra.mxu0 %v7447
    %7548 = vmatpush.bf16.msra.mxu0 %v7445
    %7549 = vmatpush.bf16.msra.mxu0 %v7443
    %7550 = vmatpush.bf16.msra.mxu0 %v7441
    %7551 = vmatpush.bf16.msra.mxu0 %v7439
    %7552 = vmatpush.bf16.msra.mxu0 %v7437
    %7553 = vmatpush.bf16.msra.mxu0 %v7435
    %7554 = vmatmul.bf16.gmra.mxu0 %v7177
    %v7555 = vpop.f32.mrf.mxu0
    %v7556 = vadd.f32 %v7542, %v7555
    %v7557 = vpop.f32.mrf.mxu0
    %v7558 = vadd.f32 %v7544, %v7557
    %7559 = vdwg.mxu0
    %7560 = vmatpush.bf16.msra.mxu0 0
    %7561 = vmatpush.bf16.msra.mxu0 0
    %7562 = vmatpush.bf16.msra.mxu0 0
    %7563 = vmatpush.bf16.msra.mxu0 0
    %7564 = vmatpush.bf16.msra.mxu0 %v7457
    %7565 = vmatpush.bf16.msra.mxu0 %v7455
    %7566 = vmatpush.bf16.msra.mxu0 %v7453
    %7567 = vmatpush.bf16.msra.mxu0 %v7451
    %7568 = vmatmul.bf16.gmra.mxu0 %v7516
    %v7569 = vpop.f32.mrf.mxu0
    %v7570 = vadd.f32 %v7556, %v7569
    %v7571 = vpop.f32.mrf.mxu0
    %v7572 = vadd.f32 %v7558, %v7571
    %7573 = vdwg.mxu0
    %7574 = vmatpush.bf16.msra.mxu0 %v7418
    %7575 = vmatpush.bf16.msra.mxu0 %v7416
    %7576 = vmatpush.bf16.msra.mxu0 %v7414
    %7577 = vmatpush.bf16.msra.mxu0 %v7412
    %7578 = vmatpush.bf16.msra.mxu0 %v7410
    %7579 = vmatpush.bf16.msra.mxu0 %v7408
    %7580 = vmatpush.bf16.msra.mxu0 %v7406
    %7581 = vmatpush.bf16.msra.mxu0 %v7404
    %7582 = vmatmul.bf16.gmra.mxu0 %v7175
    %v7583 = vpop.f32.mrf.mxu0
    %v7584 = vadd.f32 0.0, %v7583
    %v7585 = vpop.f32.mrf.mxu0
    %v7586 = vadd.f32 0.0, %v7585
    %7587 = vdwg.mxu0
    %7588 = vmatpush.bf16.msra.mxu0 %v7434
    %7589 = vmatpush.bf16.msra.mxu0 %v7432
    %7590 = vmatpush.bf16.msra.mxu0 %v7430
    %7591 = vmatpush.bf16.msra.mxu0 %v7428
    %7592 = vmatpush.bf16.msra.mxu0 %v7426
    %7593 = vmatpush.bf16.msra.mxu0 %v7424
    %7594 = vmatpush.bf16.msra.mxu0 %v7422
    %7595 = vmatpush.bf16.msra.mxu0 %v7420
    %7596 = vmatmul.bf16.gmra.mxu0 %v7176
    %v7597 = vpop.f32.mrf.mxu0
    %v7598 = vadd.f32 %v7584, %v7597
    %v7599 = vpop.f32.mrf.mxu0
    %v7600 = vadd.f32 %v7586, %v7599
    %7601 = vdwg.mxu0
    %7602 = vmatpush.bf16.msra.mxu0 %v7450
    %7603 = vmatpush.bf16.msra.mxu0 %v7448
    %7604 = vmatpush.bf16.msra.mxu0 %v7446
    %7605 = vmatpush.bf16.msra.mxu0 %v7444
    %7606 = vmatpush.bf16.msra.mxu0 %v7442
    %7607 = vmatpush.bf16.msra.mxu0 %v7440
    %7608 = vmatpush.bf16.msra.mxu0 %v7438
    %7609 = vmatpush.bf16.msra.mxu0 %v7436
    %7610 = vmatmul.bf16.gmra.mxu0 %v7177
    %v7611 = vpop.f32.mrf.mxu0
    %v7612 = vadd.f32 %v7598, %v7611
    %v7613 = vpop.f32.mrf.mxu0
    %v7614 = vadd.f32 %v7600, %v7613
    %7615 = vdwg.mxu0
    %7616 = vmatpush.bf16.msra.mxu0 0
    %7617 = vmatpush.bf16.msra.mxu0 0
    %7618 = vmatpush.bf16.msra.mxu0 0
    %7619 = vmatpush.bf16.msra.mxu0 0
    %7620 = vmatpush.bf16.msra.mxu0 %v7458
    %7621 = vmatpush.bf16.msra.mxu0 %v7456
    %7622 = vmatpush.bf16.msra.mxu0 %v7454
    %7623 = vmatpush.bf16.msra.mxu0 %v7452
    %7624 = vmatmul.bf16.gmra.mxu0 %v7516
    %v7625 = vpop.f32.mrf.mxu0
    %v7626 = vadd.f32 %v7612, %v7625
    %v7627 = vpop.f32.mrf.mxu0
    %v7628 = vadd.f32 %v7614, %v7627
    %7629 = vdwg.mxu0
    %v7630 = vld [vmem:[%s1926] sm:$0xff]
    %v7631 = vld [vmem:[%s1926 + $0x8] sm:$0xff]
    %v7632 = vld [vmem:[%s1926 + $0x10] sm:$0xff]
    %v7633 = vld [vmem:[%s1926 + $0x18] sm:$0xff]
    %v7634 = vld [vmem:[%s1926 + $0x20] sm:$0xff]
    %v7635 = vld [vmem:[%s1926 + $0x28] sm:$0xff]
    %v7636 = vld [vmem:[%s1926 + $0x30] sm:$0xff]
    %v7637 = vld [vmem:[%s1926 + $0x38] sm:$0xff]
    %v7638 = vld [vmem:[%s1926 + $0x40] sm:$0xff]
    %v7639 = vld [vmem:[%s1926 + $0x48] sm:$0xff]
    %v7640 = vld [vmem:[%s1926 + $0x50] sm:$0xff]
    %v7641 = vld [vmem:[%s1926 + $0x58] sm:$0xff]
    %v7642 = vld [vmem:[%s1926 + $0x60] sm:$0xff]
    %v7643 = vld [vmem:[%s1926 + $0x68] sm:$0xff]
    %v7644 = vld [vmem:[%s1926 + $0x70] sm:$0xff]
    %v7645 = vld [vmem:[%s1926 + $0x78] sm:$0xff]
    %v7646 = vld [vmem:[%s1926 + $0x80] sm:$0xff]
    %v7647 = vld [vmem:[%s1926 + $0x88] sm:$0xff]
    %v7648 = vld [vmem:[%s1926 + $0x90] sm:$0xff]
    %v7649 = vld [vmem:[%s1926 + $0x98] sm:$0xff]
    %v7650 = vld [vmem:[%s1926 + $0xa0] sm:$0xff]
    %v7651 = vld [vmem:[%s1926 + $0xa8] sm:$0xff]
    %v7652 = vld [vmem:[%s1926 + $0xb0] sm:$0xff]
    %v7653 = vld [vmem:[%s1926 + $0xb8] sm:$0xff]
    %v7654 = vld [vmem:[%s1926 + $0xc0] sm:$0xff]
    %v7655 = vld [vmem:[%s1926 + $0xc8] sm:$0xff]
    %v7656 = vld [vmem:[%s1926 + $0xd0] sm:$0xff]
    %v7657 = vld [vmem:[%s1926 + $0xd8] sm:$0xff]
    %v7658 = vld [vmem:[%s1926 + $0xe0] sm:$0xff]
    %v7659 = vld [vmem:[%s1926 + $0xe8] sm:$0xff]
    %v7660 = vld [vmem:[%s1926 + $0xf0] sm:$0xff]
    %v7661 = vld [vmem:[%s1926 + $0xf8] sm:$0xff]
    %v7662 = vld [vmem:[%s1926 + $0x100] sm:$0xff]
    %v7663 = vld [vmem:[%s1926 + $0x108] sm:$0xff]
    %v7664 = vld [vmem:[%s1926 + $0x110] sm:$0xff]
    %v7665 = vld [vmem:[%s1926 + $0x118] sm:$0xff]
    %v7666 = vld [vmem:[%s1926 + $0x120] sm:$0xff]
    %v7667 = vld [vmem:[%s1926 + $0x128] sm:$0xff]
    %v7668 = vld [vmem:[%s1926 + $0x130] sm:$0xff]
    %v7669 = vld [vmem:[%s1926 + $0x138] sm:$0xff]
    %v7670 = vld [vmem:[%s1926 + $0x140] sm:$0xff]
    %v7671 = vld [vmem:[%s1926 + $0x148] sm:$0xff]
    %v7672 = vld [vmem:[%s1926 + $0x150] sm:$0xff]
    %v7673 = vld [vmem:[%s1926 + $0x158] sm:$0xff]
    %v7674 = vld [vmem:[%s1926 + $0x160] sm:$0xff]
    %v7675 = vld [vmem:[%s1926 + $0x168] sm:$0xff]
    %v7676 = vld [vmem:[%s1926 + $0x170] sm:$0xff]
    %v7677 = vld [vmem:[%s1926 + $0x178] sm:$0xff]
    %v7678 = vld [vmem:[%s1926 + $0x180] sm:$0xff]
    %v7679 = vld [vmem:[%s1926 + $0x188] sm:$0xff]
    %v7680 = vld [vmem:[%s1926 + $0x190] sm:$0xff]
    %v7681 = vld [vmem:[%s1926 + $0x198] sm:$0xff]
    %v7682 = vld [vmem:[%s1926 + $0x1a0] sm:$0xff]
    %v7683 = vld [vmem:[%s1926 + $0x1a8] sm:$0xff]
    %v7684 = vld [vmem:[%s1926 + $0x1b0] sm:$0xff]
    %v7685 = vld [vmem:[%s1926 + $0x1b8] sm:$0xff]
    %v7742 = vunpack.c.l.b16 %v7630
    %v7743 = vunpack.c.h.b16 %v7630
    %v7744 = vunpack.c.l.b16 %v7631
    %v7745 = vunpack.c.h.b16 %v7631
    %v7746 = vunpack.c.l.b16 %v7632
    %v7747 = vunpack.c.h.b16 %v7632
    %v7748 = vunpack.c.l.b16 %v7633
    %v7749 = vunpack.c.h.b16 %v7633
    %v7750 = vunpack.c.l.b16 %v7634
    %v7751 = vunpack.c.h.b16 %v7634
    %v7752 = vunpack.c.l.b16 %v7635
    %v7753 = vunpack.c.h.b16 %v7635
    %v7754 = vunpack.c.l.b16 %v7636
    %v7755 = vunpack.c.h.b16 %v7636
    %v7756 = vunpack.c.l.b16 %v7637
    %v7757 = vunpack.c.h.b16 %v7637
    %v7758 = vunpack.c.l.b16 %v7638
    %v7759 = vunpack.c.h.b16 %v7638
    %v7760 = vunpack.c.l.b16 %v7639
    %v7761 = vunpack.c.h.b16 %v7639
    %v7762 = vunpack.c.l.b16 %v7640
    %v7763 = vunpack.c.h.b16 %v7640
    %v7764 = vunpack.c.l.b16 %v7641
    %v7765 = vunpack.c.h.b16 %v7641
    %v7766 = vunpack.c.l.b16 %v7642
    %v7767 = vunpack.c.h.b16 %v7642
    %v7768 = vunpack.c.l.b16 %v7643
    %v7769 = vunpack.c.h.b16 %v7643
    %v7770 = vunpack.c.l.b16 %v7644
    %v7771 = vunpack.c.h.b16 %v7644
    %v7772 = vunpack.c.l.b16 %v7645
    %v7773 = vunpack.c.h.b16 %v7645
    %v7774 = vunpack.c.l.b16 %v7646
    %v7775 = vunpack.c.h.b16 %v7646
    %v7776 = vunpack.c.l.b16 %v7647
    %v7777 = vunpack.c.h.b16 %v7647
    %v7778 = vunpack.c.l.b16 %v7648
    %v7779 = vunpack.c.h.b16 %v7648
    %v7780 = vunpack.c.l.b16 %v7649
    %v7781 = vunpack.c.h.b16 %v7649
    %v7782 = vunpack.c.l.b16 %v7650
    %v7783 = vunpack.c.h.b16 %v7650
    %v7784 = vunpack.c.l.b16 %v7651
    %v7785 = vunpack.c.h.b16 %v7651
    %v7786 = vunpack.c.l.b16 %v7652
    %v7787 = vunpack.c.h.b16 %v7652
    %v7788 = vunpack.c.l.b16 %v7653
    %v7789 = vunpack.c.h.b16 %v7653
    %v7790 = vunpack.c.l.b16 %v7654
    %v7791 = vunpack.c.h.b16 %v7654
    %v7792 = vunpack.c.l.b16 %v7655
    %v7793 = vunpack.c.h.b16 %v7655
    %v7794 = vunpack.c.l.b16 %v7656
    %v7795 = vunpack.c.h.b16 %v7656
    %v7796 = vunpack.c.l.b16 %v7657
    %v7797 = vunpack.c.h.b16 %v7657
    %v7798 = vunpack.c.l.b16 %v7658
    %v7799 = vunpack.c.h.b16 %v7658
    %v7800 = vunpack.c.l.b16 %v7659
    %v7801 = vunpack.c.h.b16 %v7659
    %v7802 = vunpack.c.l.b16 %v7660
    %v7803 = vunpack.c.h.b16 %v7660
    %v7804 = vunpack.c.l.b16 %v7661
    %v7805 = vunpack.c.h.b16 %v7661
    %v7806 = vunpack.c.l.b16 %v7662
    %v7807 = vunpack.c.h.b16 %v7662
    %v7808 = vunpack.c.l.b16 %v7663
    %v7809 = vunpack.c.h.b16 %v7663
    %v7810 = vunpack.c.l.b16 %v7664
    %v7811 = vunpack.c.h.b16 %v7664
    %v7812 = vunpack.c.l.b16 %v7665
    %v7813 = vunpack.c.h.b16 %v7665
    %v7814 = vunpack.c.l.b16 %v7666
    %v7815 = vunpack.c.h.b16 %v7666
    %v7816 = vunpack.c.l.b16 %v7667
    %v7817 = vunpack.c.h.b16 %v7667
    %v7818 = vunpack.c.l.b16 %v7668
    %v7819 = vunpack.c.h.b16 %v7668
    %v7820 = vunpack.c.l.b16 %v7669
    %v7821 = vunpack.c.h.b16 %v7669
    %v7822 = vunpack.c.l.b16 %v7670
    %v7823 = vunpack.c.h.b16 %v7670
    %v7824 = vunpack.c.l.b16 %v7671
    %v7825 = vunpack.c.h.b16 %v7671
    %v7826 = vunpack.c.l.b16 %v7672
    %v7827 = vunpack.c.h.b16 %v7672
    %v7828 = vunpack.c.l.b16 %v7673
    %v7829 = vunpack.c.h.b16 %v7673
    %v7830 = vunpack.c.l.b16 %v7674
    %v7831 = vunpack.c.h.b16 %v7674
    %v7832 = vunpack.c.l.b16 %v7675
    %v7833 = vunpack.c.h.b16 %v7675
    %v7834 = vunpack.c.l.b16 %v7676
    %v7835 = vunpack.c.h.b16 %v7676
    %v7836 = vunpack.c.l.b16 %v7677
    %v7837 = vunpack.c.h.b16 %v7677
    %v7838 = vunpack.c.l.b16 %v7678
    %v7839 = vunpack.c.h.b16 %v7678
    %v7840 = vunpack.c.l.b16 %v7679
    %v7841 = vunpack.c.h.b16 %v7679
    %v7842 = vunpack.c.l.b16 %v7680
    %v7843 = vunpack.c.h.b16 %v7680
    %v7844 = vunpack.c.l.b16 %v7681
    %v7845 = vunpack.c.h.b16 %v7681
    %v7846 = vunpack.c.l.b16 %v7682
    %v7847 = vunpack.c.h.b16 %v7682
    %v7848 = vunpack.c.l.b16 %v7683
    %v7849 = vunpack.c.h.b16 %v7683
    %v7850 = vunpack.c.l.b16 %v7684
    %v7851 = vunpack.c.h.b16 %v7684
    %v7852 = vunpack.c.l.b16 %v7685
    %v7853 = vunpack.c.h.b16 %v7685
    %v7854 = vpack.c.b16 %v7744, %v7742
    %v7855 = vpack.c.b16 %v7745, %v7743
    %v7856 = vpack.c.b16 %v7748, %v7746
    %v7857 = vpack.c.b16 %v7749, %v7747
    %v7858 = vpack.c.b16 %v7752, %v7750
    %v7859 = vpack.c.b16 %v7753, %v7751
    %v7860 = vpack.c.b16 %v7756, %v7754
    %v7861 = vpack.c.b16 %v7757, %v7755
    %v7862 = vpack.c.b16 %v7760, %v7758
    %v7863 = vpack.c.b16 %v7761, %v7759
    %v7864 = vpack.c.b16 %v7764, %v7762
    %v7865 = vpack.c.b16 %v7765, %v7763
    %v7866 = vpack.c.b16 %v7768, %v7766
    %v7867 = vpack.c.b16 %v7769, %v7767
    %v7868 = vpack.c.b16 %v7772, %v7770
    %v7869 = vpack.c.b16 %v7773, %v7771
    %v7870 = vpack.c.b16 %v7776, %v7774
    %v7871 = vpack.c.b16 %v7777, %v7775
    %v7872 = vpack.c.b16 %v7780, %v7778
    %v7873 = vpack.c.b16 %v7781, %v7779
    %v7874 = vpack.c.b16 %v7784, %v7782
    %v7875 = vpack.c.b16 %v7785, %v7783
    %v7876 = vpack.c.b16 %v7788, %v7786
    %v7877 = vpack.c.b16 %v7789, %v7787
    %v7878 = vpack.c.b16 %v7792, %v7790
    %v7879 = vpack.c.b16 %v7793, %v7791
    %v7880 = vpack.c.b16 %v7796, %v7794
    %v7881 = vpack.c.b16 %v7797, %v7795
    %v7882 = vpack.c.b16 %v7800, %v7798
    %v7883 = vpack.c.b16 %v7801, %v7799
    %v7884 = vpack.c.b16 %v7804, %v7802
    %v7885 = vpack.c.b16 %v7805, %v7803
    %v7886 = vpack.c.b16 %v7808, %v7806
    %v7887 = vpack.c.b16 %v7809, %v7807
    %v7888 = vpack.c.b16 %v7812, %v7810
    %v7889 = vpack.c.b16 %v7813, %v7811
    %v7890 = vpack.c.b16 %v7816, %v7814
    %v7891 = vpack.c.b16 %v7817, %v7815
    %v7892 = vpack.c.b16 %v7820, %v7818
    %v7893 = vpack.c.b16 %v7821, %v7819
    %v7894 = vpack.c.b16 %v7824, %v7822
    %v7895 = vpack.c.b16 %v7825, %v7823
    %v7896 = vpack.c.b16 %v7828, %v7826
    %v7897 = vpack.c.b16 %v7829, %v7827
    %v7898 = vpack.c.b16 %v7832, %v7830
    %v7899 = vpack.c.b16 %v7833, %v7831
    %v7900 = vpack.c.b16 %v7836, %v7834
    %v7901 = vpack.c.b16 %v7837, %v7835
    %v7902 = vpack.c.b16 %v7840, %v7838
    %v7903 = vpack.c.b16 %v7841, %v7839
    %v7904 = vpack.c.b16 %v7844, %v7842
    %v7905 = vpack.c.b16 %v7845, %v7843
    %v7906 = vpack.c.b16 %v7848, %v7846
    %v7907 = vpack.c.b16 %v7849, %v7847
    %v7908 = vpack.c.b16 %v7852, %v7850
    %v7909 = vpack.c.b16 %v7853, %v7851
    %7966 = vmatpush.bf16.msra.mxu0 %v7868
    %7967 = vmatpush.bf16.msra.mxu0 %v7866
    %7968 = vmatpush.bf16.msra.mxu0 %v7864
    %7969 = vmatpush.bf16.msra.mxu0 %v7862
    %7970 = vmatpush.bf16.msra.mxu0 %v7860
    %7971 = vmatpush.bf16.msra.mxu0 %v7858
    %7972 = vmatpush.bf16.msra.mxu0 %v7856
    %7973 = vmatpush.bf16.msra.mxu0 %v7854
    %7974 = vmatmul.bf16.gmra.mxu0 %v7175
    %v7975 = vpop.f32.mrf.mxu0
    %v7976 = vadd.f32 0.0, %v7975
    %v7977 = vpop.f32.mrf.mxu0
    %v7978 = vadd.f32 0.0, %v7977
    %7979 = vdwg.mxu0
    %7980 = vmatpush.bf16.msra.mxu0 %v7884
    %7981 = vmatpush.bf16.msra.mxu0 %v7882
    %7982 = vmatpush.bf16.msra.mxu0 %v7880
    %7983 = vmatpush.bf16.msra.mxu0 %v7878
    %7984 = vmatpush.bf16.msra.mxu0 %v7876
    %7985 = vmatpush.bf16.msra.mxu0 %v7874
    %7986 = vmatpush.bf16.msra.mxu0 %v7872
    %7987 = vmatpush.bf16.msra.mxu0 %v7870
    %7988 = vmatmul.bf16.gmra.mxu0 %v7176
    %v7989 = vpop.f32.mrf.mxu0
    %v7990 = vadd.f32 %v7976, %v7989
    %v7991 = vpop.f32.mrf.mxu0
    %v7992 = vadd.f32 %v7978, %v7991
    %7993 = vdwg.mxu0
    %7994 = vmatpush.bf16.msra.mxu0 %v7900
    %7995 = vmatpush.bf16.msra.mxu0 %v7898
    %7996 = vmatpush.bf16.msra.mxu0 %v7896
    %7997 = vmatpush.bf16.msra.mxu0 %v7894
    %7998 = vmatpush.bf16.msra.mxu0 %v7892
    %7999 = vmatpush.bf16.msra.mxu0 %v7890
    %8000 = vmatpush.bf16.msra.mxu0 %v7888
    %8001 = vmatpush.bf16.msra.mxu0 %v7886
    %8002 = vmatmul.bf16.gmra.mxu0 %v7177
    %v8003 = vpop.f32.mrf.mxu0
    %v8004 = vadd.f32 %v7990, %v8003
    %v8005 = vpop.f32.mrf.mxu0
    %v8006 = vadd.f32 %v7992, %v8005
    %8007 = vdwg.mxu0
    %8008 = vmatpush.bf16.msra.mxu0 0
    %8009 = vmatpush.bf16.msra.mxu0 0
    %8010 = vmatpush.bf16.msra.mxu0 0
    %8011 = vmatpush.bf16.msra.mxu0 0
    %8012 = vmatpush.bf16.msra.mxu0 %v7908
    %8013 = vmatpush.bf16.msra.mxu0 %v7906
    %8014 = vmatpush.bf16.msra.mxu0 %v7904
    %8015 = vmatpush.bf16.msra.mxu0 %v7902
    %8016 = vmatmul.bf16.gmra.mxu0 %v7516
    %v8017 = vpop.f32.mrf.mxu0
    %v8018 = vadd.f32 %v8004, %v8017
    %v8019 = vpop.f32.mrf.mxu0
    %v8020 = vadd.f32 %v8006, %v8019
    %8021 = vdwg.mxu0
    %8022 = vmatpush.bf16.msra.mxu0 %v7869
    %8023 = vmatpush.bf16.msra.mxu0 %v7867
    %8024 = vmatpush.bf16.msra.mxu0 %v7865
    %8025 = vmatpush.bf16.msra.mxu0 %v7863
    %8026 = vmatpush.bf16.msra.mxu0 %v7861
    %8027 = vmatpush.bf16.msra.mxu0 %v7859
    %8028 = vmatpush.bf16.msra.mxu0 %v7857
    %8029 = vmatpush.bf16.msra.mxu0 %v7855
    %8030 = vmatmul.bf16.gmra.mxu0 %v7175
    %v8031 = vpop.f32.mrf.mxu0
    %v8032 = vadd.f32 0.0, %v8031
    %v8033 = vpop.f32.mrf.mxu0
    %v8034 = vadd.f32 0.0, %v8033
    %8035 = vdwg.mxu0
    %8036 = vmatpush.bf16.msra.mxu0 %v7885
    %8037 = vmatpush.bf16.msra.mxu0 %v7883
    %8038 = vmatpush.bf16.msra.mxu0 %v7881
    %8039 = vmatpush.bf16.msra.mxu0 %v7879
    %8040 = vmatpush.bf16.msra.mxu0 %v7877
    %8041 = vmatpush.bf16.msra.mxu0 %v7875
    %8042 = vmatpush.bf16.msra.mxu0 %v7873
    %8043 = vmatpush.bf16.msra.mxu0 %v7871
    %8044 = vmatmul.bf16.gmra.mxu0 %v7176
    %v8045 = vpop.f32.mrf.mxu0
    %v8046 = vadd.f32 %v8032, %v8045
    %v8047 = vpop.f32.mrf.mxu0
    %v8048 = vadd.f32 %v8034, %v8047
    %8049 = vdwg.mxu0
    %8050 = vmatpush.bf16.msra.mxu0 %v7901
    %8051 = vmatpush.bf16.msra.mxu0 %v7899
    %8052 = vmatpush.bf16.msra.mxu0 %v7897
    %8053 = vmatpush.bf16.msra.mxu0 %v7895
    %8054 = vmatpush.bf16.msra.mxu0 %v7893
    %8055 = vmatpush.bf16.msra.mxu0 %v7891
    %8056 = vmatpush.bf16.msra.mxu0 %v7889
    %8057 = vmatpush.bf16.msra.mxu0 %v7887
    %8058 = vmatmul.bf16.gmra.mxu0 %v7177
    %v8059 = vpop.f32.mrf.mxu0
    %v8060 = vadd.f32 %v8046, %v8059
    %v8061 = vpop.f32.mrf.mxu0
    %v8062 = vadd.f32 %v8048, %v8061
    %8063 = vdwg.mxu0
    %8064 = vmatpush.bf16.msra.mxu0 0
    %8065 = vmatpush.bf16.msra.mxu0 0
    %8066 = vmatpush.bf16.msra.mxu0 0
    %8067 = vmatpush.bf16.msra.mxu0 0
    %8068 = vmatpush.bf16.msra.mxu0 %v7909
    %8069 = vmatpush.bf16.msra.mxu0 %v7907
    %8070 = vmatpush.bf16.msra.mxu0 %v7905
    %8071 = vmatpush.bf16.msra.mxu0 %v7903
    %8072 = vmatmul.bf16.gmra.mxu0 %v7516
    %v8073 = vpop.f32.mrf.mxu0
    %v8074 = vadd.f32 %v8060, %v8073
    %v8075 = vpop.f32.mrf.mxu0
    %v8076 = vadd.f32 %v8062, %v8075
    %8077 = vdwg.mxu0
    %v8078 = vmax.f32 %v7570, %v8018
    %v8079 = vmax.f32 %v7626, %v8074
    %v8080 = vmax.f32 %v7572, %v8020
    %v8081 = vmax.f32 %v7628, %v8076
    %v8082 = vpack.c.bf16 %v8080, %v8078
    %v8083 = vpack.c.bf16 %v8081, %v8079
    %v8084 = vld [vmem:[%s5] sm:$0xff]
    %v8085 = vld [vmem:[%s5 + $0x8] sm:$0xf]
    %v8086 = vld [vmem:[%s5 + $0xc] sm:$0xff]
    %v8087 = vld [vmem:[%s5 + $0x14] sm:$0xf]
    %v8088 = vld [vmem:[%s5 + $0x18] sm:$0xff]
    %v8089 = vld [vmem:[%s5 + $0x20] sm:$0xf]
    %v8090 = vld [vmem:[%s5 + $0x24] sm:$0xff]
    %v8091 = vld [vmem:[%s5 + $0x2c] sm:$0xf]
    %v8092 = vld [vmem:[%s5 + $0x30] sm:$0xff]
    %v8093 = vld [vmem:[%s5 + $0x38] sm:$0xf]
    %v8094 = vld [vmem:[%s5 + $0x3c] sm:$0xff]
    %v8095 = vld [vmem:[%s5 + $0x44] sm:$0xf]
    %v8096 = vld [vmem:[%s5 + $0x48] sm:$0xff]
    %v8097 = vld [vmem:[%s5 + $0x50] sm:$0xf]
    %v8098 = vld [vmem:[%s5 + $0x54] sm:$0xff]
    %v8099 = vld [vmem:[%s5 + $0x5c] sm:$0xf]
    %v8100 = vld [vmem:[%s5 + $0x60] sm:$0xff]
    %v8101 = vld [vmem:[%s5 + $0x68] sm:$0xf]
    %v8102 = vld [vmem:[%s5 + $0x6c] sm:$0xff]
    %v8103 = vld [vmem:[%s5 + $0x74] sm:$0xf]
    %v8104 = vld [vmem:[%s5 + $0x78] sm:$0xff]
    %v8105 = vld [vmem:[%s5 + $0x80] sm:$0xf]
    %v8106 = vld [vmem:[%s5 + $0x84] sm:$0xff]
    %v8107 = vld [vmem:[%s5 + $0x8c] sm:$0xf]
    %v8108 = vld [vmem:[%s5 + $0x90] sm:$0xff]
    %v8109 = vld [vmem:[%s5 + $0x98] sm:$0xf]
    %v8110 = vld [vmem:[%s5 + $0x9c] sm:$0xff]
    %v8111 = vld [vmem:[%s5 + $0xa4] sm:$0xf]
    %v8112 = vld [vmem:[%s5 + $0xa8] sm:$0xff]
    %v8113 = vld [vmem:[%s5 + $0xb0] sm:$0xf]
    %v8114 = vld [vmem:[%s5 + $0xb4] sm:$0xff]
    %v8115 = vld [vmem:[%s5 + $0xbc] sm:$0xf]
    %v8116 = vld [vmem:[%s5 + $0xc0] sm:$0xff]
    %v8117 = vld [vmem:[%s5 + $0xc8] sm:$0xf]
    %v8118 = vld [vmem:[%s5 + $0xcc] sm:$0xff]
    %v8119 = vld [vmem:[%s5 + $0xd4] sm:$0xf]
    %v8120 = vld [vmem:[%s5 + $0xd8] sm:$0xff]
    %v8121 = vld [vmem:[%s5 + $0xe0] sm:$0xf]
    %v8122 = vld [vmem:[%s5 + $0xe4] sm:$0xff]
    %v8123 = vld [vmem:[%s5 + $0xec] sm:$0xf]
    %v8124 = vld [vmem:[%s5 + $0xf0] sm:$0xff]
    %v8125 = vld [vmem:[%s5 + $0xf8] sm:$0xf]
    %v8126 = vld [vmem:[%s5 + $0xfc] sm:$0xff]
    %v8127 = vld [vmem:[%s5 + $0x104] sm:$0xf]
    %v8128 = vld [vmem:[%s5 + $0x108] sm:$0xff]
    %v8129 = vld [vmem:[%s5 + $0x110] sm:$0xf]
    %v8130 = vld [vmem:[%s5 + $0x114] sm:$0xff]
    %v8131 = vld [vmem:[%s5 + $0x11c] sm:$0xf]
    %v8132 = vld [vmem:[%s5 + $0x120] sm:$0xff]
    %v8133 = vld [vmem:[%s5 + $0x128] sm:$0xf]
    %v8134 = vld [vmem:[%s5 + $0x12c] sm:$0xff]
    %v8135 = vld [vmem:[%s5 + $0x134] sm:$0xf]
    %v8136 = vld [vmem:[%s5 + $0x138] sm:$0xff]
    %v8137 = vld [vmem:[%s5 + $0x140] sm:$0xf]
    %v8138 = vld [vmem:[%s5 + $0x144] sm:$0xff]
    %v8139 = vld [vmem:[%s5 + $0x14c] sm:$0xf]
    %v8140 = vld [vmem:[%s2437] sm:$0xff]
    %v8141 = vld [vmem:[%s2437 + $0x8] sm:$0xf]
    %v8142 = vld [vmem:[%s2437 + $0xc] sm:$0xff]
    %v8143 = vld [vmem:[%s2437 + $0x14] sm:$0xf]
    %v8144 = vld [vmem:[%s2437 + $0x18] sm:$0xff]
    %v8145 = vld [vmem:[%s2437 + $0x20] sm:$0xf]
    %v8146 = vld [vmem:[%s2437 + $0x24] sm:$0xff]
    %v8147 = vld [vmem:[%s2437 + $0x2c] sm:$0xf]
    %v8148 = vld [vmem:[%s2437 + $0x30] sm:$0xff]
    %v8149 = vld [vmem:[%s2437 + $0x38] sm:$0xf]
    %v8150 = vld [vmem:[%s2437 + $0x3c] sm:$0xff]
    %v8151 = vld [vmem:[%s2437 + $0x44] sm:$0xf]
    %v8152 = vld [vmem:[%s2437 + $0x48] sm:$0xff]
    %v8153 = vld [vmem:[%s2437 + $0x50] sm:$0xf]
    %v8154 = vld [vmem:[%s2437 + $0x54] sm:$0xff]
    %v8155 = vld [vmem:[%s2437 + $0x5c] sm:$0xf]
    %v8156 = vld [vmem:[%s2437 + $0x60] sm:$0xff]
    %v8157 = vld [vmem:[%s2437 + $0x68] sm:$0xf]
    %v8158 = vld [vmem:[%s2437 + $0x6c] sm:$0xff]
    %v8159 = vld [vmem:[%s2437 + $0x74] sm:$0xf]
    %v8160 = vld [vmem:[%s2437 + $0x78] sm:$0xff]
    %v8161 = vld [vmem:[%s2437 + $0x80] sm:$0xf]
    %v8162 = vld [vmem:[%s2437 + $0x84] sm:$0xff]
    %v8163 = vld [vmem:[%s2437 + $0x8c] sm:$0xf]
    %v8164 = vld [vmem:[%s2437 + $0x90] sm:$0xff]
    %v8165 = vld [vmem:[%s2437 + $0x98] sm:$0xf]
    %v8166 = vld [vmem:[%s2437 + $0x9c] sm:$0xff]
    %v8167 = vld [vmem:[%s2437 + $0xa4] sm:$0xf]
    %v8168 = vld [vmem:[%s2437 + $0xa8] sm:$0xff]
    %v8169 = vld [vmem:[%s2437 + $0xb0] sm:$0xf]
    %v8170 = vld [vmem:[%s2437 + $0xb4] sm:$0xff]
    %v8171 = vld [vmem:[%s2437 + $0xbc] sm:$0xf]
    %v8172 = vld [vmem:[%s2437 + $0xc0] sm:$0xff]
    %v8173 = vld [vmem:[%s2437 + $0xc8] sm:$0xf]
    %v8174 = vld [vmem:[%s2437 + $0xcc] sm:$0xff]
    %v8175 = vld [vmem:[%s2437 + $0xd4] sm:$0xf]
    %v8176 = vld [vmem:[%s2437 + $0xd8] sm:$0xff]
    %v8177 = vld [vmem:[%s2437 + $0xe0] sm:$0xf]
    %v8178 = vld [vmem:[%s2437 + $0xe4] sm:$0xff]
    %v8179 = vld [vmem:[%s2437 + $0xec] sm:$0xf]
    %v8180 = vld [vmem:[%s2437 + $0xf0] sm:$0xff]
    %v8181 = vld [vmem:[%s2437 + $0xf8] sm:$0xf]
    %v8182 = vld [vmem:[%s2437 + $0xfc] sm:$0xff]
    %v8183 = vld [vmem:[%s2437 + $0x104] sm:$0xf]
    %v8184 = vld [vmem:[%s2437 + $0x108] sm:$0xff]
    %v8185 = vld [vmem:[%s2437 + $0x110] sm:$0xf]
    %v8186 = vld [vmem:[%s2437 + $0x114] sm:$0xff]
    %v8187 = vld [vmem:[%s2437 + $0x11c] sm:$0xf]
    %v8188 = vld [vmem:[%s2437 + $0x120] sm:$0xff]
    %v8189 = vld [vmem:[%s2437 + $0x128] sm:$0xf]
    %v8190 = vld [vmem:[%s2437 + $0x12c] sm:$0xff]
    %v8191 = vld [vmem:[%s2437 + $0x134] sm:$0xf]
    %v8192 = vld [vmem:[%s2437 + $0x138] sm:$0xff]
    %v8193 = vld [vmem:[%s2437 + $0x140] sm:$0xf]
    %v8194 = vld [vmem:[%s2437 + $0x144] sm:$0xff]
    %v8195 = vld [vmem:[%s2437 + $0x14c] sm:$0xf]
    %v8197 = vshrl.u32 %v8082, 16
    %v8199 = vshll.u32 %v8082, 16
    %v8201 = vrot.slane %v8199, 1
    %v8202 = vor.u32 %v8197, %v8201
    %v8204 = vshrl.u32 %v8083, 16
    %v8206 = vshll.u32 %v8083, 16
    %v8208 = vrot.slane %v8206, 1
    %v8209 = vor.u32 %v8204, %v8208
    %v8267 = vunpack.c.l.b16 %v8140
    %v8268 = vunpack.c.h.b16 %v8140
    %v8269 = vunpack.c.l.b16 %v8141
    %v8270 = vunpack.c.l.b16 %v8142
    %v8271 = vunpack.c.h.b16 %v8142
    %v8272 = vunpack.c.l.b16 %v8143
    %v8273 = vunpack.c.l.b16 %v8144
    %v8274 = vunpack.c.h.b16 %v8144
    %v8275 = vunpack.c.l.b16 %v8145
    %v8276 = vunpack.c.l.b16 %v8146
    %v8277 = vunpack.c.h.b16 %v8146
    %v8278 = vunpack.c.l.b16 %v8147
    %v8279 = vunpack.c.l.b16 %v8148
    %v8280 = vunpack.c.h.b16 %v8148
    %v8281 = vunpack.c.l.b16 %v8149
    %v8282 = vunpack.c.l.b16 %v8150
    %v8283 = vunpack.c.h.b16 %v8150
    %v8284 = vunpack.c.l.b16 %v8151
    %v8285 = vunpack.c.l.b16 %v8152
    %v8286 = vunpack.c.h.b16 %v8152
    %v8287 = vunpack.c.l.b16 %v8153
    %v8288 = vunpack.c.l.b16 %v8154
    %v8289 = vunpack.c.h.b16 %v8154
    %v8290 = vunpack.c.l.b16 %v8155
    %v8291 = vunpack.c.l.b16 %v8156
    %v8292 = vunpack.c.h.b16 %v8156
    %v8293 = vunpack.c.l.b16 %v8157
    %v8294 = vunpack.c.l.b16 %v8158
    %v8295 = vunpack.c.h.b16 %v8158
    %v8296 = vunpack.c.l.b16 %v8159
    %v8297 = vunpack.c.l.b16 %v8160
    %v8298 = vunpack.c.h.b16 %v8160
    %v8299 = vunpack.c.l.b16 %v8161
    %v8300 = vunpack.c.l.b16 %v8162
    %v8301 = vunpack.c.h.b16 %v8162
    %v8302 = vunpack.c.l.b16 %v8163
    %v8303 = vunpack.c.l.b16 %v8164
    %v8304 = vunpack.c.h.b16 %v8164
    %v8305 = vunpack.c.l.b16 %v8165
    %v8306 = vunpack.c.l.b16 %v8166
    %v8307 = vunpack.c.h.b16 %v8166
    %v8308 = vunpack.c.l.b16 %v8167
    %v8309 = vunpack.c.l.b16 %v8168
    %v8310 = vunpack.c.h.b16 %v8168
    %v8311 = vunpack.c.l.b16 %v8169
    %v8312 = vunpack.c.l.b16 %v8170
    %v8313 = vunpack.c.h.b16 %v8170
    %v8314 = vunpack.c.l.b16 %v8171
    %v8315 = vunpack.c.l.b16 %v8172
    %v8316 = vunpack.c.h.b16 %v8172
    %v8317 = vunpack.c.l.b16 %v8173
    %v8318 = vunpack.c.l.b16 %v8174
    %v8319 = vunpack.c.h.b16 %v8174
    %v8320 = vunpack.c.l.b16 %v8175
    %v8321 = vunpack.c.l.b16 %v8176
    %v8322 = vunpack.c.h.b16 %v8176
    %v8323 = vunpack.c.l.b16 %v8177
    %v8324 = vunpack.c.l.b16 %v8178
    %v8325 = vunpack.c.h.b16 %v8178
    %v8326 = vunpack.c.l.b16 %v8179
    %v8327 = vunpack.c.l.b16 %v8180
    %v8328 = vunpack.c.h.b16 %v8180
    %v8329 = vunpack.c.l.b16 %v8181
    %v8330 = vunpack.c.l.b16 %v8182
    %v8331 = vunpack.c.h.b16 %v8182
    %v8332 = vunpack.c.l.b16 %v8183
    %v8333 = vunpack.c.l.b16 %v8184
    %v8334 = vunpack.c.h.b16 %v8184
    %v8335 = vunpack.c.l.b16 %v8185
    %v8336 = vunpack.c.l.b16 %v8186
    %v8337 = vunpack.c.h.b16 %v8186
    %v8338 = vunpack.c.l.b16 %v8187
    %v8339 = vunpack.c.l.b16 %v8188
    %v8340 = vunpack.c.h.b16 %v8188
    %v8341 = vunpack.c.l.b16 %v8189
    %v8342 = vunpack.c.l.b16 %v8190
    %v8343 = vunpack.c.h.b16 %v8190
    %v8344 = vunpack.c.l.b16 %v8191
    %v8345 = vunpack.c.l.b16 %v8192
    %v8346 = vunpack.c.h.b16 %v8192
    %v8347 = vunpack.c.l.b16 %v8193
    %v8348 = vunpack.c.l.b16 %v8194
    %v8349 = vunpack.c.h.b16 %v8194
    %v8350 = vunpack.c.l.b16 %v8195
    %v8351 = vpack.c.b16 %v8270, %v8267
    %v8352 = vpack.c.b16 %v8271, %v8268
    %v8353 = vpack.c.b16 %v8272, %v8269
    %v8354 = vpack.c.b16 %v8276, %v8273
    %v8355 = vpack.c.b16 %v8277, %v8274
    %v8356 = vpack.c.b16 %v8278, %v8275
    %v8357 = vpack.c.b16 %v8282, %v8279
    %v8358 = vpack.c.b16 %v8283, %v8280
    %v8359 = vpack.c.b16 %v8284, %v8281
    %v8360 = vpack.c.b16 %v8288, %v8285
    %v8361 = vpack.c.b16 %v8289, %v8286
    %v8362 = vpack.c.b16 %v8290, %v8287
    %v8363 = vpack.c.b16 %v8294, %v8291
    %v8364 = vpack.c.b16 %v8295, %v8292
    %v8365 = vpack.c.b16 %v8296, %v8293
    %v8366 = vpack.c.b16 %v8300, %v8297
    %v8367 = vpack.c.b16 %v8301, %v8298
    %v8368 = vpack.c.b16 %v8302, %v8299
    %v8369 = vpack.c.b16 %v8306, %v8303
    %v8370 = vpack.c.b16 %v8307, %v8304
    %v8371 = vpack.c.b16 %v8308, %v8305
    %v8372 = vpack.c.b16 %v8312, %v8309
    %v8373 = vpack.c.b16 %v8313, %v8310
    %v8374 = vpack.c.b16 %v8314, %v8311
    %v8375 = vpack.c.b16 %v8318, %v8315
    %v8376 = vpack.c.b16 %v8319, %v8316
    %v8377 = vpack.c.b16 %v8320, %v8317
    %v8378 = vpack.c.b16 %v8324, %v8321
    %v8379 = vpack.c.b16 %v8325, %v8322
    %v8380 = vpack.c.b16 %v8326, %v8323
    %v8381 = vpack.c.b16 %v8330, %v8327
    %v8382 = vpack.c.b16 %v8331, %v8328
    %v8383 = vpack.c.b16 %v8332, %v8329
    %v8384 = vpack.c.b16 %v8336, %v8333
    %v8385 = vpack.c.b16 %v8337, %v8334
    %v8386 = vpack.c.b16 %v8338, %v8335
    %v8387 = vpack.c.b16 %v8342, %v8339
    %v8388 = vpack.c.b16 %v8343, %v8340
    %v8389 = vpack.c.b16 %v8344, %v8341
    %v8390 = vpack.c.b16 %v8348, %v8345
    %v8391 = vpack.c.b16 %v8349, %v8346
    %v8392 = vpack.c.b16 %v8350, %v8347
    %v8436 = vsel %vm233, %v8209, 0
    %8438 = vmatpush.bf16.msra.mxu0 %v8372
    %8439 = vmatpush.bf16.msra.mxu0 %v8369
    %8440 = vmatpush.bf16.msra.mxu0 %v8366
    %8441 = vmatpush.bf16.msra.mxu0 %v8363
    %8442 = vmatpush.bf16.msra.mxu0 %v8360
    %8443 = vmatpush.bf16.msra.mxu0 %v8357
    %8444 = vmatpush.bf16.msra.mxu0 %v8354
    %8445 = vmatpush.bf16.msra.mxu0 %v8351
    %8446 = vmatmul.bf16.gmra.mxu0 %v8202
    %v8447 = vpop.f32.mrf.mxu0
    %v8448 = vadd.f32 0.0, %v8447
    %v8449 = vpop.f32.mrf.mxu0
    %v8450 = vadd.f32 0.0, %v8449
    %8451 = vdwg.mxu0
    %8452 = vmatpush.bf16.msra.mxu0 0
    %8453 = vmatpush.bf16.msra.mxu0 0
    %8454 = vmatpush.bf16.msra.mxu0 %v8390
    %8455 = vmatpush.bf16.msra.mxu0 %v8387
    %8456 = vmatpush.bf16.msra.mxu0 %v8384
    %8457 = vmatpush.bf16.msra.mxu0 %v8381
    %8458 = vmatpush.bf16.msra.mxu0 %v8378
    %8459 = vmatpush.bf16.msra.mxu0 %v8375
    %8460 = vmatmul.bf16.gmra.mxu0 %v8436
    %v8461 = vpop.f32.mrf.mxu0
    %v8462 = vadd.f32 %v8448, %v8461
    %v8463 = vpop.f32.mrf.mxu0
    %v8464 = vadd.f32 %v8450, %v8463
    %8465 = vdwg.mxu0
    %8466 = vmatpush.bf16.msra.mxu0 %v8373
    %8467 = vmatpush.bf16.msra.mxu0 %v8370
    %8468 = vmatpush.bf16.msra.mxu0 %v8367
    %8469 = vmatpush.bf16.msra.mxu0 %v8364
    %8470 = vmatpush.bf16.msra.mxu0 %v8361
    %8471 = vmatpush.bf16.msra.mxu0 %v8358
    %8472 = vmatpush.bf16.msra.mxu0 %v8355
    %8473 = vmatpush.bf16.msra.mxu0 %v8352
    %8474 = vmatmul.bf16.gmra.mxu0 %v8202
    %v8475 = vpop.f32.mrf.mxu0
    %v8476 = vadd.f32 0.0, %v8475
    %v8477 = vpop.f32.mrf.mxu0
    %v8478 = vadd.f32 0.0, %v8477
    %8479 = vdwg.mxu0
    %8480 = vmatpush.bf16.msra.mxu0 0
    %8481 = vmatpush.bf16.msra.mxu0 0
    %8482 = vmatpush.bf16.msra.mxu0 %v8391
    %8483 = vmatpush.bf16.msra.mxu0 %v8388
    %8484 = vmatpush.bf16.msra.mxu0 %v8385
    %8485 = vmatpush.bf16.msra.mxu0 %v8382
    %8486 = vmatpush.bf16.msra.mxu0 %v8379
    %8487 = vmatpush.bf16.msra.mxu0 %v8376
    %8488 = vmatmul.bf16.gmra.mxu0 %v8436
    %v8489 = vpop.f32.mrf.mxu0
    %v8490 = vadd.f32 %v8476, %v8489
    %v8491 = vpop.f32.mrf.mxu0
    %v8492 = vadd.f32 %v8478, %v8491
    %8493 = vdwg.mxu0
    %8494 = vmatpush.bf16.msra.mxu0 %v8374
    %8495 = vmatpush.bf16.msra.mxu0 %v8371
    %8496 = vmatpush.bf16.msra.mxu0 %v8368
    %8497 = vmatpush.bf16.msra.mxu0 %v8365
    %8498 = vmatpush.bf16.msra.mxu0 %v8362
    %8499 = vmatpush.bf16.msra.mxu0 %v8359
    %8500 = vmatpush.bf16.msra.mxu0 %v8356
    %8501 = vmatpush.bf16.msra.mxu0 %v8353
    %8502 = vmatmul.bf16.gmra.mxu0 %v8202
    %v8503 = vpop.f32.mrf.mxu0
    %v8504 = vadd.f32 0.0, %v8503
    %v8505 = vpop.f32.mrf.mxu0
    %v8506 = vadd.f32 0.0, %v8505
    %8507 = vdwg.mxu0
    %8508 = vmatpush.bf16.msra.mxu0 0
    %8509 = vmatpush.bf16.msra.mxu0 0
    %8510 = vmatpush.bf16.msra.mxu0 %v8392
    %8511 = vmatpush.bf16.msra.mxu0 %v8389
    %8512 = vmatpush.bf16.msra.mxu0 %v8386
    %8513 = vmatpush.bf16.msra.mxu0 %v8383
    %8514 = vmatpush.bf16.msra.mxu0 %v8380
    %8515 = vmatpush.bf16.msra.mxu0 %v8377
    %8516 = vmatmul.bf16.gmra.mxu0 %v8436
    %v8517 = vpop.f32.mrf.mxu0
    %v8518 = vadd.f32 %v8504, %v8517
    %v8519 = vpop.f32.mrf.mxu0
    %v8520 = vadd.f32 %v8506, %v8519
    %8521 = vdwg.mxu0
    %v8578 = vunpack.c.l.b16 %v8084
    %v8579 = vunpack.c.h.b16 %v8084
    %v8580 = vunpack.c.l.b16 %v8085
    %v8581 = vunpack.c.l.b16 %v8086
    %v8582 = vunpack.c.h.b16 %v8086
    %v8583 = vunpack.c.l.b16 %v8087
    %v8584 = vunpack.c.l.b16 %v8088
    %v8585 = vunpack.c.h.b16 %v8088
    %v8586 = vunpack.c.l.b16 %v8089
    %v8587 = vunpack.c.l.b16 %v8090
    %v8588 = vunpack.c.h.b16 %v8090
    %v8589 = vunpack.c.l.b16 %v8091
    %v8590 = vunpack.c.l.b16 %v8092
    %v8591 = vunpack.c.h.b16 %v8092
    %v8592 = vunpack.c.l.b16 %v8093
    %v8593 = vunpack.c.l.b16 %v8094
    %v8594 = vunpack.c.h.b16 %v8094
    %v8595 = vunpack.c.l.b16 %v8095
    %v8596 = vunpack.c.l.b16 %v8096
    %v8597 = vunpack.c.h.b16 %v8096
    %v8598 = vunpack.c.l.b16 %v8097
    %v8599 = vunpack.c.l.b16 %v8098
    %v8600 = vunpack.c.h.b16 %v8098
    %v8601 = vunpack.c.l.b16 %v8099
    %v8602 = vunpack.c.l.b16 %v8100
    %v8603 = vunpack.c.h.b16 %v8100
    %v8604 = vunpack.c.l.b16 %v8101
    %v8605 = vunpack.c.l.b16 %v8102
    %v8606 = vunpack.c.h.b16 %v8102
    %v8607 = vunpack.c.l.b16 %v8103
    %v8608 = vunpack.c.l.b16 %v8104
    %v8609 = vunpack.c.h.b16 %v8104
    %v8610 = vunpack.c.l.b16 %v8105
    %v8611 = vunpack.c.l.b16 %v8106
    %v8612 = vunpack.c.h.b16 %v8106
    %v8613 = vunpack.c.l.b16 %v8107
    %v8614 = vunpack.c.l.b16 %v8108
    %v8615 = vunpack.c.h.b16 %v8108
    %v8616 = vunpack.c.l.b16 %v8109
    %v8617 = vunpack.c.l.b16 %v8110
    %v8618 = vunpack.c.h.b16 %v8110
    %v8619 = vunpack.c.l.b16 %v8111
    %v8620 = vunpack.c.l.b16 %v8112
    %v8621 = vunpack.c.h.b16 %v8112
    %v8622 = vunpack.c.l.b16 %v8113
    %v8623 = vunpack.c.l.b16 %v8114
    %v8624 = vunpack.c.h.b16 %v8114
    %v8625 = vunpack.c.l.b16 %v8115
    %v8626 = vunpack.c.l.b16 %v8116
    %v8627 = vunpack.c.h.b16 %v8116
    %v8628 = vunpack.c.l.b16 %v8117
    %v8629 = vunpack.c.l.b16 %v8118
    %v8630 = vunpack.c.h.b16 %v8118
    %v8631 = vunpack.c.l.b16 %v8119
    %v8632 = vunpack.c.l.b16 %v8120
    %v8633 = vunpack.c.h.b16 %v8120
    %v8634 = vunpack.c.l.b16 %v8121
    %v8635 = vunpack.c.l.b16 %v8122
    %v8636 = vunpack.c.h.b16 %v8122
    %v8637 = vunpack.c.l.b16 %v8123
    %v8638 = vunpack.c.l.b16 %v8124
    %v8639 = vunpack.c.h.b16 %v8124
    %v8640 = vunpack.c.l.b16 %v8125
    %v8641 = vunpack.c.l.b16 %v8126
    %v8642 = vunpack.c.h.b16 %v8126
    %v8643 = vunpack.c.l.b16 %v8127
    %v8644 = vunpack.c.l.b16 %v8128
    %v8645 = vunpack.c.h.b16 %v8128
    %v8646 = vunpack.c.l.b16 %v8129
    %v8647 = vunpack.c.l.b16 %v8130
    %v8648 = vunpack.c.h.b16 %v8130
    %v8649 = vunpack.c.l.b16 %v8131
    %v8650 = vunpack.c.l.b16 %v8132
    %v8651 = vunpack.c.h.b16 %v8132
    %v8652 = vunpack.c.l.b16 %v8133
    %v8653 = vunpack.c.l.b16 %v8134
    %v8654 = vunpack.c.h.b16 %v8134
    %v8655 = vunpack.c.l.b16 %v8135
    %v8656 = vunpack.c.l.b16 %v8136
    %v8657 = vunpack.c.h.b16 %v8136
    %v8658 = vunpack.c.l.b16 %v8137
    %v8659 = vunpack.c.l.b16 %v8138
    %v8660 = vunpack.c.h.b16 %v8138
    %v8661 = vunpack.c.l.b16 %v8139
    %v8662 = vpack.c.b16 %v8581, %v8578
    %v8663 = vpack.c.b16 %v8582, %v8579
    %v8664 = vpack.c.b16 %v8583, %v8580
    %v8665 = vpack.c.b16 %v8587, %v8584
    %v8666 = vpack.c.b16 %v8588, %v8585
    %v8667 = vpack.c.b16 %v8589, %v8586
    %v8668 = vpack.c.b16 %v8593, %v8590
    %v8669 = vpack.c.b16 %v8594, %v8591
    %v8670 = vpack.c.b16 %v8595, %v8592
    %v8671 = vpack.c.b16 %v8599, %v8596
    %v8672 = vpack.c.b16 %v8600, %v8597
    %v8673 = vpack.c.b16 %v8601, %v8598
    %v8674 = vpack.c.b16 %v8605, %v8602
    %v8675 = vpack.c.b16 %v8606, %v8603
    %v8676 = vpack.c.b16 %v8607, %v8604
    %v8677 = vpack.c.b16 %v8611, %v8608
    %v8678 = vpack.c.b16 %v8612, %v8609
    %v8679 = vpack.c.b16 %v8613, %v8610
    %v8680 = vpack.c.b16 %v8617, %v8614
    %v8681 = vpack.c.b16 %v8618, %v8615
    %v8682 = vpack.c.b16 %v8619, %v8616
    %v8683 = vpack.c.b16 %v8623, %v8620
    %v8684 = vpack.c.b16 %v8624, %v8621
    %v8685 = vpack.c.b16 %v8625, %v8622
    %v8686 = vpack.c.b16 %v8629, %v8626
    %v8687 = vpack.c.b16 %v8630, %v8627
    %v8688 = vpack.c.b16 %v8631, %v8628
    %v8689 = vpack.c.b16 %v8635, %v8632
    %v8690 = vpack.c.b16 %v8636, %v8633
    %v8691 = vpack.c.b16 %v8637, %v8634
    %v8692 = vpack.c.b16 %v8641, %v8638
    %v8693 = vpack.c.b16 %v8642, %v8639
    %v8694 = vpack.c.b16 %v8643, %v8640
    %v8695 = vpack.c.b16 %v8647, %v8644
    %v8696 = vpack.c.b16 %v8648, %v8645
    %v8697 = vpack.c.b16 %v8649, %v8646
    %v8698 = vpack.c.b16 %v8653, %v8650
    %v8699 = vpack.c.b16 %v8654, %v8651
    %v8700 = vpack.c.b16 %v8655, %v8652
    %v8701 = vpack.c.b16 %v8659, %v8656
    %v8702 = vpack.c.b16 %v8660, %v8657
    %v8703 = vpack.c.b16 %v8661, %v8658
    %v8746 = vsel %vm233, %v8083, 0
    %8748 = vmatpush.bf16.msra.mxu0 %v8683
    %8749 = vmatpush.bf16.msra.mxu0 %v8680
    %8750 = vmatpush.bf16.msra.mxu0 %v8677
    %8751 = vmatpush.bf16.msra.mxu0 %v8674
    %8752 = vmatpush.bf16.msra.mxu0 %v8671
    %8753 = vmatpush.bf16.msra.mxu0 %v8668
    %8754 = vmatpush.bf16.msra.mxu0 %v8665
    %8755 = vmatpush.bf16.msra.mxu0 %v8662
    %8756 = vmatmul.bf16.gmra.mxu0 %v8082
    %v8757 = vpop.f32.mrf.mxu0
    %v8758 = vadd.f32 %v8462, %v8757
    %v8759 = vpop.f32.mrf.mxu0
    %v8760 = vadd.f32 %v8464, %v8759
    %8761 = vdwg.mxu0
    %8762 = vmatpush.bf16.msra.mxu0 0
    %8763 = vmatpush.bf16.msra.mxu0 0
    %8764 = vmatpush.bf16.msra.mxu0 %v8701
    %8765 = vmatpush.bf16.msra.mxu0 %v8698
    %8766 = vmatpush.bf16.msra.mxu0 %v8695
    %8767 = vmatpush.bf16.msra.mxu0 %v8692
    %8768 = vmatpush.bf16.msra.mxu0 %v8689
    %8769 = vmatpush.bf16.msra.mxu0 %v8686
    %8770 = vmatmul.bf16.gmra.mxu0 %v8746
    %v8771 = vpop.f32.mrf.mxu0
    %v8772 = vadd.f32 %v8758, %v8771
    %v8773 = vpop.f32.mrf.mxu0
    %v8774 = vadd.f32 %v8760, %v8773
    %8775 = vdwg.mxu0
    %8776 = vmatpush.bf16.msra.mxu0 %v8684
    %8777 = vmatpush.bf16.msra.mxu0 %v8681
    %8778 = vmatpush.bf16.msra.mxu0 %v8678
    %8779 = vmatpush.bf16.msra.mxu0 %v8675
    %8780 = vmatpush.bf16.msra.mxu0 %v8672
    %8781 = vmatpush.bf16.msra.mxu0 %v8669
    %8782 = vmatpush.bf16.msra.mxu0 %v8666
    %8783 = vmatpush.bf16.msra.mxu0 %v8663
    %8784 = vmatmul.bf16.gmra.mxu0 %v8082
    %v8785 = vpop.f32.mrf.mxu0
    %v8786 = vadd.f32 %v8490, %v8785
    %v8787 = vpop.f32.mrf.mxu0
    %v8788 = vadd.f32 %v8492, %v8787
    %8789 = vdwg.mxu0
    %8790 = vmatpush.bf16.msra.mxu0 0
    %8791 = vmatpush.bf16.msra.mxu0 0
    %8792 = vmatpush.bf16.msra.mxu0 %v8702
    %8793 = vmatpush.bf16.msra.mxu0 %v8699
    %8794 = vmatpush.bf16.msra.mxu0 %v8696
    %8795 = vmatpush.bf16.msra.mxu0 %v8693
    %8796 = vmatpush.bf16.msra.mxu0 %v8690
    %8797 = vmatpush.bf16.msra.mxu0 %v8687
    %8798 = vmatmul.bf16.gmra.mxu0 %v8746
    %v8799 = vpop.f32.mrf.mxu0
    %v8800 = vadd.f32 %v8786, %v8799
    %v8801 = vpop.f32.mrf.mxu0
    %v8802 = vadd.f32 %v8788, %v8801
    %8803 = vdwg.mxu0
    %8804 = vmatpush.bf16.msra.mxu0 %v8685
    %8805 = vmatpush.bf16.msra.mxu0 %v8682
    %8806 = vmatpush.bf16.msra.mxu0 %v8679
    %8807 = vmatpush.bf16.msra.mxu0 %v8676
    %8808 = vmatpush.bf16.msra.mxu0 %v8673
    %8809 = vmatpush.bf16.msra.mxu0 %v8670
    %8810 = vmatpush.bf16.msra.mxu0 %v8667
    %8811 = vmatpush.bf16.msra.mxu0 %v8664
    %8812 = vmatmul.bf16.gmra.mxu0 %v8082
    %v8813 = vpop.f32.mrf.mxu0
    %v8814 = vadd.f32 %v8518, %v8813
    %v8815 = vpop.f32.mrf.mxu0
    %v8816 = vadd.f32 %v8520, %v8815
    %8817 = vdwg.mxu0
    %8818 = vmatpush.bf16.msra.mxu0 0
    %8819 = vmatpush.bf16.msra.mxu0 0
    %8820 = vmatpush.bf16.msra.mxu0 %v8703
    %8821 = vmatpush.bf16.msra.mxu0 %v8700
    %8822 = vmatpush.bf16.msra.mxu0 %v8697
    %8823 = vmatpush.bf16.msra.mxu0 %v8694
    %8824 = vmatpush.bf16.msra.mxu0 %v8691
    %8825 = vmatpush.bf16.msra.mxu0 %v8688
    %8826 = vmatmul.bf16.gmra.mxu0 %v8746
    %v8827 = vpop.f32.mrf.mxu0
    %v8828 = vadd.f32 %v8814, %v8827
    %v8829 = vpop.f32.mrf.mxu0
    %v8830 = vadd.f32 %v8816, %v8829
    %8831 = vdwg.mxu0
    %v8832 = vld [vmem:[%s3130] sm:$0xff]
    %v8833 = vld [vmem:[%s3130 + $0x8] sm:$0xf]
    %v8834 = vld [vmem:[%s3130 + $0xc] sm:$0xff]
    %v8835 = vld [vmem:[%s3130 + $0x14] sm:$0xf]
    %v8836 = vld [vmem:[%s3130 + $0x18] sm:$0xff]
    %v8837 = vld [vmem:[%s3130 + $0x20] sm:$0xf]
    %v8838 = vld [vmem:[%s3130 + $0x24] sm:$0xff]
    %v8839 = vld [vmem:[%s3130 + $0x2c] sm:$0xf]
    %v8840 = vld [vmem:[%s3130 + $0x30] sm:$0xff]
    %v8841 = vld [vmem:[%s3130 + $0x38] sm:$0xf]
    %v8842 = vld [vmem:[%s3130 + $0x3c] sm:$0xff]
    %v8843 = vld [vmem:[%s3130 + $0x44] sm:$0xf]
    %v8844 = vld [vmem:[%s3130 + $0x48] sm:$0xff]
    %v8845 = vld [vmem:[%s3130 + $0x50] sm:$0xf]
    %v8846 = vld [vmem:[%s3130 + $0x54] sm:$0xff]
    %v8847 = vld [vmem:[%s3130 + $0x5c] sm:$0xf]
    %v8848 = vld [vmem:[%s3130 + $0x60] sm:$0xff]
    %v8849 = vld [vmem:[%s3130 + $0x68] sm:$0xf]
    %v8850 = vld [vmem:[%s3130 + $0x6c] sm:$0xff]
    %v8851 = vld [vmem:[%s3130 + $0x74] sm:$0xf]
    %v8852 = vld [vmem:[%s3130 + $0x78] sm:$0xff]
    %v8853 = vld [vmem:[%s3130 + $0x80] sm:$0xf]
    %v8854 = vld [vmem:[%s3130 + $0x84] sm:$0xff]
    %v8855 = vld [vmem:[%s3130 + $0x8c] sm:$0xf]
    %v8856 = vld [vmem:[%s3130 + $0x90] sm:$0xff]
    %v8857 = vld [vmem:[%s3130 + $0x98] sm:$0xf]
    %v8858 = vld [vmem:[%s3130 + $0x9c] sm:$0xff]
    %v8859 = vld [vmem:[%s3130 + $0xa4] sm:$0xf]
    %v8860 = vld [vmem:[%s3130 + $0xa8] sm:$0xff]
    %v8861 = vld [vmem:[%s3130 + $0xb0] sm:$0xf]
    %v8862 = vld [vmem:[%s3130 + $0xb4] sm:$0xff]
    %v8863 = vld [vmem:[%s3130 + $0xbc] sm:$0xf]
    %v8864 = vld [vmem:[%s3130 + $0xc0] sm:$0xff]
    %v8865 = vld [vmem:[%s3130 + $0xc8] sm:$0xf]
    %v8866 = vld [vmem:[%s3130 + $0xcc] sm:$0xff]
    %v8867 = vld [vmem:[%s3130 + $0xd4] sm:$0xf]
    %v8868 = vld [vmem:[%s3130 + $0xd8] sm:$0xff]
    %v8869 = vld [vmem:[%s3130 + $0xe0] sm:$0xf]
    %v8870 = vld [vmem:[%s3130 + $0xe4] sm:$0xff]
    %v8871 = vld [vmem:[%s3130 + $0xec] sm:$0xf]
    %v8872 = vld [vmem:[%s3130 + $0xf0] sm:$0xff]
    %v8873 = vld [vmem:[%s3130 + $0xf8] sm:$0xf]
    %v8874 = vld [vmem:[%s3130 + $0xfc] sm:$0xff]
    %v8875 = vld [vmem:[%s3130 + $0x104] sm:$0xf]
    %v8876 = vld [vmem:[%s3130 + $0x108] sm:$0xff]
    %v8877 = vld [vmem:[%s3130 + $0x110] sm:$0xf]
    %v8878 = vld [vmem:[%s3130 + $0x114] sm:$0xff]
    %v8879 = vld [vmem:[%s3130 + $0x11c] sm:$0xf]
    %v8880 = vld [vmem:[%s3130 + $0x120] sm:$0xff]
    %v8881 = vld [vmem:[%s3130 + $0x128] sm:$0xf]
    %v8882 = vld [vmem:[%s3130 + $0x12c] sm:$0xff]
    %v8883 = vld [vmem:[%s3130 + $0x134] sm:$0xf]
    %v8884 = vld [vmem:[%s3130 + $0x138] sm:$0xff]
    %v8885 = vld [vmem:[%s3130 + $0x140] sm:$0xf]
    %v8886 = vld [vmem:[%s3130 + $0x144] sm:$0xff]
    %v8887 = vld [vmem:[%s3130 + $0x14c] sm:$0xf]
    %v8890 = vrot.slane %v8082, 1
    %v8891 = vrot.slane %v8083, 1
    %v8949 = vunpack.c.l.b16 %v8832
    %v8950 = vunpack.c.h.b16 %v8832
    %v8951 = vunpack.c.l.b16 %v8833
    %v8952 = vunpack.c.l.b16 %v8834
    %v8953 = vunpack.c.h.b16 %v8834
    %v8954 = vunpack.c.l.b16 %v8835
    %v8955 = vunpack.c.l.b16 %v8836
    %v8956 = vunpack.c.h.b16 %v8836
    %v8957 = vunpack.c.l.b16 %v8837
    %v8958 = vunpack.c.l.b16 %v8838
    %v8959 = vunpack.c.h.b16 %v8838
    %v8960 = vunpack.c.l.b16 %v8839
    %v8961 = vunpack.c.l.b16 %v8840
    %v8962 = vunpack.c.h.b16 %v8840
    %v8963 = vunpack.c.l.b16 %v8841
    %v8964 = vunpack.c.l.b16 %v8842
    %v8965 = vunpack.c.h.b16 %v8842
    %v8966 = vunpack.c.l.b16 %v8843
    %v8967 = vunpack.c.l.b16 %v8844
    %v8968 = vunpack.c.h.b16 %v8844
    %v8969 = vunpack.c.l.b16 %v8845
    %v8970 = vunpack.c.l.b16 %v8846
    %v8971 = vunpack.c.h.b16 %v8846
    %v8972 = vunpack.c.l.b16 %v8847
    %v8973 = vunpack.c.l.b16 %v8848
    %v8974 = vunpack.c.h.b16 %v8848
    %v8975 = vunpack.c.l.b16 %v8849
    %v8976 = vunpack.c.l.b16 %v8850
    %v8977 = vunpack.c.h.b16 %v8850
    %v8978 = vunpack.c.l.b16 %v8851
    %v8979 = vunpack.c.l.b16 %v8852
    %v8980 = vunpack.c.h.b16 %v8852
    %v8981 = vunpack.c.l.b16 %v8853
    %v8982 = vunpack.c.l.b16 %v8854
    %v8983 = vunpack.c.h.b16 %v8854
    %v8984 = vunpack.c.l.b16 %v8855
    %v8985 = vunpack.c.l.b16 %v8856
    %v8986 = vunpack.c.h.b16 %v8856
    %v8987 = vunpack.c.l.b16 %v8857
    %v8988 = vunpack.c.l.b16 %v8858
    %v8989 = vunpack.c.h.b16 %v8858
    %v8990 = vunpack.c.l.b16 %v8859
    %v8991 = vunpack.c.l.b16 %v8860
    %v8992 = vunpack.c.h.b16 %v8860
    %v8993 = vunpack.c.l.b16 %v8861
    %v8994 = vunpack.c.l.b16 %v8862
    %v8995 = vunpack.c.h.b16 %v8862
    %v8996 = vunpack.c.l.b16 %v8863
    %v8997 = vunpack.c.l.b16 %v8864
    %v8998 = vunpack.c.h.b16 %v8864
    %v8999 = vunpack.c.l.b16 %v8865
    %v9000 = vunpack.c.l.b16 %v8866
    %v9001 = vunpack.c.h.b16 %v8866
    %v9002 = vunpack.c.l.b16 %v8867
    %v9003 = vunpack.c.l.b16 %v8868
    %v9004 = vunpack.c.h.b16 %v8868
    %v9005 = vunpack.c.l.b16 %v8869
    %v9006 = vunpack.c.l.b16 %v8870
    %v9007 = vunpack.c.h.b16 %v8870
    %v9008 = vunpack.c.l.b16 %v8871
    %v9009 = vunpack.c.l.b16 %v8872
    %v9010 = vunpack.c.h.b16 %v8872
    %v9011 = vunpack.c.l.b16 %v8873
    %v9012 = vunpack.c.l.b16 %v8874
    %v9013 = vunpack.c.h.b16 %v8874
    %v9014 = vunpack.c.l.b16 %v8875
    %v9015 = vunpack.c.l.b16 %v8876
    %v9016 = vunpack.c.h.b16 %v8876
    %v9017 = vunpack.c.l.b16 %v8877
    %v9018 = vunpack.c.l.b16 %v8878
    %v9019 = vunpack.c.h.b16 %v8878
    %v9020 = vunpack.c.l.b16 %v8879
    %v9021 = vunpack.c.l.b16 %v8880
    %v9022 = vunpack.c.h.b16 %v8880
    %v9023 = vunpack.c.l.b16 %v8881
    %v9024 = vunpack.c.l.b16 %v8882
    %v9025 = vunpack.c.h.b16 %v8882
    %v9026 = vunpack.c.l.b16 %v8883
    %v9027 = vunpack.c.l.b16 %v8884
    %v9028 = vunpack.c.h.b16 %v8884
    %v9029 = vunpack.c.l.b16 %v8885
    %v9030 = vunpack.c.l.b16 %v8886
    %v9031 = vunpack.c.h.b16 %v8886
    %v9032 = vunpack.c.l.b16 %v8887
    %v9033 = vpack.c.b16 %v8952, %v8949
    %v9034 = vpack.c.b16 %v8953, %v8950
    %v9035 = vpack.c.b16 %v8954, %v8951
    %v9036 = vpack.c.b16 %v8958, %v8955
    %v9037 = vpack.c.b16 %v8959, %v8956
    %v9038 = vpack.c.b16 %v8960, %v8957
    %v9039 = vpack.c.b16 %v8964, %v8961
    %v9040 = vpack.c.b16 %v8965, %v8962
    %v9041 = vpack.c.b16 %v8966, %v8963
    %v9042 = vpack.c.b16 %v8970, %v8967
    %v9043 = vpack.c.b16 %v8971, %v8968
    %v9044 = vpack.c.b16 %v8972, %v8969
    %v9045 = vpack.c.b16 %v8976, %v8973
    %v9046 = vpack.c.b16 %v8977, %v8974
    %v9047 = vpack.c.b16 %v8978, %v8975
    %v9048 = vpack.c.b16 %v8982, %v8979
    %v9049 = vpack.c.b16 %v8983, %v8980
    %v9050 = vpack.c.b16 %v8984, %v8981
    %v9051 = vpack.c.b16 %v8988, %v8985
    %v9052 = vpack.c.b16 %v8989, %v8986
    %v9053 = vpack.c.b16 %v8990, %v8987
    %v9054 = vpack.c.b16 %v8994, %v8991
    %v9055 = vpack.c.b16 %v8995, %v8992
    %v9056 = vpack.c.b16 %v8996, %v8993
    %v9057 = vpack.c.b16 %v9000, %v8997
    %v9058 = vpack.c.b16 %v9001, %v8998
    %v9059 = vpack.c.b16 %v9002, %v8999
    %v9060 = vpack.c.b16 %v9006, %v9003
    %v9061 = vpack.c.b16 %v9007, %v9004
    %v9062 = vpack.c.b16 %v9008, %v9005
    %v9063 = vpack.c.b16 %v9012, %v9009
    %v9064 = vpack.c.b16 %v9013, %v9010
    %v9065 = vpack.c.b16 %v9014, %v9011
    %v9066 = vpack.c.b16 %v9018, %v9015
    %v9067 = vpack.c.b16 %v9019, %v9016
    %v9068 = vpack.c.b16 %v9020, %v9017
    %v9069 = vpack.c.b16 %v9024, %v9021
    %v9070 = vpack.c.b16 %v9025, %v9022
    %v9071 = vpack.c.b16 %v9026, %v9023
    %v9072 = vpack.c.b16 %v9030, %v9027
    %v9073 = vpack.c.b16 %v9031, %v9028
    %v9074 = vpack.c.b16 %v9032, %v9029
    %v9118 = vsel %vm233, %v8891, 0
    %9120 = vmatpush.bf16.msra.mxu0 %v9054
    %9121 = vmatpush.bf16.msra.mxu0 %v9051
    %9122 = vmatpush.bf16.msra.mxu0 %v9048
    %9123 = vmatpush.bf16.msra.mxu0 %v9045
    %9124 = vmatpush.bf16.msra.mxu0 %v9042
    %9125 = vmatpush.bf16.msra.mxu0 %v9039
    %9126 = vmatpush.bf16.msra.mxu0 %v9036
    %9127 = vmatpush.bf16.msra.mxu0 %v9033
    %9128 = vmatmul.bf16.gmra.mxu0 %v8890
    %v9129 = vpop.f32.mrf.mxu0
    %v9130 = vadd.f32 0.0, %v9129
    %v9131 = vpop.f32.mrf.mxu0
    %v9132 = vadd.f32 0.0, %v9131
    %9133 = vdwg.mxu0
    %9134 = vmatpush.bf16.msra.mxu0 0
    %9135 = vmatpush.bf16.msra.mxu0 0
    %9136 = vmatpush.bf16.msra.mxu0 %v9072
    %9137 = vmatpush.bf16.msra.mxu0 %v9069
    %9138 = vmatpush.bf16.msra.mxu0 %v9066
    %9139 = vmatpush.bf16.msra.mxu0 %v9063
    %9140 = vmatpush.bf16.msra.mxu0 %v9060
    %9141 = vmatpush.bf16.msra.mxu0 %v9057
    %9142 = vmatmul.bf16.gmra.mxu0 %v9118
    %v9143 = vpop.f32.mrf.mxu0
    %v9144 = vadd.f32 %v9130, %v9143
    %v9145 = vpop.f32.mrf.mxu0
    %v9146 = vadd.f32 %v9132, %v9145
    %9147 = vdwg.mxu0
    %9148 = vmatpush.bf16.msra.mxu0 %v9055
    %9149 = vmatpush.bf16.msra.mxu0 %v9052
    %9150 = vmatpush.bf16.msra.mxu0 %v9049
    %9151 = vmatpush.bf16.msra.mxu0 %v9046
    %9152 = vmatpush.bf16.msra.mxu0 %v9043
    %9153 = vmatpush.bf16.msra.mxu0 %v9040
    %9154 = vmatpush.bf16.msra.mxu0 %v9037
    %9155 = vmatpush.bf16.msra.mxu0 %v9034
    %9156 = vmatmul.bf16.gmra.mxu0 %v8890
    %v9157 = vpop.f32.mrf.mxu0
    %v9158 = vadd.f32 0.0, %v9157
    %v9159 = vpop.f32.mrf.mxu0
    %v9160 = vadd.f32 0.0, %v9159
    %9161 = vdwg.mxu0
    %9162 = vmatpush.bf16.msra.mxu0 0
    %9163 = vmatpush.bf16.msra.mxu0 0
    %9164 = vmatpush.bf16.msra.mxu0 %v9073
    %9165 = vmatpush.bf16.msra.mxu0 %v9070
    %9166 = vmatpush.bf16.msra.mxu0 %v9067
    %9167 = vmatpush.bf16.msra.mxu0 %v9064
    %9168 = vmatpush.bf16.msra.mxu0 %v9061
    %9169 = vmatpush.bf16.msra.mxu0 %v9058
    %9170 = vmatmul.bf16.gmra.mxu0 %v9118
    %v9171 = vpop.f32.mrf.mxu0
    %v9172 = vadd.f32 %v9158, %v9171
    %v9173 = vpop.f32.mrf.mxu0
    %v9174 = vadd.f32 %v9160, %v9173
    %9175 = vdwg.mxu0
    %9176 = vmatpush.bf16.msra.mxu0 %v9056
    %9177 = vmatpush.bf16.msra.mxu0 %v9053
    %9178 = vmatpush.bf16.msra.mxu0 %v9050
    %9179 = vmatpush.bf16.msra.mxu0 %v9047
    %9180 = vmatpush.bf16.msra.mxu0 %v9044
    %9181 = vmatpush.bf16.msra.mxu0 %v9041
    %9182 = vmatpush.bf16.msra.mxu0 %v9038
    %9183 = vmatpush.bf16.msra.mxu0 %v9035
    %9184 = vmatmul.bf16.gmra.mxu0 %v8890
    %v9185 = vpop.f32.mrf.mxu0
    %v9186 = vadd.f32 0.0, %v9185
    %v9187 = vpop.f32.mrf.mxu0
    %v9188 = vadd.f32 0.0, %v9187
    %9189 = vdwg.mxu0
    %9190 = vmatpush.bf16.msra.mxu0 0
    %9191 = vmatpush.bf16.msra.mxu0 0
    %9192 = vmatpush.bf16.msra.mxu0 %v9074
    %9193 = vmatpush.bf16.msra.mxu0 %v9071
    %9194 = vmatpush.bf16.msra.mxu0 %v9068
    %9195 = vmatpush.bf16.msra.mxu0 %v9065
    %9196 = vmatpush.bf16.msra.mxu0 %v9062
    %9197 = vmatpush.bf16.msra.mxu0 %v9059
    %9198 = vmatmul.bf16.gmra.mxu0 %v9118
    %v9199 = vpop.f32.mrf.mxu0
    %v9200 = vadd.f32 %v9186, %v9199
    %v9201 = vpop.f32.mrf.mxu0
    %v9202 = vadd.f32 %v9188, %v9201
    %9203 = vdwg.mxu0
    %v9204 = vadd.f32 %v8772, %v9144
    %v9205 = vadd.f32 %v8800, %v9172
    %v9206 = vadd.f32 %v8828, %v9200
    %v9207 = vadd.f32 %v8774, %v9146
    %v9208 = vadd.f32 %v8802, %v9174
    %v9209 = vadd.f32 %v8830, %v9202
    %v9210 = vld [vmem:[%s3509] sm:$0xff]
    %v9211 = vld [vmem:[%s3509 + $0x8] sm:$0xf]
    %v9212 = vld [vmem:[%s3509 + $0xc] sm:$0xff]
    %v9213 = vld [vmem:[%s3509 + $0x14] sm:$0xf]
    %v9214 = vld [vmem:[%s3509 + $0x18] sm:$0xff]
    %v9215 = vld [vmem:[%s3509 + $0x20] sm:$0xf]
    %v9216 = vld [vmem:[%s3509 + $0x24] sm:$0xff]
    %v9217 = vld [vmem:[%s3509 + $0x2c] sm:$0xf]
    %v9218 = vld [vmem:[%s3509 + $0x30] sm:$0xff]
    %v9219 = vld [vmem:[%s3509 + $0x38] sm:$0xf]
    %v9220 = vld [vmem:[%s3509 + $0x3c] sm:$0xff]
    %v9221 = vld [vmem:[%s3509 + $0x44] sm:$0xf]
    %v9222 = vld [vmem:[%s3509 + $0x48] sm:$0xff]
    %v9223 = vld [vmem:[%s3509 + $0x50] sm:$0xf]
    %v9224 = vld [vmem:[%s3509 + $0x54] sm:$0xff]
    %v9225 = vld [vmem:[%s3509 + $0x5c] sm:$0xf]
    %v9226 = vld [vmem:[%s3509 + $0x60] sm:$0xff]
    %v9227 = vld [vmem:[%s3509 + $0x68] sm:$0xf]
    %v9228 = vld [vmem:[%s3509 + $0x6c] sm:$0xff]
    %v9229 = vld [vmem:[%s3509 + $0x74] sm:$0xf]
    %v9230 = vld [vmem:[%s3509 + $0x78] sm:$0xff]
    %v9231 = vld [vmem:[%s3509 + $0x80] sm:$0xf]
    %v9232 = vld [vmem:[%s3509 + $0x84] sm:$0xff]
    %v9233 = vld [vmem:[%s3509 + $0x8c] sm:$0xf]
    %v9234 = vld [vmem:[%s3509 + $0x90] sm:$0xff]
    %v9235 = vld [vmem:[%s3509 + $0x98] sm:$0xf]
    %v9236 = vld [vmem:[%s3509 + $0x9c] sm:$0xff]
    %v9237 = vld [vmem:[%s3509 + $0xa4] sm:$0xf]
    %v9238 = vld [vmem:[%s3509 + $0xa8] sm:$0xff]
    %v9239 = vld [vmem:[%s3509 + $0xb0] sm:$0xf]
    %v9240 = vld [vmem:[%s3509 + $0xb4] sm:$0xff]
    %v9241 = vld [vmem:[%s3509 + $0xbc] sm:$0xf]
    %v9242 = vld [vmem:[%s3509 + $0xc0] sm:$0xff]
    %v9243 = vld [vmem:[%s3509 + $0xc8] sm:$0xf]
    %v9244 = vld [vmem:[%s3509 + $0xcc] sm:$0xff]
    %v9245 = vld [vmem:[%s3509 + $0xd4] sm:$0xf]
    %v9246 = vld [vmem:[%s3509 + $0xd8] sm:$0xff]
    %v9247 = vld [vmem:[%s3509 + $0xe0] sm:$0xf]
    %v9248 = vld [vmem:[%s3509 + $0xe4] sm:$0xff]
    %v9249 = vld [vmem:[%s3509 + $0xec] sm:$0xf]
    %v9250 = vld [vmem:[%s3509 + $0xf0] sm:$0xff]
    %v9251 = vld [vmem:[%s3509 + $0xf8] sm:$0xf]
    %v9252 = vld [vmem:[%s3509 + $0xfc] sm:$0xff]
    %v9253 = vld [vmem:[%s3509 + $0x104] sm:$0xf]
    %v9254 = vld [vmem:[%s3509 + $0x108] sm:$0xff]
    %v9255 = vld [vmem:[%s3509 + $0x110] sm:$0xf]
    %v9256 = vld [vmem:[%s3509 + $0x114] sm:$0xff]
    %v9257 = vld [vmem:[%s3509 + $0x11c] sm:$0xf]
    %v9258 = vld [vmem:[%s3509 + $0x120] sm:$0xff]
    %v9259 = vld [vmem:[%s3509 + $0x128] sm:$0xf]
    %v9260 = vld [vmem:[%s3509 + $0x12c] sm:$0xff]
    %v9261 = vld [vmem:[%s3509 + $0x134] sm:$0xf]
    %v9262 = vld [vmem:[%s3509 + $0x138] sm:$0xff]
    %v9263 = vld [vmem:[%s3509 + $0x140] sm:$0xf]
    %v9264 = vld [vmem:[%s3509 + $0x144] sm:$0xff]
    %v9265 = vld [vmem:[%s3509 + $0x14c] sm:$0xf]
    %v9266 = vrot.slane %v8197, 1
    %v9267 = vrot.slane %v8199, 2
    %v9268 = vor.u32 %v9266, %v9267
    %v9269 = vrot.slane %v8204, 1
    %v9270 = vrot.slane %v8206, 2
    %v9271 = vor.u32 %v9269, %v9270
    %v9329 = vunpack.c.l.b16 %v9210
    %v9330 = vunpack.c.h.b16 %v9210
    %v9331 = vunpack.c.l.b16 %v9211
    %v9332 = vunpack.c.l.b16 %v9212
    %v9333 = vunpack.c.h.b16 %v9212
    %v9334 = vunpack.c.l.b16 %v9213
    %v9335 = vunpack.c.l.b16 %v9214
    %v9336 = vunpack.c.h.b16 %v9214
    %v9337 = vunpack.c.l.b16 %v9215
    %v9338 = vunpack.c.l.b16 %v9216
    %v9339 = vunpack.c.h.b16 %v9216
    %v9340 = vunpack.c.l.b16 %v9217
    %v9341 = vunpack.c.l.b16 %v9218
    %v9342 = vunpack.c.h.b16 %v9218
    %v9343 = vunpack.c.l.b16 %v9219
    %v9344 = vunpack.c.l.b16 %v9220
    %v9345 = vunpack.c.h.b16 %v9220
    %v9346 = vunpack.c.l.b16 %v9221
    %v9347 = vunpack.c.l.b16 %v9222
    %v9348 = vunpack.c.h.b16 %v9222
    %v9349 = vunpack.c.l.b16 %v9223
    %v9350 = vunpack.c.l.b16 %v9224
    %v9351 = vunpack.c.h.b16 %v9224
    %v9352 = vunpack.c.l.b16 %v9225
    %v9353 = vunpack.c.l.b16 %v9226
    %v9354 = vunpack.c.h.b16 %v9226
    %v9355 = vunpack.c.l.b16 %v9227
    %v9356 = vunpack.c.l.b16 %v9228
    %v9357 = vunpack.c.h.b16 %v9228
    %v9358 = vunpack.c.l.b16 %v9229
    %v9359 = vunpack.c.l.b16 %v9230
    %v9360 = vunpack.c.h.b16 %v9230
    %v9361 = vunpack.c.l.b16 %v9231
    %v9362 = vunpack.c.l.b16 %v9232
    %v9363 = vunpack.c.h.b16 %v9232
    %v9364 = vunpack.c.l.b16 %v9233
    %v9365 = vunpack.c.l.b16 %v9234
    %v9366 = vunpack.c.h.b16 %v9234
    %v9367 = vunpack.c.l.b16 %v9235
    %v9368 = vunpack.c.l.b16 %v9236
    %v9369 = vunpack.c.h.b16 %v9236
    %v9370 = vunpack.c.l.b16 %v9237
    %v9371 = vunpack.c.l.b16 %v9238
    %v9372 = vunpack.c.h.b16 %v9238
    %v9373 = vunpack.c.l.b16 %v9239
    %v9374 = vunpack.c.l.b16 %v9240
    %v9375 = vunpack.c.h.b16 %v9240
    %v9376 = vunpack.c.l.b16 %v9241
    %v9377 = vunpack.c.l.b16 %v9242
    %v9378 = vunpack.c.h.b16 %v9242
    %v9379 = vunpack.c.l.b16 %v9243
    %v9380 = vunpack.c.l.b16 %v9244
    %v9381 = vunpack.c.h.b16 %v9244
    %v9382 = vunpack.c.l.b16 %v9245
    %v9383 = vunpack.c.l.b16 %v9246
    %v9384 = vunpack.c.h.b16 %v9246
    %v9385 = vunpack.c.l.b16 %v9247
    %v9386 = vunpack.c.l.b16 %v9248
    %v9387 = vunpack.c.h.b16 %v9248
    %v9388 = vunpack.c.l.b16 %v9249
    %v9389 = vunpack.c.l.b16 %v9250
    %v9390 = vunpack.c.h.b16 %v9250
    %v9391 = vunpack.c.l.b16 %v9251
    %v9392 = vunpack.c.l.b16 %v9252
    %v9393 = vunpack.c.h.b16 %v9252
    %v9394 = vunpack.c.l.b16 %v9253
    %v9395 = vunpack.c.l.b16 %v9254
    %v9396 = vunpack.c.h.b16 %v9254
    %v9397 = vunpack.c.l.b16 %v9255
    %v9398 = vunpack.c.l.b16 %v9256
    %v9399 = vunpack.c.h.b16 %v9256
    %v9400 = vunpack.c.l.b16 %v9257
    %v9401 = vunpack.c.l.b16 %v9258
    %v9402 = vunpack.c.h.b16 %v9258
    %v9403 = vunpack.c.l.b16 %v9259
    %v9404 = vunpack.c.l.b16 %v9260
    %v9405 = vunpack.c.h.b16 %v9260
    %v9406 = vunpack.c.l.b16 %v9261
    %v9407 = vunpack.c.l.b16 %v9262
    %v9408 = vunpack.c.h.b16 %v9262
    %v9409 = vunpack.c.l.b16 %v9263
    %v9410 = vunpack.c.l.b16 %v9264
    %v9411 = vunpack.c.h.b16 %v9264
    %v9412 = vunpack.c.l.b16 %v9265
    %v9413 = vpack.c.b16 %v9332, %v9329
    %v9414 = vpack.c.b16 %v9333, %v9330
    %v9415 = vpack.c.b16 %v9334, %v9331
    %v9416 = vpack.c.b16 %v9338, %v9335
    %v9417 = vpack.c.b16 %v9339, %v9336
    %v9418 = vpack.c.b16 %v9340, %v9337
    %v9419 = vpack.c.b16 %v9344, %v9341
    %v9420 = vpack.c.b16 %v9345, %v9342
    %v9421 = vpack.c.b16 %v9346, %v9343
    %v9422 = vpack.c.b16 %v9350, %v9347
    %v9423 = vpack.c.b16 %v9351, %v9348
    %v9424 = vpack.c.b16 %v9352, %v9349
    %v9425 = vpack.c.b16 %v9356, %v9353
    %v9426 = vpack.c.b16 %v9357, %v9354
    %v9427 = vpack.c.b16 %v9358, %v9355
    %v9428 = vpack.c.b16 %v9362, %v9359
    %v9429 = vpack.c.b16 %v9363, %v9360
    %v9430 = vpack.c.b16 %v9364, %v9361
    %v9431 = vpack.c.b16 %v9368, %v9365
    %v9432 = vpack.c.b16 %v9369, %v9366
    %v9433 = vpack.c.b16 %v9370, %v9367
    %v9434 = vpack.c.b16 %v9374, %v9371
    %v9435 = vpack.c.b16 %v9375, %v9372
    %v9436 = vpack.c.b16 %v9376, %v9373
    %v9437 = vpack.c.b16 %v9380, %v9377
    %v9438 = vpack.c.b16 %v9381, %v9378
    %v9439 = vpack.c.b16 %v9382, %v9379
    %v9440 = vpack.c.b16 %v9386, %v9383
    %v9441 = vpack.c.b16 %v9387, %v9384
    %v9442 = vpack.c.b16 %v9388, %v9385
    %v9443 = vpack.c.b16 %v9392, %v9389
    %v9444 = vpack.c.b16 %v9393, %v9390
    %v9445 = vpack.c.b16 %v9394, %v9391
    %v9446 = vpack.c.b16 %v9398, %v9395
    %v9447 = vpack.c.b16 %v9399, %v9396
    %v9448 = vpack.c.b16 %v9400, %v9397
    %v9449 = vpack.c.b16 %v9404, %v9401
    %v9450 = vpack.c.b16 %v9405, %v9402
    %v9451 = vpack.c.b16 %v9406, %v9403
    %v9452 = vpack.c.b16 %v9410, %v9407
    %v9453 = vpack.c.b16 %v9411, %v9408
    %v9454 = vpack.c.b16 %v9412, %v9409
    %v9498 = vsel %vm233, %v9271, 0
    %9500 = vmatpush.bf16.msra.mxu0 %v9434
    %9501 = vmatpush.bf16.msra.mxu0 %v9431
    %9502 = vmatpush.bf16.msra.mxu0 %v9428
    %9503 = vmatpush.bf16.msra.mxu0 %v9425
    %9504 = vmatpush.bf16.msra.mxu0 %v9422
    %9505 = vmatpush.bf16.msra.mxu0 %v9419
    %9506 = vmatpush.bf16.msra.mxu0 %v9416
    %9507 = vmatpush.bf16.msra.mxu0 %v9413
    %9508 = vmatmul.bf16.gmra.mxu0 %v9268
    %v9509 = vpop.f32.mrf.mxu0
    %v9510 = vadd.f32 0.0, %v9509
    %v9511 = vpop.f32.mrf.mxu0
    %v9512 = vadd.f32 0.0, %v9511
    %9513 = vdwg.mxu0
    %9514 = vmatpush.bf16.msra.mxu0 0
    %9515 = vmatpush.bf16.msra.mxu0 0
    %9516 = vmatpush.bf16.msra.mxu0 %v9452
    %9517 = vmatpush.bf16.msra.mxu0 %v9449
    %9518 = vmatpush.bf16.msra.mxu0 %v9446
    %9519 = vmatpush.bf16.msra.mxu0 %v9443
    %9520 = vmatpush.bf16.msra.mxu0 %v9440
    %9521 = vmatpush.bf16.msra.mxu0 %v9437
    %9522 = vmatmul.bf16.gmra.mxu0 %v9498
    %v9523 = vpop.f32.mrf.mxu0
    %v9524 = vadd.f32 %v9510, %v9523
    %v9525 = vpop.f32.mrf.mxu0
    %v9526 = vadd.f32 %v9512, %v9525
    %9527 = vdwg.mxu0
    %9528 = vmatpush.bf16.msra.mxu0 %v9435
    %9529 = vmatpush.bf16.msra.mxu0 %v9432
    %9530 = vmatpush.bf16.msra.mxu0 %v9429
    %9531 = vmatpush.bf16.msra.mxu0 %v9426
    %9532 = vmatpush.bf16.msra.mxu0 %v9423
    %9533 = vmatpush.bf16.msra.mxu0 %v9420
    %9534 = vmatpush.bf16.msra.mxu0 %v9417
    %9535 = vmatpush.bf16.msra.mxu0 %v9414
    %9536 = vmatmul.bf16.gmra.mxu0 %v9268
    %v9537 = vpop.f32.mrf.mxu0
    %v9538 = vadd.f32 0.0, %v9537
    %v9539 = vpop.f32.mrf.mxu0
    %v9540 = vadd.f32 0.0, %v9539
    %9541 = vdwg.mxu0
    %9542 = vmatpush.bf16.msra.mxu0 0
    %9543 = vmatpush.bf16.msra.mxu0 0
    %9544 = vmatpush.bf16.msra.mxu0 %v9453
    %9545 = vmatpush.bf16.msra.mxu0 %v9450
    %9546 = vmatpush.bf16.msra.mxu0 %v9447
    %9547 = vmatpush.bf16.msra.mxu0 %v9444
    %9548 = vmatpush.bf16.msra.mxu0 %v9441
    %9549 = vmatpush.bf16.msra.mxu0 %v9438
    %9550 = vmatmul.bf16.gmra.mxu0 %v9498
    %v9551 = vpop.f32.mrf.mxu0
    %v9552 = vadd.f32 %v9538, %v9551
    %v9553 = vpop.f32.mrf.mxu0
    %v9554 = vadd.f32 %v9540, %v9553
    %9555 = vdwg.mxu0
    %9556 = vmatpush.bf16.msra.mxu0 %v9436
    %9557 = vmatpush.bf16.msra.mxu0 %v9433
    %9558 = vmatpush.bf16.msra.mxu0 %v9430
    %9559 = vmatpush.bf16.msra.mxu0 %v9427
    %9560 = vmatpush.bf16.msra.mxu0 %v9424
    %9561 = vmatpush.bf16.msra.mxu0 %v9421
    %9562 = vmatpush.bf16.msra.mxu0 %v9418
    %9563 = vmatpush.bf16.msra.mxu0 %v9415
    %9564 = vmatmul.bf16.gmra.mxu0 %v9268
    %v9565 = vpop.f32.mrf.mxu0
    %v9566 = vadd.f32 0.0, %v9565
    %v9567 = vpop.f32.mrf.mxu0
    %v9568 = vadd.f32 0.0, %v9567
    %9569 = vdwg.mxu0
    %9570 = vmatpush.bf16.msra.mxu0 0
    %9571 = vmatpush.bf16.msra.mxu0 0
    %9572 = vmatpush.bf16.msra.mxu0 %v9454
    %9573 = vmatpush.bf16.msra.mxu0 %v9451
    %9574 = vmatpush.bf16.msra.mxu0 %v9448
    %9575 = vmatpush.bf16.msra.mxu0 %v9445
    %9576 = vmatpush.bf16.msra.mxu0 %v9442
    %9577 = vmatpush.bf16.msra.mxu0 %v9439
    %9578 = vmatmul.bf16.gmra.mxu0 %v9498
    %v9579 = vpop.f32.mrf.mxu0
    %v9580 = vadd.f32 %v9566, %v9579
    %v9581 = vpop.f32.mrf.mxu0
    %v9582 = vadd.f32 %v9568, %v9581
    %9583 = vdwg.mxu0
    %v9584 = vadd.f32 %v9204, %v9524
    %v9585 = vadd.f32 %v9205, %v9552
    %v9586 = vadd.f32 %v9206, %v9580
    %v9587 = vadd.f32 %v9207, %v9526
    %v9588 = vadd.f32 %v9208, %v9554
    %v9589 = vadd.f32 %v9209, %v9582
    %v9590 = vld [vmem:[%s3890] sm:$0xff]
    %v9591 = vld [vmem:[%s3890 + $0x8] sm:$0xf]
    %v9592 = vld [vmem:[%s3890 + $0xc] sm:$0xff]
    %v9593 = vld [vmem:[%s3890 + $0x14] sm:$0xf]
    %v9594 = vld [vmem:[%s3890 + $0x18] sm:$0xff]
    %v9595 = vld [vmem:[%s3890 + $0x20] sm:$0xf]
    %v9596 = vld [vmem:[%s3890 + $0x24] sm:$0xff]
    %v9597 = vld [vmem:[%s3890 + $0x2c] sm:$0xf]
    %v9598 = vld [vmem:[%s3890 + $0x30] sm:$0xff]
    %v9599 = vld [vmem:[%s3890 + $0x38] sm:$0xf]
    %v9600 = vld [vmem:[%s3890 + $0x3c] sm:$0xff]
    %v9601 = vld [vmem:[%s3890 + $0x44] sm:$0xf]
    %v9602 = vld [vmem:[%s3890 + $0x48] sm:$0xff]
    %v9603 = vld [vmem:[%s3890 + $0x50] sm:$0xf]
    %v9604 = vld [vmem:[%s3890 + $0x54] sm:$0xff]
    %v9605 = vld [vmem:[%s3890 + $0x5c] sm:$0xf]
    %v9606 = vld [vmem:[%s3890 + $0x60] sm:$0xff]
    %v9607 = vld [vmem:[%s3890 + $0x68] sm:$0xf]
    %v9608 = vld [vmem:[%s3890 + $0x6c] sm:$0xff]
    %v9609 = vld [vmem:[%s3890 + $0x74] sm:$0xf]
    %v9610 = vld [vmem:[%s3890 + $0x78] sm:$0xff]
    %v9611 = vld [vmem:[%s3890 + $0x80] sm:$0xf]
    %v9612 = vld [vmem:[%s3890 + $0x84] sm:$0xff]
    %v9613 = vld [vmem:[%s3890 + $0x8c] sm:$0xf]
    %v9614 = vld [vmem:[%s3890 + $0x90] sm:$0xff]
    %v9615 = vld [vmem:[%s3890 + $0x98] sm:$0xf]
    %v9616 = vld [vmem:[%s3890 + $0x9c] sm:$0xff]
    %v9617 = vld [vmem:[%s3890 + $0xa4] sm:$0xf]
    %v9618 = vld [vmem:[%s3890 + $0xa8] sm:$0xff]
    %v9619 = vld [vmem:[%s3890 + $0xb0] sm:$0xf]
    %v9620 = vld [vmem:[%s3890 + $0xb4] sm:$0xff]
    %v9621 = vld [vmem:[%s3890 + $0xbc] sm:$0xf]
    %v9622 = vld [vmem:[%s3890 + $0xc0] sm:$0xff]
    %v9623 = vld [vmem:[%s3890 + $0xc8] sm:$0xf]
    %v9624 = vld [vmem:[%s3890 + $0xcc] sm:$0xff]
    %v9625 = vld [vmem:[%s3890 + $0xd4] sm:$0xf]
    %v9626 = vld [vmem:[%s3890 + $0xd8] sm:$0xff]
    %v9627 = vld [vmem:[%s3890 + $0xe0] sm:$0xf]
    %v9628 = vld [vmem:[%s3890 + $0xe4] sm:$0xff]
    %v9629 = vld [vmem:[%s3890 + $0xec] sm:$0xf]
    %v9630 = vld [vmem:[%s3890 + $0xf0] sm:$0xff]
    %v9631 = vld [vmem:[%s3890 + $0xf8] sm:$0xf]
    %v9632 = vld [vmem:[%s3890 + $0xfc] sm:$0xff]
    %v9633 = vld [vmem:[%s3890 + $0x104] sm:$0xf]
    %v9634 = vld [vmem:[%s3890 + $0x108] sm:$0xff]
    %v9635 = vld [vmem:[%s3890 + $0x110] sm:$0xf]
    %v9636 = vld [vmem:[%s3890 + $0x114] sm:$0xff]
    %v9637 = vld [vmem:[%s3890 + $0x11c] sm:$0xf]
    %v9638 = vld [vmem:[%s3890 + $0x120] sm:$0xff]
    %v9639 = vld [vmem:[%s3890 + $0x128] sm:$0xf]
    %v9640 = vld [vmem:[%s3890 + $0x12c] sm:$0xff]
    %v9641 = vld [vmem:[%s3890 + $0x134] sm:$0xf]
    %v9642 = vld [vmem:[%s3890 + $0x138] sm:$0xff]
    %v9643 = vld [vmem:[%s3890 + $0x140] sm:$0xf]
    %v9644 = vld [vmem:[%s3890 + $0x144] sm:$0xff]
    %v9645 = vld [vmem:[%s3890 + $0x14c] sm:$0xf]
    %v9646 = vrot.slane %v8082, 2
    %v9647 = vrot.slane %v8083, 2
    %v9705 = vunpack.c.l.b16 %v9590
    %v9706 = vunpack.c.h.b16 %v9590
    %v9707 = vunpack.c.l.b16 %v9591
    %v9708 = vunpack.c.l.b16 %v9592
    %v9709 = vunpack.c.h.b16 %v9592
    %v9710 = vunpack.c.l.b16 %v9593
    %v9711 = vunpack.c.l.b16 %v9594
    %v9712 = vunpack.c.h.b16 %v9594
    %v9713 = vunpack.c.l.b16 %v9595
    %v9714 = vunpack.c.l.b16 %v9596
    %v9715 = vunpack.c.h.b16 %v9596
    %v9716 = vunpack.c.l.b16 %v9597
    %v9717 = vunpack.c.l.b16 %v9598
    %v9718 = vunpack.c.h.b16 %v9598
    %v9719 = vunpack.c.l.b16 %v9599
    %v9720 = vunpack.c.l.b16 %v9600
    %v9721 = vunpack.c.h.b16 %v9600
    %v9722 = vunpack.c.l.b16 %v9601
    %v9723 = vunpack.c.l.b16 %v9602
    %v9724 = vunpack.c.h.b16 %v9602
    %v9725 = vunpack.c.l.b16 %v9603
    %v9726 = vunpack.c.l.b16 %v9604
    %v9727 = vunpack.c.h.b16 %v9604
    %v9728 = vunpack.c.l.b16 %v9605
    %v9729 = vunpack.c.l.b16 %v9606
    %v9730 = vunpack.c.h.b16 %v9606
    %v9731 = vunpack.c.l.b16 %v9607
    %v9732 = vunpack.c.l.b16 %v9608
    %v9733 = vunpack.c.h.b16 %v9608
    %v9734 = vunpack.c.l.b16 %v9609
    %v9735 = vunpack.c.l.b16 %v9610
    %v9736 = vunpack.c.h.b16 %v9610
    %v9737 = vunpack.c.l.b16 %v9611
    %v9738 = vunpack.c.l.b16 %v9612
    %v9739 = vunpack.c.h.b16 %v9612
    %v9740 = vunpack.c.l.b16 %v9613
    %v9741 = vunpack.c.l.b16 %v9614
    %v9742 = vunpack.c.h.b16 %v9614
    %v9743 = vunpack.c.l.b16 %v9615
    %v9744 = vunpack.c.l.b16 %v9616
    %v9745 = vunpack.c.h.b16 %v9616
    %v9746 = vunpack.c.l.b16 %v9617
    %v9747 = vunpack.c.l.b16 %v9618
    %v9748 = vunpack.c.h.b16 %v9618
    %v9749 = vunpack.c.l.b16 %v9619
    %v9750 = vunpack.c.l.b16 %v9620
    %v9751 = vunpack.c.h.b16 %v9620
    %v9752 = vunpack.c.l.b16 %v9621
    %v9753 = vunpack.c.l.b16 %v9622
    %v9754 = vunpack.c.h.b16 %v9622
    %v9755 = vunpack.c.l.b16 %v9623
    %v9756 = vunpack.c.l.b16 %v9624
    %v9757 = vunpack.c.h.b16 %v9624
    %v9758 = vunpack.c.l.b16 %v9625
    %v9759 = vunpack.c.l.b16 %v9626
    %v9760 = vunpack.c.h.b16 %v9626
    %v9761 = vunpack.c.l.b16 %v9627
    %v9762 = vunpack.c.l.b16 %v9628
    %v9763 = vunpack.c.h.b16 %v9628
    %v9764 = vunpack.c.l.b16 %v9629
    %v9765 = vunpack.c.l.b16 %v9630
    %v9766 = vunpack.c.h.b16 %v9630
    %v9767 = vunpack.c.l.b16 %v9631
    %v9768 = vunpack.c.l.b16 %v9632
    %v9769 = vunpack.c.h.b16 %v9632
    %v9770 = vunpack.c.l.b16 %v9633
    %v9771 = vunpack.c.l.b16 %v9634
    %v9772 = vunpack.c.h.b16 %v9634
    %v9773 = vunpack.c.l.b16 %v9635
    %v9774 = vunpack.c.l.b16 %v9636
    %v9775 = vunpack.c.h.b16 %v9636
    %v9776 = vunpack.c.l.b16 %v9637
    %v9777 = vunpack.c.l.b16 %v9638
    %v9778 = vunpack.c.h.b16 %v9638
    %v9779 = vunpack.c.l.b16 %v9639
    %v9780 = vunpack.c.l.b16 %v9640
    %v9781 = vunpack.c.h.b16 %v9640
    %v9782 = vunpack.c.l.b16 %v9641
    %v9783 = vunpack.c.l.b16 %v9642
    %v9784 = vunpack.c.h.b16 %v9642
    %v9785 = vunpack.c.l.b16 %v9643
    %v9786 = vunpack.c.l.b16 %v9644
    %v9787 = vunpack.c.h.b16 %v9644
    %v9788 = vunpack.c.l.b16 %v9645
    %v9789 = vpack.c.b16 %v9708, %v9705
    %v9790 = vpack.c.b16 %v9709, %v9706
    %v9791 = vpack.c.b16 %v9710, %v9707
    %v9792 = vpack.c.b16 %v9714, %v9711
    %v9793 = vpack.c.b16 %v9715, %v9712
    %v9794 = vpack.c.b16 %v9716, %v9713
    %v9795 = vpack.c.b16 %v9720, %v9717
    %v9796 = vpack.c.b16 %v9721, %v9718
    %v9797 = vpack.c.b16 %v9722, %v9719
    %v9798 = vpack.c.b16 %v9726, %v9723
    %v9799 = vpack.c.b16 %v9727, %v9724
    %v9800 = vpack.c.b16 %v9728, %v9725
    %v9801 = vpack.c.b16 %v9732, %v9729
    %v9802 = vpack.c.b16 %v9733, %v9730
    %v9803 = vpack.c.b16 %v9734, %v9731
    %v9804 = vpack.c.b16 %v9738, %v9735
    %v9805 = vpack.c.b16 %v9739, %v9736
    %v9806 = vpack.c.b16 %v9740, %v9737
    %v9807 = vpack.c.b16 %v9744, %v9741
    %v9808 = vpack.c.b16 %v9745, %v9742
    %v9809 = vpack.c.b16 %v9746, %v9743
    %v9810 = vpack.c.b16 %v9750, %v9747
    %v9811 = vpack.c.b16 %v9751, %v9748
    %v9812 = vpack.c.b16 %v9752, %v9749
    %v9813 = vpack.c.b16 %v9756, %v9753
    %v9814 = vpack.c.b16 %v9757, %v9754
    %v9815 = vpack.c.b16 %v9758, %v9755
    %v9816 = vpack.c.b16 %v9762, %v9759
    %v9817 = vpack.c.b16 %v9763, %v9760
    %v9818 = vpack.c.b16 %v9764, %v9761
    %v9819 = vpack.c.b16 %v9768, %v9765
    %v9820 = vpack.c.b16 %v9769, %v9766
    %v9821 = vpack.c.b16 %v9770, %v9767
    %v9822 = vpack.c.b16 %v9774, %v9771
    %v9823 = vpack.c.b16 %v9775, %v9772
    %v9824 = vpack.c.b16 %v9776, %v9773
    %v9825 = vpack.c.b16 %v9780, %v9777
    %v9826 = vpack.c.b16 %v9781, %v9778
    %v9827 = vpack.c.b16 %v9782, %v9779
    %v9828 = vpack.c.b16 %v9786, %v9783
    %v9829 = vpack.c.b16 %v9787, %v9784
    %v9830 = vpack.c.b16 %v9788, %v9785
    %v9874 = vsel %vm233, %v9647, 0
    %9876 = vmatpush.bf16.msra.mxu0 %v9810
    %9877 = vmatpush.bf16.msra.mxu0 %v9807
    %9878 = vmatpush.bf16.msra.mxu0 %v9804
    %9879 = vmatpush.bf16.msra.mxu0 %v9801
    %9880 = vmatpush.bf16.msra.mxu0 %v9798
    %9881 = vmatpush.bf16.msra.mxu0 %v9795
    %9882 = vmatpush.bf16.msra.mxu0 %v9792
    %9883 = vmatpush.bf16.msra.mxu0 %v9789
    %9884 = vmatmul.bf16.gmra.mxu0 %v9646
    %v9885 = vpop.f32.mrf.mxu0
    %v9886 = vadd.f32 0.0, %v9885
    %v9887 = vpop.f32.mrf.mxu0
    %v9888 = vadd.f32 0.0, %v9887
    %9889 = vdwg.mxu0
    %9890 = vmatpush.bf16.msra.mxu0 0
    %9891 = vmatpush.bf16.msra.mxu0 0
    %9892 = vmatpush.bf16.msra.mxu0 %v9828
    %9893 = vmatpush.bf16.msra.mxu0 %v9825
    %9894 = vmatpush.bf16.msra.mxu0 %v9822
    %9895 = vmatpush.bf16.msra.mxu0 %v9819
    %9896 = vmatpush.bf16.msra.mxu0 %v9816
    %9897 = vmatpush.bf16.msra.mxu0 %v9813
    %9898 = vmatmul.bf16.gmra.mxu0 %v9874
    %v9899 = vpop.f32.mrf.mxu0
    %v9900 = vadd.f32 %v9886, %v9899
    %v9901 = vpop.f32.mrf.mxu0
    %v9902 = vadd.f32 %v9888, %v9901
    %9903 = vdwg.mxu0
    %9904 = vmatpush.bf16.msra.mxu0 %v9811
    %9905 = vmatpush.bf16.msra.mxu0 %v9808
    %9906 = vmatpush.bf16.msra.mxu0 %v9805
    %9907 = vmatpush.bf16.msra.mxu0 %v9802
    %9908 = vmatpush.bf16.msra.mxu0 %v9799
    %9909 = vmatpush.bf16.msra.mxu0 %v9796
    %9910 = vmatpush.bf16.msra.mxu0 %v9793
    %9911 = vmatpush.bf16.msra.mxu0 %v9790
    %9912 = vmatmul.bf16.gmra.mxu0 %v9646
    %v9913 = vpop.f32.mrf.mxu0
    %v9914 = vadd.f32 0.0, %v9913
    %v9915 = vpop.f32.mrf.mxu0
    %v9916 = vadd.f32 0.0, %v9915
    %9917 = vdwg.mxu0
    %9918 = vmatpush.bf16.msra.mxu0 0
    %9919 = vmatpush.bf16.msra.mxu0 0
    %9920 = vmatpush.bf16.msra.mxu0 %v9829
    %9921 = vmatpush.bf16.msra.mxu0 %v9826
    %9922 = vmatpush.bf16.msra.mxu0 %v9823
    %9923 = vmatpush.bf16.msra.mxu0 %v9820
    %9924 = vmatpush.bf16.msra.mxu0 %v9817
    %9925 = vmatpush.bf16.msra.mxu0 %v9814
    %9926 = vmatmul.bf16.gmra.mxu0 %v9874
    %v9927 = vpop.f32.mrf.mxu0
    %v9928 = vadd.f32 %v9914, %v9927
    %v9929 = vpop.f32.mrf.mxu0
    %v9930 = vadd.f32 %v9916, %v9929
    %9931 = vdwg.mxu0
    %9932 = vmatpush.bf16.msra.mxu0 %v9812
    %9933 = vmatpush.bf16.msra.mxu0 %v9809
    %9934 = vmatpush.bf16.msra.mxu0 %v9806
    %9935 = vmatpush.bf16.msra.mxu0 %v9803
    %9936 = vmatpush.bf16.msra.mxu0 %v9800
    %9937 = vmatpush.bf16.msra.mxu0 %v9797
    %9938 = vmatpush.bf16.msra.mxu0 %v9794
    %9939 = vmatpush.bf16.msra.mxu0 %v9791
    %9940 = vmatmul.bf16.gmra.mxu0 %v9646
    %v9941 = vpop.f32.mrf.mxu0
    %v9942 = vadd.f32 0.0, %v9941
    %v9943 = vpop.f32.mrf.mxu0
    %v9944 = vadd.f32 0.0, %v9943
    %9945 = vdwg.mxu0
    %9946 = vmatpush.bf16.msra.mxu0 0
    %9947 = vmatpush.bf16.msra.mxu0 0
    %9948 = vmatpush.bf16.msra.mxu0 %v9830
    %9949 = vmatpush.bf16.msra.mxu0 %v9827
    %9950 = vmatpush.bf16.msra.mxu0 %v9824
    %9951 = vmatpush.bf16.msra.mxu0 %v9821
    %9952 = vmatpush.bf16.msra.mxu0 %v9818
    %9953 = vmatpush.bf16.msra.mxu0 %v9815
    %9954 = vmatmul.bf16.gmra.mxu0 %v9874
    %v9955 = vpop.f32.mrf.mxu0
    %v9956 = vadd.f32 %v9942, %v9955
    %v9957 = vpop.f32.mrf.mxu0
    %v9958 = vadd.f32 %v9944, %v9957
    %9959 = vdwg.mxu0
    %v9960 = vadd.f32 %v9584, %v9900
    %v9961 = vadd.f32 %v9585, %v9928
    %v9962 = vadd.f32 %v9586, %v9956
    %v9963 = vadd.f32 %v9587, %v9902
    %v9964 = vadd.f32 %v9588, %v9930
    %v9965 = vadd.f32 %v9589, %v9958
    %v9966 = vld [vmem:[%s6] sm:$0x7]
    %v9968 = vperm.slane %v9966, 0
    %v9969 = vperm.slane %v9966, 1
    %v9970 = vperm.slane %v9966, 2
    %v9974 = vadd.f32 %v9960, %v9968
    %v9975 = vadd.f32 %v9961, %v9969
    %v9976 = vadd.f32 %v9962, %v9970
    %v9977 = vadd.f32 %v9963, %v9968
    %v9978 = vadd.f32 %v9964, %v9969
    %v9979 = vadd.f32 %v9965, %v9970
    %v9980 = vmax.f32 %v9974, 0.0
    %v9981 = vmax.f32 %v9975, 0.0
    %v9982 = vmax.f32 %v9976, 0.0
    %v9983 = vmax.f32 %v9977, 0.0
    %v9984 = vmax.f32 %v9978, 0.0
    %v9985 = vmax.f32 %v9979, 0.0
    %v9986 = vpack.c.bf16 %v9983, %v9980
    %v9987 = vpack.c.bf16 %v9984, %v9981
    %v9988 = vpack.c.bf16 %v9985, %v9982
    %v9989 = vld [vmem:[%s7] sm:$0x7]
    %v9991 = vsel %vm4291, %v9989, 0
    %v9994 = vsel %vm4295, %v9986, 0
    %v9997 = vsel %vm4295, %v9987, 0
    %v10000 = vsel %vm4295, %v9988, 0
    %10002 = vmatpush.bf16.msra.mxu0 0
    %10003 = vmatpush.bf16.msra.mxu0 0
    %10004 = vmatpush.bf16.msra.mxu0 0
    %10005 = vmatpush.bf16.msra.mxu0 0
    %10006 = vmatpush.bf16.msra.mxu0 0
    %10007 = vmatpush.bf16.msra.mxu0 0
    %10008 = vmatpush.bf16.msra.mxu0 0
    %10009 = vmatpush.bf16.msra.mxu0 %v9994
    %10010 = vmatmul.bf16.gmra.mxu0 %v9991
    %v10011 = vpop.f32.mrf.mxu0
    %v10012 = vadd.f32 0.0, %v10011
    %v10013 = vpop.f32.mrf.mxu0
    %10014 = vdwg.mxu0
    %10015 = vmatpush.bf16.msra.mxu0 0
    %10016 = vmatpush.bf16.msra.mxu0 0
    %10017 = vmatpush.bf16.msra.mxu0 0
    %10018 = vmatpush.bf16.msra.mxu0 0
    %10019 = vmatpush.bf16.msra.mxu0 0
    %10020 = vmatpush.bf16.msra.mxu0 0
    %10021 = vmatpush.bf16.msra.mxu0 0
    %10022 = vmatpush.bf16.msra.mxu0 %v9997
    %10023 = vmatmul.bf16.gmra.mxu0 %v9991
    %v10024 = vpop.f32.mrf.mxu0
    %v10025 = vadd.f32 0.0, %v10024
    %v10026 = vpop.f32.mrf.mxu0
    %10027 = vdwg.mxu0
    %10028 = vmatpush.bf16.msra.mxu0 0
    %10029 = vmatpush.bf16.msra.mxu0 0
    %10030 = vmatpush.bf16.msra.mxu0 0
    %10031 = vmatpush.bf16.msra.mxu0 0
    %10032 = vmatpush.bf16.msra.mxu0 0
    %10033 = vmatpush.bf16.msra.mxu0 0
    %10034 = vmatpush.bf16.msra.mxu0 0
    %10035 = vmatpush.bf16.msra.mxu0 %v10000
    %10036 = vmatmul.bf16.gmra.mxu0 %v9991
    %v10037 = vpop.f32.mrf.mxu0
    %v10038 = vadd.f32 0.0, %v10037
    %v10039 = vpop.f32.mrf.mxu0
    %10040 = vdwg.mxu0
    %v10041 = vld [vmem:[%s4344] sm:$0x7]
    %v10043 = vsel %vm4291, %v10041, 0
    %10045 = vmatpush.bf16.msra.mxu0 0
    %10046 = vmatpush.bf16.msra.mxu0 0
    %10047 = vmatpush.bf16.msra.mxu0 0
    %10048 = vmatpush.bf16.msra.mxu0 0
    %10049 = vmatpush.bf16.msra.mxu0 0
    %10050 = vmatpush.bf16.msra.mxu0 0
    %10051 = vmatpush.bf16.msra.mxu0 0
    %10052 = vmatpush.bf16.msra.mxu0 %v9994
    %10053 = vmatmul.bf16.gmra.mxu0 %v10043
    %v10054 = vpop.f32.mrf.mxu0
    %v10055 = vadd.f32 0.0, %v10054
    %v10056 = vpop.f32.mrf.mxu0
    %10057 = vdwg.mxu0
    %10058 = vmatpush.bf16.msra.mxu0 0
    %10059 = vmatpush.bf16.msra.mxu0 0
    %10060 = vmatpush.bf16.msra.mxu0 0
    %10061 = vmatpush.bf16.msra.mxu0 0
    %10062 = vmatpush.bf16.msra.mxu0 0
    %10063 = vmatpush.bf16.msra.mxu0 0
    %10064 = vmatpush.bf16.msra.mxu0 0
    %10065 = vmatpush.bf16.msra.mxu0 %v9997
    %10066 = vmatmul.bf16.gmra.mxu0 %v10043
    %v10067 = vpop.f32.mrf.mxu0
    %v10068 = vadd.f32 0.0, %v10067
    %v10069 = vpop.f32.mrf.mxu0
    %10070 = vdwg.mxu0
    %10071 = vmatpush.bf16.msra.mxu0 0
    %10072 = vmatpush.bf16.msra.mxu0 0
    %10073 = vmatpush.bf16.msra.mxu0 0
    %10074 = vmatpush.bf16.msra.mxu0 0
    %10075 = vmatpush.bf16.msra.mxu0 0
    %10076 = vmatpush.bf16.msra.mxu0 0
    %10077 = vmatpush.bf16.msra.mxu0 0
    %10078 = vmatpush.bf16.msra.mxu0 %v10000
    %10079 = vmatmul.bf16.gmra.mxu0 %v10043
    %v10080 = vpop.f32.mrf.mxu0
    %v10081 = vadd.f32 0.0, %v10080
    %v10082 = vpop.f32.mrf.mxu0
    %10083 = vdwg.mxu0
    %v10084 = vmax.f32 %v10012, %v10055
    %v10085 = vmax.f32 %v10025, %v10068
    %v10086 = vmax.f32 %v10038, %v10081
    %v10087 = vpack.c.bf16 %v10084, %v10084
    %v10088 = vpack.c.bf16 %v10085, %v10085
    %v10089 = vpack.c.bf16 %v10086, %v10086
    %v10090 = vld [vmem:[%s8] sm:$0xff]
    %v10091 = vld [vmem:[%s8 + $0x8] sm:$0xff]
    %v10092 = vld [vmem:[%s8 + $0x10] sm:$0xff]
    %v10093 = vld [vmem:[%s8 + $0x18] sm:$0xff]
    %v10094 = vld [vmem:[%s8 + $0x20] sm:$0xff]
    %v10095 = vld [vmem:[%s8 + $0x28] sm:$0xff]
    %v10096 = vld [vmem:[%s8 + $0x30] sm:$0xff]
    %v10097 = vld [vmem:[%s8 + $0x38] sm:$0xff]
    %v10098 = vld [vmem:[%s8 + $0x40] sm:$0xff]
    %v10099 = vld [vmem:[%s8 + $0x48] sm:$0xff]
    %v10100 = vld [vmem:[%s8 + $0x50] sm:$0xff]
    %v10101 = vld [vmem:[%s8 + $0x58] sm:$0xff]
    %v10102 = vld [vmem:[%s8 + $0x60] sm:$0xff]
    %v10103 = vld [vmem:[%s8 + $0x68] sm:$0xff]
    %v10104 = vld [vmem:[%s8 + $0x70] sm:$0xff]
    %v10105 = vld [vmem:[%s8 + $0x78] sm:$0xff]
    %v10106 = vld [vmem:[%s8 + $0x80] sm:$0xff]
    %v10107 = vld [vmem:[%s8 + $0x88] sm:$0xff]
    %v10108 = vld [vmem:[%s8 + $0x90] sm:$0xff]
    %v10109 = vld [vmem:[%s8 + $0x98] sm:$0xff]
    %v10110 = vld [vmem:[%s8 + $0xa0] sm:$0xff]
    %v10111 = vld [vmem:[%s8 + $0xa8] sm:$0xff]
    %v10112 = vld [vmem:[%s8 + $0xb0] sm:$0xff]
    %v10113 = vld [vmem:[%s8 + $0xb8] sm:$0xff]
    %v10114 = vld [vmem:[%s8 + $0xc0] sm:$0xff]
    %v10115 = vld [vmem:[%s8 + $0xc8] sm:$0xff]
    %v10116 = vld [vmem:[%s8 + $0xd0] sm:$0xff]
    %v10117 = vld [vmem:[%s8 + $0xd8] sm:$0xff]
    %v10118 = vld [vmem:[%s8 + $0xe0] sm:$0xff]
    %v10119 = vld [vmem:[%s8 + $0xe8] sm:$0xff]
    %v10120 = vld [vmem:[%s8 + $0xf0] sm:$0xff]
    %v10121 = vld [vmem:[%s8 + $0xf8] sm:$0xff]
    %v10122 = vld [vmem:[%s8 + $0x100] sm:$0xff]
    %v10123 = vld [vmem:[%s8 + $0x108] sm:$0xff]
    %v10124 = vld [vmem:[%s8 + $0x110] sm:$0xff]
    %v10125 = vld [vmem:[%s8 + $0x118] sm:$0xff]
    %v10126 = vld [vmem:[%s8 + $0x120] sm:$0xff]
    %v10127 = vld [vmem:[%s8 + $0x128] sm:$0xff]
    %v10128 = vld [vmem:[%s8 + $0x130] sm:$0xff]
    %v10129 = vld [vmem:[%s8 + $0x138] sm:$0xff]
    %v10170 = vunpack.c.l.b16 %v10090
    %v10171 = vunpack.c.h.b16 %v10090
    %v10172 = vunpack.c.l.b16 %v10091
    %v10173 = vunpack.c.h.b16 %v10091
    %v10174 = vunpack.c.l.b16 %v10092
    %v10175 = vunpack.c.h.b16 %v10092
    %v10176 = vunpack.c.l.b16 %v10093
    %v10177 = vunpack.c.h.b16 %v10093
    %v10178 = vunpack.c.l.b16 %v10094
    %v10179 = vunpack.c.h.b16 %v10094
    %v10180 = vunpack.c.l.b16 %v10095
    %v10181 = vunpack.c.h.b16 %v10095
    %v10182 = vunpack.c.l.b16 %v10096
    %v10183 = vunpack.c.h.b16 %v10096
    %v10184 = vunpack.c.l.b16 %v10097
    %v10185 = vunpack.c.h.b16 %v10097
    %v10186 = vunpack.c.l.b16 %v10098
    %v10187 = vunpack.c.h.b16 %v10098
    %v10188 = vunpack.c.l.b16 %v10099
    %v10189 = vunpack.c.h.b16 %v10099
    %v10190 = vunpack.c.l.b16 %v10100
    %v10191 = vunpack.c.h.b16 %v10100
    %v10192 = vunpack.c.l.b16 %v10101
    %v10193 = vunpack.c.h.b16 %v10101
    %v10194 = vunpack.c.l.b16 %v10102
    %v10195 = vunpack.c.h.b16 %v10102
    %v10196 = vunpack.c.l.b16 %v10103
    %v10197 = vunpack.c.h.b16 %v10103
    %v10198 = vunpack.c.l.b16 %v10104
    %v10199 = vunpack.c.h.b16 %v10104
    %v10200 = vunpack.c.l.b16 %v10105
    %v10201 = vunpack.c.h.b16 %v10105
    %v10202 = vunpack.c.l.b16 %v10106
    %v10203 = vunpack.c.h.b16 %v10106
    %v10204 = vunpack.c.l.b16 %v10107
    %v10205 = vunpack.c.h.b16 %v10107
    %v10206 = vunpack.c.l.b16 %v10108
    %v10207 = vunpack.c.h.b16 %v10108
    %v10208 = vunpack.c.l.b16 %v10109
    %v10209 = vunpack.c.h.b16 %v10109
    %v10210 = vunpack.c.l.b16 %v10110
    %v10211 = vunpack.c.h.b16 %v10110
    %v10212 = vunpack.c.l.b16 %v10111
    %v10213 = vunpack.c.h.b16 %v10111
    %v10214 = vunpack.c.l.b16 %v10112
    %v10215 = vunpack.c.h.b16 %v10112
    %v10216 = vunpack.c.l.b16 %v10113
    %v10217 = vunpack.c.h.b16 %v10113
    %v10218 = vunpack.c.l.b16 %v10114
    %v10219 = vunpack.c.h.b16 %v10114
    %v10220 = vunpack.c.l.b16 %v10115
    %v10221 = vunpack.c.h.b16 %v10115
    %v10222 = vunpack.c.l.b16 %v10116
    %v10223 = vunpack.c.h.b16 %v10116
    %v10224 = vunpack.c.l.b16 %v10117
    %v10225 = vunpack.c.h.b16 %v10117
    %v10226 = vunpack.c.l.b16 %v10118
    %v10227 = vunpack.c.h.b16 %v10118
    %v10228 = vunpack.c.l.b16 %v10119
    %v10229 = vunpack.c.h.b16 %v10119
    %v10230 = vunpack.c.l.b16 %v10120
    %v10231 = vunpack.c.h.b16 %v10120
    %v10232 = vunpack.c.l.b16 %v10121
    %v10233 = vunpack.c.h.b16 %v10121
    %v10234 = vunpack.c.l.b16 %v10122
    %v10235 = vunpack.c.h.b16 %v10122
    %v10236 = vunpack.c.l.b16 %v10123
    %v10237 = vunpack.c.h.b16 %v10123
    %v10238 = vunpack.c.l.b16 %v10124
    %v10239 = vunpack.c.h.b16 %v10124
    %v10240 = vunpack.c.l.b16 %v10125
    %v10241 = vunpack.c.h.b16 %v10125
    %v10242 = vunpack.c.l.b16 %v10126
    %v10243 = vunpack.c.h.b16 %v10126
    %v10244 = vunpack.c.l.b16 %v10127
    %v10245 = vunpack.c.h.b16 %v10127
    %v10246 = vunpack.c.l.b16 %v10128
    %v10247 = vunpack.c.h.b16 %v10128
    %v10248 = vunpack.c.l.b16 %v10129
    %v10249 = vunpack.c.h.b16 %v10129
    %v10250 = vpack.c.b16 %v10172, %v10170
    %v10251 = vpack.c.b16 %v10173, %v10171
    %v10252 = vpack.c.b16 %v10176, %v10174
    %v10253 = vpack.c.b16 %v10177, %v10175
    %v10254 = vpack.c.b16 %v10180, %v10178
    %v10255 = vpack.c.b16 %v10181, %v10179
    %v10256 = vpack.c.b16 %v10184, %v10182
    %v10257 = vpack.c.b16 %v10185, %v10183
    %v10258 = vpack.c.b16 %v10188, %v10186
    %v10259 = vpack.c.b16 %v10189, %v10187
    %v10260 = vpack.c.b16 %v10192, %v10190
    %v10261 = vpack.c.b16 %v10193, %v10191
    %v10262 = vpack.c.b16 %v10196, %v10194
    %v10263 = vpack.c.b16 %v10197, %v10195
    %v10264 = vpack.c.b16 %v10200, %v10198
    %v10265 = vpack.c.b16 %v10201, %v10199
    %v10266 = vpack.c.b16 %v10204, %v10202
    %v10267 = vpack.c.b16 %v10205, %v10203
    %v10268 = vpack.c.b16 %v10208, %v10206
    %v10269 = vpack.c.b16 %v10209, %v10207
    %v10270 = vpack.c.b16 %v10212, %v10210
    %v10271 = vpack.c.b16 %v10213, %v10211
    %v10272 = vpack.c.b16 %v10216, %v10214
    %v10273 = vpack.c.b16 %v10217, %v10215
    %v10274 = vpack.c.b16 %v10220, %v10218
    %v10275 = vpack.c.b16 %v10221, %v10219
    %v10276 = vpack.c.b16 %v10224, %v10222
    %v10277 = vpack.c.b16 %v10225, %v10223
    %v10278 = vpack.c.b16 %v10228, %v10226
    %v10279 = vpack.c.b16 %v10229, %v10227
    %v10280 = vpack.c.b16 %v10232, %v10230
    %v10281 = vpack.c.b16 %v10233, %v10231
    %v10282 = vpack.c.b16 %v10236, %v10234
    %v10283 = vpack.c.b16 %v10237, %v10235
    %v10284 = vpack.c.b16 %v10240, %v10238
    %v10285 = vpack.c.b16 %v10241, %v10239
    %v10286 = vpack.c.b16 %v10244, %v10242
    %v10287 = vpack.c.b16 %v10245, %v10243
    %v10288 = vpack.c.b16 %v10248, %v10246
    %v10289 = vpack.c.b16 %v10249, %v10247
    %v10331 = vsel %vm1810, %v10089, 0
    %10333 = vmatpush.bf16.msra.mxu0 %v10264
    %10334 = vmatpush.bf16.msra.mxu0 %v10262
    %10335 = vmatpush.bf16.msra.mxu0 %v10260
    %10336 = vmatpush.bf16.msra.mxu0 %v10258
    %10337 = vmatpush.bf16.msra.mxu0 %v10256
    %10338 = vmatpush.bf16.msra.mxu0 %v10254
    %10339 = vmatpush.bf16.msra.mxu0 %v10252
    %10340 = vmatpush.bf16.msra.mxu0 %v10250
    %10341 = vmatmul.bf16.gmra.mxu0 %v10087
    %v10342 = vpop.f32.mrf.mxu0
    %v10343 = vadd.f32 0.0, %v10342
    %v10344 = vpop.f32.mrf.mxu0
    %10345 = vdwg.mxu0
    %10346 = vmatpush.bf16.msra.mxu0 %v10280
    %10347 = vmatpush.bf16.msra.mxu0 %v10278
    %10348 = vmatpush.bf16.msra.mxu0 %v10276
    %10349 = vmatpush.bf16.msra.mxu0 %v10274
    %10350 = vmatpush.bf16.msra.mxu0 %v10272
    %10351 = vmatpush.bf16.msra.mxu0 %v10270
    %10352 = vmatpush.bf16.msra.mxu0 %v10268
    %10353 = vmatpush.bf16.msra.mxu0 %v10266
    %10354 = vmatmul.bf16.gmra.mxu0 %v10088
    %v10355 = vpop.f32.mrf.mxu0
    %v10356 = vadd.f32 %v10343, %v10355
    %v10357 = vpop.f32.mrf.mxu0
    %10358 = vdwg.mxu0
    %10359 = vmatpush.bf16.msra.mxu0 0
    %10360 = vmatpush.bf16.msra.mxu0 0
    %10361 = vmatpush.bf16.msra.mxu0 0
    %10362 = vmatpush.bf16.msra.mxu0 0
    %10363 = vmatpush.bf16.msra.mxu0 %v10288
    %10364 = vmatpush.bf16.msra.mxu0 %v10286
    %10365 = vmatpush.bf16.msra.mxu0 %v10284
    %10366 = vmatpush.bf16.msra.mxu0 %v10282
    %10367 = vmatmul.bf16.gmra.mxu0 %v10331
    %v10368 = vpop.f32.mrf.mxu0
    %v10369 = vadd.f32 %v10356, %v10368
    %v10370 = vpop.f32.mrf.mxu0
    %10371 = vdwg.mxu0
    %10372 = vmatpush.bf16.msra.mxu0 %v10265
    %10373 = vmatpush.bf16.msra.mxu0 %v10263
    %10374 = vmatpush.bf16.msra.mxu0 %v10261
    %10375 = vmatpush.bf16.msra.mxu0 %v10259
    %10376 = vmatpush.bf16.msra.mxu0 %v10257
    %10377 = vmatpush.bf16.msra.mxu0 %v10255
    %10378 = vmatpush.bf16.msra.mxu0 %v10253
    %10379 = vmatpush.bf16.msra.mxu0 %v10251
    %10380 = vmatmul.bf16.gmra.mxu0 %v10087
    %v10381 = vpop.f32.mrf.mxu0
    %v10382 = vadd.f32 0.0, %v10381
    %v10383 = vpop.f32.mrf.mxu0
    %10384 = vdwg.mxu0
    %10385 = vmatpush.bf16.msra.mxu0 %v10281
    %10386 = vmatpush.bf16.msra.mxu0 %v10279
    %10387 = vmatpush.bf16.msra.mxu0 %v10277
    %10388 = vmatpush.bf16.msra.mxu0 %v10275
    %10389 = vmatpush.bf16.msra.mxu0 %v10273
    %10390 = vmatpush.bf16.msra.mxu0 %v10271
    %10391 = vmatpush.bf16.msra.mxu0 %v10269
    %10392 = vmatpush.bf16.msra.mxu0 %v10267
    %10393 = vmatmul.bf16.gmra.mxu0 %v10088
    %v10394 = vpop.f32.mrf.mxu0
    %v10395 = vadd.f32 %v10382, %v10394
    %v10396 = vpop.f32.mrf.mxu0
    %10397 = vdwg.mxu0
    %10398 = vmatpush.bf16.msra.mxu0 0
    %10399 = vmatpush.bf16.msra.mxu0 0
    %10400 = vmatpush.bf16.msra.mxu0 0
    %10401 = vmatpush.bf16.msra.mxu0 0
    %10402 = vmatpush.bf16.msra.mxu0 %v10289
    %10403 = vmatpush.bf16.msra.mxu0 %v10287
    %10404 = vmatpush.bf16.msra.mxu0 %v10285
    %10405 = vmatpush.bf16.msra.mxu0 %v10283
    %10406 = vmatmul.bf16.gmra.mxu0 %v10331
    %v10407 = vpop.f32.mrf.mxu0
    %v10408 = vadd.f32 %v10395, %v10407
    %v10409 = vpop.f32.mrf.mxu0
    %10410 = vdwg.mxu0
    %v10411 = vld [vmem:[%s4715] sm:$0xff]
    %v10412 = vld [vmem:[%s4715 + $0x8] sm:$0xff]
    %v10413 = vld [vmem:[%s4715 + $0x10] sm:$0xff]
    %v10414 = vld [vmem:[%s4715 + $0x18] sm:$0xff]
    %v10415 = vld [vmem:[%s4715 + $0x20] sm:$0xff]
    %v10416 = vld [vmem:[%s4715 + $0x28] sm:$0xff]
    %v10417 = vld [vmem:[%s4715 + $0x30] sm:$0xff]
    %v10418 = vld [vmem:[%s4715 + $0x38] sm:$0xff]
    %v10419 = vld [vmem:[%s4715 + $0x40] sm:$0xff]
    %v10420 = vld [vmem:[%s4715 + $0x48] sm:$0xff]
    %v10421 = vld [vmem:[%s4715 + $0x50] sm:$0xff]
    %v10422 = vld [vmem:[%s4715 + $0x58] sm:$0xff]
    %v10423 = vld [vmem:[%s4715 + $0x60] sm:$0xff]
    %v10424 = vld [vmem:[%s4715 + $0x68] sm:$0xff]
    %v10425 = vld [vmem:[%s4715 + $0x70] sm:$0xff]
    %v10426 = vld [vmem:[%s4715 + $0x78] sm:$0xff]
    %v10427 = vld [vmem:[%s4715 + $0x80] sm:$0xff]
    %v10428 = vld [vmem:[%s4715 + $0x88] sm:$0xff]
    %v10429 = vld [vmem:[%s4715 + $0x90] sm:$0xff]
    %v10430 = vld [vmem:[%s4715 + $0x98] sm:$0xff]
    %v10431 = vld [vmem:[%s4715 + $0xa0] sm:$0xff]
    %v10432 = vld [vmem:[%s4715 + $0xa8] sm:$0xff]
    %v10433 = vld [vmem:[%s4715 + $0xb0] sm:$0xff]
    %v10434 = vld [vmem:[%s4715 + $0xb8] sm:$0xff]
    %v10435 = vld [vmem:[%s4715 + $0xc0] sm:$0xff]
    %v10436 = vld [vmem:[%s4715 + $0xc8] sm:$0xff]
    %v10437 = vld [vmem:[%s4715 + $0xd0] sm:$0xff]
    %v10438 = vld [vmem:[%s4715 + $0xd8] sm:$0xff]
    %v10439 = vld [vmem:[%s4715 + $0xe0] sm:$0xff]
    %v10440 = vld [vmem:[%s4715 + $0xe8] sm:$0xff]
    %v10441 = vld [vmem:[%s4715 + $0xf0] sm:$0xff]
    %v10442 = vld [vmem:[%s4715 + $0xf8] sm:$0xff]
    %v10443 = vld [vmem:[%s4715 + $0x100] sm:$0xff]
    %v10444 = vld [vmem:[%s4715 + $0x108] sm:$0xff]
    %v10445 = vld [vmem:[%s4715 + $0x110] sm:$0xff]
    %v10446 = vld [vmem:[%s4715 + $0x118] sm:$0xff]
    %v10447 = vld [vmem:[%s4715 + $0x120] sm:$0xff]
    %v10448 = vld [vmem:[%s4715 + $0x128] sm:$0xff]
    %v10449 = vld [vmem:[%s4715 + $0x130] sm:$0xff]
    %v10450 = vld [vmem:[%s4715 + $0x138] sm:$0xff]
    %v10491 = vunpack.c.l.b16 %v10411
    %v10492 = vunpack.c.h.b16 %v10411
    %v10493 = vunpack.c.l.b16 %v10412
    %v10494 = vunpack.c.h.b16 %v10412
    %v10495 = vunpack.c.l.b16 %v10413
    %v10496 = vunpack.c.h.b16 %v10413
    %v10497 = vunpack.c.l.b16 %v10414
    %v10498 = vunpack.c.h.b16 %v10414
    %v10499 = vunpack.c.l.b16 %v10415
    %v10500 = vunpack.c.h.b16 %v10415
    %v10501 = vunpack.c.l.b16 %v10416
    %v10502 = vunpack.c.h.b16 %v10416
    %v10503 = vunpack.c.l.b16 %v10417
    %v10504 = vunpack.c.h.b16 %v10417
    %v10505 = vunpack.c.l.b16 %v10418
    %v10506 = vunpack.c.h.b16 %v10418
    %v10507 = vunpack.c.l.b16 %v10419
    %v10508 = vunpack.c.h.b16 %v10419
    %v10509 = vunpack.c.l.b16 %v10420
    %v10510 = vunpack.c.h.b16 %v10420
    %v10511 = vunpack.c.l.b16 %v10421
    %v10512 = vunpack.c.h.b16 %v10421
    %v10513 = vunpack.c.l.b16 %v10422
    %v10514 = vunpack.c.h.b16 %v10422
    %v10515 = vunpack.c.l.b16 %v10423
    %v10516 = vunpack.c.h.b16 %v10423
    %v10517 = vunpack.c.l.b16 %v10424
    %v10518 = vunpack.c.h.b16 %v10424
    %v10519 = vunpack.c.l.b16 %v10425
    %v10520 = vunpack.c.h.b16 %v10425
    %v10521 = vunpack.c.l.b16 %v10426
    %v10522 = vunpack.c.h.b16 %v10426
    %v10523 = vunpack.c.l.b16 %v10427
    %v10524 = vunpack.c.h.b16 %v10427
    %v10525 = vunpack.c.l.b16 %v10428
    %v10526 = vunpack.c.h.b16 %v10428
    %v10527 = vunpack.c.l.b16 %v10429
    %v10528 = vunpack.c.h.b16 %v10429
    %v10529 = vunpack.c.l.b16 %v10430
    %v10530 = vunpack.c.h.b16 %v10430
    %v10531 = vunpack.c.l.b16 %v10431
    %v10532 = vunpack.c.h.b16 %v10431
    %v10533 = vunpack.c.l.b16 %v10432
    %v10534 = vunpack.c.h.b16 %v10432
    %v10535 = vunpack.c.l.b16 %v10433
    %v10536 = vunpack.c.h.b16 %v10433
    %v10537 = vunpack.c.l.b16 %v10434
    %v10538 = vunpack.c.h.b16 %v10434
    %v10539 = vunpack.c.l.b16 %v10435
    %v10540 = vunpack.c.h.b16 %v10435
    %v10541 = vunpack.c.l.b16 %v10436
    %v10542 = vunpack.c.h.b16 %v10436
    %v10543 = vunpack.c.l.b16 %v10437
    %v10544 = vunpack.c.h.b16 %v10437
    %v10545 = vunpack.c.l.b16 %v10438
    %v10546 = vunpack.c.h.b16 %v10438
    %v10547 = vunpack.c.l.b16 %v10439
    %v10548 = vunpack.c.h.b16 %v10439
    %v10549 = vunpack.c.l.b16 %v10440
    %v10550 = vunpack.c.h.b16 %v10440
    %v10551 = vunpack.c.l.b16 %v10441
    %v10552 = vunpack.c.h.b16 %v10441
    %v10553 = vunpack.c.l.b16 %v10442
    %v10554 = vunpack.c.h.b16 %v10442
    %v10555 = vunpack.c.l.b16 %v10443
    %v10556 = vunpack.c.h.b16 %v10443
    %v10557 = vunpack.c.l.b16 %v10444
    %v10558 = vunpack.c.h.b16 %v10444
    %v10559 = vunpack.c.l.b16 %v10445
    %v10560 = vunpack.c.h.b16 %v10445
    %v10561 = vunpack.c.l.b16 %v10446
    %v10562 = vunpack.c.h.b16 %v10446
    %v10563 = vunpack.c.l.b16 %v10447
    %v10564 = vunpack.c.h.b16 %v10447
    %v10565 = vunpack.c.l.b16 %v10448
    %v10566 = vunpack.c.h.b16 %v10448
    %v10567 = vunpack.c.l.b16 %v10449
    %v10568 = vunpack.c.h.b16 %v10449
    %v10569 = vunpack.c.l.b16 %v10450
    %v10570 = vunpack.c.h.b16 %v10450
    %v10571 = vpack.c.b16 %v10493, %v10491
    %v10572 = vpack.c.b16 %v10494, %v10492
    %v10573 = vpack.c.b16 %v10497, %v10495
    %v10574 = vpack.c.b16 %v10498, %v10496
    %v10575 = vpack.c.b16 %v10501, %v10499
    %v10576 = vpack.c.b16 %v10502, %v10500
    %v10577 = vpack.c.b16 %v10505, %v10503
    %v10578 = vpack.c.b16 %v10506, %v10504
    %v10579 = vpack.c.b16 %v10509, %v10507
    %v10580 = vpack.c.b16 %v10510, %v10508
    %v10581 = vpack.c.b16 %v10513, %v10511
    %v10582 = vpack.c.b16 %v10514, %v10512
    %v10583 = vpack.c.b16 %v10517, %v10515
    %v10584 = vpack.c.b16 %v10518, %v10516
    %v10585 = vpack.c.b16 %v10521, %v10519
    %v10586 = vpack.c.b16 %v10522, %v10520
    %v10587 = vpack.c.b16 %v10525, %v10523
    %v10588 = vpack.c.b16 %v10526, %v10524
    %v10589 = vpack.c.b16 %v10529, %v10527
    %v10590 = vpack.c.b16 %v10530, %v10528
    %v10591 = vpack.c.b16 %v10533, %v10531
    %v10592 = vpack.c.b16 %v10534, %v10532
    %v10593 = vpack.c.b16 %v10537, %v10535
    %v10594 = vpack.c.b16 %v10538, %v10536
    %v10595 = vpack.c.b16 %v10541, %v10539
    %v10596 = vpack.c.b16 %v10542, %v10540
    %v10597 = vpack.c.b16 %v10545, %v10543
    %v10598 = vpack.c.b16 %v10546, %v10544
    %v10599 = vpack.c.b16 %v10549, %v10547
    %v10600 = vpack.c.b16 %v10550, %v10548
    %v10601 = vpack.c.b16 %v10553, %v10551
    %v10602 = vpack.c.b16 %v10554, %v10552
    %v10603 = vpack.c.b16 %v10557, %v10555
    %v10604 = vpack.c.b16 %v10558, %v10556
    %v10605 = vpack.c.b16 %v10561, %v10559
    %v10606 = vpack.c.b16 %v10562, %v10560
    %v10607 = vpack.c.b16 %v10565, %v10563
    %v10608 = vpack.c.b16 %v10566, %v10564
    %v10609 = vpack.c.b16 %v10569, %v10567
    %v10610 = vpack.c.b16 %v10570, %v10568
    %10651 = vmatpush.bf16.msra.mxu0 %v10585
    %10652 = vmatpush.bf16.msra.mxu0 %v10583
    %10653 = vmatpush.bf16.msra.mxu0 %v10581
    %10654 = vmatpush.bf16.msra.mxu0 %v10579
    %10655 = vmatpush.bf16.msra.mxu0 %v10577
    %10656 = vmatpush.bf16.msra.mxu0 %v10575
    %10657 = vmatpush.bf16.msra.mxu0 %v10573
    %10658 = vmatpush.bf16.msra.mxu0 %v10571
    %10659 = vmatmul.bf16.gmra.mxu0 %v10087
    %v10660 = vpop.f32.mrf.mxu0
    %v10661 = vadd.f32 0.0, %v10660
    %v10662 = vpop.f32.mrf.mxu0
    %10663 = vdwg.mxu0
    %10664 = vmatpush.bf16.msra.mxu0 %v10601
    %10665 = vmatpush.bf16.msra.mxu0 %v10599
    %10666 = vmatpush.bf16.msra.mxu0 %v10597
    %10667 = vmatpush.bf16.msra.mxu0 %v10595
    %10668 = vmatpush.bf16.msra.mxu0 %v10593
    %10669 = vmatpush.bf16.msra.mxu0 %v10591
    %10670 = vmatpush.bf16.msra.mxu0 %v10589
    %10671 = vmatpush.bf16.msra.mxu0 %v10587
    %10672 = vmatmul.bf16.gmra.mxu0 %v10088
    %v10673 = vpop.f32.mrf.mxu0
    %v10674 = vadd.f32 %v10661, %v10673
    %v10675 = vpop.f32.mrf.mxu0
    %10676 = vdwg.mxu0
    %10677 = vmatpush.bf16.msra.mxu0 0
    %10678 = vmatpush.bf16.msra.mxu0 0
    %10679 = vmatpush.bf16.msra.mxu0 0
    %10680 = vmatpush.bf16.msra.mxu0 0
    %10681 = vmatpush.bf16.msra.mxu0 %v10609
    %10682 = vmatpush.bf16.msra.mxu0 %v10607
    %10683 = vmatpush.bf16.msra.mxu0 %v10605
    %10684 = vmatpush.bf16.msra.mxu0 %v10603
    %10685 = vmatmul.bf16.gmra.mxu0 %v10331
    %v10686 = vpop.f32.mrf.mxu0
    %v10687 = vadd.f32 %v10674, %v10686
    %v10688 = vpop.f32.mrf.mxu0
    %10689 = vdwg.mxu0
    %10690 = vmatpush.bf16.msra.mxu0 %v10586
    %10691 = vmatpush.bf16.msra.mxu0 %v10584
    %10692 = vmatpush.bf16.msra.mxu0 %v10582
    %10693 = vmatpush.bf16.msra.mxu0 %v10580
    %10694 = vmatpush.bf16.msra.mxu0 %v10578
    %10695 = vmatpush.bf16.msra.mxu0 %v10576
    %10696 = vmatpush.bf16.msra.mxu0 %v10574
    %10697 = vmatpush.bf16.msra.mxu0 %v10572
    %10698 = vmatmul.bf16.gmra.mxu0 %v10087
    %v10699 = vpop.f32.mrf.mxu0
    %v10700 = vadd.f32 0.0, %v10699
    %v10701 = vpop.f32.mrf.mxu0
    %10702 = vdwg.mxu0
    %10703 = vmatpush.bf16.msra.mxu0 %v10602
    %10704 = vmatpush.bf16.msra.mxu0 %v10600
    %10705 = vmatpush.bf16.msra.mxu0 %v10598
    %10706 = vmatpush.bf16.msra.mxu0 %v10596
    %10707 = vmatpush.bf16.msra.mxu0 %v10594
    %10708 = vmatpush.bf16.msra.mxu0 %v10592
    %10709 = vmatpush.bf16.msra.mxu0 %v10590
    %10710 = vmatpush.bf16.msra.mxu0 %v10588
    %10711 = vmatmul.bf16.gmra.mxu0 %v10088
    %v10712 = vpop.f32.mrf.mxu0
    %v10713 = vadd.f32 %v10700, %v10712
    %v10714 = vpop.f32.mrf.mxu0
    %10715 = vdwg.mxu0
    %10716 = vmatpush.bf16.msra.mxu0 0
    %10717 = vmatpush.bf16.msra.mxu0 0
    %10718 = vmatpush.bf16.msra.mxu0 0
    %10719 = vmatpush.bf16.msra.mxu0 0
    %10720 = vmatpush.bf16.msra.mxu0 %v10610
    %10721 = vmatpush.bf16.msra.mxu0 %v10608
    %10722 = vmatpush.bf16.msra.mxu0 %v10606
    %10723 = vmatpush.bf16.msra.mxu0 %v10604
    %10724 = vmatmul.bf16.gmra.mxu0 %v10331
    %v10725 = vpop.f32.mrf.mxu0
    %v10726 = vadd.f32 %v10713, %v10725
    %v10727 = vpop.f32.mrf.mxu0
    %10728 = vdwg.mxu0
    %v10729 = vmax.f32 %v10369, %v10687
    %v10730 = vmax.f32 %v10408, %v10726
    %v10731 = vpack.c.bf16 %v10729, %v10729
    %v10732 = vpack.c.bf16 %v10730, %v10730
    %v10733 = vld [vmem:[%s9] sm:$0xf]
    %v10734 = vld [vmem:[%s9 + $0x4] sm:$0xf]
    %v10735 = vld [vmem:[%s9 + $0x8] sm:$0xf]
    %v10736 = vld [vmem:[%s9 + $0xc] sm:$0xf]
    %v10737 = vld [vmem:[%s9 + $0x10] sm:$0xf]
    %v10738 = vld [vmem:[%s9 + $0x14] sm:$0xf]
    %v10739 = vld [vmem:[%s9 + $0x18] sm:$0xf]
    %v10740 = vld [vmem:[%s9 + $0x1c] sm:$0xf]
    %v10741 = vld [vmem:[%s9 + $0x20] sm:$0xf]
    %v10742 = vld [vmem:[%s9 + $0x24] sm:$0xf]
    %v10743 = vld [vmem:[%s9 + $0x28] sm:$0xf]
    %v10744 = vld [vmem:[%s9 + $0x2c] sm:$0xf]
    %v10745 = vld [vmem:[%s9 + $0x30] sm:$0xf]
    %v10746 = vld [vmem:[%s9 + $0x34] sm:$0xf]
    %v10747 = vld [vmem:[%s9 + $0x38] sm:$0xf]
    %v10748 = vld [vmem:[%s9 + $0x3c] sm:$0xf]
    %v10749 = vld [vmem:[%s9 + $0x40] sm:$0xf]
    %v10750 = vld [vmem:[%s9 + $0x44] sm:$0xf]
    %v10751 = vld [vmem:[%s9 + $0x48] sm:$0xf]
    %v10752 = vld [vmem:[%s9 + $0x4c] sm:$0xf]
    %v10753 = vld [vmem:[%s5058] sm:$0xf]
    %v10754 = vld [vmem:[%s5058 + $0x4] sm:$0xf]
    %v10755 = vld [vmem:[%s5058 + $0x8] sm:$0xf]
    %v10756 = vld [vmem:[%s5058 + $0xc] sm:$0xf]
    %v10757 = vld [vmem:[%s5058 + $0x10] sm:$0xf]
    %v10758 = vld [vmem:[%s5058 + $0x14] sm:$0xf]
    %v10759 = vld [vmem:[%s5058 + $0x18] sm:$0xf]
    %v10760 = vld [vmem:[%s5058 + $0x1c] sm:$0xf]
    %v10761 = vld [vmem:[%s5058 + $0x20] sm:$0xf]
    %v10762 = vld [vmem:[%s5058 + $0x24] sm:$0xf]
    %v10763 = vld [vmem:[%s5058 + $0x28] sm:$0xf]
    %v10764 = vld [vmem:[%s5058 + $0x2c] sm:$0xf]
    %v10765 = vld [vmem:[%s5058 + $0x30] sm:$0xf]
    %v10766 = vld [vmem:[%s5058 + $0x34] sm:$0xf]
    %v10767 = vld [vmem:[%s5058 + $0x38] sm:$0xf]
    %v10768 = vld [vmem:[%s5058 + $0x3c] sm:$0xf]
    %v10769 = vld [vmem:[%s5058 + $0x40] sm:$0xf]
    %v10770 = vld [vmem:[%s5058 + $0x44] sm:$0xf]
    %v10771 = vld [vmem:[%s5058 + $0x48] sm:$0xf]
    %v10772 = vld [vmem:[%s5058 + $0x4c] sm:$0xf]
    %v10774 = vshrl.u32 %v10731, 16
    %v10777 = vshrl.u32 %v10732, 16
    %v10800 = vunpack.c.l.b16 %v10753
    %v10801 = vunpack.c.l.b16 %v10754
    %v10802 = vunpack.c.l.b16 %v10755
    %v10803 = vunpack.c.l.b16 %v10756
    %v10804 = vunpack.c.l.b16 %v10757
    %v10805 = vunpack.c.l.b16 %v10758
    %v10806 = vunpack.c.l.b16 %v10759
    %v10807 = vunpack.c.l.b16 %v10760
    %v10808 = vunpack.c.l.b16 %v10761
    %v10809 = vunpack.c.l.b16 %v10762
    %v10810 = vunpack.c.l.b16 %v10763
    %v10811 = vunpack.c.l.b16 %v10764
    %v10812 = vunpack.c.l.b16 %v10765
    %v10813 = vunpack.c.l.b16 %v10766
    %v10814 = vunpack.c.l.b16 %v10767
    %v10815 = vunpack.c.l.b16 %v10768
    %v10816 = vunpack.c.l.b16 %v10769
    %v10817 = vunpack.c.l.b16 %v10770
    %v10818 = vunpack.c.l.b16 %v10771
    %v10819 = vunpack.c.l.b16 %v10772
    %v10820 = vpack.c.b16 %v10801, %v10800
    %v10821 = vpack.c.b16 %v10803, %v10802
    %v10822 = vpack.c.b16 %v10805, %v10804
    %v10823 = vpack.c.b16 %v10807, %v10806
    %v10824 = vpack.c.b16 %v10809, %v10808
    %v10825 = vpack.c.b16 %v10811, %v10810
    %v10826 = vpack.c.b16 %v10813, %v10812
    %v10827 = vpack.c.b16 %v10815, %v10814
    %v10828 = vpack.c.b16 %v10817, %v10816
    %v10829 = vpack.c.b16 %v10819, %v10818
    %v10841 = vsel %vm5146, %v10777, 0
    %10843 = vmatpush.bf16.msra.mxu0 %v10827
    %10844 = vmatpush.bf16.msra.mxu0 %v10826
    %10845 = vmatpush.bf16.msra.mxu0 %v10825
    %10846 = vmatpush.bf16.msra.mxu0 %v10824
    %10847 = vmatpush.bf16.msra.mxu0 %v10823
    %10848 = vmatpush.bf16.msra.mxu0 %v10822
    %10849 = vmatpush.bf16.msra.mxu0 %v10821
    %10850 = vmatpush.bf16.msra.mxu0 %v10820
    %10851 = vmatmul.bf16.gmra.mxu0 %v10774
    %v10852 = vpop.f32.mrf.mxu0
    %v10853 = vadd.f32 0.0, %v10852
    %v10854 = vpop.f32.mrf.mxu0
    %10855 = vdwg.mxu0
    %10856 = vmatpush.bf16.msra.mxu0 0
    %10857 = vmatpush.bf16.msra.mxu0 0
    %10858 = vmatpush.bf16.msra.mxu0 0
    %10859 = vmatpush.bf16.msra.mxu0 0
    %10860 = vmatpush.bf16.msra.mxu0 0
    %10861 = vmatpush.bf16.msra.mxu0 0
    %10862 = vmatpush.bf16.msra.mxu0 %v10829
    %10863 = vmatpush.bf16.msra.mxu0 %v10828
    %10864 = vmatmul.bf16.gmra.mxu0 %v10841
    %v10865 = vpop.f32.mrf.mxu0
    %v10866 = vadd.f32 %v10853, %v10865
    %v10867 = vpop.f32.mrf.mxu0
    %10868 = vdwg.mxu0
    %v10889 = vunpack.c.l.b16 %v10733
    %v10890 = vunpack.c.l.b16 %v10734
    %v10891 = vunpack.c.l.b16 %v10735
    %v10892 = vunpack.c.l.b16 %v10736
    %v10893 = vunpack.c.l.b16 %v10737
    %v10894 = vunpack.c.l.b16 %v10738
    %v10895 = vunpack.c.l.b16 %v10739
    %v10896 = vunpack.c.l.b16 %v10740
    %v10897 = vunpack.c.l.b16 %v10741
    %v10898 = vunpack.c.l.b16 %v10742
    %v10899 = vunpack.c.l.b16 %v10743
    %v10900 = vunpack.c.l.b16 %v10744
    %v10901 = vunpack.c.l.b16 %v10745
    %v10902 = vunpack.c.l.b16 %v10746
    %v10903 = vunpack.c.l.b16 %v10747
    %v10904 = vunpack.c.l.b16 %v10748
    %v10905 = vunpack.c.l.b16 %v10749
    %v10906 = vunpack.c.l.b16 %v10750
    %v10907 = vunpack.c.l.b16 %v10751
    %v10908 = vunpack.c.l.b16 %v10752
    %v10909 = vpack.c.b16 %v10890, %v10889
    %v10910 = vpack.c.b16 %v10892, %v10891
    %v10911 = vpack.c.b16 %v10894, %v10893
    %v10912 = vpack.c.b16 %v10896, %v10895
    %v10913 = vpack.c.b16 %v10898, %v10897
    %v10914 = vpack.c.b16 %v10900, %v10899
    %v10915 = vpack.c.b16 %v10902, %v10901
    %v10916 = vpack.c.b16 %v10904, %v10903
    %v10917 = vpack.c.b16 %v10906, %v10905
    %v10918 = vpack.c.b16 %v10908, %v10907
    %v10929 = vsel %vm5146, %v10732, 0
    %10931 = vmatpush.bf16.msra.mxu0 %v10916
    %10932 = vmatpush.bf16.msra.mxu0 %v10915
    %10933 = vmatpush.bf16.msra.mxu0 %v10914
    %10934 = vmatpush.bf16.msra.mxu0 %v10913
    %10935 = vmatpush.bf16.msra.mxu0 %v10912
    %10936 = vmatpush.bf16.msra.mxu0 %v10911
    %10937 = vmatpush.bf16.msra.mxu0 %v10910
    %10938 = vmatpush.bf16.msra.mxu0 %v10909
    %10939 = vmatmul.bf16.gmra.mxu0 %v10731
    %v10940 = vpop.f32.mrf.mxu0
    %v10941 = vadd.f32 %v10866, %v10940
    %v10942 = vpop.f32.mrf.mxu0
    %10943 = vdwg.mxu0
    %10944 = vmatpush.bf16.msra.mxu0 0
    %10945 = vmatpush.bf16.msra.mxu0 0
    %10946 = vmatpush.bf16.msra.mxu0 0
    %10947 = vmatpush.bf16.msra.mxu0 0
    %10948 = vmatpush.bf16.msra.mxu0 0
    %10949 = vmatpush.bf16.msra.mxu0 0
    %10950 = vmatpush.bf16.msra.mxu0 %v10918
    %10951 = vmatpush.bf16.msra.mxu0 %v10917
    %10952 = vmatmul.bf16.gmra.mxu0 %v10929
    %v10953 = vpop.f32.mrf.mxu0
    %v10954 = vadd.f32 %v10941, %v10953
    %v10955 = vpop.f32.mrf.mxu0
    %10956 = vdwg.mxu0
    %v10957 = vld [vmem:[%s5264] sm:$0xf]
    %v10958 = vld [vmem:[%s5264 + $0x4] sm:$0xf]
    %v10959 = vld [vmem:[%s5264 + $0x8] sm:$0xf]
    %v10960 = vld [vmem:[%s5264 + $0xc] sm:$0xf]
    %v10961 = vld [vmem:[%s5264 + $0x10] sm:$0xf]
    %v10962 = vld [vmem:[%s5264 + $0x14] sm:$0xf]
    %v10963 = vld [vmem:[%s5264 + $0x18] sm:$0xf]
    %v10964 = vld [vmem:[%s5264 + $0x1c] sm:$0xf]
    %v10965 = vld [vmem:[%s5264 + $0x20] sm:$0xf]
    %v10966 = vld [vmem:[%s5264 + $0x24] sm:$0xf]
    %v10967 = vld [vmem:[%s5264 + $0x28] sm:$0xf]
    %v10968 = vld [vmem:[%s5264 + $0x2c] sm:$0xf]
    %v10969 = vld [vmem:[%s5264 + $0x30] sm:$0xf]
    %v10970 = vld [vmem:[%s5264 + $0x34] sm:$0xf]
    %v10971 = vld [vmem:[%s5264 + $0x38] sm:$0xf]
    %v10972 = vld [vmem:[%s5264 + $0x3c] sm:$0xf]
    %v10973 = vld [vmem:[%s5264 + $0x40] sm:$0xf]
    %v10974 = vld [vmem:[%s5264 + $0x44] sm:$0xf]
    %v10975 = vld [vmem:[%s5264 + $0x48] sm:$0xf]
    %v10976 = vld [vmem:[%s5264 + $0x4c] sm:$0xf]
    %v10979 = vrot.slane %v10731, 1
    %v10980 = vrot.slane %v10732, 1
    %v11002 = vunpack.c.l.b16 %v10957
    %v11003 = vunpack.c.l.b16 %v10958
    %v11004 = vunpack.c.l.b16 %v10959
    %v11005 = vunpack.c.l.b16 %v10960
    %v11006 = vunpack.c.l.b16 %v10961
    %v11007 = vunpack.c.l.b16 %v10962
    %v11008 = vunpack.c.l.b16 %v10963
    %v11009 = vunpack.c.l.b16 %v10964
    %v11010 = vunpack.c.l.b16 %v10965
    %v11011 = vunpack.c.l.b16 %v10966
    %v11012 = vunpack.c.l.b16 %v10967
    %v11013 = vunpack.c.l.b16 %v10968
    %v11014 = vunpack.c.l.b16 %v10969
    %v11015 = vunpack.c.l.b16 %v10970
    %v11016 = vunpack.c.l.b16 %v10971
    %v11017 = vunpack.c.l.b16 %v10972
    %v11018 = vunpack.c.l.b16 %v10973
    %v11019 = vunpack.c.l.b16 %v10974
    %v11020 = vunpack.c.l.b16 %v10975
    %v11021 = vunpack.c.l.b16 %v10976
    %v11022 = vpack.c.b16 %v11003, %v11002
    %v11023 = vpack.c.b16 %v11005, %v11004
    %v11024 = vpack.c.b16 %v11007, %v11006
    %v11025 = vpack.c.b16 %v11009, %v11008
    %v11026 = vpack.c.b16 %v11011, %v11010
    %v11027 = vpack.c.b16 %v11013, %v11012
    %v11028 = vpack.c.b16 %v11015, %v11014
    %v11029 = vpack.c.b16 %v11017, %v11016
    %v11030 = vpack.c.b16 %v11019, %v11018
    %v11031 = vpack.c.b16 %v11021, %v11020
    %v11043 = vsel %vm5146, %v10980, 0
    %11045 = vmatpush.bf16.msra.mxu0 %v11029
    %11046 = vmatpush.bf16.msra.mxu0 %v11028
    %11047 = vmatpush.bf16.msra.mxu0 %v11027
    %11048 = vmatpush.bf16.msra.mxu0 %v11026
    %11049 = vmatpush.bf16.msra.mxu0 %v11025
    %11050 = vmatpush.bf16.msra.mxu0 %v11024
    %11051 = vmatpush.bf16.msra.mxu0 %v11023
    %11052 = vmatpush.bf16.msra.mxu0 %v11022
    %11053 = vmatmul.bf16.gmra.mxu0 %v10979
    %v11054 = vpop.f32.mrf.mxu0
    %v11055 = vadd.f32 0.0, %v11054
    %v11056 = vpop.f32.mrf.mxu0
    %11057 = vdwg.mxu0
    %11058 = vmatpush.bf16.msra.mxu0 0
    %11059 = vmatpush.bf16.msra.mxu0 0
    %11060 = vmatpush.bf16.msra.mxu0 0
    %11061 = vmatpush.bf16.msra.mxu0 0
    %11062 = vmatpush.bf16.msra.mxu0 0
    %11063 = vmatpush.bf16.msra.mxu0 0
    %11064 = vmatpush.bf16.msra.mxu0 %v11031
    %11065 = vmatpush.bf16.msra.mxu0 %v11030
    %11066 = vmatmul.bf16.gmra.mxu0 %v11043
    %v11067 = vpop.f32.mrf.mxu0
    %v11068 = vadd.f32 %v11055, %v11067
    %v11069 = vpop.f32.mrf.mxu0
    %11070 = vdwg.mxu0
    %v11071 = vadd.f32 %v10954, %v11068
    %v11072 = vld [vmem:[%s5380] sm:$0xf]
    %v11073 = vld [vmem:[%s5380 + $0x4] sm:$0xf]
    %v11074 = vld [vmem:[%s5380 + $0x8] sm:$0xf]
    %v11075 = vld [vmem:[%s5380 + $0xc] sm:$0xf]
    %v11076 = vld [vmem:[%s5380 + $0x10] sm:$0xf]
    %v11077 = vld [vmem:[%s5380 + $0x14] sm:$0xf]
    %v11078 = vld [vmem:[%s5380 + $0x18] sm:$0xf]
    %v11079 = vld [vmem:[%s5380 + $0x1c] sm:$0xf]
    %v11080 = vld [vmem:[%s5380 + $0x20] sm:$0xf]
    %v11081 = vld [vmem:[%s5380 + $0x24] sm:$0xf]
    %v11082 = vld [vmem:[%s5380 + $0x28] sm:$0xf]
    %v11083 = vld [vmem:[%s5380 + $0x2c] sm:$0xf]
    %v11084 = vld [vmem:[%s5380 + $0x30] sm:$0xf]
    %v11085 = vld [vmem:[%s5380 + $0x34] sm:$0xf]
    %v11086 = vld [vmem:[%s5380 + $0x38] sm:$0xf]
    %v11087 = vld [vmem:[%s5380 + $0x3c] sm:$0xf]
    %v11088 = vld [vmem:[%s5380 + $0x40] sm:$0xf]
    %v11089 = vld [vmem:[%s5380 + $0x44] sm:$0xf]
    %v11090 = vld [vmem:[%s5380 + $0x48] sm:$0xf]
    %v11091 = vld [vmem:[%s5380 + $0x4c] sm:$0xf]
    %v11092 = vrot.slane %v10774, 1
    %v11093 = vrot.slane %v10777, 1
    %v11115 = vunpack.c.l.b16 %v11072
    %v11116 = vunpack.c.l.b16 %v11073
    %v11117 = vunpack.c.l.b16 %v11074
    %v11118 = vunpack.c.l.b16 %v11075
    %v11119 = vunpack.c.l.b16 %v11076
    %v11120 = vunpack.c.l.b16 %v11077
    %v11121 = vunpack.c.l.b16 %v11078
    %v11122 = vunpack.c.l.b16 %v11079
    %v11123 = vunpack.c.l.b16 %v11080
    %v11124 = vunpack.c.l.b16 %v11081
    %v11125 = vunpack.c.l.b16 %v11082
    %v11126 = vunpack.c.l.b16 %v11083
    %v11127 = vunpack.c.l.b16 %v11084
    %v11128 = vunpack.c.l.b16 %v11085
    %v11129 = vunpack.c.l.b16 %v11086
    %v11130 = vunpack.c.l.b16 %v11087
    %v11131 = vunpack.c.l.b16 %v11088
    %v11132 = vunpack.c.l.b16 %v11089
    %v11133 = vunpack.c.l.b16 %v11090
    %v11134 = vunpack.c.l.b16 %v11091
    %v11135 = vpack.c.b16 %v11116, %v11115
    %v11136 = vpack.c.b16 %v11118, %v11117
    %v11137 = vpack.c.b16 %v11120, %v11119
    %v11138 = vpack.c.b16 %v11122, %v11121
    %v11139 = vpack.c.b16 %v11124, %v11123
    %v11140 = vpack.c.b16 %v11126, %v11125
    %v11141 = vpack.c.b16 %v11128, %v11127
    %v11142 = vpack.c.b16 %v11130, %v11129
    %v11143 = vpack.c.b16 %v11132, %v11131
    %v11144 = vpack.c.b16 %v11134, %v11133
    %v11156 = vsel %vm5146, %v11093, 0
    %11158 = vmatpush.bf16.msra.mxu0 %v11142
    %11159 = vmatpush.bf16.msra.mxu0 %v11141
    %11160 = vmatpush.bf16.msra.mxu0 %v11140
    %11161 = vmatpush.bf16.msra.mxu0 %v11139
    %11162 = vmatpush.bf16.msra.mxu0 %v11138
    %11163 = vmatpush.bf16.msra.mxu0 %v11137
    %11164 = vmatpush.bf16.msra.mxu0 %v11136
    %11165 = vmatpush.bf16.msra.mxu0 %v11135
    %11166 = vmatmul.bf16.gmra.mxu0 %v11092
    %v11167 = vpop.f32.mrf.mxu0
    %v11168 = vadd.f32 0.0, %v11167
    %v11169 = vpop.f32.mrf.mxu0
    %11170 = vdwg.mxu0
    %11171 = vmatpush.bf16.msra.mxu0 0
    %11172 = vmatpush.bf16.msra.mxu0 0
    %11173 = vmatpush.bf16.msra.mxu0 0
    %11174 = vmatpush.bf16.msra.mxu0 0
    %11175 = vmatpush.bf16.msra.mxu0 0
    %11176 = vmatpush.bf16.msra.mxu0 0
    %11177 = vmatpush.bf16.msra.mxu0 %v11144
    %11178 = vmatpush.bf16.msra.mxu0 %v11143
    %11179 = vmatmul.bf16.gmra.mxu0 %v11156
    %v11180 = vpop.f32.mrf.mxu0
    %v11181 = vadd.f32 %v11168, %v11180
    %v11182 = vpop.f32.mrf.mxu0
    %11183 = vdwg.mxu0
    %v11184 = vadd.f32 %v11071, %v11181
    %v11185 = vld [vmem:[%s5494] sm:$0xf]
    %v11186 = vld [vmem:[%s5494 + $0x4] sm:$0xf]
    %v11187 = vld [vmem:[%s5494 + $0x8] sm:$0xf]
    %v11188 = vld [vmem:[%s5494 + $0xc] sm:$0xf]
    %v11189 = vld [vmem:[%s5494 + $0x10] sm:$0xf]
    %v11190 = vld [vmem:[%s5494 + $0x14] sm:$0xf]
    %v11191 = vld [vmem:[%s5494 + $0x18] sm:$0xf]
    %v11192 = vld [vmem:[%s5494 + $0x1c] sm:$0xf]
    %v11193 = vld [vmem:[%s5494 + $0x20] sm:$0xf]
    %v11194 = vld [vmem:[%s5494 + $0x24] sm:$0xf]
    %v11195 = vld [vmem:[%s5494 + $0x28] sm:$0xf]
    %v11196 = vld [vmem:[%s5494 + $0x2c] sm:$0xf]
    %v11197 = vld [vmem:[%s5494 + $0x30] sm:$0xf]
    %v11198 = vld [vmem:[%s5494 + $0x34] sm:$0xf]
    %v11199 = vld [vmem:[%s5494 + $0x38] sm:$0xf]
    %v11200 = vld [vmem:[%s5494 + $0x3c] sm:$0xf]
    %v11201 = vld [vmem:[%s5494 + $0x40] sm:$0xf]
    %v11202 = vld [vmem:[%s5494 + $0x44] sm:$0xf]
    %v11203 = vld [vmem:[%s5494 + $0x48] sm:$0xf]
    %v11204 = vld [vmem:[%s5494 + $0x4c] sm:$0xf]
    %v11205 = vrot.slane %v10731, 2
    %v11206 = vrot.slane %v10732, 2
    %v11228 = vunpack.c.l.b16 %v11185
    %v11229 = vunpack.c.l.b16 %v11186
    %v11230 = vunpack.c.l.b16 %v11187
    %v11231 = vunpack.c.l.b16 %v11188
    %v11232 = vunpack.c.l.b16 %v11189
    %v11233 = vunpack.c.l.b16 %v11190
    %v11234 = vunpack.c.l.b16 %v11191
    %v11235 = vunpack.c.l.b16 %v11192
    %v11236 = vunpack.c.l.b16 %v11193
    %v11237 = vunpack.c.l.b16 %v11194
    %v11238 = vunpack.c.l.b16 %v11195
    %v11239 = vunpack.c.l.b16 %v11196
    %v11240 = vunpack.c.l.b16 %v11197
    %v11241 = vunpack.c.l.b16 %v11198
    %v11242 = vunpack.c.l.b16 %v11199
    %v11243 = vunpack.c.l.b16 %v11200
    %v11244 = vunpack.c.l.b16 %v11201
    %v11245 = vunpack.c.l.b16 %v11202
    %v11246 = vunpack.c.l.b16 %v11203
    %v11247 = vunpack.c.l.b16 %v11204
    %v11248 = vpack.c.b16 %v11229, %v11228
    %v11249 = vpack.c.b16 %v11231, %v11230
    %v11250 = vpack.c.b16 %v11233, %v11232
    %v11251 = vpack.c.b16 %v11235, %v11234
    %v11252 = vpack.c.b16 %v11237, %v11236
    %v11253 = vpack.c.b16 %v11239, %v11238
    %v11254 = vpack.c.b16 %v11241, %v11240
    %v11255 = vpack.c.b16 %v11243, %v11242
    %v11256 = vpack.c.b16 %v11245, %v11244
    %v11257 = vpack.c.b16 %v11247, %v11246
    %v11269 = vsel %vm5146, %v11206, 0
    %11271 = vmatpush.bf16.msra.mxu0 %v11255
    %11272 = vmatpush.bf16.msra.mxu0 %v11254
    %11273 = vmatpush.bf16.msra.mxu0 %v11253
    %11274 = vmatpush.bf16.msra.mxu0 %v11252
    %11275 = vmatpush.bf16.msra.mxu0 %v11251
    %11276 = vmatpush.bf16.msra.mxu0 %v11250
    %11277 = vmatpush.bf16.msra.mxu0 %v11249
    %11278 = vmatpush.bf16.msra.mxu0 %v11248
    %11279 = vmatmul.bf16.gmra.mxu0 %v11205
    %v11280 = vpop.f32.mrf.mxu0
    %v11281 = vadd.f32 0.0, %v11280
    %v11282 = vpop.f32.mrf.mxu0
    %11283 = vdwg.mxu0
    %11284 = vmatpush.bf16.msra.mxu0 0
    %11285 = vmatpush.bf16.msra.mxu0 0
    %11286 = vmatpush.bf16.msra.mxu0 0
    %11287 = vmatpush.bf16.msra.mxu0 0
    %11288 = vmatpush.bf16.msra.mxu0 0
    %11289 = vmatpush.bf16.msra.mxu0 0
    %11290 = vmatpush.bf16.msra.mxu0 %v11257
    %11291 = vmatpush.bf16.msra.mxu0 %v11256
    %11292 = vmatmul.bf16.gmra.mxu0 %v11269
    %v11293 = vpop.f32.mrf.mxu0
    %v11294 = vadd.f32 %v11281, %v11293
    %v11295 = vpop.f32.mrf.mxu0
    %11296 = vdwg.mxu0
    %v11297 = vadd.f32 %v11184, %v11294
    %v11298 = vld [vmem:[%s10] sm:$0x1]
    %v11299 = vadd.f32 %v11297, %v11298
    %v11300 = vmax.f32 %v11299, 0.0
    %v11301 = vpack.c.bf16 %v11300, %v11300
    %v11302 = vld [vmem:[%s11] sm:$0xf]
    %v11303 = vld [vmem:[%s11 + $0x4] sm:$0xf]
    %v11304 = vld [vmem:[%s11 + $0x8] sm:$0xf]
    %v11305 = vld [vmem:[%s11 + $0xc] sm:$0xf]
    %v11306 = vld [vmem:[%s11 + $0x10] sm:$0xf]
    %v11307 = vld [vmem:[%s11 + $0x14] sm:$0xf]
    %v11308 = vld [vmem:[%s11 + $0x18] sm:$0xf]
    %v11309 = vld [vmem:[%s11 + $0x1c] sm:$0xf]
    %v11310 = vld [vmem:[%s11 + $0x20] sm:$0xf]
    %v11311 = vld [vmem:[%s11 + $0x24] sm:$0xf]
    %v11312 = vld [vmem:[%s11 + $0x28] sm:$0xf]
    %v11313 = vld [vmem:[%s11 + $0x2c] sm:$0xf]
    %v11314 = vld [vmem:[%s11 + $0x30] sm:$0xf]
    %v11315 = vld [vmem:[%s11 + $0x34] sm:$0xf]
    %v11316 = vld [vmem:[%s11 + $0x38] sm:$0xf]
    %v11317 = vld [vmem:[%s12] sm:$0x1]
    %v11333 = vunpack.c.l.b16 %v11302
    %v11334 = vunpack.c.l.b16 %v11303
    %v11335 = vunpack.c.l.b16 %v11304
    %v11336 = vunpack.c.l.b16 %v11305
    %v11337 = vunpack.c.l.b16 %v11306
    %v11338 = vunpack.c.l.b16 %v11307
    %v11339 = vunpack.c.l.b16 %v11308
    %v11340 = vunpack.c.l.b16 %v11309
    %v11341 = vunpack.c.l.b16 %v11310
    %v11342 = vunpack.c.l.b16 %v11311
    %v11343 = vunpack.c.l.b16 %v11312
    %v11344 = vunpack.c.l.b16 %v11313
    %v11345 = vunpack.c.l.b16 %v11314
    %v11346 = vunpack.c.l.b16 %v11315
    %v11347 = vunpack.c.l.b16 %v11316
    %v11348 = vpack.c.b16 %v11334, %v11333
    %v11349 = vpack.c.b16 %v11336, %v11335
    %v11350 = vpack.c.b16 %v11338, %v11337
    %v11351 = vpack.c.b16 %v11340, %v11339
    %v11352 = vpack.c.b16 %v11342, %v11341
    %v11353 = vpack.c.b16 %v11344, %v11343
    %v11354 = vpack.c.b16 %v11346, %v11345
    %v11355 = vpack.c.b16 %v11347, %v11347
    %v11364 = vsel %vm5673, %v11301, 0
    %v11367 = vsel %vm5677, %v11355, 0
    %11369 = vmatpush.bf16.msra.mxu0 %v11367
    %11370 = vmatpush.bf16.msra.mxu0 %v11354
    %11371 = vmatpush.bf16.msra.mxu0 %v11353
    %11372 = vmatpush.bf16.msra.mxu0 %v11352
    %11373 = vmatpush.bf16.msra.mxu0 %v11351
    %11374 = vmatpush.bf16.msra.mxu0 %v11350
    %11375 = vmatpush.bf16.msra.mxu0 %v11349
    %11376 = vmatpush.bf16.msra.mxu0 %v11348
    %11377 = vmatmul.bf16.gmra.mxu0 %v11364
    %v11378 = vpop.f32.mrf.mxu0
    %v11379 = vadd.f32 %v11317, %v11378
    %v11380 = vpop.f32.mrf.mxu0
    %11381 = vdwg.mxu0
    %v11382 = vmax.f32 %v11379, 0.0
    %v11383 = vpack.c.bf16 %v11382, %v11382
    %v11384 = vld [vmem:[%s13] sm:$0xf]
    %v11385 = vld [vmem:[%s13 + $0x4] sm:$0xf]
    %v11386 = vld [vmem:[%s13 + $0x8] sm:$0xf]
    %v11387 = vld [vmem:[%s13 + $0xc] sm:$0xf]
    %v11388 = vld [vmem:[%s13 + $0x10] sm:$0xf]
    %v11389 = vld [vmem:[%s13 + $0x14] sm:$0xf]
    %v11390 = vld [vmem:[%s13 + $0x18] sm:$0xf]
    %v11391 = vld [vmem:[%s13 + $0x1c] sm:$0xf]
    %v11392 = vld [vmem:[%s13 + $0x20] sm:$0xf]
    %v11393 = vld [vmem:[%s13 + $0x24] sm:$0xf]
    %v11394 = vld [vmem:[%s13 + $0x28] sm:$0x3]
    %v11395 = vld [vmem:[%s14] sm:$0x1]
    %v11407 = vunpack.c.l.b16 %v11384
    %v11408 = vunpack.c.l.b16 %v11385
    %v11409 = vunpack.c.l.b16 %v11386
    %v11410 = vunpack.c.l.b16 %v11387
    %v11411 = vunpack.c.l.b16 %v11388
    %v11412 = vunpack.c.l.b16 %v11389
    %v11413 = vunpack.c.l.b16 %v11390
    %v11414 = vunpack.c.l.b16 %v11391
    %v11415 = vunpack.c.l.b16 %v11392
    %v11416 = vunpack.c.l.b16 %v11393
    %v11417 = vunpack.c.l.b16 %v11394
    %v11418 = vpack.c.b16 %v11408, %v11407
    %v11419 = vpack.c.b16 %v11410, %v11409
    %v11420 = vpack.c.b16 %v11412, %v11411
    %v11421 = vpack.c.b16 %v11414, %v11413
    %v11422 = vpack.c.b16 %v11416, %v11415
    %v11423 = vpack.c.b16 %v11417, %v11417
    %v11430 = vsel %vm5741, %v11383, 0
    %v11433 = vsel %vm5745, %v11423, 0
    %11435 = vmatpush.bf16.msra.mxu0 0
    %11436 = vmatpush.bf16.msra.mxu0 0
    %11437 = vmatpush.bf16.msra.mxu0 %v11433
    %11438 = vmatpush.bf16.msra.mxu0 %v11422
    %11439 = vmatpush.bf16.msra.mxu0 %v11421
    %11440 = vmatpush.bf16.msra.mxu0 %v11420
    %11441 = vmatpush.bf16.msra.mxu0 %v11419
    %11442 = vmatpush.bf16.msra.mxu0 %v11418
    %11443 = vmatmul.bf16.gmra.mxu0 %v11430
    %v11444 = vpop.f32.mrf.mxu0
    %v11445 = vadd.f32 %v11395, %v11444
    %v11446 = vpop.f32.mrf.mxu0
    %11447 = vdwg.mxu0
    %11448 = vst.msk [vmem:[#allocation2 + $0x1] sm:$0x1] %vm5762, %v11445
    // Predicated region
    $region62: #{basic_cnn_forward.1} parent=1 // pred_check
      _
    $region63: #{basic_cnn_forward.1} parent=1 // pred_check_branch
      %11450 = sbr.rel (0) target = $region65
    $region64: #{basic_cnn_forward.1} parent=1 // pred_region
      %11452 = vsyncadd [#allocation3], 0
      %s11454 = sshll.u32 [#allocation2], 4
      %s11455 = int_to_ptr.vmem [resolvable:$true] %s11454
      %s11456 = sshll.u32 %s15, 4
      %s11457 = int_to_ptr.hbm [resolvable:$true] %s11456
      %11459 = dma.vmem_to_hbm [thread:$0]  %s11455, 32, %s11457, [#allocation3]
    $region65: #{basic_cnn_forward.1} parent=1 // pred_fallthru
      _
    // Predicated region
    $region66: #{basic_cnn_forward.1} parent=1 // pred_check
      _
    $region67: #{basic_cnn_forward.1} parent=1 // pred_check_branch
      %11461 = sbr.rel (0) target = $region69
    $region68: #{basic_cnn_forward.1} parent=1 // pred_region
      %11463 = dma.done [#allocation3], 32
    $region69: #{basic_cnn_forward.1} parent=1 // pred_fallthru
      _
    %11464 = vsyncpa [#allocation3], 1

</llo_original>
